<compile_context>
chip_gen: v6e
topology: v6e:2x2x1
jax: 0.10.0
libtpu: 0.0.40
codegen_flags: <defaults>
</compile_context>

<pallas_src>
import jax
import jax.numpy as jnp
import numpy as np
from jax.experimental import pallas as pl
from jax.experimental.pallas import tpu as pltpu


# --------------------------------------------------------------------------
# Kernel factory (closes over static S, B, Hp).
# --------------------------------------------------------------------------
def _make_kernel(S, B, Hp):
    G4 = 4 * Hp
    G8 = 8 * Hp

    def kernel(
        x_ref,        # (S*B, I)   time-major rows: row s*B + b  = x[b, s, :]
        w_ih_l_ref,   # (I, 4Hp)   LSTM input weights, gate-padded
        b_l_ref,      # (1, 4Hp)   LSTM bias (b_ih + b_hh), gate-padded
        w_fused_ref,  # (2Hp, 8Hp) fused per-step weight: [GRU sums | LSTM rec gates]
        b_fused_ref,  # (1, 8Hp)   GRU bias in first 4 groups, zero in LSTM groups
        w_lin_ref,    # (Hp, Op)
        b_lin_ref,    # (1, Op)
        out_ref,      # (B, Op)
        hh_ref,       # VMEM scratch (B, 2Hp): [h_lstm | h_gru] recurrent state
    ):
        # ---- Phase 1: non-recurrent LSTM input projection as ONE MXU dot over all
        # S*B rows (bias folded in).  Kept vreg-resident; no scratch round-trip.
        gx = jnp.dot(x_ref[...], w_ih_l_ref[...],
                     preferred_element_type=jnp.float32) + b_l_ref[...]

        # Small hoist only: broadcast biases once.  Weights are NOT hoisted as
        # values; refs are read per dot so the MXU streams them from VMEM.
        b_fused = jnp.broadcast_to(b_fused_ref[...], (B, G8))

        def lstm_cell(gates, c_prev):
            i_g = jax.nn.sigmoid(gates[:, 0 * Hp:1 * Hp])
            f_g = jax.nn.sigmoid(gates[:, 1 * Hp:2 * Hp])
            g_g = jnp.tanh(gates[:, 2 * Hp:3 * Hp])
            o_g = jax.nn.sigmoid(gates[:, 3 * Hp:4 * Hp])
            c_new = f_g * c_prev + i_g * g_g
            return o_g * jnp.tanh(c_new), c_new

        def gru_cell(sums, h_prev):
            r = jax.nn.sigmoid(sums[:, 0 * Hp:1 * Hp])
            z = jax.nn.sigmoid(sums[:, 1 * Hp:2 * Hp])
            n = jnp.tanh(sums[:, 2 * Hp:3 * Hp] + r * sums[:, 3 * Hp:4 * Hp])
            return (1.0 - z) * n + z * h_prev

        hh_ref[...] = jnp.zeros((B, 2 * Hp), jnp.float32)
        c_l = jnp.zeros((B, Hp), jnp.float32)
        h_g = jnp.zeros((B, Hp), jnp.float32)
        rec = jnp.zeros((B, G4), jnp.float32)      # h_lstm(t-1) @ W_hh  (zero at t=0)

        # ---- Steps 0..S-2: ONE fused MXU dot per step:
        #   [h_lstm(t) | h_gru(t-1)] (B,2Hp) @ W_fused (2Hp,8Hp)
        #     -> [ GRU sums for step t | LSTM recurrent gates for step t+1 ]
        # S is small & static here -> Python loop == full unroll with static slices.
        for t in range(S - 1):
            h_l, c_l = lstm_cell(gx[t * B:(t + 1) * B, :] + rec, c_l)
            hh_ref[:, 0:Hp] = h_l                      # update h_lstm half in place
            fused = jnp.dot(hh_ref[...], w_fused_ref[...],
                            preferred_element_type=jnp.float32) + b_fused
            h_g = gru_cell(fused[:, 0:G4], h_g)
            rec = fused[:, G4:G8]
            hh_ref[:, Hp:2 * Hp] = h_g                 # update h_gru half in place

        # ---- Epilogue (t = S-1): no recurrent gates needed past the sequence, so
        # only the GRU half of the fused weight is contracted.
        h_l, c_l = lstm_cell(gx[(S - 1) * B:S * B, :] + rec, c_l)
        hh_ref[:, 0:Hp] = h_l
        gru_sums = jnp.dot(hh_ref[...], w_fused_ref[:, 0:G4],
                           preferred_element_type=jnp.float32) + b_fused[:, 0:G4]
        h_g = gru_cell(gru_sums, h_g)

        # ---- Final Linear on the last GRU hidden state (lane-dense 128-wide store).
        out_ref[...] = jnp.dot(h_g, w_lin_ref[...],
                               preferred_element_type=jnp.float32) + b_lin_ref[...]

    return kernel


# --------------------------------------------------------------------------
# Wrapper
# --------------------------------------------------------------------------
def multisensor_lstm_gru(x, kp, out_size):
    """x: (B, S, I) float32, batch_first like the PyTorch module."""
    B, S, I = x.shape
    Hp = kp["w_lin"].shape[0]
    Op = kp["w_lin"].shape[1]

    # time-major 2-D view: row s*B + b == x[b, s, :]
    x2d = jnp.transpose(x, (1, 0, 2)).reshape(S * B, I)

    full = lambda a: pl.BlockSpec(a.shape, lambda i: (0,) * a.ndim)

    out_padded = pl.pallas_call(
        _make_kernel(S, B, Hp),
        out_shape=jax.ShapeDtypeStruct((B, Op), jnp.float32),
        grid=(1,),                               # single grid step; recurrence in-kernel
        in_specs=[
            pl.BlockSpec((S * B, I), lambda i: (0, 0)),
            full(kp["w_ih_l"]), full(kp["b_l"]),
            full(kp["w_fused"]), full(kp["b_fused"]),
            full(kp["w_lin"]), full(kp["b_lin"]),
        ],
        out_specs=pl.BlockSpec((B, Op), lambda i: (0, 0)),
        scratch_shapes=[pltpu.VMEM((B, 2 * Hp), jnp.float32)],
        compiler_params=pltpu.CompilerParams(
            dimension_semantics=("arbitrary",)),
    )(
        x2d,
        kp["w_ih_l"], kp["b_l"],
        kp["w_fused"], kp["b_fused"],
        kp["w_lin"], kp["b_lin"],
    )
    return out_padded[:, :out_size]


# --------------------------------------------------------------------------
# Parameters: PyTorch-layout init + packing into the padded/fused kernel layout.
# --------------------------------------------------------------------------
def init_params(key, I, H, O):
    """PyTorch-style U(-1/sqrt(H), 1/sqrt(H)), PyTorch weight layouts."""
    k = 1.0 / np.sqrt(H)
    keys = jax.random.split(key, 10)
    u = lambda kk, shape: jax.random.uniform(kk, shape, jnp.float32, -k, k)
    return {
        "w_ih_l0": u(keys[0], (4 * H, I)),   # LSTM, gate order i,f,g,o
        "w_hh_l0": u(keys[1], (4 * H, H)),
        "b_ih_l0": u(keys[2], (4 * H,)),
        "b_hh_l0": u(keys[3], (4 * H,)),
        "w_ih_g0": u(keys[4], (3 * H, H)),   # GRU, gate order r,z,n
        "w_hh_g0": u(keys[5], (3 * H, H)),
        "b_ih_g0": u(keys[6], (3 * H,)),
        "b_hh_g0": u(keys[7], (3 * H,)),
        "w_lin":   u(keys[8], (O, H)),
        "b_lin":   u(keys[9], (O,)),
    }


def prepare_kernel_params(p, H, Hp, O, Op):
    """Transpose, lane-pad each gate group to Hp, and build the fused per-step weight."""
    f32 = jnp.float32

    def pad_gate_cols(wT, n_gates):
        # wT: (K, n_gates*H) -> (K, n_gates*Hp), each gate block lane-padded to Hp
        K = wT.shape[0]
        out = jnp.zeros((K, n_gates * Hp), f32)
        for g in range(n_gates):
            out = out.at[:, g * Hp:g * Hp + H].set(wT[:, g * H:(g + 1) * H])
        return out

    # ----- Hoisted LSTM input projection: x @ W_ih^T + (b_ih + b_hh), gate-padded --
    w_ih_l = pad_gate_cols(p["w_ih_l0"].T, 4)                                # (I, 4Hp)
    b_l = pad_gate_cols((p["b_ih_l0"] + p["b_hh_l0"]).reshape(1, 4 * H), 4)  # (1, 4Hp)

    # ----- Fused per-step weight (2Hp, 8Hp):
    #   rows [0,Hp)    <- h_lstm,  rows [Hp,2Hp) <- h_gru
    #   cols [0,4Hp)   -> GRU sums [r_sum | z_sum | gi_n | gh_n]
    #   cols [4Hp,8Hp) -> LSTM recurrent gates for the NEXT step [i | f | g | o]
    wi = p["w_ih_g0"].T   # (H, 3H), columns [r | z | n]
    wh = p["w_hh_g0"].T
    w_fused = jnp.zeros((2 * Hp, 8 * Hp), f32)
    w_fused = w_fused.at[0:H,       0 * Hp:0 * Hp + H].set(wi[:, 0:H])          # r from h_lstm
    w_fused = w_fused.at[Hp:Hp + H, 0 * Hp:0 * Hp + H].set(wh[:, 0:H])          # r from h_gru
    w_fused = w_fused.at[0:H,       1 * Hp:1 * Hp + H].set(wi[:, H:2 * H])      # z from h_lstm
    w_fused = w_fused.at[Hp:Hp + H, 1 * Hp:1 * Hp + H].set(wh[:, H:2 * H])      # z from h_gru
    w_fused = w_fused.at[0:H,       2 * Hp:2 * Hp + H].set(wi[:, 2 * H:3 * H])  # gi_n
    w_fused = w_fused.at[Hp:Hp + H, 3 * Hp:3 * Hp + H].set(wh[:, 2 * H:3 * H])  # gh_n
    w_fused = w_fused.at[0:H, 4 * Hp:8 * Hp].set(pad_gate_cols(p["w_hh_l0"].T, 4))

    bi, bh = p["b_ih_g0"], p["b_hh_g0"]
    b_fused = jnp.zeros((1, 8 * Hp), f32)
    b_fused = b_fused.at[0, 0 * Hp:0 * Hp + H].set(bi[0:H] + bh[0:H])
    b_fused = b_fused.at[0, 1 * Hp:1 * Hp + H].set(bi[H:2 * H] + bh[H:2 * H])
    b_fused = b_fused.at[0, 2 * Hp:2 * Hp + H].set(bi[2 * H:3 * H])
    b_fused = b_fused.at[0, 3 * Hp:3 * Hp + H].set(bh[2 * H:3 * H])
    # cols [4Hp,8Hp) stay zero: the LSTM bias is already folded into gx.

    # ----- Linear (output lane-padded to Op) -----
    w_lin = jnp.zeros((Hp, Op), f32).at[:H, :O].set(p["w_lin"].T)
    b_lin = jnp.zeros((1, Op), f32).at[0, :O].set(p["b_lin"])

    return {"w_ih_l": w_ih_l, "b_l": b_l, "w_fused": w_fused, "b_fused": b_fused,
            "w_lin": w_lin, "b_lin": b_lin}


# --------------------------------------------------------------------------
# Pure-NumPy f32 reference (mirrors the PyTorch forward exactly) for verification.
# --------------------------------------------------------------------------
def reference(x, p):
    x = np.asarray(x, np.float32)
    pn = {k: np.asarray(v, np.float32) for k, v in p.items()}
    B, S, I = x.shape
    H = pn["w_hh_l0"].shape[1]
    sig = lambda v: 1.0 / (1.0 + np.exp(-v))

    w_ih_l, w_hh_l = pn["w_ih_l0"].T, pn["w_hh_l0"].T
    b_l = pn["b_ih_l0"] + pn["b_hh_l0"]
    w_ih_g, w_hh_g = pn["w_ih_g0"].T, pn["w_hh_g0"].T
    b_ih_g, b_hh_g = pn["b_ih_g0"], pn["b_hh_g0"]

    h_l = np.zeros((B, H), np.float32)
    c_l = np.zeros((B, H), np.float32)
    h_g = np.zeros((B, H), np.float32)
    for t in range(S):
        x_t = x[:, t, :]
        gates = x_t @ w_ih_l + h_l @ w_hh_l + b_l
        i_g = sig(gates[:, 0:H])
        f_g = sig(gates[:, H:2 * H])
        g_g = np.tanh(gates[:, 2 * H:3 * H])
        o_g = sig(gates[:, 3 * H:4 * H])
        c_l = f_g * c_l + i_g * g_g
        h_l = o_g * np.tanh(c_l)

        gi = h_l @ w_ih_g + b_ih_g
        gh = h_g @ w_hh_g + b_hh_g
        r = sig(gi[:, 0:H] + gh[:, 0:H])
        z = sig(gi[:, H:2 * H] + gh[:, H:2 * H])
        n = np.tanh(gi[:, 2 * H:3 * H] + r * gh[:, 2 * H:3 * H])
        h_g = (1.0 - z) * n + z * h_g
    return h_g @ pn["w_lin"].T + pn["b_lin"]


if __name__ == "__main__":
    # config.input_size = 16, config.hidden_layer_size = 32, output_size = 4
    B, S, I, H, O = 2, 8, 16, 32, 4
    Hp = 128 * ((H + 127) // 128)   # lane-aligned gate width
    Op = 128 * ((O + 127) // 128)   # lane-dense output width

    key = jax.random.PRNGKey(0)
    k_x, k_p = jax.random.split(key)
    x = jax.random.normal(k_x, (B, S, I), dtype=jnp.float32)
    params = init_params(k_p, I, H, O)
    kparams = prepare_kernel_params(params, H, Hp, O, Op)

    out = multisensor_lstm_gru(x, kparams, out_size=O)
    out = jax.block_until_ready(out)

    # Tolerance tightened from 1e-2 (all-f32 path; catches packing/layout regressions).
    ref = reference(x, params)
    np.testing.assert_allclose(np.asarray(out), ref, rtol=1e-4, atol=1e-5)

    print("KERNEL_OK")
</pallas_src>

<mosaic_0001>
module attributes {stable_mosaic.version = 11 : i64} {
  func.func @kernel(%arg0: i32, %arg1: memref<16x16xf32, #tpu.memory_space<vmem>>, %arg2: memref<16x512xf32, #tpu.memory_space<vmem>>, %arg3: memref<1x512xf32, #tpu.memory_space<vmem>>, %arg4: memref<256x1024xf32, #tpu.memory_space<vmem>>, %arg5: memref<1x1024xf32, #tpu.memory_space<vmem>>, %arg6: memref<128x128xf32, #tpu.memory_space<vmem>>, %arg7: memref<1x128xf32, #tpu.memory_space<vmem>>, %arg8: memref<2x128xf32, #tpu.memory_space<vmem>>, %arg9: memref<2x256xf32, #tpu.memory_space<vmem>>) attributes {dimension_semantics = [#tpu.dimension_semantics<arbitrary>], iteration_bounds = array<i64: 1>, scalar_prefetch = 0 : i64, scratch_operands = 1 : i64, tpu.core_type = #tpu.core_type<tc>, window_params = [{pipeline_mode = #tpu.pipeline_mode<synchronous>, transform_indices = @transform_0, window_bounds = array<i64: 16, 16>}, {pipeline_mode = #tpu.pipeline_mode<synchronous>, transform_indices = @transform_1, window_bounds = array<i64: 16, 512>}, {pipeline_mode = #tpu.pipeline_mode<synchronous>, transform_indices = @transform_2, window_bounds = array<i64: 1, 512>}, {pipeline_mode = #tpu.pipeline_mode<synchronous>, transform_indices = @transform_3, window_bounds = array<i64: 256, 1024>}, {pipeline_mode = #tpu.pipeline_mode<synchronous>, transform_indices = @transform_4, window_bounds = array<i64: 1, 1024>}, {pipeline_mode = #tpu.pipeline_mode<synchronous>, transform_indices = @transform_5, window_bounds = array<i64: 128, 128>}, {pipeline_mode = #tpu.pipeline_mode<synchronous>, transform_indices = @transform_6, window_bounds = array<i64: 1, 128>}, {pipeline_mode = #tpu.pipeline_mode<synchronous>, transform_indices = @transform_7, window_bounds = array<i64: 2, 128>}]} {
    %c0 = arith.constant 0 : index
    %c0_0 = arith.constant 0 : index
    %0 = vector.load %arg1[%c0, %c0_0] : memref<16x16xf32, #tpu.memory_space<vmem>>, vector<16x16xf32>
    %c0_1 = arith.constant 0 : index
    %c0_2 = arith.constant 0 : index
    %1 = vector.load %arg2[%c0_1, %c0_2] : memref<16x512xf32, #tpu.memory_space<vmem>>, vector<16x512xf32>
    %cst = arith.constant dense<0.000000e+00> : vector<16x512xf32>
    %2 = tpu.matmul %0, %1, %cst {dimension_numbers = #tpu.dot_dimension_numbers<[1], [0], [0], [1], [0, 0, 1, 1], [], []>} : vector<16x16xf32>, vector<16x512xf32>, vector<16x512xf32> -> vector<16x512xf32>
    %c0_3 = arith.constant 0 : index
    %c0_4 = arith.constant 0 : index
    %3 = vector.load %arg3[%c0_3, %c0_4] : memref<1x512xf32, #tpu.memory_space<vmem>>, vector<1x512xf32>
    %4 = vector.broadcast %3 : vector<1x512xf32> to vector<16x512xf32>
    %5 = arith.addf %2, %4 : vector<16x512xf32>
    %c0_5 = arith.constant 0 : index
    %c0_6 = arith.constant 0 : index
    %6 = vector.load %arg5[%c0_5, %c0_6] : memref<1x1024xf32, #tpu.memory_space<vmem>>, vector<1x1024xf32>
    %7 = vector.shape_cast %6 : vector<1x1024xf32> to vector<1x1024xf32>
    %8 = vector.broadcast %7 : vector<1x1024xf32> to vector<2x1024xf32>
    %cst_7 = arith.constant 0.000000e+00 : f32
    %9 = vector.broadcast %cst_7 : f32 to vector<2x256xf32>
    %c0_8 = arith.constant 0 : index
    %c0_9 = arith.constant 0 : index
    %10 = vector.load %arg9[%c0_8, %c0_9] : memref<2x256xf32, #tpu.memory_space<vmem>>, vector<2x256xf32>
    tpu.vector_store %arg9[%c0_8, %c0_9], %9 {strides = array<i32>} : memref<2x256xf32, #tpu.memory_space<vmem>>, vector<2x256xf32>,
    %cst_10 = arith.constant 0.000000e+00 : f32
    %11 = vector.broadcast %cst_10 : f32 to vector<2x128xf32>
    %cst_11 = arith.constant 0.000000e+00 : f32
    %12 = vector.broadcast %cst_11 : f32 to vector<2x128xf32>
    %cst_12 = arith.constant 0.000000e+00 : f32
    %13 = vector.broadcast %cst_12 : f32 to vector<2x512xf32>
    %14 = vector.extract_strided_slice %5 {offsets = [0, 0], sizes = [2, 512], strides = [1, 1]} : vector<16x512xf32> to vector<2x512xf32>
    %15 = arith.addf %14, %13 : vector<2x512xf32>
    %16 = vector.extract_strided_slice %15 {offsets = [0, 0], sizes = [2, 128], strides = [1, 1]} : vector<2x512xf32> to vector<2x128xf32>
    %17 = arith.negf %16 : vector<2x128xf32>
    %18 = math.exp %17 : vector<2x128xf32>
    %cst_13 = arith.constant 1.000000e+00 : f32
    %19 = vector.broadcast %cst_13 : f32 to vector<2x128xf32>
    %20 = arith.addf %19, %18 : vector<2x128xf32>
    %21 = arith.divf %19, %20 : vector<2x128xf32>
    %22 = vector.extract_strided_slice %15 {offsets = [0, 128], sizes = [2, 128], strides = [1, 1]} : vector<2x512xf32> to vector<2x128xf32>
    %23 = arith.negf %22 : vector<2x128xf32>
    %24 = math.exp %23 : vector<2x128xf32>
    %cst_14 = arith.constant 1.000000e+00 : f32
    %25 = vector.broadcast %cst_14 : f32 to vector<2x128xf32>
    %26 = arith.addf %25, %24 : vector<2x128xf32>
    %27 = arith.divf %25, %26 : vector<2x128xf32>
    %28 = vector.extract_strided_slice %15 {offsets = [0, 256], sizes = [2, 128], strides = [1, 1]} : vector<2x512xf32> to vector<2x128xf32>
    %29 = math.tanh %28 : vector<2x128xf32>
    %30 = vector.extract_strided_slice %15 {offsets = [0, 384], sizes = [2, 128], strides = [1, 1]} : vector<2x512xf32> to vector<2x128xf32>
    %31 = arith.negf %30 : vector<2x128xf32>
    %32 = math.exp %31 : vector<2x128xf32>
    %cst_15 = arith.constant 1.000000e+00 : f32
    %33 = vector.broadcast %cst_15 : f32 to vector<2x128xf32>
    %34 = arith.addf %33, %32 : vector<2x128xf32>
    %35 = arith.divf %33, %34 : vector<2x128xf32>
    %36 = arith.mulf %27, %11 : vector<2x128xf32>
    %37 = arith.mulf %21, %29 : vector<2x128xf32>
    %38 = arith.addf %36, %37 : vector<2x128xf32>
    %39 = math.tanh %38 : vector<2x128xf32>
    %40 = arith.mulf %35, %39 : vector<2x128xf32>
    %c0_16 = arith.constant 0 : index
    %c0_17 = arith.constant 0 : index
    %41 = vector.load %arg9[%c0_16, %c0_17] : memref<2x256xf32, #tpu.memory_space<vmem>>, vector<2x128xf32>
    tpu.vector_store %arg9[%c0_16, %c0_17], %40 {strides = array<i32>} : memref<2x256xf32, #tpu.memory_space<vmem>>, vector<2x128xf32>,
    %c0_18 = arith.constant 0 : index
    %c0_19 = arith.constant 0 : index
    %42 = vector.load %arg9[%c0_18, %c0_19] : memref<2x256xf32, #tpu.memory_space<vmem>>, vector<2x256xf32>
    %c0_20 = arith.constant 0 : index
    %c0_21 = arith.constant 0 : index
    %43 = vector.load %arg4[%c0_20, %c0_21] : memref<256x1024xf32, #tpu.memory_space<vmem>>, vector<256x1024xf32>
    %cst_22 = arith.constant dense<0.000000e+00> : vector<2x1024xf32>
    %44 = tpu.matmul %42, %43, %cst_22 {dimension_numbers = #tpu.dot_dimension_numbers<[1], [0], [0], [1], [0, 0, 1, 1], [], []>} : vector<2x256xf32>, vector<256x1024xf32>, vector<2x1024xf32> -> vector<2x1024xf32>
    %45 = arith.addf %44, %8 : vector<2x1024xf32>
    %46 = vector.extract_strided_slice %45 {offsets = [0, 0], sizes = [2, 512], strides = [1, 1]} : vector<2x1024xf32> to vector<2x512xf32>
    %47 = vector.extract_strided_slice %46 {offsets = [0, 0], sizes = [2, 128], strides = [1, 1]} : vector<2x512xf32> to vector<2x128xf32>
    %48 = arith.negf %47 : vector<2x128xf32>
    %49 = math.exp %48 : vector<2x128xf32>
    %cst_23 = arith.constant 1.000000e+00 : f32
    %50 = vector.broadcast %cst_23 : f32 to vector<2x128xf32>
    %51 = arith.addf %50, %49 : vector<2x128xf32>
    %52 = arith.divf %50, %51 : vector<2x128xf32>
    %53 = vector.extract_strided_slice %46 {offsets = [0, 128], sizes = [2, 128], strides = [1, 1]} : vector<2x512xf32> to vector<2x128xf32>
    %54 = arith.negf %53 : vector<2x128xf32>
    %55 = math.exp %54 : vector<2x128xf32>
    %cst_24 = arith.constant 1.000000e+00 : f32
    %56 = vector.broadcast %cst_24 : f32 to vector<2x128xf32>
    %57 = arith.addf %56, %55 : vector<2x128xf32>
    %58 = arith.divf %56, %57 : vector<2x128xf32>
    %59 = vector.extract_strided_slice %46 {offsets = [0, 256], sizes = [2, 128], strides = [1, 1]} : vector<2x512xf32> to vector<2x128xf32>
    %60 = vector.extract_strided_slice %46 {offsets = [0, 384], sizes = [2, 128], strides = [1, 1]} : vector<2x512xf32> to vector<2x128xf32>
    %61 = arith.mulf %52, %60 : vector<2x128xf32>
    %62 = arith.addf %59, %61 : vector<2x128xf32>
    %63 = math.tanh %62 : vector<2x128xf32>
    %cst_25 = arith.constant 1.000000e+00 : f32
    %64 = vector.broadcast %cst_25 : f32 to vector<2x128xf32>
    %65 = arith.subf %64, %58 : vector<2x128xf32>
    %66 = arith.mulf %65, %63 : vector<2x128xf32>
    %67 = arith.mulf %58, %12 : vector<2x128xf32>
    %68 = arith.addf %66, %67 : vector<2x128xf32>
    %69 = vector.extract_strided_slice %45 {offsets = [0, 512], sizes = [2, 512], strides = [1, 1]} : vector<2x1024xf32> to vector<2x512xf32>
    %c0_26 = arith.constant 0 : index
    %c128 = arith.constant 128 : index
    %70 = vector.load %arg9[%c0_26, %c128] : memref<2x256xf32, #tpu.memory_space<vmem>>, vector<2x128xf32>
    tpu.vector_store %arg9[%c0_26, %c128], %68 {strides = array<i32>} : memref<2x256xf32, #tpu.memory_space<vmem>>, vector<2x128xf32>,
    %71 = vector.extract_strided_slice %5 {offsets = [2, 0], sizes = [2, 512], strides = [1, 1]} : vector<16x512xf32> to vector<2x512xf32>
    %72 = arith.addf %71, %69 : vector<2x512xf32>
    %73 = vector.extract_strided_slice %72 {offsets = [0, 0], sizes = [2, 128], strides = [1, 1]} : vector<2x512xf32> to vector<2x128xf32>
    %74 = arith.negf %73 : vector<2x128xf32>
    %75 = math.exp %74 : vector<2x128xf32>
    %cst_27 = arith.constant 1.000000e+00 : f32
    %76 = vector.broadcast %cst_27 : f32 to vector<2x128xf32>
    %77 = arith.addf %76, %75 : vector<2x128xf32>
    %78 = arith.divf %76, %77 : vector<2x128xf32>
    %79 = vector.extract_strided_slice %72 {offsets = [0, 128], sizes = [2, 128], strides = [1, 1]} : vector<2x512xf32> to vector<2x128xf32>
    %80 = arith.negf %79 : vector<2x128xf32>
    %81 = math.exp %80 : vector<2x128xf32>
    %cst_28 = arith.constant 1.000000e+00 : f32
    %82 = vector.broadcast %cst_28 : f32 to vector<2x128xf32>
    %83 = arith.addf %82, %81 : vector<2x128xf32>
    %84 = arith.divf %82, %83 : vector<2x128xf32>
    %85 = vector.extract_strided_slice %72 {offsets = [0, 256], sizes = [2, 128], strides = [1, 1]} : vector<2x512xf32> to vector<2x128xf32>
    %86 = math.tanh %85 : vector<2x128xf32>
    %87 = vector.extract_strided_slice %72 {offsets = [0, 384], sizes = [2, 128], strides = [1, 1]} : vector<2x512xf32> to vector<2x128xf32>
    %88 = arith.negf %87 : vector<2x128xf32>
    %89 = math.exp %88 : vector<2x128xf32>
    %cst_29 = arith.constant 1.000000e+00 : f32
    %90 = vector.broadcast %cst_29 : f32 to vector<2x128xf32>
    %91 = arith.addf %90, %89 : vector<2x128xf32>
    %92 = arith.divf %90, %91 : vector<2x128xf32>
    %93 = arith.mulf %84, %38 : vector<2x128xf32>
    %94 = arith.mulf %78, %86 : vector<2x128xf32>
    %95 = arith.addf %93, %94 : vector<2x128xf32>
    %96 = math.tanh %95 : vector<2x128xf32>
    %97 = arith.mulf %92, %96 : vector<2x128xf32>
    %c0_30 = arith.constant 0 : index
    %c0_31 = arith.constant 0 : index
    %98 = vector.load %arg9[%c0_30, %c0_31] : memref<2x256xf32, #tpu.memory_space<vmem>>, vector<2x128xf32>
    tpu.vector_store %arg9[%c0_30, %c0_31], %97 {strides = array<i32>} : memref<2x256xf32, #tpu.memory_space<vmem>>, vector<2x128xf32>,
    %c0_32 = arith.constant 0 : index
    %c0_33 = arith.constant 0 : index
    %99 = vector.load %arg9[%c0_32, %c0_33] : memref<2x256xf32, #tpu.memory_space<vmem>>, vector<2x256xf32>
    %c0_34 = arith.constant 0 : index
    %c0_35 = arith.constant 0 : index
    %100 = vector.load %arg4[%c0_34, %c0_35] : memref<256x1024xf32, #tpu.memory_space<vmem>>, vector<256x1024xf32>
    %cst_36 = arith.constant dense<0.000000e+00> : vector<2x1024xf32>
    %101 = tpu.matmul %99, %100, %cst_36 {dimension_numbers = #tpu.dot_dimension_numbers<[1], [0], [0], [1], [0, 0, 1, 1], [], []>} : vector<2x256xf32>, vector<256x1024xf32>, vector<2x1024xf32> -> vector<2x1024xf32>
    %102 = arith.addf %101, %8 : vector<2x1024xf32>
    %103 = vector.extract_strided_slice %102 {offsets = [0, 0], sizes = [2, 512], strides = [1, 1]} : vector<2x1024xf32> to vector<2x512xf32>
    %104 = vector.extract_strided_slice %103 {offsets = [0, 0], sizes = [2, 128], strides = [1, 1]} : vector<2x512xf32> to vector<2x128xf32>
    %105 = arith.negf %104 : vector<2x128xf32>
    %106 = math.exp %105 : vector<2x128xf32>
    %cst_37 = arith.constant 1.000000e+00 : f32
    %107 = vector.broadcast %cst_37 : f32 to vector<2x128xf32>
    %108 = arith.addf %107, %106 : vector<2x128xf32>
    %109 = arith.divf %107, %108 : vector<2x128xf32>
    %110 = vector.extract_strided_slice %103 {offsets = [0, 128], sizes = [2, 128], strides = [1, 1]} : vector<2x512xf32> to vector<2x128xf32>
    %111 = arith.negf %110 : vector<2x128xf32>
    %112 = math.exp %111 : vector<2x128xf32>
    %cst_38 = arith.constant 1.000000e+00 : f32
    %113 = vector.broadcast %cst_38 : f32 to vector<2x128xf32>
    %114 = arith.addf %113, %112 : vector<2x128xf32>
    %115 = arith.divf %113, %114 : vector<2x128xf32>
    %116 = vector.extract_strided_slice %103 {offsets = [0, 256], sizes = [2, 128], strides = [1, 1]} : vector<2x512xf32> to vector<2x128xf32>
    %117 = vector.extract_strided_slice %103 {offsets = [0, 384], sizes = [2, 128], strides = [1, 1]} : vector<2x512xf32> to vector<2x128xf32>
    %118 = arith.mulf %109, %117 : vector<2x128xf32>
    %119 = arith.addf %116, %118 : vector<2x128xf32>
    %120 = math.tanh %119 : vector<2x128xf32>
    %cst_39 = arith.constant 1.000000e+00 : f32
    %121 = vector.broadcast %cst_39 : f32 to vector<2x128xf32>
    %122 = arith.subf %121, %115 : vector<2x128xf32>
    %123 = arith.mulf %122, %120 : vector<2x128xf32>
    %124 = arith.mulf %115, %68 : vector<2x128xf32>
    %125 = arith.addf %123, %124 : vector<2x128xf32>
    %126 = vector.extract_strided_slice %102 {offsets = [0, 512], sizes = [2, 512], strides = [1, 1]} : vector<2x1024xf32> to vector<2x512xf32>
    %c0_40 = arith.constant 0 : index
    %c128_41 = arith.constant 128 : index
    %127 = vector.load %arg9[%c0_40, %c128_41] : memref<2x256xf32, #tpu.memory_space<vmem>>, vector<2x128xf32>
    tpu.vector_store %arg9[%c0_40, %c128_41], %125 {strides = array<i32>} : memref<2x256xf32, #tpu.memory_space<vmem>>, vector<2x128xf32>,
    %128 = vector.extract_strided_slice %5 {offsets = [4, 0], sizes = [2, 512], strides = [1, 1]} : vector<16x512xf32> to vector<2x512xf32>
    %129 = arith.addf %128, %126 : vector<2x512xf32>
    %130 = vector.extract_strided_slice %129 {offsets = [0, 0], sizes = [2, 128], strides = [1, 1]} : vector<2x512xf32> to vector<2x128xf32>
    %131 = arith.negf %130 : vector<2x128xf32>
    %132 = math.exp %131 : vector<2x128xf32>
    %cst_42 = arith.constant 1.000000e+00 : f32
    %133 = vector.broadcast %cst_42 : f32 to vector<2x128xf32>
    %134 = arith.addf %133, %132 : vector<2x128xf32>
    %135 = arith.divf %133, %134 : vector<2x128xf32>
    %136 = vector.extract_strided_slice %129 {offsets = [0, 128], sizes = [2, 128], strides = [1, 1]} : vector<2x512xf32> to vector<2x128xf32>
    %137 = arith.negf %136 : vector<2x128xf32>
    %138 = math.exp %137 : vector<2x128xf32>
    %cst_43 = arith.constant 1.000000e+00 : f32
    %139 = vector.broadcast %cst_43 : f32 to vector<2x128xf32>
    %140 = arith.addf %139, %138 : vector<2x128xf32>
    %141 = arith.divf %139, %140 : vector<2x128xf32>
    %142 = vector.extract_strided_slice %129 {offsets = [0, 256], sizes = [2, 128], strides = [1, 1]} : vector<2x512xf32> to vector<2x128xf32>
    %143 = math.tanh %142 : vector<2x128xf32>
    %144 = vector.extract_strided_slice %129 {offsets = [0, 384], sizes = [2, 128], strides = [1, 1]} : vector<2x512xf32> to vector<2x128xf32>
    %145 = arith.negf %144 : vector<2x128xf32>
    %146 = math.exp %145 : vector<2x128xf32>
    %cst_44 = arith.constant 1.000000e+00 : f32
    %147 = vector.broadcast %cst_44 : f32 to vector<2x128xf32>
    %148 = arith.addf %147, %146 : vector<2x128xf32>
    %149 = arith.divf %147, %148 : vector<2x128xf32>
    %150 = arith.mulf %141, %95 : vector<2x128xf32>
    %151 = arith.mulf %135, %143 : vector<2x128xf32>
    %152 = arith.addf %150, %151 : vector<2x128xf32>
    %153 = math.tanh %152 : vector<2x128xf32>
    %154 = arith.mulf %149, %153 : vector<2x128xf32>
    %c0_45 = arith.constant 0 : index
    %c0_46 = arith.constant 0 : index
    %155 = vector.load %arg9[%c0_45, %c0_46] : memref<2x256xf32, #tpu.memory_space<vmem>>, vector<2x128xf32>
    tpu.vector_store %arg9[%c0_45, %c0_46], %154 {strides = array<i32>} : memref<2x256xf32, #tpu.memory_space<vmem>>, vector<2x128xf32>,
    %c0_47 = arith.constant 0 : index
    %c0_48 = arith.constant 0 : index
    %156 = vector.load %arg9[%c0_47, %c0_48] : memref<2x256xf32, #tpu.memory_space<vmem>>, vector<2x256xf32>
    %c0_49 = arith.constant 0 : index
    %c0_50 = arith.constant 0 : index
    %157 = vector.load %arg4[%c0_49, %c0_50] : memref<256x1024xf32, #tpu.memory_space<vmem>>, vector<256x1024xf32>
    %cst_51 = arith.constant dense<0.000000e+00> : vector<2x1024xf32>
    %158 = tpu.matmul %156, %157, %cst_51 {dimension_numbers = #tpu.dot_dimension_numbers<[1], [0], [0], [1], [0, 0, 1, 1], [], []>} : vector<2x256xf32>, vector<256x1024xf32>, vector<2x1024xf32> -> vector<2x1024xf32>
    %159 = arith.addf %158, %8 : vector<2x1024xf32>
    %160 = vector.extract_strided_slice %159 {offsets = [0, 0], sizes = [2, 512], strides = [1, 1]} : vector<2x1024xf32> to vector<2x512xf32>
    %161 = vector.extract_strided_slice %160 {offsets = [0, 0], sizes = [2, 128], strides = [1, 1]} : vector<2x512xf32> to vector<2x128xf32>
    %162 = arith.negf %161 : vector<2x128xf32>
    %163 = math.exp %162 : vector<2x128xf32>
    %cst_52 = arith.constant 1.000000e+00 : f32
    %164 = vector.broadcast %cst_52 : f32 to vector<2x128xf32>
    %165 = arith.addf %164, %163 : vector<2x128xf32>
    %166 = arith.divf %164, %165 : vector<2x128xf32>
    %167 = vector.extract_strided_slice %160 {offsets = [0, 128], sizes = [2, 128], strides = [1, 1]} : vector<2x512xf32> to vector<2x128xf32>
    %168 = arith.negf %167 : vector<2x128xf32>
    %169 = math.exp %168 : vector<2x128xf32>
    %cst_53 = arith.constant 1.000000e+00 : f32
    %170 = vector.broadcast %cst_53 : f32 to vector<2x128xf32>
    %171 = arith.addf %170, %169 : vector<2x128xf32>
    %172 = arith.divf %170, %171 : vector<2x128xf32>
    %173 = vector.extract_strided_slice %160 {offsets = [0, 256], sizes = [2, 128], strides = [1, 1]} : vector<2x512xf32> to vector<2x128xf32>
    %174 = vector.extract_strided_slice %160 {offsets = [0, 384], sizes = [2, 128], strides = [1, 1]} : vector<2x512xf32> to vector<2x128xf32>
    %175 = arith.mulf %166, %174 : vector<2x128xf32>
    %176 = arith.addf %173, %175 : vector<2x128xf32>
    %177 = math.tanh %176 : vector<2x128xf32>
    %cst_54 = arith.constant 1.000000e+00 : f32
    %178 = vector.broadcast %cst_54 : f32 to vector<2x128xf32>
    %179 = arith.subf %178, %172 : vector<2x128xf32>
    %180 = arith.mulf %179, %177 : vector<2x128xf32>
    %181 = arith.mulf %172, %125 : vector<2x128xf32>
    %182 = arith.addf %180, %181 : vector<2x128xf32>
    %183 = vector.extract_strided_slice %159 {offsets = [0, 512], sizes = [2, 512], strides = [1, 1]} : vector<2x1024xf32> to vector<2x512xf32>
    %c0_55 = arith.constant 0 : index
    %c128_56 = arith.constant 128 : index
    %184 = vector.load %arg9[%c0_55, %c128_56] : memref<2x256xf32, #tpu.memory_space<vmem>>, vector<2x128xf32>
    tpu.vector_store %arg9[%c0_55, %c128_56], %182 {strides = array<i32>} : memref<2x256xf32, #tpu.memory_space<vmem>>, vector<2x128xf32>,
    %185 = vector.extract_strided_slice %5 {offsets = [6, 0], sizes = [2, 512], strides = [1, 1]} : vector<16x512xf32> to vector<2x512xf32>
    %186 = arith.addf %185, %183 : vector<2x512xf32>
    %187 = vector.extract_strided_slice %186 {offsets = [0, 0], sizes = [2, 128], strides = [1, 1]} : vector<2x512xf32> to vector<2x128xf32>
    %188 = arith.negf %187 : vector<2x128xf32>
    %189 = math.exp %188 : vector<2x128xf32>
    %cst_57 = arith.constant 1.000000e+00 : f32
    %190 = vector.broadcast %cst_57 : f32 to vector<2x128xf32>
    %191 = arith.addf %190, %189 : vector<2x128xf32>
    %192 = arith.divf %190, %191 : vector<2x128xf32>
    %193 = vector.extract_strided_slice %186 {offsets = [0, 128], sizes = [2, 128], strides = [1, 1]} : vector<2x512xf32> to vector<2x128xf32>
    %194 = arith.negf %193 : vector<2x128xf32>
    %195 = math.exp %194 : vector<2x128xf32>
    %cst_58 = arith.constant 1.000000e+00 : f32
    %196 = vector.broadcast %cst_58 : f32 to vector<2x128xf32>
    %197 = arith.addf %196, %195 : vector<2x128xf32>
    %198 = arith.divf %196, %197 : vector<2x128xf32>
    %199 = vector.extract_strided_slice %186 {offsets = [0, 256], sizes = [2, 128], strides = [1, 1]} : vector<2x512xf32> to vector<2x128xf32>
    %200 = math.tanh %199 : vector<2x128xf32>
    %201 = vector.extract_strided_slice %186 {offsets = [0, 384], sizes = [2, 128], strides = [1, 1]} : vector<2x512xf32> to vector<2x128xf32>
    %202 = arith.negf %201 : vector<2x128xf32>
    %203 = math.exp %202 : vector<2x128xf32>
    %cst_59 = arith.constant 1.000000e+00 : f32
    %204 = vector.broadcast %cst_59 : f32 to vector<2x128xf32>
    %205 = arith.addf %204, %203 : vector<2x128xf32>
    %206 = arith.divf %204, %205 : vector<2x128xf32>
    %207 = arith.mulf %198, %152 : vector<2x128xf32>
    %208 = arith.mulf %192, %200 : vector<2x128xf32>
    %209 = arith.addf %207, %208 : vector<2x128xf32>
    %210 = math.tanh %209 : vector<2x128xf32>
    %211 = arith.mulf %206, %210 : vector<2x128xf32>
    %c0_60 = arith.constant 0 : index
    %c0_61 = arith.constant 0 : index
    %212 = vector.load %arg9[%c0_60, %c0_61] : memref<2x256xf32, #tpu.memory_space<vmem>>, vector<2x128xf32>
    tpu.vector_store %arg9[%c0_60, %c0_61], %211 {strides = array<i32>} : memref<2x256xf32, #tpu.memory_space<vmem>>, vector<2x128xf32>,
    %c0_62 = arith.constant 0 : index
    %c0_63 = arith.constant 0 : index
    %213 = vector.load %arg9[%c0_62, %c0_63] : memref<2x256xf32, #tpu.memory_space<vmem>>, vector<2x256xf32>
    %c0_64 = arith.constant 0 : index
    %c0_65 = arith.constant 0 : index
    %214 = vector.load %arg4[%c0_64, %c0_65] : memref<256x1024xf32, #tpu.memory_space<vmem>>, vector<256x1024xf32>
    %cst_66 = arith.constant dense<0.000000e+00> : vector<2x1024xf32>
    %215 = tpu.matmul %213, %214, %cst_66 {dimension_numbers = #tpu.dot_dimension_numbers<[1], [0], [0], [1], [0, 0, 1, 1], [], []>} : vector<2x256xf32>, vector<256x1024xf32>, vector<2x1024xf32> -> vector<2x1024xf32>
    %216 = arith.addf %215, %8 : vector<2x1024xf32>
    %217 = vector.extract_strided_slice %216 {offsets = [0, 0], sizes = [2, 512], strides = [1, 1]} : vector<2x1024xf32> to vector<2x512xf32>
    %218 = vector.extract_strided_slice %217 {offsets = [0, 0], sizes = [2, 128], strides = [1, 1]} : vector<2x512xf32> to vector<2x128xf32>
    %219 = arith.negf %218 : vector<2x128xf32>
    %220 = math.exp %219 : vector<2x128xf32>
    %cst_67 = arith.constant 1.000000e+00 : f32
    %221 = vector.broadcast %cst_67 : f32 to vector<2x128xf32>
    %222 = arith.addf %221, %220 : vector<2x128xf32>
    %223 = arith.divf %221, %222 : vector<2x128xf32>
    %224 = vector.extract_strided_slice %217 {offsets = [0, 128], sizes = [2, 128], strides = [1, 1]} : vector<2x512xf32> to vector<2x128xf32>
    %225 = arith.negf %224 : vector<2x128xf32>
    %226 = math.exp %225 : vector<2x128xf32>
    %cst_68 = arith.constant 1.000000e+00 : f32
    %227 = vector.broadcast %cst_68 : f32 to vector<2x128xf32>
    %228 = arith.addf %227, %226 : vector<2x128xf32>
    %229 = arith.divf %227, %228 : vector<2x128xf32>
    %230 = vector.extract_strided_slice %217 {offsets = [0, 256], sizes = [2, 128], strides = [1, 1]} : vector<2x512xf32> to vector<2x128xf32>
    %231 = vector.extract_strided_slice %217 {offsets = [0, 384], sizes = [2, 128], strides = [1, 1]} : vector<2x512xf32> to vector<2x128xf32>
    %232 = arith.mulf %223, %231 : vector<2x128xf32>
    %233 = arith.addf %230, %232 : vector<2x128xf32>
    %234 = math.tanh %233 : vector<2x128xf32>
    %cst_69 = arith.constant 1.000000e+00 : f32
    %235 = vector.broadcast %cst_69 : f32 to vector<2x128xf32>
    %236 = arith.subf %235, %229 : vector<2x128xf32>
    %237 = arith.mulf %236, %234 : vector<2x128xf32>
    %238 = arith.mulf %229, %182 : vector<2x128xf32>
    %239 = arith.addf %237, %238 : vector<2x128xf32>
    %240 = vector.extract_strided_slice %216 {offsets = [0, 512], sizes = [2, 512], strides = [1, 1]} : vector<2x1024xf32> to vector<2x512xf32>
    %c0_70 = arith.constant 0 : index
    %c128_71 = arith.constant 128 : index
    %241 = vector.load %arg9[%c0_70, %c128_71] : memref<2x256xf32, #tpu.memory_space<vmem>>, vector<2x128xf32>
    tpu.vector_store %arg9[%c0_70, %c128_71], %239 {strides = array<i32>} : memref<2x256xf32, #tpu.memory_space<vmem>>, vector<2x128xf32>,
    %242 = vector.extract_strided_slice %5 {offsets = [8, 0], sizes = [2, 512], strides = [1, 1]} : vector<16x512xf32> to vector<2x512xf32>
    %243 = arith.addf %242, %240 : vector<2x512xf32>
    %244 = vector.extract_strided_slice %243 {offsets = [0, 0], sizes = [2, 128], strides = [1, 1]} : vector<2x512xf32> to vector<2x128xf32>
    %245 = arith.negf %244 : vector<2x128xf32>
    %246 = math.exp %245 : vector<2x128xf32>
    %cst_72 = arith.constant 1.000000e+00 : f32
    %247 = vector.broadcast %cst_72 : f32 to vector<2x128xf32>
    %248 = arith.addf %247, %246 : vector<2x128xf32>
    %249 = arith.divf %247, %248 : vector<2x128xf32>
    %250 = vector.extract_strided_slice %243 {offsets = [0, 128], sizes = [2, 128], strides = [1, 1]} : vector<2x512xf32> to vector<2x128xf32>
    %251 = arith.negf %250 : vector<2x128xf32>
    %252 = math.exp %251 : vector<2x128xf32>
    %cst_73 = arith.constant 1.000000e+00 : f32
    %253 = vector.broadcast %cst_73 : f32 to vector<2x128xf32>
    %254 = arith.addf %253, %252 : vector<2x128xf32>
    %255 = arith.divf %253, %254 : vector<2x128xf32>
    %256 = vector.extract_strided_slice %243 {offsets = [0, 256], sizes = [2, 128], strides = [1, 1]} : vector<2x512xf32> to vector<2x128xf32>
    %257 = math.tanh %256 : vector<2x128xf32>
    %258 = vector.extract_strided_slice %243 {offsets = [0, 384], sizes = [2, 128], strides = [1, 1]} : vector<2x512xf32> to vector<2x128xf32>
    %259 = arith.negf %258 : vector<2x128xf32>
    %260 = math.exp %259 : vector<2x128xf32>
    %cst_74 = arith.constant 1.000000e+00 : f32
    %261 = vector.broadcast %cst_74 : f32 to vector<2x128xf32>
    %262 = arith.addf %261, %260 : vector<2x128xf32>
    %263 = arith.divf %261, %262 : vector<2x128xf32>
    %264 = arith.mulf %255, %209 : vector<2x128xf32>
    %265 = arith.mulf %249, %257 : vector<2x128xf32>
    %266 = arith.addf %264, %265 : vector<2x128xf32>
    %267 = math.tanh %266 : vector<2x128xf32>
    %268 = arith.mulf %263, %267 : vector<2x128xf32>
    %c0_75 = arith.constant 0 : index
    %c0_76 = arith.constant 0 : index
    %269 = vector.load %arg9[%c0_75, %c0_76] : memref<2x256xf32, #tpu.memory_space<vmem>>, vector<2x128xf32>
    tpu.vector_store %arg9[%c0_75, %c0_76], %268 {strides = array<i32>} : memref<2x256xf32, #tpu.memory_space<vmem>>, vector<2x128xf32>,
    %c0_77 = arith.constant 0 : index
    %c0_78 = arith.constant 0 : index
    %270 = vector.load %arg9[%c0_77, %c0_78] : memref<2x256xf32, #tpu.memory_space<vmem>>, vector<2x256xf32>
    %c0_79 = arith.constant 0 : index
    %c0_80 = arith.constant 0 : index
    %271 = vector.load %arg4[%c0_79, %c0_80] : memref<256x1024xf32, #tpu.memory_space<vmem>>, vector<256x1024xf32>
    %cst_81 = arith.constant dense<0.000000e+00> : vector<2x1024xf32>
    %272 = tpu.matmul %270, %271, %cst_81 {dimension_numbers = #tpu.dot_dimension_numbers<[1], [0], [0], [1], [0, 0, 1, 1], [], []>} : vector<2x256xf32>, vector<256x1024xf32>, vector<2x1024xf32> -> vector<2x1024xf32>
    %273 = arith.addf %272, %8 : vector<2x1024xf32>
    %274 = vector.extract_strided_slice %273 {offsets = [0, 0], sizes = [2, 512], strides = [1, 1]} : vector<2x1024xf32> to vector<2x512xf32>
    %275 = vector.extract_strided_slice %274 {offsets = [0, 0], sizes = [2, 128], strides = [1, 1]} : vector<2x512xf32> to vector<2x128xf32>
    %276 = arith.negf %275 : vector<2x128xf32>
    %277 = math.exp %276 : vector<2x128xf32>
    %cst_82 = arith.constant 1.000000e+00 : f32
    %278 = vector.broadcast %cst_82 : f32 to vector<2x128xf32>
    %279 = arith.addf %278, %277 : vector<2x128xf32>
    %280 = arith.divf %278, %279 : vector<2x128xf32>
    %281 = vector.extract_strided_slice %274 {offsets = [0, 128], sizes = [2, 128], strides = [1, 1]} : vector<2x512xf32> to vector<2x128xf32>
    %282 = arith.negf %281 : vector<2x128xf32>
    %283 = math.exp %282 : vector<2x128xf32>
    %cst_83 = arith.constant 1.000000e+00 : f32
    %284 = vector.broadcast %cst_83 : f32 to vector<2x128xf32>
    %285 = arith.addf %284, %283 : vector<2x128xf32>
    %286 = arith.divf %284, %285 : vector<2x128xf32>
    %287 = vector.extract_strided_slice %274 {offsets = [0, 256], sizes = [2, 128], strides = [1, 1]} : vector<2x512xf32> to vector<2x128xf32>
    %288 = vector.extract_strided_slice %274 {offsets = [0, 384], sizes = [2, 128], strides = [1, 1]} : vector<2x512xf32> to vector<2x128xf32>
    %289 = arith.mulf %280, %288 : vector<2x128xf32>
    %290 = arith.addf %287, %289 : vector<2x128xf32>
    %291 = math.tanh %290 : vector<2x128xf32>
    %cst_84 = arith.constant 1.000000e+00 : f32
    %292 = vector.broadcast %cst_84 : f32 to vector<2x128xf32>
    %293 = arith.subf %292, %286 : vector<2x128xf32>
    %294 = arith.mulf %293, %291 : vector<2x128xf32>
    %295 = arith.mulf %286, %239 : vector<2x128xf32>
    %296 = arith.addf %294, %295 : vector<2x128xf32>
    %297 = vector.extract_strided_slice %273 {offsets = [0, 512], sizes = [2, 512], strides = [1, 1]} : vector<2x1024xf32> to vector<2x512xf32>
    %c0_85 = arith.constant 0 : index
    %c128_86 = arith.constant 128 : index
    %298 = vector.load %arg9[%c0_85, %c128_86] : memref<2x256xf32, #tpu.memory_space<vmem>>, vector<2x128xf32>
    tpu.vector_store %arg9[%c0_85, %c128_86], %296 {strides = array<i32>} : memref<2x256xf32, #tpu.memory_space<vmem>>, vector<2x128xf32>,
    %299 = vector.extract_strided_slice %5 {offsets = [10, 0], sizes = [2, 512], strides = [1, 1]} : vector<16x512xf32> to vector<2x512xf32>
    %300 = arith.addf %299, %297 : vector<2x512xf32>
    %301 = vector.extract_strided_slice %300 {offsets = [0, 0], sizes = [2, 128], strides = [1, 1]} : vector<2x512xf32> to vector<2x128xf32>
    %302 = arith.negf %301 : vector<2x128xf32>
    %303 = math.exp %302 : vector<2x128xf32>
    %cst_87 = arith.constant 1.000000e+00 : f32
    %304 = vector.broadcast %cst_87 : f32 to vector<2x128xf32>
    %305 = arith.addf %304, %303 : vector<2x128xf32>
    %306 = arith.divf %304, %305 : vector<2x128xf32>
    %307 = vector.extract_strided_slice %300 {offsets = [0, 128], sizes = [2, 128], strides = [1, 1]} : vector<2x512xf32> to vector<2x128xf32>
    %308 = arith.negf %307 : vector<2x128xf32>
    %309 = math.exp %308 : vector<2x128xf32>
    %cst_88 = arith.constant 1.000000e+00 : f32
    %310 = vector.broadcast %cst_88 : f32 to vector<2x128xf32>
    %311 = arith.addf %310, %309 : vector<2x128xf32>
    %312 = arith.divf %310, %311 : vector<2x128xf32>
    %313 = vector.extract_strided_slice %300 {offsets = [0, 256], sizes = [2, 128], strides = [1, 1]} : vector<2x512xf32> to vector<2x128xf32>
    %314 = math.tanh %313 : vector<2x128xf32>
    %315 = vector.extract_strided_slice %300 {offsets = [0, 384], sizes = [2, 128], strides = [1, 1]} : vector<2x512xf32> to vector<2x128xf32>
    %316 = arith.negf %315 : vector<2x128xf32>
    %317 = math.exp %316 : vector<2x128xf32>
    %cst_89 = arith.constant 1.000000e+00 : f32
    %318 = vector.broadcast %cst_89 : f32 to vector<2x128xf32>
    %319 = arith.addf %318, %317 : vector<2x128xf32>
    %320 = arith.divf %318, %319 : vector<2x128xf32>
    %321 = arith.mulf %312, %266 : vector<2x128xf32>
    %322 = arith.mulf %306, %314 : vector<2x128xf32>
    %323 = arith.addf %321, %322 : vector<2x128xf32>
    %324 = math.tanh %323 : vector<2x128xf32>
    %325 = arith.mulf %320, %324 : vector<2x128xf32>
    %c0_90 = arith.constant 0 : index
    %c0_91 = arith.constant 0 : index
    %326 = vector.load %arg9[%c0_90, %c0_91] : memref<2x256xf32, #tpu.memory_space<vmem>>, vector<2x128xf32>
    tpu.vector_store %arg9[%c0_90, %c0_91], %325 {strides = array<i32>} : memref<2x256xf32, #tpu.memory_space<vmem>>, vector<2x128xf32>,
    %c0_92 = arith.constant 0 : index
    %c0_93 = arith.constant 0 : index
    %327 = vector.load %arg9[%c0_92, %c0_93] : memref<2x256xf32, #tpu.memory_space<vmem>>, vector<2x256xf32>
    %c0_94 = arith.constant 0 : index
    %c0_95 = arith.constant 0 : index
    %328 = vector.load %arg4[%c0_94, %c0_95] : memref<256x1024xf32, #tpu.memory_space<vmem>>, vector<256x1024xf32>
    %cst_96 = arith.constant dense<0.000000e+00> : vector<2x1024xf32>
    %329 = tpu.matmul %327, %328, %cst_96 {dimension_numbers = #tpu.dot_dimension_numbers<[1], [0], [0], [1], [0, 0, 1, 1], [], []>} : vector<2x256xf32>, vector<256x1024xf32>, vector<2x1024xf32> -> vector<2x1024xf32>
    %330 = arith.addf %329, %8 : vector<2x1024xf32>
    %331 = vector.extract_strided_slice %330 {offsets = [0, 0], sizes = [2, 512], strides = [1, 1]} : vector<2x1024xf32> to vector<2x512xf32>
    %332 = vector.extract_strided_slice %331 {offsets = [0, 0], sizes = [2, 128], strides = [1, 1]} : vector<2x512xf32> to vector<2x128xf32>
    %333 = arith.negf %332 : vector<2x128xf32>
    %334 = math.exp %333 : vector<2x128xf32>
    %cst_97 = arith.constant 1.000000e+00 : f32
    %335 = vector.broadcast %cst_97 : f32 to vector<2x128xf32>
    %336 = arith.addf %335, %334 : vector<2x128xf32>
    %337 = arith.divf %335, %336 : vector<2x128xf32>
    %338 = vector.extract_strided_slice %331 {offsets = [0, 128], sizes = [2, 128], strides = [1, 1]} : vector<2x512xf32> to vector<2x128xf32>
    %339 = arith.negf %338 : vector<2x128xf32>
    %340 = math.exp %339 : vector<2x128xf32>
    %cst_98 = arith.constant 1.000000e+00 : f32
    %341 = vector.broadcast %cst_98 : f32 to vector<2x128xf32>
    %342 = arith.addf %341, %340 : vector<2x128xf32>
    %343 = arith.divf %341, %342 : vector<2x128xf32>
    %344 = vector.extract_strided_slice %331 {offsets = [0, 256], sizes = [2, 128], strides = [1, 1]} : vector<2x512xf32> to vector<2x128xf32>
    %345 = vector.extract_strided_slice %331 {offsets = [0, 384], sizes = [2, 128], strides = [1, 1]} : vector<2x512xf32> to vector<2x128xf32>
    %346 = arith.mulf %337, %345 : vector<2x128xf32>
    %347 = arith.addf %344, %346 : vector<2x128xf32>
    %348 = math.tanh %347 : vector<2x128xf32>
    %cst_99 = arith.constant 1.000000e+00 : f32
    %349 = vector.broadcast %cst_99 : f32 to vector<2x128xf32>
    %350 = arith.subf %349, %343 : vector<2x128xf32>
    %351 = arith.mulf %350, %348 : vector<2x128xf32>
    %352 = arith.mulf %343, %296 : vector<2x128xf32>
    %353 = arith.addf %351, %352 : vector<2x128xf32>
    %354 = vector.extract_strided_slice %330 {offsets = [0, 512], sizes = [2, 512], strides = [1, 1]} : vector<2x1024xf32> to vector<2x512xf32>
    %c0_100 = arith.constant 0 : index
    %c128_101 = arith.constant 128 : index
    %355 = vector.load %arg9[%c0_100, %c128_101] : memref<2x256xf32, #tpu.memory_space<vmem>>, vector<2x128xf32>
    tpu.vector_store %arg9[%c0_100, %c128_101], %353 {strides = array<i32>} : memref<2x256xf32, #tpu.memory_space<vmem>>, vector<2x128xf32>,
    %356 = vector.extract_strided_slice %5 {offsets = [12, 0], sizes = [2, 512], strides = [1, 1]} : vector<16x512xf32> to vector<2x512xf32>
    %357 = arith.addf %356, %354 : vector<2x512xf32>
    %358 = vector.extract_strided_slice %357 {offsets = [0, 0], sizes = [2, 128], strides = [1, 1]} : vector<2x512xf32> to vector<2x128xf32>
    %359 = arith.negf %358 : vector<2x128xf32>
    %360 = math.exp %359 : vector<2x128xf32>
    %cst_102 = arith.constant 1.000000e+00 : f32
    %361 = vector.broadcast %cst_102 : f32 to vector<2x128xf32>
    %362 = arith.addf %361, %360 : vector<2x128xf32>
    %363 = arith.divf %361, %362 : vector<2x128xf32>
    %364 = vector.extract_strided_slice %357 {offsets = [0, 128], sizes = [2, 128], strides = [1, 1]} : vector<2x512xf32> to vector<2x128xf32>
    %365 = arith.negf %364 : vector<2x128xf32>
    %366 = math.exp %365 : vector<2x128xf32>
    %cst_103 = arith.constant 1.000000e+00 : f32
    %367 = vector.broadcast %cst_103 : f32 to vector<2x128xf32>
    %368 = arith.addf %367, %366 : vector<2x128xf32>
    %369 = arith.divf %367, %368 : vector<2x128xf32>
    %370 = vector.extract_strided_slice %357 {offsets = [0, 256], sizes = [2, 128], strides = [1, 1]} : vector<2x512xf32> to vector<2x128xf32>
    %371 = math.tanh %370 : vector<2x128xf32>
    %372 = vector.extract_strided_slice %357 {offsets = [0, 384], sizes = [2, 128], strides = [1, 1]} : vector<2x512xf32> to vector<2x128xf32>
    %373 = arith.negf %372 : vector<2x128xf32>
    %374 = math.exp %373 : vector<2x128xf32>
    %cst_104 = arith.constant 1.000000e+00 : f32
    %375 = vector.broadcast %cst_104 : f32 to vector<2x128xf32>
    %376 = arith.addf %375, %374 : vector<2x128xf32>
    %377 = arith.divf %375, %376 : vector<2x128xf32>
    %378 = arith.mulf %369, %323 : vector<2x128xf32>
    %379 = arith.mulf %363, %371 : vector<2x128xf32>
    %380 = arith.addf %378, %379 : vector<2x128xf32>
    %381 = math.tanh %380 : vector<2x128xf32>
    %382 = arith.mulf %377, %381 : vector<2x128xf32>
    %c0_105 = arith.constant 0 : index
    %c0_106 = arith.constant 0 : index
    %383 = vector.load %arg9[%c0_105, %c0_106] : memref<2x256xf32, #tpu.memory_space<vmem>>, vector<2x128xf32>
    tpu.vector_store %arg9[%c0_105, %c0_106], %382 {strides = array<i32>} : memref<2x256xf32, #tpu.memory_space<vmem>>, vector<2x128xf32>,
    %c0_107 = arith.constant 0 : index
    %c0_108 = arith.constant 0 : index
    %384 = vector.load %arg9[%c0_107, %c0_108] : memref<2x256xf32, #tpu.memory_space<vmem>>, vector<2x256xf32>
    %c0_109 = arith.constant 0 : index
    %c0_110 = arith.constant 0 : index
    %385 = vector.load %arg4[%c0_109, %c0_110] : memref<256x1024xf32, #tpu.memory_space<vmem>>, vector<256x1024xf32>
    %cst_111 = arith.constant dense<0.000000e+00> : vector<2x1024xf32>
    %386 = tpu.matmul %384, %385, %cst_111 {dimension_numbers = #tpu.dot_dimension_numbers<[1], [0], [0], [1], [0, 0, 1, 1], [], []>} : vector<2x256xf32>, vector<256x1024xf32>, vector<2x1024xf32> -> vector<2x1024xf32>
    %387 = arith.addf %386, %8 : vector<2x1024xf32>
    %388 = vector.extract_strided_slice %387 {offsets = [0, 0], sizes = [2, 512], strides = [1, 1]} : vector<2x1024xf32> to vector<2x512xf32>
    %389 = vector.extract_strided_slice %388 {offsets = [0, 0], sizes = [2, 128], strides = [1, 1]} : vector<2x512xf32> to vector<2x128xf32>
    %390 = arith.negf %389 : vector<2x128xf32>
    %391 = math.exp %390 : vector<2x128xf32>
    %cst_112 = arith.constant 1.000000e+00 : f32
    %392 = vector.broadcast %cst_112 : f32 to vector<2x128xf32>
    %393 = arith.addf %392, %391 : vector<2x128xf32>
    %394 = arith.divf %392, %393 : vector<2x128xf32>
    %395 = vector.extract_strided_slice %388 {offsets = [0, 128], sizes = [2, 128], strides = [1, 1]} : vector<2x512xf32> to vector<2x128xf32>
    %396 = arith.negf %395 : vector<2x128xf32>
    %397 = math.exp %396 : vector<2x128xf32>
    %cst_113 = arith.constant 1.000000e+00 : f32
    %398 = vector.broadcast %cst_113 : f32 to vector<2x128xf32>
    %399 = arith.addf %398, %397 : vector<2x128xf32>
    %400 = arith.divf %398, %399 : vector<2x128xf32>
    %401 = vector.extract_strided_slice %388 {offsets = [0, 256], sizes = [2, 128], strides = [1, 1]} : vector<2x512xf32> to vector<2x128xf32>
    %402 = vector.extract_strided_slice %388 {offsets = [0, 384], sizes = [2, 128], strides = [1, 1]} : vector<2x512xf32> to vector<2x128xf32>
    %403 = arith.mulf %394, %402 : vector<2x128xf32>
    %404 = arith.addf %401, %403 : vector<2x128xf32>
    %405 = math.tanh %404 : vector<2x128xf32>
    %cst_114 = arith.constant 1.000000e+00 : f32
    %406 = vector.broadcast %cst_114 : f32 to vector<2x128xf32>
    %407 = arith.subf %406, %400 : vector<2x128xf32>
    %408 = arith.mulf %407, %405 : vector<2x128xf32>
    %409 = arith.mulf %400, %353 : vector<2x128xf32>
    %410 = arith.addf %408, %409 : vector<2x128xf32>
    %411 = vector.extract_strided_slice %387 {offsets = [0, 512], sizes = [2, 512], strides = [1, 1]} : vector<2x1024xf32> to vector<2x512xf32>
    %c0_115 = arith.constant 0 : index
    %c128_116 = arith.constant 128 : index
    %412 = vector.load %arg9[%c0_115, %c128_116] : memref<2x256xf32, #tpu.memory_space<vmem>>, vector<2x128xf32>
    tpu.vector_store %arg9[%c0_115, %c128_116], %410 {strides = array<i32>} : memref<2x256xf32, #tpu.memory_space<vmem>>, vector<2x128xf32>,
    %413 = vector.extract_strided_slice %5 {offsets = [14, 0], sizes = [2, 512], strides = [1, 1]} : vector<16x512xf32> to vector<2x512xf32>
    %414 = arith.addf %413, %411 : vector<2x512xf32>
    %415 = vector.extract_strided_slice %414 {offsets = [0, 0], sizes = [2, 128], strides = [1, 1]} : vector<2x512xf32> to vector<2x128xf32>
    %416 = arith.negf %415 : vector<2x128xf32>
    %417 = math.exp %416 : vector<2x128xf32>
    %cst_117 = arith.constant 1.000000e+00 : f32
    %418 = vector.broadcast %cst_117 : f32 to vector<2x128xf32>
    %419 = arith.addf %418, %417 : vector<2x128xf32>
    %420 = arith.divf %418, %419 : vector<2x128xf32>
    %421 = vector.extract_strided_slice %414 {offsets = [0, 128], sizes = [2, 128], strides = [1, 1]} : vector<2x512xf32> to vector<2x128xf32>
    %422 = arith.negf %421 : vector<2x128xf32>
    %423 = math.exp %422 : vector<2x128xf32>
    %cst_118 = arith.constant 1.000000e+00 : f32
    %424 = vector.broadcast %cst_118 : f32 to vector<2x128xf32>
    %425 = arith.addf %424, %423 : vector<2x128xf32>
    %426 = arith.divf %424, %425 : vector<2x128xf32>
    %427 = vector.extract_strided_slice %414 {offsets = [0, 256], sizes = [2, 128], strides = [1, 1]} : vector<2x512xf32> to vector<2x128xf32>
    %428 = math.tanh %427 : vector<2x128xf32>
    %429 = vector.extract_strided_slice %414 {offsets = [0, 384], sizes = [2, 128], strides = [1, 1]} : vector<2x512xf32> to vector<2x128xf32>
    %430 = arith.negf %429 : vector<2x128xf32>
    %431 = math.exp %430 : vector<2x128xf32>
    %cst_119 = arith.constant 1.000000e+00 : f32
    %432 = vector.broadcast %cst_119 : f32 to vector<2x128xf32>
    %433 = arith.addf %432, %431 : vector<2x128xf32>
    %434 = arith.divf %432, %433 : vector<2x128xf32>
    %435 = arith.mulf %426, %380 : vector<2x128xf32>
    %436 = arith.mulf %420, %428 : vector<2x128xf32>
    %437 = arith.addf %435, %436 : vector<2x128xf32>
    %438 = math.tanh %437 : vector<2x128xf32>
    %439 = arith.mulf %434, %438 : vector<2x128xf32>
    %c0_120 = arith.constant 0 : index
    %c0_121 = arith.constant 0 : index
    %440 = vector.load %arg9[%c0_120, %c0_121] : memref<2x256xf32, #tpu.memory_space<vmem>>, vector<2x128xf32>
    tpu.vector_store %arg9[%c0_120, %c0_121], %439 {strides = array<i32>} : memref<2x256xf32, #tpu.memory_space<vmem>>, vector<2x128xf32>,
    %c0_122 = arith.constant 0 : index
    %c0_123 = arith.constant 0 : index
    %441 = vector.load %arg9[%c0_122, %c0_123] : memref<2x256xf32, #tpu.memory_space<vmem>>, vector<2x256xf32>
    %c0_124 = arith.constant 0 : index
    %c0_125 = arith.constant 0 : index
    %442 = vector.load %arg4[%c0_124, %c0_125] : memref<256x1024xf32, #tpu.memory_space<vmem>>, vector<256x512xf32>
    %cst_126 = arith.constant dense<0.000000e+00> : vector<2x512xf32>
    %443 = tpu.matmul %441, %442, %cst_126 {dimension_numbers = #tpu.dot_dimension_numbers<[1], [0], [0], [1], [0, 0, 1, 1], [], []>} : vector<2x256xf32>, vector<256x512xf32>, vector<2x512xf32> -> vector<2x512xf32>
    %444 = vector.extract_strided_slice %8 {offsets = [0, 0], sizes = [2, 512], strides = [1, 1]} : vector<2x1024xf32> to vector<2x512xf32>
    %445 = arith.addf %443, %444 : vector<2x512xf32>
    %446 = vector.extract_strided_slice %445 {offsets = [0, 0], sizes = [2, 128], strides = [1, 1]} : vector<2x512xf32> to vector<2x128xf32>
    %447 = arith.negf %446 : vector<2x128xf32>
    %448 = math.exp %447 : vector<2x128xf32>
    %cst_127 = arith.constant 1.000000e+00 : f32
    %449 = vector.broadcast %cst_127 : f32 to vector<2x128xf32>
    %450 = arith.addf %449, %448 : vector<2x128xf32>
    %451 = arith.divf %449, %450 : vector<2x128xf32>
    %452 = vector.extract_strided_slice %445 {offsets = [0, 128], sizes = [2, 128], strides = [1, 1]} : vector<2x512xf32> to vector<2x128xf32>
    %453 = arith.negf %452 : vector<2x128xf32>
    %454 = math.exp %453 : vector<2x128xf32>
    %cst_128 = arith.constant 1.000000e+00 : f32
    %455 = vector.broadcast %cst_128 : f32 to vector<2x128xf32>
    %456 = arith.addf %455, %454 : vector<2x128xf32>
    %457 = arith.divf %455, %456 : vector<2x128xf32>
    %458 = vector.extract_strided_slice %445 {offsets = [0, 256], sizes = [2, 128], strides = [1, 1]} : vector<2x512xf32> to vector<2x128xf32>
    %459 = vector.extract_strided_slice %445 {offsets = [0, 384], sizes = [2, 128], strides = [1, 1]} : vector<2x512xf32> to vector<2x128xf32>
    %460 = arith.mulf %451, %459 : vector<2x128xf32>
    %461 = arith.addf %458, %460 : vector<2x128xf32>
    %462 = math.tanh %461 : vector<2x128xf32>
    %cst_129 = arith.constant 1.000000e+00 : f32
    %463 = vector.broadcast %cst_129 : f32 to vector<2x128xf32>
    %464 = arith.subf %463, %457 : vector<2x128xf32>
    %465 = arith.mulf %464, %462 : vector<2x128xf32>
    %466 = arith.mulf %457, %410 : vector<2x128xf32>
    %467 = arith.addf %465, %466 : vector<2x128xf32>
    %c0_130 = arith.constant 0 : index
    %c0_131 = arith.constant 0 : index
    %468 = vector.load %arg6[%c0_130, %c0_131] : memref<128x128xf32, #tpu.memory_space<vmem>>, vector<128x128xf32>
    %cst_132 = arith.constant dense<0.000000e+00> : vector<2x128xf32>
    %469 = tpu.matmul %467, %468, %cst_132 {dimension_numbers = #tpu.dot_dimension_numbers<[1], [0], [0], [1], [0, 0, 1, 1], [], []>} : vector<2x128xf32>, vector<128x128xf32>, vector<2x128xf32> -> vector<2x128xf32>
    %c0_133 = arith.constant 0 : index
    %c0_134 = arith.constant 0 : index
    %470 = vector.load %arg7[%c0_133, %c0_134] : memref<1x128xf32, #tpu.memory_space<vmem>>, vector<1x128xf32>
    %471 = vector.broadcast %470 : vector<1x128xf32> to vector<2x128xf32>
    %472 = arith.addf %469, %471 : vector<2x128xf32>
    %c0_135 = arith.constant 0 : index
    %c0_136 = arith.constant 0 : index
    %473 = vector.load %arg8[%c0_135, %c0_136] : memref<2x128xf32, #tpu.memory_space<vmem>>, vector<2x128xf32>
    tpu.vector_store %arg8[%c0_135, %c0_136], %472 {strides = array<i32>} : memref<2x128xf32, #tpu.memory_space<vmem>>, vector<2x128xf32>,
    return
  }
  func.func @transform_0(%arg0: i32) -> (i32, i32) {
    %c0_i32 = arith.constant 0 : i32
    %c0_i32_0 = arith.constant 0 : i32
    %c0_i32_1 = arith.constant 0 : i32
    return %c0_i32, %c0_i32_0 : i32, i32
  }
  func.func @transform_1(%arg0: i32) -> (i32, i32) {
    %c0_i32 = arith.constant 0 : i32
    %c0_i32_0 = arith.constant 0 : i32
    %c0_i32_1 = arith.constant 0 : i32
    return %c0_i32, %c0_i32_0 : i32, i32
  }
  func.func @transform_2(%arg0: i32) -> (i32, i32) {
    %c0_i32 = arith.constant 0 : i32
    %c0_i32_0 = arith.constant 0 : i32
    %c0_i32_1 = arith.constant 0 : i32
    return %c0_i32, %c0_i32_0 : i32, i32
  }
  func.func @transform_3(%arg0: i32) -> (i32, i32) {
    %c0_i32 = arith.constant 0 : i32
    %c0_i32_0 = arith.constant 0 : i32
    %c0_i32_1 = arith.constant 0 : i32
    return %c0_i32, %c0_i32_0 : i32, i32
  }
  func.func @transform_4(%arg0: i32) -> (i32, i32) {
    %c0_i32 = arith.constant 0 : i32
    %c0_i32_0 = arith.constant 0 : i32
    %c0_i32_1 = arith.constant 0 : i32
    return %c0_i32, %c0_i32_0 : i32, i32
  }
  func.func @transform_5(%arg0: i32) -> (i32, i32) {
    %c0_i32 = arith.constant 0 : i32
    %c0_i32_0 = arith.constant 0 : i32
    %c0_i32_1 = arith.constant 0 : i32
    return %c0_i32, %c0_i32_0 : i32, i32
  }
  func.func @transform_6(%arg0: i32) -> (i32, i32) {
    %c0_i32 = arith.constant 0 : i32
    %c0_i32_0 = arith.constant 0 : i32
    %c0_i32_1 = arith.constant 0 : i32
    return %c0_i32, %c0_i32_0 : i32, i32
  }
  func.func @transform_7(%arg0: i32) -> (i32, i32) {
    %c0_i32 = arith.constant 0 : i32
    %c0_i32_0 = arith.constant 0 : i32
    %c0_i32_1 = arith.constant 0 : i32
    return %c0_i32, %c0_i32_0 : i32, i32
  }
}

</mosaic_0001>

<llo_original>
// kernel: tpu_custom_call.1
$region0: #{tpu_custom_call.1}
  #allocation0 [shape = 'u32[]', space=smem, size = 0x4, offset = 0x4, fixed_abs, tag = 'smem constant byte address 0x4 - core index']
  #allocation1 [shape = 'u32[144,128]{1,0:T(1,128)}', space=vmem, size = 0x12000, scoped, tag = 'internal scratch']
  #allocation2 [shape = 'f32[2,256]{1,0:T(2,128)}', space=vmem, size = 0x800, scoped, tag = 'scratch operand']
  %s0 = inlined_call_operand.hbm [shape: f32[16,16], index: 0, kind: input, shape index: {}]
  %s1 = inlined_call_operand.hbm [shape: f32[16,512], index: 1, kind: input, shape index: {}]
  %s2 = inlined_call_operand.hbm [shape: f32[1,512], index: 2, kind: input, shape index: {}]
  %s3 = inlined_call_operand.hbm [shape: f32[256,1024], index: 3, kind: input, shape index: {}]
  %s4 = inlined_call_operand.hbm [shape: f32[1,1024], index: 4, kind: input, shape index: {}]
  %s5 = inlined_call_operand.hbm [shape: f32[128,128], index: 5, kind: input, shape index: {}]
  %s6 = inlined_call_operand.vmem [shape: f32[1,128], index: 6, kind: input, shape index: {}]
  %s7 = inlined_call_operand.hbm [shape: f32[2,128], index: 7, kind: output, shape index: {}]
  %s8 = sld [smem:[#allocation0]]
  $region62: #{tpu_custom_call.1} parent=0
    _
  %s10 = ssub.s32 1, %s8
  %s11 = scalar_select 0, %s10, %s8
  $region1: #{tpu_custom_call.1} parent=0
    #allocation3 [shape = 'u8[8192]{0}', space=vmem, size = 0x2000, scoped, tag = 'input window, operand 0, single buffered']
    #allocation4 [shape = 's32[1]{0}', space=sflag, size = 0x4, scoped, tag = 'scoped memory for tpu_custom_call.1']
    #allocation5 [shape = 's32[1]{0}', space=sflag, size = 0x4, scoped, tag = 'scoped memory for tpu_custom_call.1']
    #allocation6 [shape = 'u8[32768]{0}', space=vmem, size = 0x8000, scoped, tag = 'input window, operand 1, single buffered']
    #allocation7 [shape = 's32[1]{0}', space=sflag, size = 0x4, scoped, tag = 'scoped memory for tpu_custom_call.1']
    #allocation8 [shape = 'u8[2048]{0}', space=vmem, size = 0x800, scoped, tag = 'input window, operand 2, single buffered']
    #allocation9 [shape = 'u8[1048576]{0}', space=vmem, size = 0x100000, scoped, tag = 'input window, operand 3, single buffered']
    #allocation10 [shape = 's32[1]{0}', space=sflag, size = 0x4, scoped, tag = 'scoped memory for tpu_custom_call.1']
    #allocation11 [shape = 'u8[4096]{0}', space=vmem, size = 0x1000, scoped, tag = 'input window, operand 4, single buffered']
    #allocation12 [shape = 'u8[65536]{0}', space=vmem, size = 0x10000, scoped, tag = 'input window, operand 5, single buffered']
    #allocation13 [shape = 's32[1]{0}', space=sflag, size = 0x4, scoped, tag = 'scoped memory for tpu_custom_call.1']
    #allocation14 [shape = 'u8[1024]{0}', space=vmem, size = 0x400, scoped, tag = 'output window, operand 0, single buffered']
    %12 = vsyncpa [#allocation4], 0
    %13 = vsyncpa [#allocation7], 0
    %14 = vsyncpa [#allocation10], 0
    %15 = vsyncpa [#allocation13], 0
    %16 = vsyncpa [#allocation5], 0
    // Predicated region
    $region2: #{tpu_custom_call.1} parent=1 // pred_check
      _
    $region3: #{tpu_custom_call.1} parent=1 // pred_check_branch
      %18 = sbr.rel (0) target = $region5
    $region4: #{tpu_custom_call.1} parent=1 // pred_region
      %s20 = ssub.s32 256, 256
      %21 = vsyncadd [#allocation4], %s20
      %s22 = sshll.u32 [#allocation3], 4
      %s23 = int_to_ptr.vmem [resolvable:$true] %s22
      %28 = dma.hbm_to_vmem [thread:$0]  %s0, 256, %s23, [#allocation4], 128, 128, 8
    $region5: #{tpu_custom_call.1} parent=1 // pred_fallthru
      _
    // Predicated region
    $region6: #{tpu_custom_call.1} parent=1 // pred_check
      _
    $region7: #{tpu_custom_call.1} parent=1 // pred_check_branch
      %30 = sbr.rel (0) target = $region9
    $region8: #{tpu_custom_call.1} parent=1 // pred_region
      %s32 = ssub.s32 1024, 1024
      %33 = vsyncadd [#allocation7], %s32
      %s34 = sshll.u32 [#allocation6], 4
      %s35 = int_to_ptr.vmem [resolvable:$true] %s34
      %40 = dma.hbm_to_vmem [thread:$0]  %s1, 1024, %s35, [#allocation7], 512, 512, 32
    $region9: #{tpu_custom_call.1} parent=1 // pred_fallthru
      _
    // Predicated region
    $region10: #{tpu_custom_call.1} parent=1 // pred_check
      _
    $region11: #{tpu_custom_call.1} parent=1 // pred_check_branch
      %42 = sbr.rel (0) target = $region13
    $region12: #{tpu_custom_call.1} parent=1 // pred_region
      %s44 = ssub.s32 64, 64
      %45 = vsyncadd [#allocation7], %s44
      %s47 = sshll.u32 [#allocation8], 4
      %s48 = int_to_ptr.vmem [resolvable:$true] %s47
      %50 = dma.hbm_to_vmem [thread:$0]  %s2, 64, %s48, [#allocation7]
    $region13: #{tpu_custom_call.1} parent=1 // pred_fallthru
      _
    // Predicated region
    $region14: #{tpu_custom_call.1} parent=1 // pred_check
      _
    $region15: #{tpu_custom_call.1} parent=1 // pred_check_branch
      %52 = sbr.rel (0) target = $region17
    $region16: #{tpu_custom_call.1} parent=1 // pred_region
      %s54 = ssub.s32 32768, 32768
      %55 = vsyncadd [#allocation10], %s54
      %s56 = sshll.u32 [#allocation9], 4
      %s57 = int_to_ptr.vmem [resolvable:$true] %s56
      %62 = dma.hbm_to_vmem [thread:$0]  %s3, 32768, %s57, [#allocation10], 1024, 1024, 64
    $region17: #{tpu_custom_call.1} parent=1 // pred_fallthru
      _
    // Predicated region
    $region18: #{tpu_custom_call.1} parent=1 // pred_check
      _
    $region19: #{tpu_custom_call.1} parent=1 // pred_check_branch
      %64 = sbr.rel (0) target = $region21
    $region20: #{tpu_custom_call.1} parent=1 // pred_region
      %s66 = ssub.s32 128, 128
      %67 = vsyncadd [#allocation10], %s66
      %s69 = sshll.u32 [#allocation11], 4
      %s70 = int_to_ptr.vmem [resolvable:$true] %s69
      %72 = dma.hbm_to_vmem [thread:$0]  %s4, 128, %s70, [#allocation10]
    $region21: #{tpu_custom_call.1} parent=1 // pred_fallthru
      _
    // Predicated region
    $region22: #{tpu_custom_call.1} parent=1 // pred_check
      _
    $region23: #{tpu_custom_call.1} parent=1 // pred_check_branch
      %74 = sbr.rel (0) target = $region25
    $region24: #{tpu_custom_call.1} parent=1 // pred_region
      %s76 = ssub.s32 2048, 2048
      %77 = vsyncadd [#allocation13], %s76
      %s78 = sshll.u32 [#allocation12], 4
      %s79 = int_to_ptr.vmem [resolvable:$true] %s78
      %84 = dma.hbm_to_vmem [thread:$0]  %s5, 2048, %s79, [#allocation13], 128, 128, 8
    $region25: #{tpu_custom_call.1} parent=1 // pred_fallthru
      _
    // Predicated region
    $region26: #{tpu_custom_call.1} parent=1 // pred_check
      _
    $region27: #{tpu_custom_call.1} parent=1 // pred_check_branch
      %86 = sbr.rel (0) target = $region29
    $region28: #{tpu_custom_call.1} parent=1 // pred_region
      _
    $region29: #{tpu_custom_call.1} parent=1 // pred_fallthru
      _
    // Predicated region
    $region30: #{tpu_custom_call.1} parent=1 // pred_check
      _
    $region31: #{tpu_custom_call.1} parent=1 // pred_check_branch
      %88 = sbr.rel (0) target = $region33
    $region32: #{tpu_custom_call.1} parent=1 // pred_region
      %89 = dma.done [#allocation4], 256
    $region33: #{tpu_custom_call.1} parent=1 // pred_fallthru
      _
    // Predicated region
    $region34: #{tpu_custom_call.1} parent=1 // pred_check
      _
    $region35: #{tpu_custom_call.1} parent=1 // pred_check_branch
      %91 = sbr.rel (0) target = $region37
    $region36: #{tpu_custom_call.1} parent=1 // pred_region
      %92 = dma.done [#allocation7], 1024
    $region37: #{tpu_custom_call.1} parent=1 // pred_fallthru
      _
    // Predicated region
    $region38: #{tpu_custom_call.1} parent=1 // pred_check
      _
    $region39: #{tpu_custom_call.1} parent=1 // pred_check_branch
      %94 = sbr.rel (0) target = $region41
    $region40: #{tpu_custom_call.1} parent=1 // pred_region
      %95 = dma.done [#allocation7], 64
    $region41: #{tpu_custom_call.1} parent=1 // pred_fallthru
      _
    // Predicated region
    $region42: #{tpu_custom_call.1} parent=1 // pred_check
      _
    $region43: #{tpu_custom_call.1} parent=1 // pred_check_branch
      %97 = sbr.rel (0) target = $region45
    $region44: #{tpu_custom_call.1} parent=1 // pred_region
      %98 = dma.done [#allocation10], 32768
    $region45: #{tpu_custom_call.1} parent=1 // pred_fallthru
      _
    // Predicated region
    $region46: #{tpu_custom_call.1} parent=1 // pred_check
      _
    $region47: #{tpu_custom_call.1} parent=1 // pred_check_branch
      %100 = sbr.rel (0) target = $region49
    $region48: #{tpu_custom_call.1} parent=1 // pred_region
      %101 = dma.done [#allocation10], 128
    $region49: #{tpu_custom_call.1} parent=1 // pred_fallthru
      _
    // Predicated region
    $region50: #{tpu_custom_call.1} parent=1 // pred_check
      _
    $region51: #{tpu_custom_call.1} parent=1 // pred_check_branch
      %103 = sbr.rel (0) target = $region53
    $region52: #{tpu_custom_call.1} parent=1 // pred_region
      %104 = dma.done [#allocation13], 2048
    $region53: #{tpu_custom_call.1} parent=1 // pred_fallthru
      _
    %v105 = vld [vmem:[#allocation3] sm:$0xff]
    %v106 = vld [vmem:[#allocation3 + $0x8] sm:$0xff]
    %v107 = vld [vmem:[#allocation6] sm:$0xff]
    %v108 = vld [vmem:[#allocation6 + $0x8] sm:$0xff]
    %v109 = vld [vmem:[#allocation6 + $0x10] sm:$0xff]
    %v110 = vld [vmem:[#allocation6 + $0x18] sm:$0xff]
    %v111 = vld [vmem:[#allocation6 + $0x20] sm:$0xff]
    %v112 = vld [vmem:[#allocation6 + $0x28] sm:$0xff]
    %v113 = vld [vmem:[#allocation6 + $0x30] sm:$0xff]
    %v114 = vld [vmem:[#allocation6 + $0x38] sm:$0xff]
    %v115 = vld [vmem:[#allocation8] sm:$0xf]
    %v117 = vlaneseq
    %v118 = vshrl.u32 %v117, 7
    %v119 = vsub.s32 0, %v118
    %v120 = vrot.slane %v115, %v119
    %v121 = vlaneseq
    %v122 = vshrl.u32 %v121, 7
    %v123 = vsub.s32 1, %v122
    %v124 = vrot.slane %v115, %v123
    %v125 = vlaneseq
    %v126 = vshrl.u32 %v125, 7
    %v127 = vsub.s32 2, %v126
    %v128 = vrot.slane %v115, %v127
    %v129 = vlaneseq
    %v130 = vshrl.u32 %v129, 7
    %v131 = vsub.s32 3, %v130
    %v132 = vrot.slane %v115, %v131
    %vm137 = vcmask 130048
    %v139 = vsel %vm137, %v105, 0
    %v142 = vsel %vm137, %v106, 0
    %144 = vmatprep.subr.mxu0 0.0
    %145 = vmatpush1.msra.mxu0 0.0
    %146 = vmatprep.subr.mxu0 0.0
    %147 = vmatpush1.msra.mxu0 0.0
    %148 = vmatprep.subr.mxu0 0.0
    %149 = vmatpush1.msra.mxu0 0.0
    %150 = vmatprep.subr.mxu0 0.0
    %151 = vmatpush1.msra.mxu0 0.0
    %152 = vmatprep.subr.mxu0 0.0
    %153 = vmatpush1.msra.mxu0 0.0
    %154 = vmatprep.subr.mxu0 0.0
    %155 = vmatpush1.msra.mxu0 0.0
    %156 = vmatprep.subr.mxu0 0.0
    %157 = vmatpush1.msra.mxu0 0.0
    %158 = vmatprep.subr.mxu0 0.0
    %159 = vmatpush1.msra.mxu0 0.0
    %160 = vmatprep.subr.mxu0 0.0
    %161 = vmatpush1.msra.mxu0 0.0
    %162 = vmatprep.subr.mxu0 0.0
    %163 = vmatpush1.msra.mxu0 0.0
    %164 = vmatprep.subr.mxu0 0.0
    %165 = vmatpush1.msra.mxu0 0.0
    %166 = vmatprep.subr.mxu0 0.0
    %167 = vmatpush1.msra.mxu0 0.0
    %168 = vmatprep.subr.mxu0 0.0
    %169 = vmatpush1.msra.mxu0 0.0
    %170 = vmatprep.subr.mxu0 0.0
    %171 = vmatpush1.msra.mxu0 0.0
    %172 = vmatprep.subr.mxu0 %v112
    %173 = vmatpush1.msra.mxu0 %v111
    %174 = vmatprep.subr.mxu0 %v108
    %175 = vmatpush1.msra.mxu0 %v107
    %176 = vmatprep.subr.mxu0 0.0
    %177 = vmatpush2.msra.mxu0 0.0
    %178 = vmatprep.subr.mxu0 0.0
    %179 = vmatpush2.msra.mxu0 0.0
    %180 = vmatprep.subr.mxu0 0.0
    %181 = vmatpush2.msra.mxu0 0.0
    %182 = vmatprep.subr.mxu0 0.0
    %183 = vmatpush2.msra.mxu0 0.0
    %184 = vmatprep.subr.mxu0 0.0
    %185 = vmatpush2.msra.mxu0 0.0
    %186 = vmatprep.subr.mxu0 0.0
    %187 = vmatpush2.msra.mxu0 0.0
    %188 = vmatprep.subr.mxu0 0.0
    %189 = vmatpush2.msra.mxu0 0.0
    %190 = vmatprep.subr.mxu0 0.0
    %191 = vmatpush2.msra.mxu0 0.0
    %192 = vmatprep.subr.mxu0 0.0
    %193 = vmatpush2.msra.mxu0 0.0
    %194 = vmatprep.subr.mxu0 0.0
    %195 = vmatpush2.msra.mxu0 0.0
    %196 = vmatprep.subr.mxu0 0.0
    %197 = vmatpush2.msra.mxu0 0.0
    %198 = vmatprep.subr.mxu0 0.0
    %199 = vmatpush2.msra.mxu0 0.0
    %200 = vmatprep.subr.mxu0 0.0
    %201 = vmatpush2.msra.mxu0 0.0
    %202 = vmatprep.subr.mxu0 0.0
    %203 = vmatpush2.msra.mxu0 0.0
    %204 = vmatprep.subr.mxu0 0.0
    %205 = vmatpush2.msra.mxu0 0.0
    %206 = vmatprep.subr.mxu0 0.0
    %207 = vmatpush2.msra.mxu0 0.0
    %208 = vmatprep.mubr.f32.mxu0 0.0
    %209 = vmatmul.mubr.f32.gmra.mxu0 %v139
    %v210 = vpop.f32.mrf.mxu0
    %v211 = vadd.f32 %v120, %v210
    %v212 = vpop.f32.mrf.mxu0
    %v213 = vadd.f32 %v124, %v212
    %214 = vmatprep.mubr.f32.mxu0 0.0
    %215 = vmatmul.mubr.f32.gmra.mxu0 %v142
    %v216 = vpop.f32.mrf.mxu0
    %v217 = vadd.f32 %v120, %v216
    %v218 = vpop.f32.mrf.mxu0
    %v219 = vadd.f32 %v124, %v218
    %220 = vdwg.mxu0
    %221 = vmatprep.subr.mxu0 0.0
    %222 = vmatpush1.msra.mxu0 0.0
    %223 = vmatprep.subr.mxu0 0.0
    %224 = vmatpush1.msra.mxu0 0.0
    %225 = vmatprep.subr.mxu0 0.0
    %226 = vmatpush1.msra.mxu0 0.0
    %227 = vmatprep.subr.mxu0 0.0
    %228 = vmatpush1.msra.mxu0 0.0
    %229 = vmatprep.subr.mxu0 0.0
    %230 = vmatpush1.msra.mxu0 0.0
    %231 = vmatprep.subr.mxu0 0.0
    %232 = vmatpush1.msra.mxu0 0.0
    %233 = vmatprep.subr.mxu0 0.0
    %234 = vmatpush1.msra.mxu0 0.0
    %235 = vmatprep.subr.mxu0 0.0
    %236 = vmatpush1.msra.mxu0 0.0
    %237 = vmatprep.subr.mxu0 0.0
    %238 = vmatpush1.msra.mxu0 0.0
    %239 = vmatprep.subr.mxu0 0.0
    %240 = vmatpush1.msra.mxu0 0.0
    %241 = vmatprep.subr.mxu0 0.0
    %242 = vmatpush1.msra.mxu0 0.0
    %243 = vmatprep.subr.mxu0 0.0
    %244 = vmatpush1.msra.mxu0 0.0
    %245 = vmatprep.subr.mxu0 0.0
    %246 = vmatpush1.msra.mxu0 0.0
    %247 = vmatprep.subr.mxu0 0.0
    %248 = vmatpush1.msra.mxu0 0.0
    %249 = vmatprep.subr.mxu0 %v114
    %250 = vmatpush1.msra.mxu0 %v113
    %251 = vmatprep.subr.mxu0 %v110
    %252 = vmatpush1.msra.mxu0 %v109
    %253 = vmatprep.subr.mxu0 0.0
    %254 = vmatpush2.msra.mxu0 0.0
    %255 = vmatprep.subr.mxu0 0.0
    %256 = vmatpush2.msra.mxu0 0.0
    %257 = vmatprep.subr.mxu0 0.0
    %258 = vmatpush2.msra.mxu0 0.0
    %259 = vmatprep.subr.mxu0 0.0
    %260 = vmatpush2.msra.mxu0 0.0
    %261 = vmatprep.subr.mxu0 0.0
    %262 = vmatpush2.msra.mxu0 0.0
    %263 = vmatprep.subr.mxu0 0.0
    %264 = vmatpush2.msra.mxu0 0.0
    %265 = vmatprep.subr.mxu0 0.0
    %266 = vmatpush2.msra.mxu0 0.0
    %267 = vmatprep.subr.mxu0 0.0
    %268 = vmatpush2.msra.mxu0 0.0
    %269 = vmatprep.subr.mxu0 0.0
    %270 = vmatpush2.msra.mxu0 0.0
    %271 = vmatprep.subr.mxu0 0.0
    %272 = vmatpush2.msra.mxu0 0.0
    %273 = vmatprep.subr.mxu0 0.0
    %274 = vmatpush2.msra.mxu0 0.0
    %275 = vmatprep.subr.mxu0 0.0
    %276 = vmatpush2.msra.mxu0 0.0
    %277 = vmatprep.subr.mxu0 0.0
    %278 = vmatpush2.msra.mxu0 0.0
    %279 = vmatprep.subr.mxu0 0.0
    %280 = vmatpush2.msra.mxu0 0.0
    %281 = vmatprep.subr.mxu0 0.0
    %282 = vmatpush2.msra.mxu0 0.0
    %283 = vmatprep.subr.mxu0 0.0
    %284 = vmatpush2.msra.mxu0 0.0
    %285 = vmatprep.mubr.f32.mxu0 0.0
    %286 = vmatmul.mubr.f32.gmra.mxu0 %v139
    %v287 = vpop.f32.mrf.mxu0
    %v288 = vadd.f32 %v128, %v287
    %v289 = vpop.f32.mrf.mxu0
    %v290 = vadd.f32 %v132, %v289
    %291 = vmatprep.mubr.f32.mxu0 0.0
    %292 = vmatmul.mubr.f32.gmra.mxu0 %v142
    %v293 = vpop.f32.mrf.mxu0
    %v294 = vadd.f32 %v128, %v293
    %v295 = vpop.f32.mrf.mxu0
    %v296 = vadd.f32 %v132, %v295
    %297 = vdwg.mxu0
    %v298 = vld [vmem:[#allocation11] sm:$0xff]
    %v300 = vlaneseq
    %v301 = vshrl.u32 %v300, 7
    %v302 = vsub.s32 0, %v301
    %v303 = vrot.slane %v298, %v302
    %v304 = vlaneseq
    %v305 = vshrl.u32 %v304, 7
    %v306 = vsub.s32 1, %v305
    %v307 = vrot.slane %v298, %v306
    %v308 = vlaneseq
    %v309 = vshrl.u32 %v308, 7
    %v310 = vsub.s32 2, %v309
    %v311 = vrot.slane %v298, %v310
    %v312 = vlaneseq
    %v313 = vshrl.u32 %v312, 7
    %v314 = vsub.s32 3, %v313
    %v315 = vrot.slane %v298, %v314
    %v316 = vlaneseq
    %v317 = vshrl.u32 %v316, 7
    %v318 = vsub.s32 4, %v317
    %v319 = vrot.slane %v298, %v318
    %v320 = vlaneseq
    %v321 = vshrl.u32 %v320, 7
    %v322 = vsub.s32 5, %v321
    %v323 = vrot.slane %v298, %v322
    %v324 = vlaneseq
    %v325 = vshrl.u32 %v324, 7
    %v326 = vsub.s32 6, %v325
    %v327 = vrot.slane %v298, %v326
    %v328 = vlaneseq
    %v329 = vshrl.u32 %v328, 7
    %v330 = vsub.s32 7, %v329
    %v331 = vrot.slane %v298, %v330
    %340 = vst [vmem:[#allocation2] sm:$0xf] 0.0
    %v341 = vadd.f32 %v211, 0.0
    %v342 = vadd.f32 %v213, 0.0
    %v343 = vadd.f32 %v288, 0.0
    %v344 = vadd.f32 %v290, 0.0
    %v345 = vxor.u32 %v341, 2147483648
    %v346 = vmul.f32 %v345, 1.442695
    %v347 = vpow.pop %v346
    %v348 = vadd.f32 %v347, 1.0
    %v349 = vrcp.pop %v348
    %v350 = vmul.f32 1.0, %v349
    %v351 = vxor.u32 %v342, 2147483648
    %v352 = vmul.f32 %v351, 1.442695
    %v353 = vpow.pop %v352
    %v354 = vadd.f32 %v353, 1.0
    %v355 = vrcp.pop %v354
    %v356 = vmul.f32 1.0, %v355
    %v357 = vtanh.pop %v343
    %v358 = vxor.u32 %v344, 2147483648
    %v359 = vmul.f32 %v358, 1.442695
    %v360 = vpow.pop %v359
    %v361 = vadd.f32 %v360, 1.0
    %v362 = vrcp.pop %v361
    %v363 = vmul.f32 1.0, %v362
    %v364 = vmul.f32 %v356, 0.0
    %v365 = vmul.f32 %v350, %v357
    %v366 = vadd.f32 %v364, %v365
    %v367 = vtanh.pop %v366
    %v368 = vmul.f32 %v363, %v367
    %369 = vst [vmem:[#allocation2] sm:$0x3] %v368
    %v370 = vld [vmem:[#allocation2] sm:$0xf]
    %v371 = vld [vmem:[#allocation9] sm:$0xff]
    %v372 = vld [vmem:[#allocation9 + $0x8] sm:$0xff]
    %v373 = vld [vmem:[#allocation9 + $0x10] sm:$0xff]
    %v374 = vld [vmem:[#allocation9 + $0x18] sm:$0xff]
    %v375 = vld [vmem:[#allocation9 + $0x20] sm:$0xff]
    %v376 = vld [vmem:[#allocation9 + $0x28] sm:$0xff]
    %v377 = vld [vmem:[#allocation9 + $0x30] sm:$0xff]
    %v378 = vld [vmem:[#allocation9 + $0x38] sm:$0xff]
    %v379 = vld [vmem:[#allocation9 + $0x40] sm:$0xff]
    %v380 = vld [vmem:[#allocation9 + $0x48] sm:$0xff]
    %v381 = vld [vmem:[#allocation9 + $0x50] sm:$0xff]
    %v382 = vld [vmem:[#allocation9 + $0x58] sm:$0xff]
    %v383 = vld [vmem:[#allocation9 + $0x60] sm:$0xff]
    %v384 = vld [vmem:[#allocation9 + $0x68] sm:$0xff]
    %v385 = vld [vmem:[#allocation9 + $0x70] sm:$0xff]
    %v386 = vld [vmem:[#allocation9 + $0x78] sm:$0xff]
    %v387 = vld [vmem:[#allocation9 + $0x80] sm:$0xff]
    %v388 = vld [vmem:[#allocation9 + $0x88] sm:$0xff]
    %v389 = vld [vmem:[#allocation9 + $0x90] sm:$0xff]
    %v390 = vld [vmem:[#allocation9 + $0x98] sm:$0xff]
    %v391 = vld [vmem:[#allocation9 + $0xa0] sm:$0xff]
    %v392 = vld [vmem:[#allocation9 + $0xa8] sm:$0xff]
    %v393 = vld [vmem:[#allocation9 + $0xb0] sm:$0xff]
    %v394 = vld [vmem:[#allocation9 + $0xb8] sm:$0xff]
    %v395 = vld [vmem:[#allocation9 + $0xc0] sm:$0xff]
    %v396 = vld [vmem:[#allocation9 + $0xc8] sm:$0xff]
    %v397 = vld [vmem:[#allocation9 + $0xd0] sm:$0xff]
    %v398 = vld [vmem:[#allocation9 + $0xd8] sm:$0xff]
    %v399 = vld [vmem:[#allocation9 + $0xe0] sm:$0xff]
    %v400 = vld [vmem:[#allocation9 + $0xe8] sm:$0xff]
    %v401 = vld [vmem:[#allocation9 + $0xf0] sm:$0xff]
    %v402 = vld [vmem:[#allocation9 + $0xf8] sm:$0xff]
    %v403 = vld [vmem:[#allocation9 + $0x100] sm:$0xff]
    %v404 = vld [vmem:[#allocation9 + $0x108] sm:$0xff]
    %v405 = vld [vmem:[#allocation9 + $0x110] sm:$0xff]
    %v406 = vld [vmem:[#allocation9 + $0x118] sm:$0xff]
    %v407 = vld [vmem:[#allocation9 + $0x120] sm:$0xff]
    %v408 = vld [vmem:[#allocation9 + $0x128] sm:$0xff]
    %v409 = vld [vmem:[#allocation9 + $0x130] sm:$0xff]
    %v410 = vld [vmem:[#allocation9 + $0x138] sm:$0xff]
    %v411 = vld [vmem:[#allocation9 + $0x140] sm:$0xff]
    %v412 = vld [vmem:[#allocation9 + $0x148] sm:$0xff]
    %v413 = vld [vmem:[#allocation9 + $0x150] sm:$0xff]
    %v414 = vld [vmem:[#allocation9 + $0x158] sm:$0xff]
    %v415 = vld [vmem:[#allocation9 + $0x160] sm:$0xff]
    %v416 = vld [vmem:[#allocation9 + $0x168] sm:$0xff]
    %v417 = vld [vmem:[#allocation9 + $0x170] sm:$0xff]
    %v418 = vld [vmem:[#allocation9 + $0x178] sm:$0xff]
    %v419 = vld [vmem:[#allocation9 + $0x180] sm:$0xff]
    %v420 = vld [vmem:[#allocation9 + $0x188] sm:$0xff]
    %v421 = vld [vmem:[#allocation9 + $0x190] sm:$0xff]
    %v422 = vld [vmem:[#allocation9 + $0x198] sm:$0xff]
    %v423 = vld [vmem:[#allocation9 + $0x1a0] sm:$0xff]
    %v424 = vld [vmem:[#allocation9 + $0x1a8] sm:$0xff]
    %v425 = vld [vmem:[#allocation9 + $0x1b0] sm:$0xff]
    %v426 = vld [vmem:[#allocation9 + $0x1b8] sm:$0xff]
    %v427 = vld [vmem:[#allocation9 + $0x1c0] sm:$0xff]
    %v428 = vld [vmem:[#allocation9 + $0x1c8] sm:$0xff]
    %v429 = vld [vmem:[#allocation9 + $0x1d0] sm:$0xff]
    %v430 = vld [vmem:[#allocation9 + $0x1d8] sm:$0xff]
    %v431 = vld [vmem:[#allocation9 + $0x1e0] sm:$0xff]
    %v432 = vld [vmem:[#allocation9 + $0x1e8] sm:$0xff]
    %v433 = vld [vmem:[#allocation9 + $0x1f0] sm:$0xff]
    %v434 = vld [vmem:[#allocation9 + $0x1f8] sm:$0xff]
    %v435 = vld [vmem:[#allocation9 + $0x200] sm:$0xff]
    %v436 = vld [vmem:[#allocation9 + $0x208] sm:$0xff]
    %v437 = vld [vmem:[#allocation9 + $0x210] sm:$0xff]
    %v438 = vld [vmem:[#allocation9 + $0x218] sm:$0xff]
    %v439 = vld [vmem:[#allocation9 + $0x220] sm:$0xff]
    %v440 = vld [vmem:[#allocation9 + $0x228] sm:$0xff]
    %v441 = vld [vmem:[#allocation9 + $0x230] sm:$0xff]
    %v442 = vld [vmem:[#allocation9 + $0x238] sm:$0xff]
    %v443 = vld [vmem:[#allocation9 + $0x240] sm:$0xff]
    %v444 = vld [vmem:[#allocation9 + $0x248] sm:$0xff]
    %v445 = vld [vmem:[#allocation9 + $0x250] sm:$0xff]
    %v446 = vld [vmem:[#allocation9 + $0x258] sm:$0xff]
    %v447 = vld [vmem:[#allocation9 + $0x260] sm:$0xff]
    %v448 = vld [vmem:[#allocation9 + $0x268] sm:$0xff]
    %v449 = vld [vmem:[#allocation9 + $0x270] sm:$0xff]
    %v450 = vld [vmem:[#allocation9 + $0x278] sm:$0xff]
    %v451 = vld [vmem:[#allocation9 + $0x280] sm:$0xff]
    %v452 = vld [vmem:[#allocation9 + $0x288] sm:$0xff]
    %v453 = vld [vmem:[#allocation9 + $0x290] sm:$0xff]
    %v454 = vld [vmem:[#allocation9 + $0x298] sm:$0xff]
    %v455 = vld [vmem:[#allocation9 + $0x2a0] sm:$0xff]
    %v456 = vld [vmem:[#allocation9 + $0x2a8] sm:$0xff]
    %v457 = vld [vmem:[#allocation9 + $0x2b0] sm:$0xff]
    %v458 = vld [vmem:[#allocation9 + $0x2b8] sm:$0xff]
    %v459 = vld [vmem:[#allocation9 + $0x2c0] sm:$0xff]
    %v460 = vld [vmem:[#allocation9 + $0x2c8] sm:$0xff]
    %v461 = vld [vmem:[#allocation9 + $0x2d0] sm:$0xff]
    %v462 = vld [vmem:[#allocation9 + $0x2d8] sm:$0xff]
    %v463 = vld [vmem:[#allocation9 + $0x2e0] sm:$0xff]
    %v464 = vld [vmem:[#allocation9 + $0x2e8] sm:$0xff]
    %v465 = vld [vmem:[#allocation9 + $0x2f0] sm:$0xff]
    %v466 = vld [vmem:[#allocation9 + $0x2f8] sm:$0xff]
    %v467 = vld [vmem:[#allocation9 + $0x300] sm:$0xff]
    %v468 = vld [vmem:[#allocation9 + $0x308] sm:$0xff]
    %v469 = vld [vmem:[#allocation9 + $0x310] sm:$0xff]
    %v470 = vld [vmem:[#allocation9 + $0x318] sm:$0xff]
    %v471 = vld [vmem:[#allocation9 + $0x320] sm:$0xff]
    %v472 = vld [vmem:[#allocation9 + $0x328] sm:$0xff]
    %v473 = vld [vmem:[#allocation9 + $0x330] sm:$0xff]
    %v474 = vld [vmem:[#allocation9 + $0x338] sm:$0xff]
    %v475 = vld [vmem:[#allocation9 + $0x340] sm:$0xff]
    %v476 = vld [vmem:[#allocation9 + $0x348] sm:$0xff]
    %v477 = vld [vmem:[#allocation9 + $0x350] sm:$0xff]
    %v478 = vld [vmem:[#allocation9 + $0x358] sm:$0xff]
    %v479 = vld [vmem:[#allocation9 + $0x360] sm:$0xff]
    %v480 = vld [vmem:[#allocation9 + $0x368] sm:$0xff]
    %v481 = vld [vmem:[#allocation9 + $0x370] sm:$0xff]
    %v482 = vld [vmem:[#allocation9 + $0x378] sm:$0xff]
    %v483 = vld [vmem:[#allocation9 + $0x380] sm:$0xff]
    %v484 = vld [vmem:[#allocation9 + $0x388] sm:$0xff]
    %v485 = vld [vmem:[#allocation9 + $0x390] sm:$0xff]
    %v486 = vld [vmem:[#allocation9 + $0x398] sm:$0xff]
    %v487 = vld [vmem:[#allocation9 + $0x3a0] sm:$0xff]
    %v488 = vld [vmem:[#allocation9 + $0x3a8] sm:$0xff]
    %v489 = vld [vmem:[#allocation9 + $0x3b0] sm:$0xff]
    %v490 = vld [vmem:[#allocation9 + $0x3b8] sm:$0xff]
    %v491 = vld [vmem:[#allocation9 + $0x3c0] sm:$0xff]
    %v492 = vld [vmem:[#allocation9 + $0x3c8] sm:$0xff]
    %v493 = vld [vmem:[#allocation9 + $0x3d0] sm:$0xff]
    %v494 = vld [vmem:[#allocation9 + $0x3d8] sm:$0xff]
    %v495 = vld [vmem:[#allocation9 + $0x3e0] sm:$0xff]
    %v496 = vld [vmem:[#allocation9 + $0x3e8] sm:$0xff]
    %v497 = vld [vmem:[#allocation9 + $0x3f0] sm:$0xff]
    %v498 = vld [vmem:[#allocation9 + $0x3f8] sm:$0xff]
    %v499 = vld [vmem:[#allocation9 + $0x400] sm:$0xff]
    %v500 = vld [vmem:[#allocation9 + $0x408] sm:$0xff]
    %v501 = vld [vmem:[#allocation9 + $0x410] sm:$0xff]
    %v502 = vld [vmem:[#allocation9 + $0x418] sm:$0xff]
    %v503 = vld [vmem:[#allocation9 + $0x420] sm:$0xff]
    %v504 = vld [vmem:[#allocation9 + $0x428] sm:$0xff]
    %v505 = vld [vmem:[#allocation9 + $0x430] sm:$0xff]
    %v506 = vld [vmem:[#allocation9 + $0x438] sm:$0xff]
    %v507 = vld [vmem:[#allocation9 + $0x440] sm:$0xff]
    %v508 = vld [vmem:[#allocation9 + $0x448] sm:$0xff]
    %v509 = vld [vmem:[#allocation9 + $0x450] sm:$0xff]
    %v510 = vld [vmem:[#allocation9 + $0x458] sm:$0xff]
    %v511 = vld [vmem:[#allocation9 + $0x460] sm:$0xff]
    %v512 = vld [vmem:[#allocation9 + $0x468] sm:$0xff]
    %v513 = vld [vmem:[#allocation9 + $0x470] sm:$0xff]
    %v514 = vld [vmem:[#allocation9 + $0x478] sm:$0xff]
    %v515 = vld [vmem:[#allocation9 + $0x480] sm:$0xff]
    %v516 = vld [vmem:[#allocation9 + $0x488] sm:$0xff]
    %v517 = vld [vmem:[#allocation9 + $0x490] sm:$0xff]
    %v518 = vld [vmem:[#allocation9 + $0x498] sm:$0xff]
    %v519 = vld [vmem:[#allocation9 + $0x4a0] sm:$0xff]
    %v520 = vld [vmem:[#allocation9 + $0x4a8] sm:$0xff]
    %v521 = vld [vmem:[#allocation9 + $0x4b0] sm:$0xff]
    %v522 = vld [vmem:[#allocation9 + $0x4b8] sm:$0xff]
    %v523 = vld [vmem:[#allocation9 + $0x4c0] sm:$0xff]
    %v524 = vld [vmem:[#allocation9 + $0x4c8] sm:$0xff]
    %v525 = vld [vmem:[#allocation9 + $0x4d0] sm:$0xff]
    %v526 = vld [vmem:[#allocation9 + $0x4d8] sm:$0xff]
    %v527 = vld [vmem:[#allocation9 + $0x4e0] sm:$0xff]
    %v528 = vld [vmem:[#allocation9 + $0x4e8] sm:$0xff]
    %v529 = vld [vmem:[#allocation9 + $0x4f0] sm:$0xff]
    %v530 = vld [vmem:[#allocation9 + $0x4f8] sm:$0xff]
    %v531 = vld [vmem:[#allocation9 + $0x500] sm:$0xff]
    %v532 = vld [vmem:[#allocation9 + $0x508] sm:$0xff]
    %v533 = vld [vmem:[#allocation9 + $0x510] sm:$0xff]
    %v534 = vld [vmem:[#allocation9 + $0x518] sm:$0xff]
    %v535 = vld [vmem:[#allocation9 + $0x520] sm:$0xff]
    %v536 = vld [vmem:[#allocation9 + $0x528] sm:$0xff]
    %v537 = vld [vmem:[#allocation9 + $0x530] sm:$0xff]
    %v538 = vld [vmem:[#allocation9 + $0x538] sm:$0xff]
    %v539 = vld [vmem:[#allocation9 + $0x540] sm:$0xff]
    %v540 = vld [vmem:[#allocation9 + $0x548] sm:$0xff]
    %v541 = vld [vmem:[#allocation9 + $0x550] sm:$0xff]
    %v542 = vld [vmem:[#allocation9 + $0x558] sm:$0xff]
    %v543 = vld [vmem:[#allocation9 + $0x560] sm:$0xff]
    %v544 = vld [vmem:[#allocation9 + $0x568] sm:$0xff]
    %v545 = vld [vmem:[#allocation9 + $0x570] sm:$0xff]
    %v546 = vld [vmem:[#allocation9 + $0x578] sm:$0xff]
    %v547 = vld [vmem:[#allocation9 + $0x580] sm:$0xff]
    %v548 = vld [vmem:[#allocation9 + $0x588] sm:$0xff]
    %v549 = vld [vmem:[#allocation9 + $0x590] sm:$0xff]
    %v550 = vld [vmem:[#allocation9 + $0x598] sm:$0xff]
    %v551 = vld [vmem:[#allocation9 + $0x5a0] sm:$0xff]
    %v552 = vld [vmem:[#allocation9 + $0x5a8] sm:$0xff]
    %v553 = vld [vmem:[#allocation9 + $0x5b0] sm:$0xff]
    %v554 = vld [vmem:[#allocation9 + $0x5b8] sm:$0xff]
    %v555 = vld [vmem:[#allocation9 + $0x5c0] sm:$0xff]
    %v556 = vld [vmem:[#allocation9 + $0x5c8] sm:$0xff]
    %v557 = vld [vmem:[#allocation9 + $0x5d0] sm:$0xff]
    %v558 = vld [vmem:[#allocation9 + $0x5d8] sm:$0xff]
    %v559 = vld [vmem:[#allocation9 + $0x5e0] sm:$0xff]
    %v560 = vld [vmem:[#allocation9 + $0x5e8] sm:$0xff]
    %v561 = vld [vmem:[#allocation9 + $0x5f0] sm:$0xff]
    %v562 = vld [vmem:[#allocation9 + $0x5f8] sm:$0xff]
    %v563 = vld [vmem:[#allocation9 + $0x600] sm:$0xff]
    %v564 = vld [vmem:[#allocation9 + $0x608] sm:$0xff]
    %v565 = vld [vmem:[#allocation9 + $0x610] sm:$0xff]
    %v566 = vld [vmem:[#allocation9 + $0x618] sm:$0xff]
    %v567 = vld [vmem:[#allocation9 + $0x620] sm:$0xff]
    %v568 = vld [vmem:[#allocation9 + $0x628] sm:$0xff]
    %v569 = vld [vmem:[#allocation9 + $0x630] sm:$0xff]
    %v570 = vld [vmem:[#allocation9 + $0x638] sm:$0xff]
    %v571 = vld [vmem:[#allocation9 + $0x640] sm:$0xff]
    %v572 = vld [vmem:[#allocation9 + $0x648] sm:$0xff]
    %v573 = vld [vmem:[#allocation9 + $0x650] sm:$0xff]
    %v574 = vld [vmem:[#allocation9 + $0x658] sm:$0xff]
    %v575 = vld [vmem:[#allocation9 + $0x660] sm:$0xff]
    %v576 = vld [vmem:[#allocation9 + $0x668] sm:$0xff]
    %v577 = vld [vmem:[#allocation9 + $0x670] sm:$0xff]
    %v578 = vld [vmem:[#allocation9 + $0x678] sm:$0xff]
    %v579 = vld [vmem:[#allocation9 + $0x680] sm:$0xff]
    %v580 = vld [vmem:[#allocation9 + $0x688] sm:$0xff]
    %v581 = vld [vmem:[#allocation9 + $0x690] sm:$0xff]
    %v582 = vld [vmem:[#allocation9 + $0x698] sm:$0xff]
    %v583 = vld [vmem:[#allocation9 + $0x6a0] sm:$0xff]
    %v584 = vld [vmem:[#allocation9 + $0x6a8] sm:$0xff]
    %v585 = vld [vmem:[#allocation9 + $0x6b0] sm:$0xff]
    %v586 = vld [vmem:[#allocation9 + $0x6b8] sm:$0xff]
    %v587 = vld [vmem:[#allocation9 + $0x6c0] sm:$0xff]
    %v588 = vld [vmem:[#allocation9 + $0x6c8] sm:$0xff]
    %v589 = vld [vmem:[#allocation9 + $0x6d0] sm:$0xff]
    %v590 = vld [vmem:[#allocation9 + $0x6d8] sm:$0xff]
    %v591 = vld [vmem:[#allocation9 + $0x6e0] sm:$0xff]
    %v592 = vld [vmem:[#allocation9 + $0x6e8] sm:$0xff]
    %v593 = vld [vmem:[#allocation9 + $0x6f0] sm:$0xff]
    %v594 = vld [vmem:[#allocation9 + $0x6f8] sm:$0xff]
    %v595 = vld [vmem:[#allocation9 + $0x700] sm:$0xff]
    %v596 = vld [vmem:[#allocation9 + $0x708] sm:$0xff]
    %v597 = vld [vmem:[#allocation9 + $0x710] sm:$0xff]
    %v598 = vld [vmem:[#allocation9 + $0x718] sm:$0xff]
    %v599 = vld [vmem:[#allocation9 + $0x720] sm:$0xff]
    %v600 = vld [vmem:[#allocation9 + $0x728] sm:$0xff]
    %v601 = vld [vmem:[#allocation9 + $0x730] sm:$0xff]
    %v602 = vld [vmem:[#allocation9 + $0x738] sm:$0xff]
    %v603 = vld [vmem:[#allocation9 + $0x740] sm:$0xff]
    %v604 = vld [vmem:[#allocation9 + $0x748] sm:$0xff]
    %v605 = vld [vmem:[#allocation9 + $0x750] sm:$0xff]
    %v606 = vld [vmem:[#allocation9 + $0x758] sm:$0xff]
    %v607 = vld [vmem:[#allocation9 + $0x760] sm:$0xff]
    %v608 = vld [vmem:[#allocation9 + $0x768] sm:$0xff]
    %v609 = vld [vmem:[#allocation9 + $0x770] sm:$0xff]
    %v610 = vld [vmem:[#allocation9 + $0x778] sm:$0xff]
    %v611 = vld [vmem:[#allocation9 + $0x780] sm:$0xff]
    %v612 = vld [vmem:[#allocation9 + $0x788] sm:$0xff]
    %v613 = vld [vmem:[#allocation9 + $0x790] sm:$0xff]
    %v614 = vld [vmem:[#allocation9 + $0x798] sm:$0xff]
    %v615 = vld [vmem:[#allocation9 + $0x7a0] sm:$0xff]
    %v616 = vld [vmem:[#allocation9 + $0x7a8] sm:$0xff]
    %v617 = vld [vmem:[#allocation9 + $0x7b0] sm:$0xff]
    %v618 = vld [vmem:[#allocation9 + $0x7b8] sm:$0xff]
    %v619 = vld [vmem:[#allocation9 + $0x7c0] sm:$0xff]
    %v620 = vld [vmem:[#allocation9 + $0x7c8] sm:$0xff]
    %v621 = vld [vmem:[#allocation9 + $0x7d0] sm:$0xff]
    %v622 = vld [vmem:[#allocation9 + $0x7d8] sm:$0xff]
    %v623 = vld [vmem:[#allocation9 + $0x7e0] sm:$0xff]
    %v624 = vld [vmem:[#allocation9 + $0x7e8] sm:$0xff]
    %v625 = vld [vmem:[#allocation9 + $0x7f0] sm:$0xff]
    %v626 = vld [vmem:[#allocation9 + $0x7f8] sm:$0xff]
    %v629 = vunpack.c.l.s4 1983009808
    %v630 = vunpack.c.0.s8 %v629
    %v631 = vlaneseq
    %v632 = vshrl.u32 %v631, 7
    %v633 = vsub.s32 %v630, %v632
    %v634 = vrot.slane %v370, %v633
    %v635 = vcombine.high %v634, %v634
    %638 = vmatprep.subr.mxu0 %v492
    %639 = vmatpush1.msra.mxu0 %v491
    %640 = vmatprep.subr.mxu0 %v484
    %641 = vmatpush1.msra.mxu0 %v483
    %642 = vmatprep.subr.mxu0 %v476
    %643 = vmatpush1.msra.mxu0 %v475
    %644 = vmatprep.subr.mxu0 %v468
    %645 = vmatpush1.msra.mxu0 %v467
    %646 = vmatprep.subr.mxu0 %v460
    %647 = vmatpush1.msra.mxu0 %v459
    %648 = vmatprep.subr.mxu0 %v452
    %649 = vmatpush1.msra.mxu0 %v451
    %650 = vmatprep.subr.mxu0 %v444
    %651 = vmatpush1.msra.mxu0 %v443
    %652 = vmatprep.subr.mxu0 %v436
    %653 = vmatpush1.msra.mxu0 %v435
    %654 = vmatprep.subr.mxu0 %v428
    %655 = vmatpush1.msra.mxu0 %v427
    %656 = vmatprep.subr.mxu0 %v420
    %657 = vmatpush1.msra.mxu0 %v419
    %658 = vmatprep.subr.mxu0 %v412
    %659 = vmatpush1.msra.mxu0 %v411
    %660 = vmatprep.subr.mxu0 %v404
    %661 = vmatpush1.msra.mxu0 %v403
    %662 = vmatprep.subr.mxu0 %v396
    %663 = vmatpush1.msra.mxu0 %v395
    %664 = vmatprep.subr.mxu0 %v388
    %665 = vmatpush1.msra.mxu0 %v387
    %666 = vmatprep.subr.mxu0 %v380
    %667 = vmatpush1.msra.mxu0 %v379
    %668 = vmatprep.subr.mxu0 %v372
    %669 = vmatpush1.msra.mxu0 %v371
    %670 = vmatprep.subr.mxu0 %v620
    %671 = vmatpush2.msra.mxu0 %v619
    %672 = vmatprep.subr.mxu0 %v612
    %673 = vmatpush2.msra.mxu0 %v611
    %674 = vmatprep.subr.mxu0 %v604
    %675 = vmatpush2.msra.mxu0 %v603
    %676 = vmatprep.subr.mxu0 %v596
    %677 = vmatpush2.msra.mxu0 %v595
    %678 = vmatprep.subr.mxu0 %v588
    %679 = vmatpush2.msra.mxu0 %v587
    %680 = vmatprep.subr.mxu0 %v580
    %681 = vmatpush2.msra.mxu0 %v579
    %682 = vmatprep.subr.mxu0 %v572
    %683 = vmatpush2.msra.mxu0 %v571
    %684 = vmatprep.subr.mxu0 %v564
    %685 = vmatpush2.msra.mxu0 %v563
    %686 = vmatprep.subr.mxu0 %v556
    %687 = vmatpush2.msra.mxu0 %v555
    %688 = vmatprep.subr.mxu0 %v548
    %689 = vmatpush2.msra.mxu0 %v547
    %690 = vmatprep.subr.mxu0 %v540
    %691 = vmatpush2.msra.mxu0 %v539
    %692 = vmatprep.subr.mxu0 %v532
    %693 = vmatpush2.msra.mxu0 %v531
    %694 = vmatprep.subr.mxu0 %v524
    %695 = vmatpush2.msra.mxu0 %v523
    %696 = vmatprep.subr.mxu0 %v516
    %697 = vmatpush2.msra.mxu0 %v515
    %698 = vmatprep.subr.mxu0 %v508
    %699 = vmatpush2.msra.mxu0 %v507
    %700 = vmatprep.subr.mxu0 %v500
    %701 = vmatpush2.msra.mxu0 %v499
    %702 = vmatprep.mubr.f32.mxu0 %v635
    %703 = vmatmul.mubr.f32.gmra.mxu0 %v634
    %v704 = vpop.f32.mrf.mxu0
    %v705 = vadd.f32 %v303, %v704
    %v706 = vpop.f32.mrf.mxu0
    %v707 = vadd.f32 %v307, %v706
    %708 = vdwg.mxu0
    %709 = vmatprep.subr.mxu0 %v494
    %710 = vmatpush1.msra.mxu0 %v493
    %711 = vmatprep.subr.mxu0 %v486
    %712 = vmatpush1.msra.mxu0 %v485
    %713 = vmatprep.subr.mxu0 %v478
    %714 = vmatpush1.msra.mxu0 %v477
    %715 = vmatprep.subr.mxu0 %v470
    %716 = vmatpush1.msra.mxu0 %v469
    %717 = vmatprep.subr.mxu0 %v462
    %718 = vmatpush1.msra.mxu0 %v461
    %719 = vmatprep.subr.mxu0 %v454
    %720 = vmatpush1.msra.mxu0 %v453
    %721 = vmatprep.subr.mxu0 %v446
    %722 = vmatpush1.msra.mxu0 %v445
    %723 = vmatprep.subr.mxu0 %v438
    %724 = vmatpush1.msra.mxu0 %v437
    %725 = vmatprep.subr.mxu0 %v430
    %726 = vmatpush1.msra.mxu0 %v429
    %727 = vmatprep.subr.mxu0 %v422
    %728 = vmatpush1.msra.mxu0 %v421
    %729 = vmatprep.subr.mxu0 %v414
    %730 = vmatpush1.msra.mxu0 %v413
    %731 = vmatprep.subr.mxu0 %v406
    %732 = vmatpush1.msra.mxu0 %v405
    %733 = vmatprep.subr.mxu0 %v398
    %734 = vmatpush1.msra.mxu0 %v397
    %735 = vmatprep.subr.mxu0 %v390
    %736 = vmatpush1.msra.mxu0 %v389
    %737 = vmatprep.subr.mxu0 %v382
    %738 = vmatpush1.msra.mxu0 %v381
    %739 = vmatprep.subr.mxu0 %v374
    %740 = vmatpush1.msra.mxu0 %v373
    %741 = vmatprep.subr.mxu0 %v622
    %742 = vmatpush2.msra.mxu0 %v621
    %743 = vmatprep.subr.mxu0 %v614
    %744 = vmatpush2.msra.mxu0 %v613
    %745 = vmatprep.subr.mxu0 %v606
    %746 = vmatpush2.msra.mxu0 %v605
    %747 = vmatprep.subr.mxu0 %v598
    %748 = vmatpush2.msra.mxu0 %v597
    %749 = vmatprep.subr.mxu0 %v590
    %750 = vmatpush2.msra.mxu0 %v589
    %751 = vmatprep.subr.mxu0 %v582
    %752 = vmatpush2.msra.mxu0 %v581
    %753 = vmatprep.subr.mxu0 %v574
    %754 = vmatpush2.msra.mxu0 %v573
    %755 = vmatprep.subr.mxu0 %v566
    %756 = vmatpush2.msra.mxu0 %v565
    %757 = vmatprep.subr.mxu0 %v558
    %758 = vmatpush2.msra.mxu0 %v557
    %759 = vmatprep.subr.mxu0 %v550
    %760 = vmatpush2.msra.mxu0 %v549
    %761 = vmatprep.subr.mxu0 %v542
    %762 = vmatpush2.msra.mxu0 %v541
    %763 = vmatprep.subr.mxu0 %v534
    %764 = vmatpush2.msra.mxu0 %v533
    %765 = vmatprep.subr.mxu0 %v526
    %766 = vmatpush2.msra.mxu0 %v525
    %767 = vmatprep.subr.mxu0 %v518
    %768 = vmatpush2.msra.mxu0 %v517
    %769 = vmatprep.subr.mxu0 %v510
    %770 = vmatpush2.msra.mxu0 %v509
    %771 = vmatprep.subr.mxu0 %v502
    %772 = vmatpush2.msra.mxu0 %v501
    %773 = vmatprep.mubr.f32.mxu0 %v635
    %774 = vmatmul.mubr.f32.gmra.mxu0 %v634
    %v775 = vpop.f32.mrf.mxu0
    %v776 = vadd.f32 %v311, %v775
    %v777 = vpop.f32.mrf.mxu0
    %v778 = vadd.f32 %v315, %v777
    %779 = vdwg.mxu0
    %780 = vmatprep.subr.mxu0 %v496
    %781 = vmatpush1.msra.mxu0 %v495
    %782 = vmatprep.subr.mxu0 %v488
    %783 = vmatpush1.msra.mxu0 %v487
    %784 = vmatprep.subr.mxu0 %v480
    %785 = vmatpush1.msra.mxu0 %v479
    %786 = vmatprep.subr.mxu0 %v472
    %787 = vmatpush1.msra.mxu0 %v471
    %788 = vmatprep.subr.mxu0 %v464
    %789 = vmatpush1.msra.mxu0 %v463
    %790 = vmatprep.subr.mxu0 %v456
    %791 = vmatpush1.msra.mxu0 %v455
    %792 = vmatprep.subr.mxu0 %v448
    %793 = vmatpush1.msra.mxu0 %v447
    %794 = vmatprep.subr.mxu0 %v440
    %795 = vmatpush1.msra.mxu0 %v439
    %796 = vmatprep.subr.mxu0 %v432
    %797 = vmatpush1.msra.mxu0 %v431
    %798 = vmatprep.subr.mxu0 %v424
    %799 = vmatpush1.msra.mxu0 %v423
    %800 = vmatprep.subr.mxu0 %v416
    %801 = vmatpush1.msra.mxu0 %v415
    %802 = vmatprep.subr.mxu0 %v408
    %803 = vmatpush1.msra.mxu0 %v407
    %804 = vmatprep.subr.mxu0 %v400
    %805 = vmatpush1.msra.mxu0 %v399
    %806 = vmatprep.subr.mxu0 %v392
    %807 = vmatpush1.msra.mxu0 %v391
    %808 = vmatprep.subr.mxu0 %v384
    %809 = vmatpush1.msra.mxu0 %v383
    %810 = vmatprep.subr.mxu0 %v376
    %811 = vmatpush1.msra.mxu0 %v375
    %812 = vmatprep.subr.mxu0 %v624
    %813 = vmatpush2.msra.mxu0 %v623
    %814 = vmatprep.subr.mxu0 %v616
    %815 = vmatpush2.msra.mxu0 %v615
    %816 = vmatprep.subr.mxu0 %v608
    %817 = vmatpush2.msra.mxu0 %v607
    %818 = vmatprep.subr.mxu0 %v600
    %819 = vmatpush2.msra.mxu0 %v599
    %820 = vmatprep.subr.mxu0 %v592
    %821 = vmatpush2.msra.mxu0 %v591
    %822 = vmatprep.subr.mxu0 %v584
    %823 = vmatpush2.msra.mxu0 %v583
    %824 = vmatprep.subr.mxu0 %v576
    %825 = vmatpush2.msra.mxu0 %v575
    %826 = vmatprep.subr.mxu0 %v568
    %827 = vmatpush2.msra.mxu0 %v567
    %828 = vmatprep.subr.mxu0 %v560
    %829 = vmatpush2.msra.mxu0 %v559
    %830 = vmatprep.subr.mxu0 %v552
    %831 = vmatpush2.msra.mxu0 %v551
    %832 = vmatprep.subr.mxu0 %v544
    %833 = vmatpush2.msra.mxu0 %v543
    %834 = vmatprep.subr.mxu0 %v536
    %835 = vmatpush2.msra.mxu0 %v535
    %836 = vmatprep.subr.mxu0 %v528
    %837 = vmatpush2.msra.mxu0 %v527
    %838 = vmatprep.subr.mxu0 %v520
    %839 = vmatpush2.msra.mxu0 %v519
    %840 = vmatprep.subr.mxu0 %v512
    %841 = vmatpush2.msra.mxu0 %v511
    %842 = vmatprep.subr.mxu0 %v504
    %843 = vmatpush2.msra.mxu0 %v503
    %844 = vmatprep.mubr.f32.mxu0 %v635
    %845 = vmatmul.mubr.f32.gmra.mxu0 %v634
    %v846 = vpop.f32.mrf.mxu0
    %v847 = vadd.f32 %v319, %v846
    %v848 = vpop.f32.mrf.mxu0
    %v849 = vadd.f32 %v323, %v848
    %850 = vdwg.mxu0
    %851 = vmatprep.subr.mxu0 %v498
    %852 = vmatpush1.msra.mxu0 %v497
    %853 = vmatprep.subr.mxu0 %v490
    %854 = vmatpush1.msra.mxu0 %v489
    %855 = vmatprep.subr.mxu0 %v482
    %856 = vmatpush1.msra.mxu0 %v481
    %857 = vmatprep.subr.mxu0 %v474
    %858 = vmatpush1.msra.mxu0 %v473
    %859 = vmatprep.subr.mxu0 %v466
    %860 = vmatpush1.msra.mxu0 %v465
    %861 = vmatprep.subr.mxu0 %v458
    %862 = vmatpush1.msra.mxu0 %v457
    %863 = vmatprep.subr.mxu0 %v450
    %864 = vmatpush1.msra.mxu0 %v449
    %865 = vmatprep.subr.mxu0 %v442
    %866 = vmatpush1.msra.mxu0 %v441
    %867 = vmatprep.subr.mxu0 %v434
    %868 = vmatpush1.msra.mxu0 %v433
    %869 = vmatprep.subr.mxu0 %v426
    %870 = vmatpush1.msra.mxu0 %v425
    %871 = vmatprep.subr.mxu0 %v418
    %872 = vmatpush1.msra.mxu0 %v417
    %873 = vmatprep.subr.mxu0 %v410
    %874 = vmatpush1.msra.mxu0 %v409
    %875 = vmatprep.subr.mxu0 %v402
    %876 = vmatpush1.msra.mxu0 %v401
    %877 = vmatprep.subr.mxu0 %v394
    %878 = vmatpush1.msra.mxu0 %v393
    %879 = vmatprep.subr.mxu0 %v386
    %880 = vmatpush1.msra.mxu0 %v385
    %881 = vmatprep.subr.mxu0 %v378
    %882 = vmatpush1.msra.mxu0 %v377
    %883 = vmatprep.subr.mxu0 %v626
    %884 = vmatpush2.msra.mxu0 %v625
    %885 = vmatprep.subr.mxu0 %v618
    %886 = vmatpush2.msra.mxu0 %v617
    %887 = vmatprep.subr.mxu0 %v610
    %888 = vmatpush2.msra.mxu0 %v609
    %889 = vmatprep.subr.mxu0 %v602
    %890 = vmatpush2.msra.mxu0 %v601
    %891 = vmatprep.subr.mxu0 %v594
    %892 = vmatpush2.msra.mxu0 %v593
    %893 = vmatprep.subr.mxu0 %v586
    %894 = vmatpush2.msra.mxu0 %v585
    %895 = vmatprep.subr.mxu0 %v578
    %896 = vmatpush2.msra.mxu0 %v577
    %897 = vmatprep.subr.mxu0 %v570
    %898 = vmatpush2.msra.mxu0 %v569
    %899 = vmatprep.subr.mxu0 %v562
    %900 = vmatpush2.msra.mxu0 %v561
    %901 = vmatprep.subr.mxu0 %v554
    %902 = vmatpush2.msra.mxu0 %v553
    %903 = vmatprep.subr.mxu0 %v546
    %904 = vmatpush2.msra.mxu0 %v545
    %905 = vmatprep.subr.mxu0 %v538
    %906 = vmatpush2.msra.mxu0 %v537
    %907 = vmatprep.subr.mxu0 %v530
    %908 = vmatpush2.msra.mxu0 %v529
    %909 = vmatprep.subr.mxu0 %v522
    %910 = vmatpush2.msra.mxu0 %v521
    %911 = vmatprep.subr.mxu0 %v514
    %912 = vmatpush2.msra.mxu0 %v513
    %913 = vmatprep.subr.mxu0 %v506
    %914 = vmatpush2.msra.mxu0 %v505
    %915 = vmatprep.mubr.f32.mxu0 %v635
    %916 = vmatmul.mubr.f32.gmra.mxu0 %v634
    %v917 = vpop.f32.mrf.mxu0
    %v918 = vadd.f32 %v327, %v917
    %v919 = vpop.f32.mrf.mxu0
    %v920 = vadd.f32 %v331, %v919
    %921 = vdwg.mxu0
    %v922 = vxor.u32 %v705, 2147483648
    %v923 = vmul.f32 %v922, 1.442695
    %v924 = vpow.pop %v923
    %v925 = vadd.f32 %v924, 1.0
    %v926 = vrcp.pop %v925
    %v927 = vmul.f32 1.0, %v926
    %v928 = vxor.u32 %v707, 2147483648
    %v929 = vmul.f32 %v928, 1.442695
    %v930 = vpow.pop %v929
    %v931 = vadd.f32 %v930, 1.0
    %v932 = vrcp.pop %v931
    %v933 = vmul.f32 1.0, %v932
    %v934 = vmul.f32 %v927, %v778
    %v935 = vadd.f32 %v776, %v934
    %v936 = vtanh.pop %v935
    %v937 = vsub.f32 1.0, %v933
    %v938 = vmul.f32 %v937, %v936
    %v939 = vmul.f32 %v933, 0.0
    %v940 = vadd.f32 %v938, %v939
    %941 = vst [vmem:[#allocation2 + $0x2] sm:$0x3] %v940
    %v946 = vrot.slane %v847, 6
    %v947 = vrot.slane %v849, 6
    %v948 = vrot.slane %v918, 6
    %v949 = vrot.slane %v920, 6
    %v954 = vadd.f32 %v211, %v946
    %v955 = vadd.f32 %v213, %v947
    %v956 = vadd.f32 %v288, %v948
    %v957 = vadd.f32 %v290, %v949
    %v958 = vxor.u32 %v954, 2147483648
    %v959 = vmul.f32 %v958, 1.442695
    %v960 = vpow.pop %v959
    %v961 = vadd.f32 %v960, 1.0
    %v962 = vrcp.pop %v961
    %v963 = vmul.f32 1.0, %v962
    %v964 = vxor.u32 %v955, 2147483648
    %v965 = vmul.f32 %v964, 1.442695
    %v966 = vpow.pop %v965
    %v967 = vadd.f32 %v966, 1.0
    %v968 = vrcp.pop %v967
    %v969 = vmul.f32 1.0, %v968
    %v970 = vtanh.pop %v956
    %v971 = vxor.u32 %v957, 2147483648
    %v972 = vmul.f32 %v971, 1.442695
    %v973 = vpow.pop %v972
    %v974 = vadd.f32 %v973, 1.0
    %v975 = vrcp.pop %v974
    %v976 = vmul.f32 1.0, %v975
    %v978 = vrot.slane %v366, 6
    %v980 = vmul.f32 %v969, %v978
    %v981 = vmul.f32 %v963, %v970
    %v982 = vadd.f32 %v980, %v981
    %v983 = vtanh.pop %v982
    %v984 = vmul.f32 %v976, %v983
    %v987 = vunpack.c.l.s4 1983009808
    %v988 = vunpack.c.0.s8 %v987
    %v989 = vlaneseq
    %v990 = vshrl.u32 %v989, 7
    %v991 = vsub.s32 %v988, %v990
    %v992 = vrot.slane %v984, %v991
    %v993 = vcombine.high %v992, %v992
    %995 = vst [vmem:[#allocation2] sm:$0x3] %v993
    %v996 = vld [vmem:[#allocation2] sm:$0xf]
    %v997 = vld [vmem:[#allocation9] sm:$0xff]
    %v998 = vld [vmem:[#allocation9 + $0x8] sm:$0xff]
    %v999 = vld [vmem:[#allocation9 + $0x10] sm:$0xff]
    %v1000 = vld [vmem:[#allocation9 + $0x18] sm:$0xff]
    %v1001 = vld [vmem:[#allocation9 + $0x20] sm:$0xff]
    %v1002 = vld [vmem:[#allocation9 + $0x28] sm:$0xff]
    %v1003 = vld [vmem:[#allocation9 + $0x30] sm:$0xff]
    %v1004 = vld [vmem:[#allocation9 + $0x38] sm:$0xff]
    %v1005 = vld [vmem:[#allocation9 + $0x40] sm:$0xff]
    %v1006 = vld [vmem:[#allocation9 + $0x48] sm:$0xff]
    %v1007 = vld [vmem:[#allocation9 + $0x50] sm:$0xff]
    %v1008 = vld [vmem:[#allocation9 + $0x58] sm:$0xff]
    %v1009 = vld [vmem:[#allocation9 + $0x60] sm:$0xff]
    %v1010 = vld [vmem:[#allocation9 + $0x68] sm:$0xff]
    %v1011 = vld [vmem:[#allocation9 + $0x70] sm:$0xff]
    %v1012 = vld [vmem:[#allocation9 + $0x78] sm:$0xff]
    %v1013 = vld [vmem:[#allocation9 + $0x80] sm:$0xff]
    %v1014 = vld [vmem:[#allocation9 + $0x88] sm:$0xff]
    %v1015 = vld [vmem:[#allocation9 + $0x90] sm:$0xff]
    %v1016 = vld [vmem:[#allocation9 + $0x98] sm:$0xff]
    %v1017 = vld [vmem:[#allocation9 + $0xa0] sm:$0xff]
    %v1018 = vld [vmem:[#allocation9 + $0xa8] sm:$0xff]
    %v1019 = vld [vmem:[#allocation9 + $0xb0] sm:$0xff]
    %v1020 = vld [vmem:[#allocation9 + $0xb8] sm:$0xff]
    %v1021 = vld [vmem:[#allocation9 + $0xc0] sm:$0xff]
    %v1022 = vld [vmem:[#allocation9 + $0xc8] sm:$0xff]
    %v1023 = vld [vmem:[#allocation9 + $0xd0] sm:$0xff]
    %v1024 = vld [vmem:[#allocation9 + $0xd8] sm:$0xff]
    %v1025 = vld [vmem:[#allocation9 + $0xe0] sm:$0xff]
    %v1026 = vld [vmem:[#allocation9 + $0xe8] sm:$0xff]
    %v1027 = vld [vmem:[#allocation9 + $0xf0] sm:$0xff]
    %v1028 = vld [vmem:[#allocation9 + $0xf8] sm:$0xff]
    %v1029 = vld [vmem:[#allocation9 + $0x100] sm:$0xff]
    %v1030 = vld [vmem:[#allocation9 + $0x108] sm:$0xff]
    %v1031 = vld [vmem:[#allocation9 + $0x110] sm:$0xff]
    %v1032 = vld [vmem:[#allocation9 + $0x118] sm:$0xff]
    %v1033 = vld [vmem:[#allocation9 + $0x120] sm:$0xff]
    %v1034 = vld [vmem:[#allocation9 + $0x128] sm:$0xff]
    %v1035 = vld [vmem:[#allocation9 + $0x130] sm:$0xff]
    %v1036 = vld [vmem:[#allocation9 + $0x138] sm:$0xff]
    %v1037 = vld [vmem:[#allocation9 + $0x140] sm:$0xff]
    %v1038 = vld [vmem:[#allocation9 + $0x148] sm:$0xff]
    %v1039 = vld [vmem:[#allocation9 + $0x150] sm:$0xff]
    %v1040 = vld [vmem:[#allocation9 + $0x158] sm:$0xff]
    %v1041 = vld [vmem:[#allocation9 + $0x160] sm:$0xff]
    %v1042 = vld [vmem:[#allocation9 + $0x168] sm:$0xff]
    %v1043 = vld [vmem:[#allocation9 + $0x170] sm:$0xff]
    %v1044 = vld [vmem:[#allocation9 + $0x178] sm:$0xff]
    %v1045 = vld [vmem:[#allocation9 + $0x180] sm:$0xff]
    %v1046 = vld [vmem:[#allocation9 + $0x188] sm:$0xff]
    %v1047 = vld [vmem:[#allocation9 + $0x190] sm:$0xff]
    %v1048 = vld [vmem:[#allocation9 + $0x198] sm:$0xff]
    %v1049 = vld [vmem:[#allocation9 + $0x1a0] sm:$0xff]
    %v1050 = vld [vmem:[#allocation9 + $0x1a8] sm:$0xff]
    %v1051 = vld [vmem:[#allocation9 + $0x1b0] sm:$0xff]
    %v1052 = vld [vmem:[#allocation9 + $0x1b8] sm:$0xff]
    %v1053 = vld [vmem:[#allocation9 + $0x1c0] sm:$0xff]
    %v1054 = vld [vmem:[#allocation9 + $0x1c8] sm:$0xff]
    %v1055 = vld [vmem:[#allocation9 + $0x1d0] sm:$0xff]
    %v1056 = vld [vmem:[#allocation9 + $0x1d8] sm:$0xff]
    %v1057 = vld [vmem:[#allocation9 + $0x1e0] sm:$0xff]
    %v1058 = vld [vmem:[#allocation9 + $0x1e8] sm:$0xff]
    %v1059 = vld [vmem:[#allocation9 + $0x1f0] sm:$0xff]
    %v1060 = vld [vmem:[#allocation9 + $0x1f8] sm:$0xff]
    %v1061 = vld [vmem:[#allocation9 + $0x200] sm:$0xff]
    %v1062 = vld [vmem:[#allocation9 + $0x208] sm:$0xff]
    %v1063 = vld [vmem:[#allocation9 + $0x210] sm:$0xff]
    %v1064 = vld [vmem:[#allocation9 + $0x218] sm:$0xff]
    %v1065 = vld [vmem:[#allocation9 + $0x220] sm:$0xff]
    %v1066 = vld [vmem:[#allocation9 + $0x228] sm:$0xff]
    %v1067 = vld [vmem:[#allocation9 + $0x230] sm:$0xff]
    %v1068 = vld [vmem:[#allocation9 + $0x238] sm:$0xff]
    %v1069 = vld [vmem:[#allocation9 + $0x240] sm:$0xff]
    %v1070 = vld [vmem:[#allocation9 + $0x248] sm:$0xff]
    %v1071 = vld [vmem:[#allocation9 + $0x250] sm:$0xff]
    %v1072 = vld [vmem:[#allocation9 + $0x258] sm:$0xff]
    %v1073 = vld [vmem:[#allocation9 + $0x260] sm:$0xff]
    %v1074 = vld [vmem:[#allocation9 + $0x268] sm:$0xff]
    %v1075 = vld [vmem:[#allocation9 + $0x270] sm:$0xff]
    %v1076 = vld [vmem:[#allocation9 + $0x278] sm:$0xff]
    %v1077 = vld [vmem:[#allocation9 + $0x280] sm:$0xff]
    %v1078 = vld [vmem:[#allocation9 + $0x288] sm:$0xff]
    %v1079 = vld [vmem:[#allocation9 + $0x290] sm:$0xff]
    %v1080 = vld [vmem:[#allocation9 + $0x298] sm:$0xff]
    %v1081 = vld [vmem:[#allocation9 + $0x2a0] sm:$0xff]
    %v1082 = vld [vmem:[#allocation9 + $0x2a8] sm:$0xff]
    %v1083 = vld [vmem:[#allocation9 + $0x2b0] sm:$0xff]
    %v1084 = vld [vmem:[#allocation9 + $0x2b8] sm:$0xff]
    %v1085 = vld [vmem:[#allocation9 + $0x2c0] sm:$0xff]
    %v1086 = vld [vmem:[#allocation9 + $0x2c8] sm:$0xff]
    %v1087 = vld [vmem:[#allocation9 + $0x2d0] sm:$0xff]
    %v1088 = vld [vmem:[#allocation9 + $0x2d8] sm:$0xff]
    %v1089 = vld [vmem:[#allocation9 + $0x2e0] sm:$0xff]
    %v1090 = vld [vmem:[#allocation9 + $0x2e8] sm:$0xff]
    %v1091 = vld [vmem:[#allocation9 + $0x2f0] sm:$0xff]
    %v1092 = vld [vmem:[#allocation9 + $0x2f8] sm:$0xff]
    %v1093 = vld [vmem:[#allocation9 + $0x300] sm:$0xff]
    %v1094 = vld [vmem:[#allocation9 + $0x308] sm:$0xff]
    %v1095 = vld [vmem:[#allocation9 + $0x310] sm:$0xff]
    %v1096 = vld [vmem:[#allocation9 + $0x318] sm:$0xff]
    %v1097 = vld [vmem:[#allocation9 + $0x320] sm:$0xff]
    %v1098 = vld [vmem:[#allocation9 + $0x328] sm:$0xff]
    %v1099 = vld [vmem:[#allocation9 + $0x330] sm:$0xff]
    %v1100 = vld [vmem:[#allocation9 + $0x338] sm:$0xff]
    %v1101 = vld [vmem:[#allocation9 + $0x340] sm:$0xff]
    %v1102 = vld [vmem:[#allocation9 + $0x348] sm:$0xff]
    %v1103 = vld [vmem:[#allocation9 + $0x350] sm:$0xff]
    %v1104 = vld [vmem:[#allocation9 + $0x358] sm:$0xff]
    %v1105 = vld [vmem:[#allocation9 + $0x360] sm:$0xff]
    %v1106 = vld [vmem:[#allocation9 + $0x368] sm:$0xff]
    %v1107 = vld [vmem:[#allocation9 + $0x370] sm:$0xff]
    %v1108 = vld [vmem:[#allocation9 + $0x378] sm:$0xff]
    %v1109 = vld [vmem:[#allocation9 + $0x380] sm:$0xff]
    %v1110 = vld [vmem:[#allocation9 + $0x388] sm:$0xff]
    %v1111 = vld [vmem:[#allocation9 + $0x390] sm:$0xff]
    %v1112 = vld [vmem:[#allocation9 + $0x398] sm:$0xff]
    %v1113 = vld [vmem:[#allocation9 + $0x3a0] sm:$0xff]
    %v1114 = vld [vmem:[#allocation9 + $0x3a8] sm:$0xff]
    %v1115 = vld [vmem:[#allocation9 + $0x3b0] sm:$0xff]
    %v1116 = vld [vmem:[#allocation9 + $0x3b8] sm:$0xff]
    %v1117 = vld [vmem:[#allocation9 + $0x3c0] sm:$0xff]
    %v1118 = vld [vmem:[#allocation9 + $0x3c8] sm:$0xff]
    %v1119 = vld [vmem:[#allocation9 + $0x3d0] sm:$0xff]
    %v1120 = vld [vmem:[#allocation9 + $0x3d8] sm:$0xff]
    %v1121 = vld [vmem:[#allocation9 + $0x3e0] sm:$0xff]
    %v1122 = vld [vmem:[#allocation9 + $0x3e8] sm:$0xff]
    %v1123 = vld [vmem:[#allocation9 + $0x3f0] sm:$0xff]
    %v1124 = vld [vmem:[#allocation9 + $0x3f8] sm:$0xff]
    %v1125 = vld [vmem:[#allocation9 + $0x400] sm:$0xff]
    %v1126 = vld [vmem:[#allocation9 + $0x408] sm:$0xff]
    %v1127 = vld [vmem:[#allocation9 + $0x410] sm:$0xff]
    %v1128 = vld [vmem:[#allocation9 + $0x418] sm:$0xff]
    %v1129 = vld [vmem:[#allocation9 + $0x420] sm:$0xff]
    %v1130 = vld [vmem:[#allocation9 + $0x428] sm:$0xff]
    %v1131 = vld [vmem:[#allocation9 + $0x430] sm:$0xff]
    %v1132 = vld [vmem:[#allocation9 + $0x438] sm:$0xff]
    %v1133 = vld [vmem:[#allocation9 + $0x440] sm:$0xff]
    %v1134 = vld [vmem:[#allocation9 + $0x448] sm:$0xff]
    %v1135 = vld [vmem:[#allocation9 + $0x450] sm:$0xff]
    %v1136 = vld [vmem:[#allocation9 + $0x458] sm:$0xff]
    %v1137 = vld [vmem:[#allocation9 + $0x460] sm:$0xff]
    %v1138 = vld [vmem:[#allocation9 + $0x468] sm:$0xff]
    %v1139 = vld [vmem:[#allocation9 + $0x470] sm:$0xff]
    %v1140 = vld [vmem:[#allocation9 + $0x478] sm:$0xff]
    %v1141 = vld [vmem:[#allocation9 + $0x480] sm:$0xff]
    %v1142 = vld [vmem:[#allocation9 + $0x488] sm:$0xff]
    %v1143 = vld [vmem:[#allocation9 + $0x490] sm:$0xff]
    %v1144 = vld [vmem:[#allocation9 + $0x498] sm:$0xff]
    %v1145 = vld [vmem:[#allocation9 + $0x4a0] sm:$0xff]
    %v1146 = vld [vmem:[#allocation9 + $0x4a8] sm:$0xff]
    %v1147 = vld [vmem:[#allocation9 + $0x4b0] sm:$0xff]
    %v1148 = vld [vmem:[#allocation9 + $0x4b8] sm:$0xff]
    %v1149 = vld [vmem:[#allocation9 + $0x4c0] sm:$0xff]
    %v1150 = vld [vmem:[#allocation9 + $0x4c8] sm:$0xff]
    %v1151 = vld [vmem:[#allocation9 + $0x4d0] sm:$0xff]
    %v1152 = vld [vmem:[#allocation9 + $0x4d8] sm:$0xff]
    %v1153 = vld [vmem:[#allocation9 + $0x4e0] sm:$0xff]
    %v1154 = vld [vmem:[#allocation9 + $0x4e8] sm:$0xff]
    %v1155 = vld [vmem:[#allocation9 + $0x4f0] sm:$0xff]
    %v1156 = vld [vmem:[#allocation9 + $0x4f8] sm:$0xff]
    %v1157 = vld [vmem:[#allocation9 + $0x500] sm:$0xff]
    %v1158 = vld [vmem:[#allocation9 + $0x508] sm:$0xff]
    %v1159 = vld [vmem:[#allocation9 + $0x510] sm:$0xff]
    %v1160 = vld [vmem:[#allocation9 + $0x518] sm:$0xff]
    %v1161 = vld [vmem:[#allocation9 + $0x520] sm:$0xff]
    %v1162 = vld [vmem:[#allocation9 + $0x528] sm:$0xff]
    %v1163 = vld [vmem:[#allocation9 + $0x530] sm:$0xff]
    %v1164 = vld [vmem:[#allocation9 + $0x538] sm:$0xff]
    %v1165 = vld [vmem:[#allocation9 + $0x540] sm:$0xff]
    %v1166 = vld [vmem:[#allocation9 + $0x548] sm:$0xff]
    %v1167 = vld [vmem:[#allocation9 + $0x550] sm:$0xff]
    %v1168 = vld [vmem:[#allocation9 + $0x558] sm:$0xff]
    %v1169 = vld [vmem:[#allocation9 + $0x560] sm:$0xff]
    %v1170 = vld [vmem:[#allocation9 + $0x568] sm:$0xff]
    %v1171 = vld [vmem:[#allocation9 + $0x570] sm:$0xff]
    %v1172 = vld [vmem:[#allocation9 + $0x578] sm:$0xff]
    %v1173 = vld [vmem:[#allocation9 + $0x580] sm:$0xff]
    %v1174 = vld [vmem:[#allocation9 + $0x588] sm:$0xff]
    %v1175 = vld [vmem:[#allocation9 + $0x590] sm:$0xff]
    %v1176 = vld [vmem:[#allocation9 + $0x598] sm:$0xff]
    %v1177 = vld [vmem:[#allocation9 + $0x5a0] sm:$0xff]
    %v1178 = vld [vmem:[#allocation9 + $0x5a8] sm:$0xff]
    %v1179 = vld [vmem:[#allocation9 + $0x5b0] sm:$0xff]
    %v1180 = vld [vmem:[#allocation9 + $0x5b8] sm:$0xff]
    %v1181 = vld [vmem:[#allocation9 + $0x5c0] sm:$0xff]
    %v1182 = vld [vmem:[#allocation9 + $0x5c8] sm:$0xff]
    %v1183 = vld [vmem:[#allocation9 + $0x5d0] sm:$0xff]
    %v1184 = vld [vmem:[#allocation9 + $0x5d8] sm:$0xff]
    %v1185 = vld [vmem:[#allocation9 + $0x5e0] sm:$0xff]
    %v1186 = vld [vmem:[#allocation9 + $0x5e8] sm:$0xff]
    %v1187 = vld [vmem:[#allocation9 + $0x5f0] sm:$0xff]
    %v1188 = vld [vmem:[#allocation9 + $0x5f8] sm:$0xff]
    %v1189 = vld [vmem:[#allocation9 + $0x600] sm:$0xff]
    %v1190 = vld [vmem:[#allocation9 + $0x608] sm:$0xff]
    %v1191 = vld [vmem:[#allocation9 + $0x610] sm:$0xff]
    %v1192 = vld [vmem:[#allocation9 + $0x618] sm:$0xff]
    %v1193 = vld [vmem:[#allocation9 + $0x620] sm:$0xff]
    %v1194 = vld [vmem:[#allocation9 + $0x628] sm:$0xff]
    %v1195 = vld [vmem:[#allocation9 + $0x630] sm:$0xff]
    %v1196 = vld [vmem:[#allocation9 + $0x638] sm:$0xff]
    %v1197 = vld [vmem:[#allocation9 + $0x640] sm:$0xff]
    %v1198 = vld [vmem:[#allocation9 + $0x648] sm:$0xff]
    %v1199 = vld [vmem:[#allocation9 + $0x650] sm:$0xff]
    %v1200 = vld [vmem:[#allocation9 + $0x658] sm:$0xff]
    %v1201 = vld [vmem:[#allocation9 + $0x660] sm:$0xff]
    %v1202 = vld [vmem:[#allocation9 + $0x668] sm:$0xff]
    %v1203 = vld [vmem:[#allocation9 + $0x670] sm:$0xff]
    %v1204 = vld [vmem:[#allocation9 + $0x678] sm:$0xff]
    %v1205 = vld [vmem:[#allocation9 + $0x680] sm:$0xff]
    %v1206 = vld [vmem:[#allocation9 + $0x688] sm:$0xff]
    %v1207 = vld [vmem:[#allocation9 + $0x690] sm:$0xff]
    %v1208 = vld [vmem:[#allocation9 + $0x698] sm:$0xff]
    %v1209 = vld [vmem:[#allocation9 + $0x6a0] sm:$0xff]
    %v1210 = vld [vmem:[#allocation9 + $0x6a8] sm:$0xff]
    %v1211 = vld [vmem:[#allocation9 + $0x6b0] sm:$0xff]
    %v1212 = vld [vmem:[#allocation9 + $0x6b8] sm:$0xff]
    %v1213 = vld [vmem:[#allocation9 + $0x6c0] sm:$0xff]
    %v1214 = vld [vmem:[#allocation9 + $0x6c8] sm:$0xff]
    %v1215 = vld [vmem:[#allocation9 + $0x6d0] sm:$0xff]
    %v1216 = vld [vmem:[#allocation9 + $0x6d8] sm:$0xff]
    %v1217 = vld [vmem:[#allocation9 + $0x6e0] sm:$0xff]
    %v1218 = vld [vmem:[#allocation9 + $0x6e8] sm:$0xff]
    %v1219 = vld [vmem:[#allocation9 + $0x6f0] sm:$0xff]
    %v1220 = vld [vmem:[#allocation9 + $0x6f8] sm:$0xff]
    %v1221 = vld [vmem:[#allocation9 + $0x700] sm:$0xff]
    %v1222 = vld [vmem:[#allocation9 + $0x708] sm:$0xff]
    %v1223 = vld [vmem:[#allocation9 + $0x710] sm:$0xff]
    %v1224 = vld [vmem:[#allocation9 + $0x718] sm:$0xff]
    %v1225 = vld [vmem:[#allocation9 + $0x720] sm:$0xff]
    %v1226 = vld [vmem:[#allocation9 + $0x728] sm:$0xff]
    %v1227 = vld [vmem:[#allocation9 + $0x730] sm:$0xff]
    %v1228 = vld [vmem:[#allocation9 + $0x738] sm:$0xff]
    %v1229 = vld [vmem:[#allocation9 + $0x740] sm:$0xff]
    %v1230 = vld [vmem:[#allocation9 + $0x748] sm:$0xff]
    %v1231 = vld [vmem:[#allocation9 + $0x750] sm:$0xff]
    %v1232 = vld [vmem:[#allocation9 + $0x758] sm:$0xff]
    %v1233 = vld [vmem:[#allocation9 + $0x760] sm:$0xff]
    %v1234 = vld [vmem:[#allocation9 + $0x768] sm:$0xff]
    %v1235 = vld [vmem:[#allocation9 + $0x770] sm:$0xff]
    %v1236 = vld [vmem:[#allocation9 + $0x778] sm:$0xff]
    %v1237 = vld [vmem:[#allocation9 + $0x780] sm:$0xff]
    %v1238 = vld [vmem:[#allocation9 + $0x788] sm:$0xff]
    %v1239 = vld [vmem:[#allocation9 + $0x790] sm:$0xff]
    %v1240 = vld [vmem:[#allocation9 + $0x798] sm:$0xff]
    %v1241 = vld [vmem:[#allocation9 + $0x7a0] sm:$0xff]
    %v1242 = vld [vmem:[#allocation9 + $0x7a8] sm:$0xff]
    %v1243 = vld [vmem:[#allocation9 + $0x7b0] sm:$0xff]
    %v1244 = vld [vmem:[#allocation9 + $0x7b8] sm:$0xff]
    %v1245 = vld [vmem:[#allocation9 + $0x7c0] sm:$0xff]
    %v1246 = vld [vmem:[#allocation9 + $0x7c8] sm:$0xff]
    %v1247 = vld [vmem:[#allocation9 + $0x7d0] sm:$0xff]
    %v1248 = vld [vmem:[#allocation9 + $0x7d8] sm:$0xff]
    %v1249 = vld [vmem:[#allocation9 + $0x7e0] sm:$0xff]
    %v1250 = vld [vmem:[#allocation9 + $0x7e8] sm:$0xff]
    %v1251 = vld [vmem:[#allocation9 + $0x7f0] sm:$0xff]
    %v1252 = vld [vmem:[#allocation9 + $0x7f8] sm:$0xff]
    %v1255 = vunpack.c.l.s4 1983009808
    %v1256 = vunpack.c.0.s8 %v1255
    %v1257 = vlaneseq
    %v1258 = vshrl.u32 %v1257, 7
    %v1259 = vsub.s32 %v1256, %v1258
    %v1260 = vrot.slane %v996, %v1259
    %v1261 = vcombine.high %v1260, %v1260
    %1264 = vmatprep.subr.mxu0 %v1118
    %1265 = vmatpush1.msra.mxu0 %v1117
    %1266 = vmatprep.subr.mxu0 %v1110
    %1267 = vmatpush1.msra.mxu0 %v1109
    %1268 = vmatprep.subr.mxu0 %v1102
    %1269 = vmatpush1.msra.mxu0 %v1101
    %1270 = vmatprep.subr.mxu0 %v1094
    %1271 = vmatpush1.msra.mxu0 %v1093
    %1272 = vmatprep.subr.mxu0 %v1086
    %1273 = vmatpush1.msra.mxu0 %v1085
    %1274 = vmatprep.subr.mxu0 %v1078
    %1275 = vmatpush1.msra.mxu0 %v1077
    %1276 = vmatprep.subr.mxu0 %v1070
    %1277 = vmatpush1.msra.mxu0 %v1069
    %1278 = vmatprep.subr.mxu0 %v1062
    %1279 = vmatpush1.msra.mxu0 %v1061
    %1280 = vmatprep.subr.mxu0 %v1054
    %1281 = vmatpush1.msra.mxu0 %v1053
    %1282 = vmatprep.subr.mxu0 %v1046
    %1283 = vmatpush1.msra.mxu0 %v1045
    %1284 = vmatprep.subr.mxu0 %v1038
    %1285 = vmatpush1.msra.mxu0 %v1037
    %1286 = vmatprep.subr.mxu0 %v1030
    %1287 = vmatpush1.msra.mxu0 %v1029
    %1288 = vmatprep.subr.mxu0 %v1022
    %1289 = vmatpush1.msra.mxu0 %v1021
    %1290 = vmatprep.subr.mxu0 %v1014
    %1291 = vmatpush1.msra.mxu0 %v1013
    %1292 = vmatprep.subr.mxu0 %v1006
    %1293 = vmatpush1.msra.mxu0 %v1005
    %1294 = vmatprep.subr.mxu0 %v998
    %1295 = vmatpush1.msra.mxu0 %v997
    %1296 = vmatprep.subr.mxu0 %v1246
    %1297 = vmatpush2.msra.mxu0 %v1245
    %1298 = vmatprep.subr.mxu0 %v1238
    %1299 = vmatpush2.msra.mxu0 %v1237
    %1300 = vmatprep.subr.mxu0 %v1230
    %1301 = vmatpush2.msra.mxu0 %v1229
    %1302 = vmatprep.subr.mxu0 %v1222
    %1303 = vmatpush2.msra.mxu0 %v1221
    %1304 = vmatprep.subr.mxu0 %v1214
    %1305 = vmatpush2.msra.mxu0 %v1213
    %1306 = vmatprep.subr.mxu0 %v1206
    %1307 = vmatpush2.msra.mxu0 %v1205
    %1308 = vmatprep.subr.mxu0 %v1198
    %1309 = vmatpush2.msra.mxu0 %v1197
    %1310 = vmatprep.subr.mxu0 %v1190
    %1311 = vmatpush2.msra.mxu0 %v1189
    %1312 = vmatprep.subr.mxu0 %v1182
    %1313 = vmatpush2.msra.mxu0 %v1181
    %1314 = vmatprep.subr.mxu0 %v1174
    %1315 = vmatpush2.msra.mxu0 %v1173
    %1316 = vmatprep.subr.mxu0 %v1166
    %1317 = vmatpush2.msra.mxu0 %v1165
    %1318 = vmatprep.subr.mxu0 %v1158
    %1319 = vmatpush2.msra.mxu0 %v1157
    %1320 = vmatprep.subr.mxu0 %v1150
    %1321 = vmatpush2.msra.mxu0 %v1149
    %1322 = vmatprep.subr.mxu0 %v1142
    %1323 = vmatpush2.msra.mxu0 %v1141
    %1324 = vmatprep.subr.mxu0 %v1134
    %1325 = vmatpush2.msra.mxu0 %v1133
    %1326 = vmatprep.subr.mxu0 %v1126
    %1327 = vmatpush2.msra.mxu0 %v1125
    %1328 = vmatprep.mubr.f32.mxu0 %v1261
    %1329 = vmatmul.mubr.f32.gmra.mxu0 %v1260
    %v1330 = vpop.f32.mrf.mxu0
    %v1331 = vadd.f32 %v303, %v1330
    %v1332 = vpop.f32.mrf.mxu0
    %v1333 = vadd.f32 %v307, %v1332
    %1334 = vdwg.mxu0
    %1335 = vmatprep.subr.mxu0 %v1120
    %1336 = vmatpush1.msra.mxu0 %v1119
    %1337 = vmatprep.subr.mxu0 %v1112
    %1338 = vmatpush1.msra.mxu0 %v1111
    %1339 = vmatprep.subr.mxu0 %v1104
    %1340 = vmatpush1.msra.mxu0 %v1103
    %1341 = vmatprep.subr.mxu0 %v1096
    %1342 = vmatpush1.msra.mxu0 %v1095
    %1343 = vmatprep.subr.mxu0 %v1088
    %1344 = vmatpush1.msra.mxu0 %v1087
    %1345 = vmatprep.subr.mxu0 %v1080
    %1346 = vmatpush1.msra.mxu0 %v1079
    %1347 = vmatprep.subr.mxu0 %v1072
    %1348 = vmatpush1.msra.mxu0 %v1071
    %1349 = vmatprep.subr.mxu0 %v1064
    %1350 = vmatpush1.msra.mxu0 %v1063
    %1351 = vmatprep.subr.mxu0 %v1056
    %1352 = vmatpush1.msra.mxu0 %v1055
    %1353 = vmatprep.subr.mxu0 %v1048
    %1354 = vmatpush1.msra.mxu0 %v1047
    %1355 = vmatprep.subr.mxu0 %v1040
    %1356 = vmatpush1.msra.mxu0 %v1039
    %1357 = vmatprep.subr.mxu0 %v1032
    %1358 = vmatpush1.msra.mxu0 %v1031
    %1359 = vmatprep.subr.mxu0 %v1024
    %1360 = vmatpush1.msra.mxu0 %v1023
    %1361 = vmatprep.subr.mxu0 %v1016
    %1362 = vmatpush1.msra.mxu0 %v1015
    %1363 = vmatprep.subr.mxu0 %v1008
    %1364 = vmatpush1.msra.mxu0 %v1007
    %1365 = vmatprep.subr.mxu0 %v1000
    %1366 = vmatpush1.msra.mxu0 %v999
    %1367 = vmatprep.subr.mxu0 %v1248
    %1368 = vmatpush2.msra.mxu0 %v1247
    %1369 = vmatprep.subr.mxu0 %v1240
    %1370 = vmatpush2.msra.mxu0 %v1239
    %1371 = vmatprep.subr.mxu0 %v1232
    %1372 = vmatpush2.msra.mxu0 %v1231
    %1373 = vmatprep.subr.mxu0 %v1224
    %1374 = vmatpush2.msra.mxu0 %v1223
    %1375 = vmatprep.subr.mxu0 %v1216
    %1376 = vmatpush2.msra.mxu0 %v1215
    %1377 = vmatprep.subr.mxu0 %v1208
    %1378 = vmatpush2.msra.mxu0 %v1207
    %1379 = vmatprep.subr.mxu0 %v1200
    %1380 = vmatpush2.msra.mxu0 %v1199
    %1381 = vmatprep.subr.mxu0 %v1192
    %1382 = vmatpush2.msra.mxu0 %v1191
    %1383 = vmatprep.subr.mxu0 %v1184
    %1384 = vmatpush2.msra.mxu0 %v1183
    %1385 = vmatprep.subr.mxu0 %v1176
    %1386 = vmatpush2.msra.mxu0 %v1175
    %1387 = vmatprep.subr.mxu0 %v1168
    %1388 = vmatpush2.msra.mxu0 %v1167
    %1389 = vmatprep.subr.mxu0 %v1160
    %1390 = vmatpush2.msra.mxu0 %v1159
    %1391 = vmatprep.subr.mxu0 %v1152
    %1392 = vmatpush2.msra.mxu0 %v1151
    %1393 = vmatprep.subr.mxu0 %v1144
    %1394 = vmatpush2.msra.mxu0 %v1143
    %1395 = vmatprep.subr.mxu0 %v1136
    %1396 = vmatpush2.msra.mxu0 %v1135
    %1397 = vmatprep.subr.mxu0 %v1128
    %1398 = vmatpush2.msra.mxu0 %v1127
    %1399 = vmatprep.mubr.f32.mxu0 %v1261
    %1400 = vmatmul.mubr.f32.gmra.mxu0 %v1260
    %v1401 = vpop.f32.mrf.mxu0
    %v1402 = vadd.f32 %v311, %v1401
    %v1403 = vpop.f32.mrf.mxu0
    %v1404 = vadd.f32 %v315, %v1403
    %1405 = vdwg.mxu0
    %1406 = vmatprep.subr.mxu0 %v1122
    %1407 = vmatpush1.msra.mxu0 %v1121
    %1408 = vmatprep.subr.mxu0 %v1114
    %1409 = vmatpush1.msra.mxu0 %v1113
    %1410 = vmatprep.subr.mxu0 %v1106
    %1411 = vmatpush1.msra.mxu0 %v1105
    %1412 = vmatprep.subr.mxu0 %v1098
    %1413 = vmatpush1.msra.mxu0 %v1097
    %1414 = vmatprep.subr.mxu0 %v1090
    %1415 = vmatpush1.msra.mxu0 %v1089
    %1416 = vmatprep.subr.mxu0 %v1082
    %1417 = vmatpush1.msra.mxu0 %v1081
    %1418 = vmatprep.subr.mxu0 %v1074
    %1419 = vmatpush1.msra.mxu0 %v1073
    %1420 = vmatprep.subr.mxu0 %v1066
    %1421 = vmatpush1.msra.mxu0 %v1065
    %1422 = vmatprep.subr.mxu0 %v1058
    %1423 = vmatpush1.msra.mxu0 %v1057
    %1424 = vmatprep.subr.mxu0 %v1050
    %1425 = vmatpush1.msra.mxu0 %v1049
    %1426 = vmatprep.subr.mxu0 %v1042
    %1427 = vmatpush1.msra.mxu0 %v1041
    %1428 = vmatprep.subr.mxu0 %v1034
    %1429 = vmatpush1.msra.mxu0 %v1033
    %1430 = vmatprep.subr.mxu0 %v1026
    %1431 = vmatpush1.msra.mxu0 %v1025
    %1432 = vmatprep.subr.mxu0 %v1018
    %1433 = vmatpush1.msra.mxu0 %v1017
    %1434 = vmatprep.subr.mxu0 %v1010
    %1435 = vmatpush1.msra.mxu0 %v1009
    %1436 = vmatprep.subr.mxu0 %v1002
    %1437 = vmatpush1.msra.mxu0 %v1001
    %1438 = vmatprep.subr.mxu0 %v1250
    %1439 = vmatpush2.msra.mxu0 %v1249
    %1440 = vmatprep.subr.mxu0 %v1242
    %1441 = vmatpush2.msra.mxu0 %v1241
    %1442 = vmatprep.subr.mxu0 %v1234
    %1443 = vmatpush2.msra.mxu0 %v1233
    %1444 = vmatprep.subr.mxu0 %v1226
    %1445 = vmatpush2.msra.mxu0 %v1225
    %1446 = vmatprep.subr.mxu0 %v1218
    %1447 = vmatpush2.msra.mxu0 %v1217
    %1448 = vmatprep.subr.mxu0 %v1210
    %1449 = vmatpush2.msra.mxu0 %v1209
    %1450 = vmatprep.subr.mxu0 %v1202
    %1451 = vmatpush2.msra.mxu0 %v1201
    %1452 = vmatprep.subr.mxu0 %v1194
    %1453 = vmatpush2.msra.mxu0 %v1193
    %1454 = vmatprep.subr.mxu0 %v1186
    %1455 = vmatpush2.msra.mxu0 %v1185
    %1456 = vmatprep.subr.mxu0 %v1178
    %1457 = vmatpush2.msra.mxu0 %v1177
    %1458 = vmatprep.subr.mxu0 %v1170
    %1459 = vmatpush2.msra.mxu0 %v1169
    %1460 = vmatprep.subr.mxu0 %v1162
    %1461 = vmatpush2.msra.mxu0 %v1161
    %1462 = vmatprep.subr.mxu0 %v1154
    %1463 = vmatpush2.msra.mxu0 %v1153
    %1464 = vmatprep.subr.mxu0 %v1146
    %1465 = vmatpush2.msra.mxu0 %v1145
    %1466 = vmatprep.subr.mxu0 %v1138
    %1467 = vmatpush2.msra.mxu0 %v1137
    %1468 = vmatprep.subr.mxu0 %v1130
    %1469 = vmatpush2.msra.mxu0 %v1129
    %1470 = vmatprep.mubr.f32.mxu0 %v1261
    %1471 = vmatmul.mubr.f32.gmra.mxu0 %v1260
    %v1472 = vpop.f32.mrf.mxu0
    %v1473 = vadd.f32 %v319, %v1472
    %v1474 = vpop.f32.mrf.mxu0
    %v1475 = vadd.f32 %v323, %v1474
    %1476 = vdwg.mxu0
    %1477 = vmatprep.subr.mxu0 %v1124
    %1478 = vmatpush1.msra.mxu0 %v1123
    %1479 = vmatprep.subr.mxu0 %v1116
    %1480 = vmatpush1.msra.mxu0 %v1115
    %1481 = vmatprep.subr.mxu0 %v1108
    %1482 = vmatpush1.msra.mxu0 %v1107
    %1483 = vmatprep.subr.mxu0 %v1100
    %1484 = vmatpush1.msra.mxu0 %v1099
    %1485 = vmatprep.subr.mxu0 %v1092
    %1486 = vmatpush1.msra.mxu0 %v1091
    %1487 = vmatprep.subr.mxu0 %v1084
    %1488 = vmatpush1.msra.mxu0 %v1083
    %1489 = vmatprep.subr.mxu0 %v1076
    %1490 = vmatpush1.msra.mxu0 %v1075
    %1491 = vmatprep.subr.mxu0 %v1068
    %1492 = vmatpush1.msra.mxu0 %v1067
    %1493 = vmatprep.subr.mxu0 %v1060
    %1494 = vmatpush1.msra.mxu0 %v1059
    %1495 = vmatprep.subr.mxu0 %v1052
    %1496 = vmatpush1.msra.mxu0 %v1051
    %1497 = vmatprep.subr.mxu0 %v1044
    %1498 = vmatpush1.msra.mxu0 %v1043
    %1499 = vmatprep.subr.mxu0 %v1036
    %1500 = vmatpush1.msra.mxu0 %v1035
    %1501 = vmatprep.subr.mxu0 %v1028
    %1502 = vmatpush1.msra.mxu0 %v1027
    %1503 = vmatprep.subr.mxu0 %v1020
    %1504 = vmatpush1.msra.mxu0 %v1019
    %1505 = vmatprep.subr.mxu0 %v1012
    %1506 = vmatpush1.msra.mxu0 %v1011
    %1507 = vmatprep.subr.mxu0 %v1004
    %1508 = vmatpush1.msra.mxu0 %v1003
    %1509 = vmatprep.subr.mxu0 %v1252
    %1510 = vmatpush2.msra.mxu0 %v1251
    %1511 = vmatprep.subr.mxu0 %v1244
    %1512 = vmatpush2.msra.mxu0 %v1243
    %1513 = vmatprep.subr.mxu0 %v1236
    %1514 = vmatpush2.msra.mxu0 %v1235
    %1515 = vmatprep.subr.mxu0 %v1228
    %1516 = vmatpush2.msra.mxu0 %v1227
    %1517 = vmatprep.subr.mxu0 %v1220
    %1518 = vmatpush2.msra.mxu0 %v1219
    %1519 = vmatprep.subr.mxu0 %v1212
    %1520 = vmatpush2.msra.mxu0 %v1211
    %1521 = vmatprep.subr.mxu0 %v1204
    %1522 = vmatpush2.msra.mxu0 %v1203
    %1523 = vmatprep.subr.mxu0 %v1196
    %1524 = vmatpush2.msra.mxu0 %v1195
    %1525 = vmatprep.subr.mxu0 %v1188
    %1526 = vmatpush2.msra.mxu0 %v1187
    %1527 = vmatprep.subr.mxu0 %v1180
    %1528 = vmatpush2.msra.mxu0 %v1179
    %1529 = vmatprep.subr.mxu0 %v1172
    %1530 = vmatpush2.msra.mxu0 %v1171
    %1531 = vmatprep.subr.mxu0 %v1164
    %1532 = vmatpush2.msra.mxu0 %v1163
    %1533 = vmatprep.subr.mxu0 %v1156
    %1534 = vmatpush2.msra.mxu0 %v1155
    %1535 = vmatprep.subr.mxu0 %v1148
    %1536 = vmatpush2.msra.mxu0 %v1147
    %1537 = vmatprep.subr.mxu0 %v1140
    %1538 = vmatpush2.msra.mxu0 %v1139
    %1539 = vmatprep.subr.mxu0 %v1132
    %1540 = vmatpush2.msra.mxu0 %v1131
    %1541 = vmatprep.mubr.f32.mxu0 %v1261
    %1542 = vmatmul.mubr.f32.gmra.mxu0 %v1260
    %v1543 = vpop.f32.mrf.mxu0
    %v1544 = vadd.f32 %v327, %v1543
    %v1545 = vpop.f32.mrf.mxu0
    %v1546 = vadd.f32 %v331, %v1545
    %1547 = vdwg.mxu0
    %v1548 = vxor.u32 %v1331, 2147483648
    %v1549 = vmul.f32 %v1548, 1.442695
    %v1550 = vpow.pop %v1549
    %v1551 = vadd.f32 %v1550, 1.0
    %v1552 = vrcp.pop %v1551
    %v1553 = vmul.f32 1.0, %v1552
    %v1554 = vxor.u32 %v1333, 2147483648
    %v1555 = vmul.f32 %v1554, 1.442695
    %v1556 = vpow.pop %v1555
    %v1557 = vadd.f32 %v1556, 1.0
    %v1558 = vrcp.pop %v1557
    %v1559 = vmul.f32 1.0, %v1558
    %v1560 = vmul.f32 %v1553, %v1404
    %v1561 = vadd.f32 %v1402, %v1560
    %v1562 = vtanh.pop %v1561
    %v1563 = vsub.f32 1.0, %v1559
    %v1564 = vmul.f32 %v1563, %v1562
    %v1565 = vmul.f32 %v1559, %v940
    %v1566 = vadd.f32 %v1564, %v1565
    %1567 = vst [vmem:[#allocation2 + $0x2] sm:$0x3] %v1566
    %v1572 = vrot.slane %v1473, 4
    %v1573 = vrot.slane %v1475, 4
    %v1574 = vrot.slane %v1544, 4
    %v1575 = vrot.slane %v1546, 4
    %v1580 = vadd.f32 %v211, %v1572
    %v1581 = vadd.f32 %v213, %v1573
    %v1582 = vadd.f32 %v288, %v1574
    %v1583 = vadd.f32 %v290, %v1575
    %v1584 = vxor.u32 %v1580, 2147483648
    %v1585 = vmul.f32 %v1584, 1.442695
    %v1586 = vpow.pop %v1585
    %v1587 = vadd.f32 %v1586, 1.0
    %v1588 = vrcp.pop %v1587
    %v1589 = vmul.f32 1.0, %v1588
    %v1590 = vxor.u32 %v1581, 2147483648
    %v1591 = vmul.f32 %v1590, 1.442695
    %v1592 = vpow.pop %v1591
    %v1593 = vadd.f32 %v1592, 1.0
    %v1594 = vrcp.pop %v1593
    %v1595 = vmul.f32 1.0, %v1594
    %v1596 = vtanh.pop %v1582
    %v1597 = vxor.u32 %v1583, 2147483648
    %v1598 = vmul.f32 %v1597, 1.442695
    %v1599 = vpow.pop %v1598
    %v1600 = vadd.f32 %v1599, 1.0
    %v1601 = vrcp.pop %v1600
    %v1602 = vmul.f32 1.0, %v1601
    %v1604 = vrot.slane %v982, 6
    %v1606 = vmul.f32 %v1595, %v1604
    %v1607 = vmul.f32 %v1589, %v1596
    %v1608 = vadd.f32 %v1606, %v1607
    %v1609 = vtanh.pop %v1608
    %v1610 = vmul.f32 %v1602, %v1609
    %v1612 = vcombine.high %v1610, %v1610
    %v1614 = vunpack.c.l.s4 1983009808
    %v1615 = vunpack.c.0.s8 %v1614
    %v1616 = vlaneseq
    %v1617 = vshrl.u32 %v1616, 7
    %v1618 = vsub.s32 %v1615, %v1617
    %v1619 = vrot.slane %v1612, %v1618
    %1621 = vst [vmem:[#allocation2] sm:$0x3] %v1619
    %v1622 = vld [vmem:[#allocation2] sm:$0xf]
    %v1623 = vld [vmem:[#allocation9] sm:$0xff]
    %v1624 = vld [vmem:[#allocation9 + $0x8] sm:$0xff]
    %v1625 = vld [vmem:[#allocation9 + $0x10] sm:$0xff]
    %v1626 = vld [vmem:[#allocation9 + $0x18] sm:$0xff]
    %v1627 = vld [vmem:[#allocation9 + $0x20] sm:$0xff]
    %v1628 = vld [vmem:[#allocation9 + $0x28] sm:$0xff]
    %v1629 = vld [vmem:[#allocation9 + $0x30] sm:$0xff]
    %v1630 = vld [vmem:[#allocation9 + $0x38] sm:$0xff]
    %v1631 = vld [vmem:[#allocation9 + $0x40] sm:$0xff]
    %v1632 = vld [vmem:[#allocation9 + $0x48] sm:$0xff]
    %v1633 = vld [vmem:[#allocation9 + $0x50] sm:$0xff]
    %v1634 = vld [vmem:[#allocation9 + $0x58] sm:$0xff]
    %v1635 = vld [vmem:[#allocation9 + $0x60] sm:$0xff]
    %v1636 = vld [vmem:[#allocation9 + $0x68] sm:$0xff]
    %v1637 = vld [vmem:[#allocation9 + $0x70] sm:$0xff]
    %v1638 = vld [vmem:[#allocation9 + $0x78] sm:$0xff]
    %v1639 = vld [vmem:[#allocation9 + $0x80] sm:$0xff]
    %v1640 = vld [vmem:[#allocation9 + $0x88] sm:$0xff]
    %v1641 = vld [vmem:[#allocation9 + $0x90] sm:$0xff]
    %v1642 = vld [vmem:[#allocation9 + $0x98] sm:$0xff]
    %v1643 = vld [vmem:[#allocation9 + $0xa0] sm:$0xff]
    %v1644 = vld [vmem:[#allocation9 + $0xa8] sm:$0xff]
    %v1645 = vld [vmem:[#allocation9 + $0xb0] sm:$0xff]
    %v1646 = vld [vmem:[#allocation9 + $0xb8] sm:$0xff]
    %v1647 = vld [vmem:[#allocation9 + $0xc0] sm:$0xff]
    %v1648 = vld [vmem:[#allocation9 + $0xc8] sm:$0xff]
    %v1649 = vld [vmem:[#allocation9 + $0xd0] sm:$0xff]
    %v1650 = vld [vmem:[#allocation9 + $0xd8] sm:$0xff]
    %v1651 = vld [vmem:[#allocation9 + $0xe0] sm:$0xff]
    %v1652 = vld [vmem:[#allocation9 + $0xe8] sm:$0xff]
    %v1653 = vld [vmem:[#allocation9 + $0xf0] sm:$0xff]
    %v1654 = vld [vmem:[#allocation9 + $0xf8] sm:$0xff]
    %v1655 = vld [vmem:[#allocation9 + $0x100] sm:$0xff]
    %v1656 = vld [vmem:[#allocation9 + $0x108] sm:$0xff]
    %v1657 = vld [vmem:[#allocation9 + $0x110] sm:$0xff]
    %v1658 = vld [vmem:[#allocation9 + $0x118] sm:$0xff]
    %v1659 = vld [vmem:[#allocation9 + $0x120] sm:$0xff]
    %v1660 = vld [vmem:[#allocation9 + $0x128] sm:$0xff]
    %v1661 = vld [vmem:[#allocation9 + $0x130] sm:$0xff]
    %v1662 = vld [vmem:[#allocation9 + $0x138] sm:$0xff]
    %v1663 = vld [vmem:[#allocation9 + $0x140] sm:$0xff]
    %v1664 = vld [vmem:[#allocation9 + $0x148] sm:$0xff]
    %v1665 = vld [vmem:[#allocation9 + $0x150] sm:$0xff]
    %v1666 = vld [vmem:[#allocation9 + $0x158] sm:$0xff]
    %v1667 = vld [vmem:[#allocation9 + $0x160] sm:$0xff]
    %v1668 = vld [vmem:[#allocation9 + $0x168] sm:$0xff]
    %v1669 = vld [vmem:[#allocation9 + $0x170] sm:$0xff]
    %v1670 = vld [vmem:[#allocation9 + $0x178] sm:$0xff]
    %v1671 = vld [vmem:[#allocation9 + $0x180] sm:$0xff]
    %v1672 = vld [vmem:[#allocation9 + $0x188] sm:$0xff]
    %v1673 = vld [vmem:[#allocation9 + $0x190] sm:$0xff]
    %v1674 = vld [vmem:[#allocation9 + $0x198] sm:$0xff]
    %v1675 = vld [vmem:[#allocation9 + $0x1a0] sm:$0xff]
    %v1676 = vld [vmem:[#allocation9 + $0x1a8] sm:$0xff]
    %v1677 = vld [vmem:[#allocation9 + $0x1b0] sm:$0xff]
    %v1678 = vld [vmem:[#allocation9 + $0x1b8] sm:$0xff]
    %v1679 = vld [vmem:[#allocation9 + $0x1c0] sm:$0xff]
    %v1680 = vld [vmem:[#allocation9 + $0x1c8] sm:$0xff]
    %v1681 = vld [vmem:[#allocation9 + $0x1d0] sm:$0xff]
    %v1682 = vld [vmem:[#allocation9 + $0x1d8] sm:$0xff]
    %v1683 = vld [vmem:[#allocation9 + $0x1e0] sm:$0xff]
    %v1684 = vld [vmem:[#allocation9 + $0x1e8] sm:$0xff]
    %v1685 = vld [vmem:[#allocation9 + $0x1f0] sm:$0xff]
    %v1686 = vld [vmem:[#allocation9 + $0x1f8] sm:$0xff]
    %v1687 = vld [vmem:[#allocation9 + $0x200] sm:$0xff]
    %v1688 = vld [vmem:[#allocation9 + $0x208] sm:$0xff]
    %v1689 = vld [vmem:[#allocation9 + $0x210] sm:$0xff]
    %v1690 = vld [vmem:[#allocation9 + $0x218] sm:$0xff]
    %v1691 = vld [vmem:[#allocation9 + $0x220] sm:$0xff]
    %v1692 = vld [vmem:[#allocation9 + $0x228] sm:$0xff]
    %v1693 = vld [vmem:[#allocation9 + $0x230] sm:$0xff]
    %v1694 = vld [vmem:[#allocation9 + $0x238] sm:$0xff]
    %v1695 = vld [vmem:[#allocation9 + $0x240] sm:$0xff]
    %v1696 = vld [vmem:[#allocation9 + $0x248] sm:$0xff]
    %v1697 = vld [vmem:[#allocation9 + $0x250] sm:$0xff]
    %v1698 = vld [vmem:[#allocation9 + $0x258] sm:$0xff]
    %v1699 = vld [vmem:[#allocation9 + $0x260] sm:$0xff]
    %v1700 = vld [vmem:[#allocation9 + $0x268] sm:$0xff]
    %v1701 = vld [vmem:[#allocation9 + $0x270] sm:$0xff]
    %v1702 = vld [vmem:[#allocation9 + $0x278] sm:$0xff]
    %v1703 = vld [vmem:[#allocation9 + $0x280] sm:$0xff]
    %v1704 = vld [vmem:[#allocation9 + $0x288] sm:$0xff]
    %v1705 = vld [vmem:[#allocation9 + $0x290] sm:$0xff]
    %v1706 = vld [vmem:[#allocation9 + $0x298] sm:$0xff]
    %v1707 = vld [vmem:[#allocation9 + $0x2a0] sm:$0xff]
    %v1708 = vld [vmem:[#allocation9 + $0x2a8] sm:$0xff]
    %v1709 = vld [vmem:[#allocation9 + $0x2b0] sm:$0xff]
    %v1710 = vld [vmem:[#allocation9 + $0x2b8] sm:$0xff]
    %v1711 = vld [vmem:[#allocation9 + $0x2c0] sm:$0xff]
    %v1712 = vld [vmem:[#allocation9 + $0x2c8] sm:$0xff]
    %v1713 = vld [vmem:[#allocation9 + $0x2d0] sm:$0xff]
    %v1714 = vld [vmem:[#allocation9 + $0x2d8] sm:$0xff]
    %v1715 = vld [vmem:[#allocation9 + $0x2e0] sm:$0xff]
    %v1716 = vld [vmem:[#allocation9 + $0x2e8] sm:$0xff]
    %v1717 = vld [vmem:[#allocation9 + $0x2f0] sm:$0xff]
    %v1718 = vld [vmem:[#allocation9 + $0x2f8] sm:$0xff]
    %v1719 = vld [vmem:[#allocation9 + $0x300] sm:$0xff]
    %v1720 = vld [vmem:[#allocation9 + $0x308] sm:$0xff]
    %v1721 = vld [vmem:[#allocation9 + $0x310] sm:$0xff]
    %v1722 = vld [vmem:[#allocation9 + $0x318] sm:$0xff]
    %v1723 = vld [vmem:[#allocation9 + $0x320] sm:$0xff]
    %v1724 = vld [vmem:[#allocation9 + $0x328] sm:$0xff]
    %v1725 = vld [vmem:[#allocation9 + $0x330] sm:$0xff]
    %v1726 = vld [vmem:[#allocation9 + $0x338] sm:$0xff]
    %v1727 = vld [vmem:[#allocation9 + $0x340] sm:$0xff]
    %v1728 = vld [vmem:[#allocation9 + $0x348] sm:$0xff]
    %v1729 = vld [vmem:[#allocation9 + $0x350] sm:$0xff]
    %v1730 = vld [vmem:[#allocation9 + $0x358] sm:$0xff]
    %v1731 = vld [vmem:[#allocation9 + $0x360] sm:$0xff]
    %v1732 = vld [vmem:[#allocation9 + $0x368] sm:$0xff]
    %v1733 = vld [vmem:[#allocation9 + $0x370] sm:$0xff]
    %v1734 = vld [vmem:[#allocation9 + $0x378] sm:$0xff]
    %v1735 = vld [vmem:[#allocation9 + $0x380] sm:$0xff]
    %v1736 = vld [vmem:[#allocation9 + $0x388] sm:$0xff]
    %v1737 = vld [vmem:[#allocation9 + $0x390] sm:$0xff]
    %v1738 = vld [vmem:[#allocation9 + $0x398] sm:$0xff]
    %v1739 = vld [vmem:[#allocation9 + $0x3a0] sm:$0xff]
    %v1740 = vld [vmem:[#allocation9 + $0x3a8] sm:$0xff]
    %v1741 = vld [vmem:[#allocation9 + $0x3b0] sm:$0xff]
    %v1742 = vld [vmem:[#allocation9 + $0x3b8] sm:$0xff]
    %v1743 = vld [vmem:[#allocation9 + $0x3c0] sm:$0xff]
    %v1744 = vld [vmem:[#allocation9 + $0x3c8] sm:$0xff]
    %v1745 = vld [vmem:[#allocation9 + $0x3d0] sm:$0xff]
    %v1746 = vld [vmem:[#allocation9 + $0x3d8] sm:$0xff]
    %v1747 = vld [vmem:[#allocation9 + $0x3e0] sm:$0xff]
    %v1748 = vld [vmem:[#allocation9 + $0x3e8] sm:$0xff]
    %v1749 = vld [vmem:[#allocation9 + $0x3f0] sm:$0xff]
    %v1750 = vld [vmem:[#allocation9 + $0x3f8] sm:$0xff]
    %v1751 = vld [vmem:[#allocation9 + $0x400] sm:$0xff]
    %v1752 = vld [vmem:[#allocation9 + $0x408] sm:$0xff]
    %v1753 = vld [vmem:[#allocation9 + $0x410] sm:$0xff]
    %v1754 = vld [vmem:[#allocation9 + $0x418] sm:$0xff]
    %v1755 = vld [vmem:[#allocation9 + $0x420] sm:$0xff]
    %v1756 = vld [vmem:[#allocation9 + $0x428] sm:$0xff]
    %v1757 = vld [vmem:[#allocation9 + $0x430] sm:$0xff]
    %v1758 = vld [vmem:[#allocation9 + $0x438] sm:$0xff]
    %v1759 = vld [vmem:[#allocation9 + $0x440] sm:$0xff]
    %v1760 = vld [vmem:[#allocation9 + $0x448] sm:$0xff]
    %v1761 = vld [vmem:[#allocation9 + $0x450] sm:$0xff]
    %v1762 = vld [vmem:[#allocation9 + $0x458] sm:$0xff]
    %v1763 = vld [vmem:[#allocation9 + $0x460] sm:$0xff]
    %v1764 = vld [vmem:[#allocation9 + $0x468] sm:$0xff]
    %v1765 = vld [vmem:[#allocation9 + $0x470] sm:$0xff]
    %v1766 = vld [vmem:[#allocation9 + $0x478] sm:$0xff]
    %v1767 = vld [vmem:[#allocation9 + $0x480] sm:$0xff]
    %v1768 = vld [vmem:[#allocation9 + $0x488] sm:$0xff]
    %v1769 = vld [vmem:[#allocation9 + $0x490] sm:$0xff]
    %v1770 = vld [vmem:[#allocation9 + $0x498] sm:$0xff]
    %v1771 = vld [vmem:[#allocation9 + $0x4a0] sm:$0xff]
    %v1772 = vld [vmem:[#allocation9 + $0x4a8] sm:$0xff]
    %v1773 = vld [vmem:[#allocation9 + $0x4b0] sm:$0xff]
    %v1774 = vld [vmem:[#allocation9 + $0x4b8] sm:$0xff]
    %v1775 = vld [vmem:[#allocation9 + $0x4c0] sm:$0xff]
    %v1776 = vld [vmem:[#allocation9 + $0x4c8] sm:$0xff]
    %v1777 = vld [vmem:[#allocation9 + $0x4d0] sm:$0xff]
    %v1778 = vld [vmem:[#allocation9 + $0x4d8] sm:$0xff]
    %v1779 = vld [vmem:[#allocation9 + $0x4e0] sm:$0xff]
    %v1780 = vld [vmem:[#allocation9 + $0x4e8] sm:$0xff]
    %v1781 = vld [vmem:[#allocation9 + $0x4f0] sm:$0xff]
    %v1782 = vld [vmem:[#allocation9 + $0x4f8] sm:$0xff]
    %v1783 = vld [vmem:[#allocation9 + $0x500] sm:$0xff]
    %v1784 = vld [vmem:[#allocation9 + $0x508] sm:$0xff]
    %v1785 = vld [vmem:[#allocation9 + $0x510] sm:$0xff]
    %v1786 = vld [vmem:[#allocation9 + $0x518] sm:$0xff]
    %v1787 = vld [vmem:[#allocation9 + $0x520] sm:$0xff]
    %v1788 = vld [vmem:[#allocation9 + $0x528] sm:$0xff]
    %v1789 = vld [vmem:[#allocation9 + $0x530] sm:$0xff]
    %v1790 = vld [vmem:[#allocation9 + $0x538] sm:$0xff]
    %v1791 = vld [vmem:[#allocation9 + $0x540] sm:$0xff]
    %v1792 = vld [vmem:[#allocation9 + $0x548] sm:$0xff]
    %v1793 = vld [vmem:[#allocation9 + $0x550] sm:$0xff]
    %v1794 = vld [vmem:[#allocation9 + $0x558] sm:$0xff]
    %v1795 = vld [vmem:[#allocation9 + $0x560] sm:$0xff]
    %v1796 = vld [vmem:[#allocation9 + $0x568] sm:$0xff]
    %v1797 = vld [vmem:[#allocation9 + $0x570] sm:$0xff]
    %v1798 = vld [vmem:[#allocation9 + $0x578] sm:$0xff]
    %v1799 = vld [vmem:[#allocation9 + $0x580] sm:$0xff]
    %v1800 = vld [vmem:[#allocation9 + $0x588] sm:$0xff]
    %v1801 = vld [vmem:[#allocation9 + $0x590] sm:$0xff]
    %v1802 = vld [vmem:[#allocation9 + $0x598] sm:$0xff]
    %v1803 = vld [vmem:[#allocation9 + $0x5a0] sm:$0xff]
    %v1804 = vld [vmem:[#allocation9 + $0x5a8] sm:$0xff]
    %v1805 = vld [vmem:[#allocation9 + $0x5b0] sm:$0xff]
    %v1806 = vld [vmem:[#allocation9 + $0x5b8] sm:$0xff]
    %v1807 = vld [vmem:[#allocation9 + $0x5c0] sm:$0xff]
    %v1808 = vld [vmem:[#allocation9 + $0x5c8] sm:$0xff]
    %v1809 = vld [vmem:[#allocation9 + $0x5d0] sm:$0xff]
    %v1810 = vld [vmem:[#allocation9 + $0x5d8] sm:$0xff]
    %v1811 = vld [vmem:[#allocation9 + $0x5e0] sm:$0xff]
    %v1812 = vld [vmem:[#allocation9 + $0x5e8] sm:$0xff]
    %v1813 = vld [vmem:[#allocation9 + $0x5f0] sm:$0xff]
    %v1814 = vld [vmem:[#allocation9 + $0x5f8] sm:$0xff]
    %v1815 = vld [vmem:[#allocation9 + $0x600] sm:$0xff]
    %v1816 = vld [vmem:[#allocation9 + $0x608] sm:$0xff]
    %v1817 = vld [vmem:[#allocation9 + $0x610] sm:$0xff]
    %v1818 = vld [vmem:[#allocation9 + $0x618] sm:$0xff]
    %v1819 = vld [vmem:[#allocation9 + $0x620] sm:$0xff]
    %v1820 = vld [vmem:[#allocation9 + $0x628] sm:$0xff]
    %v1821 = vld [vmem:[#allocation9 + $0x630] sm:$0xff]
    %v1822 = vld [vmem:[#allocation9 + $0x638] sm:$0xff]
    %v1823 = vld [vmem:[#allocation9 + $0x640] sm:$0xff]
    %v1824 = vld [vmem:[#allocation9 + $0x648] sm:$0xff]
    %v1825 = vld [vmem:[#allocation9 + $0x650] sm:$0xff]
    %v1826 = vld [vmem:[#allocation9 + $0x658] sm:$0xff]
    %v1827 = vld [vmem:[#allocation9 + $0x660] sm:$0xff]
    %v1828 = vld [vmem:[#allocation9 + $0x668] sm:$0xff]
    %v1829 = vld [vmem:[#allocation9 + $0x670] sm:$0xff]
    %v1830 = vld [vmem:[#allocation9 + $0x678] sm:$0xff]
    %v1831 = vld [vmem:[#allocation9 + $0x680] sm:$0xff]
    %v1832 = vld [vmem:[#allocation9 + $0x688] sm:$0xff]
    %v1833 = vld [vmem:[#allocation9 + $0x690] sm:$0xff]
    %v1834 = vld [vmem:[#allocation9 + $0x698] sm:$0xff]
    %v1835 = vld [vmem:[#allocation9 + $0x6a0] sm:$0xff]
    %v1836 = vld [vmem:[#allocation9 + $0x6a8] sm:$0xff]
    %v1837 = vld [vmem:[#allocation9 + $0x6b0] sm:$0xff]
    %v1838 = vld [vmem:[#allocation9 + $0x6b8] sm:$0xff]
    %v1839 = vld [vmem:[#allocation9 + $0x6c0] sm:$0xff]
    %v1840 = vld [vmem:[#allocation9 + $0x6c8] sm:$0xff]
    %v1841 = vld [vmem:[#allocation9 + $0x6d0] sm:$0xff]
    %v1842 = vld [vmem:[#allocation9 + $0x6d8] sm:$0xff]
    %v1843 = vld [vmem:[#allocation9 + $0x6e0] sm:$0xff]
    %v1844 = vld [vmem:[#allocation9 + $0x6e8] sm:$0xff]
    %v1845 = vld [vmem:[#allocation9 + $0x6f0] sm:$0xff]
    %v1846 = vld [vmem:[#allocation9 + $0x6f8] sm:$0xff]
    %v1847 = vld [vmem:[#allocation9 + $0x700] sm:$0xff]
    %v1848 = vld [vmem:[#allocation9 + $0x708] sm:$0xff]
    %v1849 = vld [vmem:[#allocation9 + $0x710] sm:$0xff]
    %v1850 = vld [vmem:[#allocation9 + $0x718] sm:$0xff]
    %v1851 = vld [vmem:[#allocation9 + $0x720] sm:$0xff]
    %v1852 = vld [vmem:[#allocation9 + $0x728] sm:$0xff]
    %v1853 = vld [vmem:[#allocation9 + $0x730] sm:$0xff]
    %v1854 = vld [vmem:[#allocation9 + $0x738] sm:$0xff]
    %v1855 = vld [vmem:[#allocation9 + $0x740] sm:$0xff]
    %v1856 = vld [vmem:[#allocation9 + $0x748] sm:$0xff]
    %v1857 = vld [vmem:[#allocation9 + $0x750] sm:$0xff]
    %v1858 = vld [vmem:[#allocation9 + $0x758] sm:$0xff]
    %v1859 = vld [vmem:[#allocation9 + $0x760] sm:$0xff]
    %v1860 = vld [vmem:[#allocation9 + $0x768] sm:$0xff]
    %v1861 = vld [vmem:[#allocation9 + $0x770] sm:$0xff]
    %v1862 = vld [vmem:[#allocation9 + $0x778] sm:$0xff]
    %v1863 = vld [vmem:[#allocation9 + $0x780] sm:$0xff]
    %v1864 = vld [vmem:[#allocation9 + $0x788] sm:$0xff]
    %v1865 = vld [vmem:[#allocation9 + $0x790] sm:$0xff]
    %v1866 = vld [vmem:[#allocation9 + $0x798] sm:$0xff]
    %v1867 = vld [vmem:[#allocation9 + $0x7a0] sm:$0xff]
    %v1868 = vld [vmem:[#allocation9 + $0x7a8] sm:$0xff]
    %v1869 = vld [vmem:[#allocation9 + $0x7b0] sm:$0xff]
    %v1870 = vld [vmem:[#allocation9 + $0x7b8] sm:$0xff]
    %v1871 = vld [vmem:[#allocation9 + $0x7c0] sm:$0xff]
    %v1872 = vld [vmem:[#allocation9 + $0x7c8] sm:$0xff]
    %v1873 = vld [vmem:[#allocation9 + $0x7d0] sm:$0xff]
    %v1874 = vld [vmem:[#allocation9 + $0x7d8] sm:$0xff]
    %v1875 = vld [vmem:[#allocation9 + $0x7e0] sm:$0xff]
    %v1876 = vld [vmem:[#allocation9 + $0x7e8] sm:$0xff]
    %v1877 = vld [vmem:[#allocation9 + $0x7f0] sm:$0xff]
    %v1878 = vld [vmem:[#allocation9 + $0x7f8] sm:$0xff]
    %v1881 = vunpack.c.l.s4 1983009808
    %v1882 = vunpack.c.0.s8 %v1881
    %v1883 = vlaneseq
    %v1884 = vshrl.u32 %v1883, 7
    %v1885 = vsub.s32 %v1882, %v1884
    %v1886 = vrot.slane %v1622, %v1885
    %v1887 = vcombine.high %v1886, %v1886
    %1890 = vmatprep.subr.mxu0 %v1744
    %1891 = vmatpush1.msra.mxu0 %v1743
    %1892 = vmatprep.subr.mxu0 %v1736
    %1893 = vmatpush1.msra.mxu0 %v1735
    %1894 = vmatprep.subr.mxu0 %v1728
    %1895 = vmatpush1.msra.mxu0 %v1727
    %1896 = vmatprep.subr.mxu0 %v1720
    %1897 = vmatpush1.msra.mxu0 %v1719
    %1898 = vmatprep.subr.mxu0 %v1712
    %1899 = vmatpush1.msra.mxu0 %v1711
    %1900 = vmatprep.subr.mxu0 %v1704
    %1901 = vmatpush1.msra.mxu0 %v1703
    %1902 = vmatprep.subr.mxu0 %v1696
    %1903 = vmatpush1.msra.mxu0 %v1695
    %1904 = vmatprep.subr.mxu0 %v1688
    %1905 = vmatpush1.msra.mxu0 %v1687
    %1906 = vmatprep.subr.mxu0 %v1680
    %1907 = vmatpush1.msra.mxu0 %v1679
    %1908 = vmatprep.subr.mxu0 %v1672
    %1909 = vmatpush1.msra.mxu0 %v1671
    %1910 = vmatprep.subr.mxu0 %v1664
    %1911 = vmatpush1.msra.mxu0 %v1663
    %1912 = vmatprep.subr.mxu0 %v1656
    %1913 = vmatpush1.msra.mxu0 %v1655
    %1914 = vmatprep.subr.mxu0 %v1648
    %1915 = vmatpush1.msra.mxu0 %v1647
    %1916 = vmatprep.subr.mxu0 %v1640
    %1917 = vmatpush1.msra.mxu0 %v1639
    %1918 = vmatprep.subr.mxu0 %v1632
    %1919 = vmatpush1.msra.mxu0 %v1631
    %1920 = vmatprep.subr.mxu0 %v1624
    %1921 = vmatpush1.msra.mxu0 %v1623
    %1922 = vmatprep.subr.mxu0 %v1872
    %1923 = vmatpush2.msra.mxu0 %v1871
    %1924 = vmatprep.subr.mxu0 %v1864
    %1925 = vmatpush2.msra.mxu0 %v1863
    %1926 = vmatprep.subr.mxu0 %v1856
    %1927 = vmatpush2.msra.mxu0 %v1855
    %1928 = vmatprep.subr.mxu0 %v1848
    %1929 = vmatpush2.msra.mxu0 %v1847
    %1930 = vmatprep.subr.mxu0 %v1840
    %1931 = vmatpush2.msra.mxu0 %v1839
    %1932 = vmatprep.subr.mxu0 %v1832
    %1933 = vmatpush2.msra.mxu0 %v1831
    %1934 = vmatprep.subr.mxu0 %v1824
    %1935 = vmatpush2.msra.mxu0 %v1823
    %1936 = vmatprep.subr.mxu0 %v1816
    %1937 = vmatpush2.msra.mxu0 %v1815
    %1938 = vmatprep.subr.mxu0 %v1808
    %1939 = vmatpush2.msra.mxu0 %v1807
    %1940 = vmatprep.subr.mxu0 %v1800
    %1941 = vmatpush2.msra.mxu0 %v1799
    %1942 = vmatprep.subr.mxu0 %v1792
    %1943 = vmatpush2.msra.mxu0 %v1791
    %1944 = vmatprep.subr.mxu0 %v1784
    %1945 = vmatpush2.msra.mxu0 %v1783
    %1946 = vmatprep.subr.mxu0 %v1776
    %1947 = vmatpush2.msra.mxu0 %v1775
    %1948 = vmatprep.subr.mxu0 %v1768
    %1949 = vmatpush2.msra.mxu0 %v1767
    %1950 = vmatprep.subr.mxu0 %v1760
    %1951 = vmatpush2.msra.mxu0 %v1759
    %1952 = vmatprep.subr.mxu0 %v1752
    %1953 = vmatpush2.msra.mxu0 %v1751
    %1954 = vmatprep.mubr.f32.mxu0 %v1887
    %1955 = vmatmul.mubr.f32.gmra.mxu0 %v1886
    %v1956 = vpop.f32.mrf.mxu0
    %v1957 = vadd.f32 %v303, %v1956
    %v1958 = vpop.f32.mrf.mxu0
    %v1959 = vadd.f32 %v307, %v1958
    %1960 = vdwg.mxu0
    %1961 = vmatprep.subr.mxu0 %v1746
    %1962 = vmatpush1.msra.mxu0 %v1745
    %1963 = vmatprep.subr.mxu0 %v1738
    %1964 = vmatpush1.msra.mxu0 %v1737
    %1965 = vmatprep.subr.mxu0 %v1730
    %1966 = vmatpush1.msra.mxu0 %v1729
    %1967 = vmatprep.subr.mxu0 %v1722
    %1968 = vmatpush1.msra.mxu0 %v1721
    %1969 = vmatprep.subr.mxu0 %v1714
    %1970 = vmatpush1.msra.mxu0 %v1713
    %1971 = vmatprep.subr.mxu0 %v1706
    %1972 = vmatpush1.msra.mxu0 %v1705
    %1973 = vmatprep.subr.mxu0 %v1698
    %1974 = vmatpush1.msra.mxu0 %v1697
    %1975 = vmatprep.subr.mxu0 %v1690
    %1976 = vmatpush1.msra.mxu0 %v1689
    %1977 = vmatprep.subr.mxu0 %v1682
    %1978 = vmatpush1.msra.mxu0 %v1681
    %1979 = vmatprep.subr.mxu0 %v1674
    %1980 = vmatpush1.msra.mxu0 %v1673
    %1981 = vmatprep.subr.mxu0 %v1666
    %1982 = vmatpush1.msra.mxu0 %v1665
    %1983 = vmatprep.subr.mxu0 %v1658
    %1984 = vmatpush1.msra.mxu0 %v1657
    %1985 = vmatprep.subr.mxu0 %v1650
    %1986 = vmatpush1.msra.mxu0 %v1649
    %1987 = vmatprep.subr.mxu0 %v1642
    %1988 = vmatpush1.msra.mxu0 %v1641
    %1989 = vmatprep.subr.mxu0 %v1634
    %1990 = vmatpush1.msra.mxu0 %v1633
    %1991 = vmatprep.subr.mxu0 %v1626
    %1992 = vmatpush1.msra.mxu0 %v1625
    %1993 = vmatprep.subr.mxu0 %v1874
    %1994 = vmatpush2.msra.mxu0 %v1873
    %1995 = vmatprep.subr.mxu0 %v1866
    %1996 = vmatpush2.msra.mxu0 %v1865
    %1997 = vmatprep.subr.mxu0 %v1858
    %1998 = vmatpush2.msra.mxu0 %v1857
    %1999 = vmatprep.subr.mxu0 %v1850
    %2000 = vmatpush2.msra.mxu0 %v1849
    %2001 = vmatprep.subr.mxu0 %v1842
    %2002 = vmatpush2.msra.mxu0 %v1841
    %2003 = vmatprep.subr.mxu0 %v1834
    %2004 = vmatpush2.msra.mxu0 %v1833
    %2005 = vmatprep.subr.mxu0 %v1826
    %2006 = vmatpush2.msra.mxu0 %v1825
    %2007 = vmatprep.subr.mxu0 %v1818
    %2008 = vmatpush2.msra.mxu0 %v1817
    %2009 = vmatprep.subr.mxu0 %v1810
    %2010 = vmatpush2.msra.mxu0 %v1809
    %2011 = vmatprep.subr.mxu0 %v1802
    %2012 = vmatpush2.msra.mxu0 %v1801
    %2013 = vmatprep.subr.mxu0 %v1794
    %2014 = vmatpush2.msra.mxu0 %v1793
    %2015 = vmatprep.subr.mxu0 %v1786
    %2016 = vmatpush2.msra.mxu0 %v1785
    %2017 = vmatprep.subr.mxu0 %v1778
    %2018 = vmatpush2.msra.mxu0 %v1777
    %2019 = vmatprep.subr.mxu0 %v1770
    %2020 = vmatpush2.msra.mxu0 %v1769
    %2021 = vmatprep.subr.mxu0 %v1762
    %2022 = vmatpush2.msra.mxu0 %v1761
    %2023 = vmatprep.subr.mxu0 %v1754
    %2024 = vmatpush2.msra.mxu0 %v1753
    %2025 = vmatprep.mubr.f32.mxu0 %v1887
    %2026 = vmatmul.mubr.f32.gmra.mxu0 %v1886
    %v2027 = vpop.f32.mrf.mxu0
    %v2028 = vadd.f32 %v311, %v2027
    %v2029 = vpop.f32.mrf.mxu0
    %v2030 = vadd.f32 %v315, %v2029
    %2031 = vdwg.mxu0
    %2032 = vmatprep.subr.mxu0 %v1748
    %2033 = vmatpush1.msra.mxu0 %v1747
    %2034 = vmatprep.subr.mxu0 %v1740
    %2035 = vmatpush1.msra.mxu0 %v1739
    %2036 = vmatprep.subr.mxu0 %v1732
    %2037 = vmatpush1.msra.mxu0 %v1731
    %2038 = vmatprep.subr.mxu0 %v1724
    %2039 = vmatpush1.msra.mxu0 %v1723
    %2040 = vmatprep.subr.mxu0 %v1716
    %2041 = vmatpush1.msra.mxu0 %v1715
    %2042 = vmatprep.subr.mxu0 %v1708
    %2043 = vmatpush1.msra.mxu0 %v1707
    %2044 = vmatprep.subr.mxu0 %v1700
    %2045 = vmatpush1.msra.mxu0 %v1699
    %2046 = vmatprep.subr.mxu0 %v1692
    %2047 = vmatpush1.msra.mxu0 %v1691
    %2048 = vmatprep.subr.mxu0 %v1684
    %2049 = vmatpush1.msra.mxu0 %v1683
    %2050 = vmatprep.subr.mxu0 %v1676
    %2051 = vmatpush1.msra.mxu0 %v1675
    %2052 = vmatprep.subr.mxu0 %v1668
    %2053 = vmatpush1.msra.mxu0 %v1667
    %2054 = vmatprep.subr.mxu0 %v1660
    %2055 = vmatpush1.msra.mxu0 %v1659
    %2056 = vmatprep.subr.mxu0 %v1652
    %2057 = vmatpush1.msra.mxu0 %v1651
    %2058 = vmatprep.subr.mxu0 %v1644
    %2059 = vmatpush1.msra.mxu0 %v1643
    %2060 = vmatprep.subr.mxu0 %v1636
    %2061 = vmatpush1.msra.mxu0 %v1635
    %2062 = vmatprep.subr.mxu0 %v1628
    %2063 = vmatpush1.msra.mxu0 %v1627
    %2064 = vmatprep.subr.mxu0 %v1876
    %2065 = vmatpush2.msra.mxu0 %v1875
    %2066 = vmatprep.subr.mxu0 %v1868
    %2067 = vmatpush2.msra.mxu0 %v1867
    %2068 = vmatprep.subr.mxu0 %v1860
    %2069 = vmatpush2.msra.mxu0 %v1859
    %2070 = vmatprep.subr.mxu0 %v1852
    %2071 = vmatpush2.msra.mxu0 %v1851
    %2072 = vmatprep.subr.mxu0 %v1844
    %2073 = vmatpush2.msra.mxu0 %v1843
    %2074 = vmatprep.subr.mxu0 %v1836
    %2075 = vmatpush2.msra.mxu0 %v1835
    %2076 = vmatprep.subr.mxu0 %v1828
    %2077 = vmatpush2.msra.mxu0 %v1827
    %2078 = vmatprep.subr.mxu0 %v1820
    %2079 = vmatpush2.msra.mxu0 %v1819
    %2080 = vmatprep.subr.mxu0 %v1812
    %2081 = vmatpush2.msra.mxu0 %v1811
    %2082 = vmatprep.subr.mxu0 %v1804
    %2083 = vmatpush2.msra.mxu0 %v1803
    %2084 = vmatprep.subr.mxu0 %v1796
    %2085 = vmatpush2.msra.mxu0 %v1795
    %2086 = vmatprep.subr.mxu0 %v1788
    %2087 = vmatpush2.msra.mxu0 %v1787
    %2088 = vmatprep.subr.mxu0 %v1780
    %2089 = vmatpush2.msra.mxu0 %v1779
    %2090 = vmatprep.subr.mxu0 %v1772
    %2091 = vmatpush2.msra.mxu0 %v1771
    %2092 = vmatprep.subr.mxu0 %v1764
    %2093 = vmatpush2.msra.mxu0 %v1763
    %2094 = vmatprep.subr.mxu0 %v1756
    %2095 = vmatpush2.msra.mxu0 %v1755
    %2096 = vmatprep.mubr.f32.mxu0 %v1887
    %2097 = vmatmul.mubr.f32.gmra.mxu0 %v1886
    %v2098 = vpop.f32.mrf.mxu0
    %v2099 = vadd.f32 %v319, %v2098
    %v2100 = vpop.f32.mrf.mxu0
    %v2101 = vadd.f32 %v323, %v2100
    %2102 = vdwg.mxu0
    %2103 = vmatprep.subr.mxu0 %v1750
    %2104 = vmatpush1.msra.mxu0 %v1749
    %2105 = vmatprep.subr.mxu0 %v1742
    %2106 = vmatpush1.msra.mxu0 %v1741
    %2107 = vmatprep.subr.mxu0 %v1734
    %2108 = vmatpush1.msra.mxu0 %v1733
    %2109 = vmatprep.subr.mxu0 %v1726
    %2110 = vmatpush1.msra.mxu0 %v1725
    %2111 = vmatprep.subr.mxu0 %v1718
    %2112 = vmatpush1.msra.mxu0 %v1717
    %2113 = vmatprep.subr.mxu0 %v1710
    %2114 = vmatpush1.msra.mxu0 %v1709
    %2115 = vmatprep.subr.mxu0 %v1702
    %2116 = vmatpush1.msra.mxu0 %v1701
    %2117 = vmatprep.subr.mxu0 %v1694
    %2118 = vmatpush1.msra.mxu0 %v1693
    %2119 = vmatprep.subr.mxu0 %v1686
    %2120 = vmatpush1.msra.mxu0 %v1685
    %2121 = vmatprep.subr.mxu0 %v1678
    %2122 = vmatpush1.msra.mxu0 %v1677
    %2123 = vmatprep.subr.mxu0 %v1670
    %2124 = vmatpush1.msra.mxu0 %v1669
    %2125 = vmatprep.subr.mxu0 %v1662
    %2126 = vmatpush1.msra.mxu0 %v1661
    %2127 = vmatprep.subr.mxu0 %v1654
    %2128 = vmatpush1.msra.mxu0 %v1653
    %2129 = vmatprep.subr.mxu0 %v1646
    %2130 = vmatpush1.msra.mxu0 %v1645
    %2131 = vmatprep.subr.mxu0 %v1638
    %2132 = vmatpush1.msra.mxu0 %v1637
    %2133 = vmatprep.subr.mxu0 %v1630
    %2134 = vmatpush1.msra.mxu0 %v1629
    %2135 = vmatprep.subr.mxu0 %v1878
    %2136 = vmatpush2.msra.mxu0 %v1877
    %2137 = vmatprep.subr.mxu0 %v1870
    %2138 = vmatpush2.msra.mxu0 %v1869
    %2139 = vmatprep.subr.mxu0 %v1862
    %2140 = vmatpush2.msra.mxu0 %v1861
    %2141 = vmatprep.subr.mxu0 %v1854
    %2142 = vmatpush2.msra.mxu0 %v1853
    %2143 = vmatprep.subr.mxu0 %v1846
    %2144 = vmatpush2.msra.mxu0 %v1845
    %2145 = vmatprep.subr.mxu0 %v1838
    %2146 = vmatpush2.msra.mxu0 %v1837
    %2147 = vmatprep.subr.mxu0 %v1830
    %2148 = vmatpush2.msra.mxu0 %v1829
    %2149 = vmatprep.subr.mxu0 %v1822
    %2150 = vmatpush2.msra.mxu0 %v1821
    %2151 = vmatprep.subr.mxu0 %v1814
    %2152 = vmatpush2.msra.mxu0 %v1813
    %2153 = vmatprep.subr.mxu0 %v1806
    %2154 = vmatpush2.msra.mxu0 %v1805
    %2155 = vmatprep.subr.mxu0 %v1798
    %2156 = vmatpush2.msra.mxu0 %v1797
    %2157 = vmatprep.subr.mxu0 %v1790
    %2158 = vmatpush2.msra.mxu0 %v1789
    %2159 = vmatprep.subr.mxu0 %v1782
    %2160 = vmatpush2.msra.mxu0 %v1781
    %2161 = vmatprep.subr.mxu0 %v1774
    %2162 = vmatpush2.msra.mxu0 %v1773
    %2163 = vmatprep.subr.mxu0 %v1766
    %2164 = vmatpush2.msra.mxu0 %v1765
    %2165 = vmatprep.subr.mxu0 %v1758
    %2166 = vmatpush2.msra.mxu0 %v1757
    %2167 = vmatprep.mubr.f32.mxu0 %v1887
    %2168 = vmatmul.mubr.f32.gmra.mxu0 %v1886
    %v2169 = vpop.f32.mrf.mxu0
    %v2170 = vadd.f32 %v327, %v2169
    %v2171 = vpop.f32.mrf.mxu0
    %v2172 = vadd.f32 %v331, %v2171
    %2173 = vdwg.mxu0
    %v2174 = vxor.u32 %v1957, 2147483648
    %v2175 = vmul.f32 %v2174, 1.442695
    %v2176 = vpow.pop %v2175
    %v2177 = vadd.f32 %v2176, 1.0
    %v2178 = vrcp.pop %v2177
    %v2179 = vmul.f32 1.0, %v2178
    %v2180 = vxor.u32 %v1959, 2147483648
    %v2181 = vmul.f32 %v2180, 1.442695
    %v2182 = vpow.pop %v2181
    %v2183 = vadd.f32 %v2182, 1.0
    %v2184 = vrcp.pop %v2183
    %v2185 = vmul.f32 1.0, %v2184
    %v2186 = vmul.f32 %v2179, %v2030
    %v2187 = vadd.f32 %v2028, %v2186
    %v2188 = vtanh.pop %v2187
    %v2189 = vsub.f32 1.0, %v2185
    %v2190 = vmul.f32 %v2189, %v2188
    %v2191 = vmul.f32 %v2185, %v1566
    %v2192 = vadd.f32 %v2190, %v2191
    %2193 = vst [vmem:[#allocation2 + $0x2] sm:$0x3] %v2192
    %v2198 = vrot.slane %v2099, 2
    %v2199 = vrot.slane %v2101, 2
    %v2200 = vrot.slane %v2170, 2
    %v2201 = vrot.slane %v2172, 2
    %v2206 = vadd.f32 %v211, %v2198
    %v2207 = vadd.f32 %v213, %v2199
    %v2208 = vadd.f32 %v288, %v2200
    %v2209 = vadd.f32 %v290, %v2201
    %v2210 = vxor.u32 %v2206, 2147483648
    %v2211 = vmul.f32 %v2210, 1.442695
    %v2212 = vpow.pop %v2211
    %v2213 = vadd.f32 %v2212, 1.0
    %v2214 = vrcp.pop %v2213
    %v2215 = vmul.f32 1.0, %v2214
    %v2216 = vxor.u32 %v2207, 2147483648
    %v2217 = vmul.f32 %v2216, 1.442695
    %v2218 = vpow.pop %v2217
    %v2219 = vadd.f32 %v2218, 1.0
    %v2220 = vrcp.pop %v2219
    %v2221 = vmul.f32 1.0, %v2220
    %v2222 = vtanh.pop %v2208
    %v2223 = vxor.u32 %v2209, 2147483648
    %v2224 = vmul.f32 %v2223, 1.442695
    %v2225 = vpow.pop %v2224
    %v2226 = vadd.f32 %v2225, 1.0
    %v2227 = vrcp.pop %v2226
    %v2228 = vmul.f32 1.0, %v2227
    %v2230 = vrot.slane %v1608, 6
    %v2232 = vmul.f32 %v2221, %v2230
    %v2233 = vmul.f32 %v2215, %v2222
    %v2234 = vadd.f32 %v2232, %v2233
    %v2235 = vtanh.pop %v2234
    %v2236 = vmul.f32 %v2228, %v2235
    %v2238 = vcombine.high %v2236, %v2236
    %v2240 = vunpack.c.l.s4 1983009808
    %v2241 = vunpack.c.0.s8 %v2240
    %v2242 = vlaneseq
    %v2243 = vshrl.u32 %v2242, 7
    %v2244 = vsub.s32 %v2241, %v2243
    %v2245 = vrot.slane %v2238, %v2244
    %v2246 = vcombine.high %v2245, %v2245
    %2248 = vst [vmem:[#allocation2] sm:$0x3] %v2246
    %v2249 = vld [vmem:[#allocation2] sm:$0xf]
    %v2250 = vld [vmem:[#allocation9] sm:$0xff]
    %v2251 = vld [vmem:[#allocation9 + $0x8] sm:$0xff]
    %v2252 = vld [vmem:[#allocation9 + $0x10] sm:$0xff]
    %v2253 = vld [vmem:[#allocation9 + $0x18] sm:$0xff]
    %v2254 = vld [vmem:[#allocation9 + $0x20] sm:$0xff]
    %v2255 = vld [vmem:[#allocation9 + $0x28] sm:$0xff]
    %v2256 = vld [vmem:[#allocation9 + $0x30] sm:$0xff]
    %v2257 = vld [vmem:[#allocation9 + $0x38] sm:$0xff]
    %v2258 = vld [vmem:[#allocation9 + $0x40] sm:$0xff]
    %v2259 = vld [vmem:[#allocation9 + $0x48] sm:$0xff]
    %v2260 = vld [vmem:[#allocation9 + $0x50] sm:$0xff]
    %v2261 = vld [vmem:[#allocation9 + $0x58] sm:$0xff]
    %v2262 = vld [vmem:[#allocation9 + $0x60] sm:$0xff]
    %v2263 = vld [vmem:[#allocation9 + $0x68] sm:$0xff]
    %v2264 = vld [vmem:[#allocation9 + $0x70] sm:$0xff]
    %v2265 = vld [vmem:[#allocation9 + $0x78] sm:$0xff]
    %v2266 = vld [vmem:[#allocation9 + $0x80] sm:$0xff]
    %v2267 = vld [vmem:[#allocation9 + $0x88] sm:$0xff]
    %v2268 = vld [vmem:[#allocation9 + $0x90] sm:$0xff]
    %v2269 = vld [vmem:[#allocation9 + $0x98] sm:$0xff]
    %v2270 = vld [vmem:[#allocation9 + $0xa0] sm:$0xff]
    %v2271 = vld [vmem:[#allocation9 + $0xa8] sm:$0xff]
    %v2272 = vld [vmem:[#allocation9 + $0xb0] sm:$0xff]
    %v2273 = vld [vmem:[#allocation9 + $0xb8] sm:$0xff]
    %v2274 = vld [vmem:[#allocation9 + $0xc0] sm:$0xff]
    %v2275 = vld [vmem:[#allocation9 + $0xc8] sm:$0xff]
    %v2276 = vld [vmem:[#allocation9 + $0xd0] sm:$0xff]
    %v2277 = vld [vmem:[#allocation9 + $0xd8] sm:$0xff]
    %v2278 = vld [vmem:[#allocation9 + $0xe0] sm:$0xff]
    %v2279 = vld [vmem:[#allocation9 + $0xe8] sm:$0xff]
    %v2280 = vld [vmem:[#allocation9 + $0xf0] sm:$0xff]
    %v2281 = vld [vmem:[#allocation9 + $0xf8] sm:$0xff]
    %v2282 = vld [vmem:[#allocation9 + $0x100] sm:$0xff]
    %v2283 = vld [vmem:[#allocation9 + $0x108] sm:$0xff]
    %v2284 = vld [vmem:[#allocation9 + $0x110] sm:$0xff]
    %v2285 = vld [vmem:[#allocation9 + $0x118] sm:$0xff]
    %v2286 = vld [vmem:[#allocation9 + $0x120] sm:$0xff]
    %v2287 = vld [vmem:[#allocation9 + $0x128] sm:$0xff]
    %v2288 = vld [vmem:[#allocation9 + $0x130] sm:$0xff]
    %v2289 = vld [vmem:[#allocation9 + $0x138] sm:$0xff]
    %v2290 = vld [vmem:[#allocation9 + $0x140] sm:$0xff]
    %v2291 = vld [vmem:[#allocation9 + $0x148] sm:$0xff]
    %v2292 = vld [vmem:[#allocation9 + $0x150] sm:$0xff]
    %v2293 = vld [vmem:[#allocation9 + $0x158] sm:$0xff]
    %v2294 = vld [vmem:[#allocation9 + $0x160] sm:$0xff]
    %v2295 = vld [vmem:[#allocation9 + $0x168] sm:$0xff]
    %v2296 = vld [vmem:[#allocation9 + $0x170] sm:$0xff]
    %v2297 = vld [vmem:[#allocation9 + $0x178] sm:$0xff]
    %v2298 = vld [vmem:[#allocation9 + $0x180] sm:$0xff]
    %v2299 = vld [vmem:[#allocation9 + $0x188] sm:$0xff]
    %v2300 = vld [vmem:[#allocation9 + $0x190] sm:$0xff]
    %v2301 = vld [vmem:[#allocation9 + $0x198] sm:$0xff]
    %v2302 = vld [vmem:[#allocation9 + $0x1a0] sm:$0xff]
    %v2303 = vld [vmem:[#allocation9 + $0x1a8] sm:$0xff]
    %v2304 = vld [vmem:[#allocation9 + $0x1b0] sm:$0xff]
    %v2305 = vld [vmem:[#allocation9 + $0x1b8] sm:$0xff]
    %v2306 = vld [vmem:[#allocation9 + $0x1c0] sm:$0xff]
    %v2307 = vld [vmem:[#allocation9 + $0x1c8] sm:$0xff]
    %v2308 = vld [vmem:[#allocation9 + $0x1d0] sm:$0xff]
    %v2309 = vld [vmem:[#allocation9 + $0x1d8] sm:$0xff]
    %v2310 = vld [vmem:[#allocation9 + $0x1e0] sm:$0xff]
    %v2311 = vld [vmem:[#allocation9 + $0x1e8] sm:$0xff]
    %v2312 = vld [vmem:[#allocation9 + $0x1f0] sm:$0xff]
    %v2313 = vld [vmem:[#allocation9 + $0x1f8] sm:$0xff]
    %v2314 = vld [vmem:[#allocation9 + $0x200] sm:$0xff]
    %v2315 = vld [vmem:[#allocation9 + $0x208] sm:$0xff]
    %v2316 = vld [vmem:[#allocation9 + $0x210] sm:$0xff]
    %v2317 = vld [vmem:[#allocation9 + $0x218] sm:$0xff]
    %v2318 = vld [vmem:[#allocation9 + $0x220] sm:$0xff]
    %v2319 = vld [vmem:[#allocation9 + $0x228] sm:$0xff]
    %v2320 = vld [vmem:[#allocation9 + $0x230] sm:$0xff]
    %v2321 = vld [vmem:[#allocation9 + $0x238] sm:$0xff]
    %v2322 = vld [vmem:[#allocation9 + $0x240] sm:$0xff]
    %v2323 = vld [vmem:[#allocation9 + $0x248] sm:$0xff]
    %v2324 = vld [vmem:[#allocation9 + $0x250] sm:$0xff]
    %v2325 = vld [vmem:[#allocation9 + $0x258] sm:$0xff]
    %v2326 = vld [vmem:[#allocation9 + $0x260] sm:$0xff]
    %v2327 = vld [vmem:[#allocation9 + $0x268] sm:$0xff]
    %v2328 = vld [vmem:[#allocation9 + $0x270] sm:$0xff]
    %v2329 = vld [vmem:[#allocation9 + $0x278] sm:$0xff]
    %v2330 = vld [vmem:[#allocation9 + $0x280] sm:$0xff]
    %v2331 = vld [vmem:[#allocation9 + $0x288] sm:$0xff]
    %v2332 = vld [vmem:[#allocation9 + $0x290] sm:$0xff]
    %v2333 = vld [vmem:[#allocation9 + $0x298] sm:$0xff]
    %v2334 = vld [vmem:[#allocation9 + $0x2a0] sm:$0xff]
    %v2335 = vld [vmem:[#allocation9 + $0x2a8] sm:$0xff]
    %v2336 = vld [vmem:[#allocation9 + $0x2b0] sm:$0xff]
    %v2337 = vld [vmem:[#allocation9 + $0x2b8] sm:$0xff]
    %v2338 = vld [vmem:[#allocation9 + $0x2c0] sm:$0xff]
    %v2339 = vld [vmem:[#allocation9 + $0x2c8] sm:$0xff]
    %v2340 = vld [vmem:[#allocation9 + $0x2d0] sm:$0xff]
    %v2341 = vld [vmem:[#allocation9 + $0x2d8] sm:$0xff]
    %v2342 = vld [vmem:[#allocation9 + $0x2e0] sm:$0xff]
    %v2343 = vld [vmem:[#allocation9 + $0x2e8] sm:$0xff]
    %v2344 = vld [vmem:[#allocation9 + $0x2f0] sm:$0xff]
    %v2345 = vld [vmem:[#allocation9 + $0x2f8] sm:$0xff]
    %v2346 = vld [vmem:[#allocation9 + $0x300] sm:$0xff]
    %v2347 = vld [vmem:[#allocation9 + $0x308] sm:$0xff]
    %v2348 = vld [vmem:[#allocation9 + $0x310] sm:$0xff]
    %v2349 = vld [vmem:[#allocation9 + $0x318] sm:$0xff]
    %v2350 = vld [vmem:[#allocation9 + $0x320] sm:$0xff]
    %v2351 = vld [vmem:[#allocation9 + $0x328] sm:$0xff]
    %v2352 = vld [vmem:[#allocation9 + $0x330] sm:$0xff]
    %v2353 = vld [vmem:[#allocation9 + $0x338] sm:$0xff]
    %v2354 = vld [vmem:[#allocation9 + $0x340] sm:$0xff]
    %v2355 = vld [vmem:[#allocation9 + $0x348] sm:$0xff]
    %v2356 = vld [vmem:[#allocation9 + $0x350] sm:$0xff]
    %v2357 = vld [vmem:[#allocation9 + $0x358] sm:$0xff]
    %v2358 = vld [vmem:[#allocation9 + $0x360] sm:$0xff]
    %v2359 = vld [vmem:[#allocation9 + $0x368] sm:$0xff]
    %v2360 = vld [vmem:[#allocation9 + $0x370] sm:$0xff]
    %v2361 = vld [vmem:[#allocation9 + $0x378] sm:$0xff]
    %v2362 = vld [vmem:[#allocation9 + $0x380] sm:$0xff]
    %v2363 = vld [vmem:[#allocation9 + $0x388] sm:$0xff]
    %v2364 = vld [vmem:[#allocation9 + $0x390] sm:$0xff]
    %v2365 = vld [vmem:[#allocation9 + $0x398] sm:$0xff]
    %v2366 = vld [vmem:[#allocation9 + $0x3a0] sm:$0xff]
    %v2367 = vld [vmem:[#allocation9 + $0x3a8] sm:$0xff]
    %v2368 = vld [vmem:[#allocation9 + $0x3b0] sm:$0xff]
    %v2369 = vld [vmem:[#allocation9 + $0x3b8] sm:$0xff]
    %v2370 = vld [vmem:[#allocation9 + $0x3c0] sm:$0xff]
    %v2371 = vld [vmem:[#allocation9 + $0x3c8] sm:$0xff]
    %v2372 = vld [vmem:[#allocation9 + $0x3d0] sm:$0xff]
    %v2373 = vld [vmem:[#allocation9 + $0x3d8] sm:$0xff]
    %v2374 = vld [vmem:[#allocation9 + $0x3e0] sm:$0xff]
    %v2375 = vld [vmem:[#allocation9 + $0x3e8] sm:$0xff]
    %v2376 = vld [vmem:[#allocation9 + $0x3f0] sm:$0xff]
    %v2377 = vld [vmem:[#allocation9 + $0x3f8] sm:$0xff]
    %v2378 = vld [vmem:[#allocation9 + $0x400] sm:$0xff]
    %v2379 = vld [vmem:[#allocation9 + $0x408] sm:$0xff]
    %v2380 = vld [vmem:[#allocation9 + $0x410] sm:$0xff]
    %v2381 = vld [vmem:[#allocation9 + $0x418] sm:$0xff]
    %v2382 = vld [vmem:[#allocation9 + $0x420] sm:$0xff]
    %v2383 = vld [vmem:[#allocation9 + $0x428] sm:$0xff]
    %v2384 = vld [vmem:[#allocation9 + $0x430] sm:$0xff]
    %v2385 = vld [vmem:[#allocation9 + $0x438] sm:$0xff]
    %v2386 = vld [vmem:[#allocation9 + $0x440] sm:$0xff]
    %v2387 = vld [vmem:[#allocation9 + $0x448] sm:$0xff]
    %v2388 = vld [vmem:[#allocation9 + $0x450] sm:$0xff]
    %v2389 = vld [vmem:[#allocation9 + $0x458] sm:$0xff]
    %v2390 = vld [vmem:[#allocation9 + $0x460] sm:$0xff]
    %v2391 = vld [vmem:[#allocation9 + $0x468] sm:$0xff]
    %v2392 = vld [vmem:[#allocation9 + $0x470] sm:$0xff]
    %v2393 = vld [vmem:[#allocation9 + $0x478] sm:$0xff]
    %v2394 = vld [vmem:[#allocation9 + $0x480] sm:$0xff]
    %v2395 = vld [vmem:[#allocation9 + $0x488] sm:$0xff]
    %v2396 = vld [vmem:[#allocation9 + $0x490] sm:$0xff]
    %v2397 = vld [vmem:[#allocation9 + $0x498] sm:$0xff]
    %v2398 = vld [vmem:[#allocation9 + $0x4a0] sm:$0xff]
    %v2399 = vld [vmem:[#allocation9 + $0x4a8] sm:$0xff]
    %v2400 = vld [vmem:[#allocation9 + $0x4b0] sm:$0xff]
    %v2401 = vld [vmem:[#allocation9 + $0x4b8] sm:$0xff]
    %v2402 = vld [vmem:[#allocation9 + $0x4c0] sm:$0xff]
    %v2403 = vld [vmem:[#allocation9 + $0x4c8] sm:$0xff]
    %v2404 = vld [vmem:[#allocation9 + $0x4d0] sm:$0xff]
    %v2405 = vld [vmem:[#allocation9 + $0x4d8] sm:$0xff]
    %v2406 = vld [vmem:[#allocation9 + $0x4e0] sm:$0xff]
    %v2407 = vld [vmem:[#allocation9 + $0x4e8] sm:$0xff]
    %v2408 = vld [vmem:[#allocation9 + $0x4f0] sm:$0xff]
    %v2409 = vld [vmem:[#allocation9 + $0x4f8] sm:$0xff]
    %v2410 = vld [vmem:[#allocation9 + $0x500] sm:$0xff]
    %v2411 = vld [vmem:[#allocation9 + $0x508] sm:$0xff]
    %v2412 = vld [vmem:[#allocation9 + $0x510] sm:$0xff]
    %v2413 = vld [vmem:[#allocation9 + $0x518] sm:$0xff]
    %v2414 = vld [vmem:[#allocation9 + $0x520] sm:$0xff]
    %v2415 = vld [vmem:[#allocation9 + $0x528] sm:$0xff]
    %v2416 = vld [vmem:[#allocation9 + $0x530] sm:$0xff]
    %v2417 = vld [vmem:[#allocation9 + $0x538] sm:$0xff]
    %v2418 = vld [vmem:[#allocation9 + $0x540] sm:$0xff]
    %v2419 = vld [vmem:[#allocation9 + $0x548] sm:$0xff]
    %v2420 = vld [vmem:[#allocation9 + $0x550] sm:$0xff]
    %v2421 = vld [vmem:[#allocation9 + $0x558] sm:$0xff]
    %v2422 = vld [vmem:[#allocation9 + $0x560] sm:$0xff]
    %v2423 = vld [vmem:[#allocation9 + $0x568] sm:$0xff]
    %v2424 = vld [vmem:[#allocation9 + $0x570] sm:$0xff]
    %v2425 = vld [vmem:[#allocation9 + $0x578] sm:$0xff]
    %v2426 = vld [vmem:[#allocation9 + $0x580] sm:$0xff]
    %v2427 = vld [vmem:[#allocation9 + $0x588] sm:$0xff]
    %v2428 = vld [vmem:[#allocation9 + $0x590] sm:$0xff]
    %v2429 = vld [vmem:[#allocation9 + $0x598] sm:$0xff]
    %v2430 = vld [vmem:[#allocation9 + $0x5a0] sm:$0xff]
    %v2431 = vld [vmem:[#allocation9 + $0x5a8] sm:$0xff]
    %v2432 = vld [vmem:[#allocation9 + $0x5b0] sm:$0xff]
    %v2433 = vld [vmem:[#allocation9 + $0x5b8] sm:$0xff]
    %v2434 = vld [vmem:[#allocation9 + $0x5c0] sm:$0xff]
    %v2435 = vld [vmem:[#allocation9 + $0x5c8] sm:$0xff]
    %v2436 = vld [vmem:[#allocation9 + $0x5d0] sm:$0xff]
    %v2437 = vld [vmem:[#allocation9 + $0x5d8] sm:$0xff]
    %v2438 = vld [vmem:[#allocation9 + $0x5e0] sm:$0xff]
    %v2439 = vld [vmem:[#allocation9 + $0x5e8] sm:$0xff]
    %v2440 = vld [vmem:[#allocation9 + $0x5f0] sm:$0xff]
    %v2441 = vld [vmem:[#allocation9 + $0x5f8] sm:$0xff]
    %v2442 = vld [vmem:[#allocation9 + $0x600] sm:$0xff]
    %v2443 = vld [vmem:[#allocation9 + $0x608] sm:$0xff]
    %v2444 = vld [vmem:[#allocation9 + $0x610] sm:$0xff]
    %v2445 = vld [vmem:[#allocation9 + $0x618] sm:$0xff]
    %v2446 = vld [vmem:[#allocation9 + $0x620] sm:$0xff]
    %v2447 = vld [vmem:[#allocation9 + $0x628] sm:$0xff]
    %v2448 = vld [vmem:[#allocation9 + $0x630] sm:$0xff]
    %v2449 = vld [vmem:[#allocation9 + $0x638] sm:$0xff]
    %v2450 = vld [vmem:[#allocation9 + $0x640] sm:$0xff]
    %v2451 = vld [vmem:[#allocation9 + $0x648] sm:$0xff]
    %v2452 = vld [vmem:[#allocation9 + $0x650] sm:$0xff]
    %v2453 = vld [vmem:[#allocation9 + $0x658] sm:$0xff]
    %v2454 = vld [vmem:[#allocation9 + $0x660] sm:$0xff]
    %v2455 = vld [vmem:[#allocation9 + $0x668] sm:$0xff]
    %v2456 = vld [vmem:[#allocation9 + $0x670] sm:$0xff]
    %v2457 = vld [vmem:[#allocation9 + $0x678] sm:$0xff]
    %v2458 = vld [vmem:[#allocation9 + $0x680] sm:$0xff]
    %v2459 = vld [vmem:[#allocation9 + $0x688] sm:$0xff]
    %v2460 = vld [vmem:[#allocation9 + $0x690] sm:$0xff]
    %v2461 = vld [vmem:[#allocation9 + $0x698] sm:$0xff]
    %v2462 = vld [vmem:[#allocation9 + $0x6a0] sm:$0xff]
    %v2463 = vld [vmem:[#allocation9 + $0x6a8] sm:$0xff]
    %v2464 = vld [vmem:[#allocation9 + $0x6b0] sm:$0xff]
    %v2465 = vld [vmem:[#allocation9 + $0x6b8] sm:$0xff]
    %v2466 = vld [vmem:[#allocation9 + $0x6c0] sm:$0xff]
    %v2467 = vld [vmem:[#allocation9 + $0x6c8] sm:$0xff]
    %v2468 = vld [vmem:[#allocation9 + $0x6d0] sm:$0xff]
    %v2469 = vld [vmem:[#allocation9 + $0x6d8] sm:$0xff]
    %v2470 = vld [vmem:[#allocation9 + $0x6e0] sm:$0xff]
    %v2471 = vld [vmem:[#allocation9 + $0x6e8] sm:$0xff]
    %v2472 = vld [vmem:[#allocation9 + $0x6f0] sm:$0xff]
    %v2473 = vld [vmem:[#allocation9 + $0x6f8] sm:$0xff]
    %v2474 = vld [vmem:[#allocation9 + $0x700] sm:$0xff]
    %v2475 = vld [vmem:[#allocation9 + $0x708] sm:$0xff]
    %v2476 = vld [vmem:[#allocation9 + $0x710] sm:$0xff]
    %v2477 = vld [vmem:[#allocation9 + $0x718] sm:$0xff]
    %v2478 = vld [vmem:[#allocation9 + $0x720] sm:$0xff]
    %v2479 = vld [vmem:[#allocation9 + $0x728] sm:$0xff]
    %v2480 = vld [vmem:[#allocation9 + $0x730] sm:$0xff]
    %v2481 = vld [vmem:[#allocation9 + $0x738] sm:$0xff]
    %v2482 = vld [vmem:[#allocation9 + $0x740] sm:$0xff]
    %v2483 = vld [vmem:[#allocation9 + $0x748] sm:$0xff]
    %v2484 = vld [vmem:[#allocation9 + $0x750] sm:$0xff]
    %v2485 = vld [vmem:[#allocation9 + $0x758] sm:$0xff]
    %v2486 = vld [vmem:[#allocation9 + $0x760] sm:$0xff]
    %v2487 = vld [vmem:[#allocation9 + $0x768] sm:$0xff]
    %v2488 = vld [vmem:[#allocation9 + $0x770] sm:$0xff]
    %v2489 = vld [vmem:[#allocation9 + $0x778] sm:$0xff]
    %v2490 = vld [vmem:[#allocation9 + $0x780] sm:$0xff]
    %v2491 = vld [vmem:[#allocation9 + $0x788] sm:$0xff]
    %v2492 = vld [vmem:[#allocation9 + $0x790] sm:$0xff]
    %v2493 = vld [vmem:[#allocation9 + $0x798] sm:$0xff]
    %v2494 = vld [vmem:[#allocation9 + $0x7a0] sm:$0xff]
    %v2495 = vld [vmem:[#allocation9 + $0x7a8] sm:$0xff]
    %v2496 = vld [vmem:[#allocation9 + $0x7b0] sm:$0xff]
    %v2497 = vld [vmem:[#allocation9 + $0x7b8] sm:$0xff]
    %v2498 = vld [vmem:[#allocation9 + $0x7c0] sm:$0xff]
    %v2499 = vld [vmem:[#allocation9 + $0x7c8] sm:$0xff]
    %v2500 = vld [vmem:[#allocation9 + $0x7d0] sm:$0xff]
    %v2501 = vld [vmem:[#allocation9 + $0x7d8] sm:$0xff]
    %v2502 = vld [vmem:[#allocation9 + $0x7e0] sm:$0xff]
    %v2503 = vld [vmem:[#allocation9 + $0x7e8] sm:$0xff]
    %v2504 = vld [vmem:[#allocation9 + $0x7f0] sm:$0xff]
    %v2505 = vld [vmem:[#allocation9 + $0x7f8] sm:$0xff]
    %v2508 = vunpack.c.l.s4 1983009808
    %v2509 = vunpack.c.0.s8 %v2508
    %v2510 = vlaneseq
    %v2511 = vshrl.u32 %v2510, 7
    %v2512 = vsub.s32 %v2509, %v2511
    %v2513 = vrot.slane %v2249, %v2512
    %v2514 = vcombine.high %v2513, %v2513
    %2517 = vmatprep.subr.mxu0 %v2371
    %2518 = vmatpush1.msra.mxu0 %v2370
    %2519 = vmatprep.subr.mxu0 %v2363
    %2520 = vmatpush1.msra.mxu0 %v2362
    %2521 = vmatprep.subr.mxu0 %v2355
    %2522 = vmatpush1.msra.mxu0 %v2354
    %2523 = vmatprep.subr.mxu0 %v2347
    %2524 = vmatpush1.msra.mxu0 %v2346
    %2525 = vmatprep.subr.mxu0 %v2339
    %2526 = vmatpush1.msra.mxu0 %v2338
    %2527 = vmatprep.subr.mxu0 %v2331
    %2528 = vmatpush1.msra.mxu0 %v2330
    %2529 = vmatprep.subr.mxu0 %v2323
    %2530 = vmatpush1.msra.mxu0 %v2322
    %2531 = vmatprep.subr.mxu0 %v2315
    %2532 = vmatpush1.msra.mxu0 %v2314
    %2533 = vmatprep.subr.mxu0 %v2307
    %2534 = vmatpush1.msra.mxu0 %v2306
    %2535 = vmatprep.subr.mxu0 %v2299
    %2536 = vmatpush1.msra.mxu0 %v2298
    %2537 = vmatprep.subr.mxu0 %v2291
    %2538 = vmatpush1.msra.mxu0 %v2290
    %2539 = vmatprep.subr.mxu0 %v2283
    %2540 = vmatpush1.msra.mxu0 %v2282
    %2541 = vmatprep.subr.mxu0 %v2275
    %2542 = vmatpush1.msra.mxu0 %v2274
    %2543 = vmatprep.subr.mxu0 %v2267
    %2544 = vmatpush1.msra.mxu0 %v2266
    %2545 = vmatprep.subr.mxu0 %v2259
    %2546 = vmatpush1.msra.mxu0 %v2258
    %2547 = vmatprep.subr.mxu0 %v2251
    %2548 = vmatpush1.msra.mxu0 %v2250
    %2549 = vmatprep.subr.mxu0 %v2499
    %2550 = vmatpush2.msra.mxu0 %v2498
    %2551 = vmatprep.subr.mxu0 %v2491
    %2552 = vmatpush2.msra.mxu0 %v2490
    %2553 = vmatprep.subr.mxu0 %v2483
    %2554 = vmatpush2.msra.mxu0 %v2482
    %2555 = vmatprep.subr.mxu0 %v2475
    %2556 = vmatpush2.msra.mxu0 %v2474
    %2557 = vmatprep.subr.mxu0 %v2467
    %2558 = vmatpush2.msra.mxu0 %v2466
    %2559 = vmatprep.subr.mxu0 %v2459
    %2560 = vmatpush2.msra.mxu0 %v2458
    %2561 = vmatprep.subr.mxu0 %v2451
    %2562 = vmatpush2.msra.mxu0 %v2450
    %2563 = vmatprep.subr.mxu0 %v2443
    %2564 = vmatpush2.msra.mxu0 %v2442
    %2565 = vmatprep.subr.mxu0 %v2435
    %2566 = vmatpush2.msra.mxu0 %v2434
    %2567 = vmatprep.subr.mxu0 %v2427
    %2568 = vmatpush2.msra.mxu0 %v2426
    %2569 = vmatprep.subr.mxu0 %v2419
    %2570 = vmatpush2.msra.mxu0 %v2418
    %2571 = vmatprep.subr.mxu0 %v2411
    %2572 = vmatpush2.msra.mxu0 %v2410
    %2573 = vmatprep.subr.mxu0 %v2403
    %2574 = vmatpush2.msra.mxu0 %v2402
    %2575 = vmatprep.subr.mxu0 %v2395
    %2576 = vmatpush2.msra.mxu0 %v2394
    %2577 = vmatprep.subr.mxu0 %v2387
    %2578 = vmatpush2.msra.mxu0 %v2386
    %2579 = vmatprep.subr.mxu0 %v2379
    %2580 = vmatpush2.msra.mxu0 %v2378
    %2581 = vmatprep.mubr.f32.mxu0 %v2514
    %2582 = vmatmul.mubr.f32.gmra.mxu0 %v2513
    %v2583 = vpop.f32.mrf.mxu0
    %v2584 = vadd.f32 %v303, %v2583
    %v2585 = vpop.f32.mrf.mxu0
    %v2586 = vadd.f32 %v307, %v2585
    %2587 = vdwg.mxu0
    %2588 = vmatprep.subr.mxu0 %v2373
    %2589 = vmatpush1.msra.mxu0 %v2372
    %2590 = vmatprep.subr.mxu0 %v2365
    %2591 = vmatpush1.msra.mxu0 %v2364
    %2592 = vmatprep.subr.mxu0 %v2357
    %2593 = vmatpush1.msra.mxu0 %v2356
    %2594 = vmatprep.subr.mxu0 %v2349
    %2595 = vmatpush1.msra.mxu0 %v2348
    %2596 = vmatprep.subr.mxu0 %v2341
    %2597 = vmatpush1.msra.mxu0 %v2340
    %2598 = vmatprep.subr.mxu0 %v2333
    %2599 = vmatpush1.msra.mxu0 %v2332
    %2600 = vmatprep.subr.mxu0 %v2325
    %2601 = vmatpush1.msra.mxu0 %v2324
    %2602 = vmatprep.subr.mxu0 %v2317
    %2603 = vmatpush1.msra.mxu0 %v2316
    %2604 = vmatprep.subr.mxu0 %v2309
    %2605 = vmatpush1.msra.mxu0 %v2308
    %2606 = vmatprep.subr.mxu0 %v2301
    %2607 = vmatpush1.msra.mxu0 %v2300
    %2608 = vmatprep.subr.mxu0 %v2293
    %2609 = vmatpush1.msra.mxu0 %v2292
    %2610 = vmatprep.subr.mxu0 %v2285
    %2611 = vmatpush1.msra.mxu0 %v2284
    %2612 = vmatprep.subr.mxu0 %v2277
    %2613 = vmatpush1.msra.mxu0 %v2276
    %2614 = vmatprep.subr.mxu0 %v2269
    %2615 = vmatpush1.msra.mxu0 %v2268
    %2616 = vmatprep.subr.mxu0 %v2261
    %2617 = vmatpush1.msra.mxu0 %v2260
    %2618 = vmatprep.subr.mxu0 %v2253
    %2619 = vmatpush1.msra.mxu0 %v2252
    %2620 = vmatprep.subr.mxu0 %v2501
    %2621 = vmatpush2.msra.mxu0 %v2500
    %2622 = vmatprep.subr.mxu0 %v2493
    %2623 = vmatpush2.msra.mxu0 %v2492
    %2624 = vmatprep.subr.mxu0 %v2485
    %2625 = vmatpush2.msra.mxu0 %v2484
    %2626 = vmatprep.subr.mxu0 %v2477
    %2627 = vmatpush2.msra.mxu0 %v2476
    %2628 = vmatprep.subr.mxu0 %v2469
    %2629 = vmatpush2.msra.mxu0 %v2468
    %2630 = vmatprep.subr.mxu0 %v2461
    %2631 = vmatpush2.msra.mxu0 %v2460
    %2632 = vmatprep.subr.mxu0 %v2453
    %2633 = vmatpush2.msra.mxu0 %v2452
    %2634 = vmatprep.subr.mxu0 %v2445
    %2635 = vmatpush2.msra.mxu0 %v2444
    %2636 = vmatprep.subr.mxu0 %v2437
    %2637 = vmatpush2.msra.mxu0 %v2436
    %2638 = vmatprep.subr.mxu0 %v2429
    %2639 = vmatpush2.msra.mxu0 %v2428
    %2640 = vmatprep.subr.mxu0 %v2421
    %2641 = vmatpush2.msra.mxu0 %v2420
    %2642 = vmatprep.subr.mxu0 %v2413
    %2643 = vmatpush2.msra.mxu0 %v2412
    %2644 = vmatprep.subr.mxu0 %v2405
    %2645 = vmatpush2.msra.mxu0 %v2404
    %2646 = vmatprep.subr.mxu0 %v2397
    %2647 = vmatpush2.msra.mxu0 %v2396
    %2648 = vmatprep.subr.mxu0 %v2389
    %2649 = vmatpush2.msra.mxu0 %v2388
    %2650 = vmatprep.subr.mxu0 %v2381
    %2651 = vmatpush2.msra.mxu0 %v2380
    %2652 = vmatprep.mubr.f32.mxu0 %v2514
    %2653 = vmatmul.mubr.f32.gmra.mxu0 %v2513
    %v2654 = vpop.f32.mrf.mxu0
    %v2655 = vadd.f32 %v311, %v2654
    %v2656 = vpop.f32.mrf.mxu0
    %v2657 = vadd.f32 %v315, %v2656
    %2658 = vdwg.mxu0
    %2659 = vmatprep.subr.mxu0 %v2375
    %2660 = vmatpush1.msra.mxu0 %v2374
    %2661 = vmatprep.subr.mxu0 %v2367
    %2662 = vmatpush1.msra.mxu0 %v2366
    %2663 = vmatprep.subr.mxu0 %v2359
    %2664 = vmatpush1.msra.mxu0 %v2358
    %2665 = vmatprep.subr.mxu0 %v2351
    %2666 = vmatpush1.msra.mxu0 %v2350
    %2667 = vmatprep.subr.mxu0 %v2343
    %2668 = vmatpush1.msra.mxu0 %v2342
    %2669 = vmatprep.subr.mxu0 %v2335
    %2670 = vmatpush1.msra.mxu0 %v2334
    %2671 = vmatprep.subr.mxu0 %v2327
    %2672 = vmatpush1.msra.mxu0 %v2326
    %2673 = vmatprep.subr.mxu0 %v2319
    %2674 = vmatpush1.msra.mxu0 %v2318
    %2675 = vmatprep.subr.mxu0 %v2311
    %2676 = vmatpush1.msra.mxu0 %v2310
    %2677 = vmatprep.subr.mxu0 %v2303
    %2678 = vmatpush1.msra.mxu0 %v2302
    %2679 = vmatprep.subr.mxu0 %v2295
    %2680 = vmatpush1.msra.mxu0 %v2294
    %2681 = vmatprep.subr.mxu0 %v2287
    %2682 = vmatpush1.msra.mxu0 %v2286
    %2683 = vmatprep.subr.mxu0 %v2279
    %2684 = vmatpush1.msra.mxu0 %v2278
    %2685 = vmatprep.subr.mxu0 %v2271
    %2686 = vmatpush1.msra.mxu0 %v2270
    %2687 = vmatprep.subr.mxu0 %v2263
    %2688 = vmatpush1.msra.mxu0 %v2262
    %2689 = vmatprep.subr.mxu0 %v2255
    %2690 = vmatpush1.msra.mxu0 %v2254
    %2691 = vmatprep.subr.mxu0 %v2503
    %2692 = vmatpush2.msra.mxu0 %v2502
    %2693 = vmatprep.subr.mxu0 %v2495
    %2694 = vmatpush2.msra.mxu0 %v2494
    %2695 = vmatprep.subr.mxu0 %v2487
    %2696 = vmatpush2.msra.mxu0 %v2486
    %2697 = vmatprep.subr.mxu0 %v2479
    %2698 = vmatpush2.msra.mxu0 %v2478
    %2699 = vmatprep.subr.mxu0 %v2471
    %2700 = vmatpush2.msra.mxu0 %v2470
    %2701 = vmatprep.subr.mxu0 %v2463
    %2702 = vmatpush2.msra.mxu0 %v2462
    %2703 = vmatprep.subr.mxu0 %v2455
    %2704 = vmatpush2.msra.mxu0 %v2454
    %2705 = vmatprep.subr.mxu0 %v2447
    %2706 = vmatpush2.msra.mxu0 %v2446
    %2707 = vmatprep.subr.mxu0 %v2439
    %2708 = vmatpush2.msra.mxu0 %v2438
    %2709 = vmatprep.subr.mxu0 %v2431
    %2710 = vmatpush2.msra.mxu0 %v2430
    %2711 = vmatprep.subr.mxu0 %v2423
    %2712 = vmatpush2.msra.mxu0 %v2422
    %2713 = vmatprep.subr.mxu0 %v2415
    %2714 = vmatpush2.msra.mxu0 %v2414
    %2715 = vmatprep.subr.mxu0 %v2407
    %2716 = vmatpush2.msra.mxu0 %v2406
    %2717 = vmatprep.subr.mxu0 %v2399
    %2718 = vmatpush2.msra.mxu0 %v2398
    %2719 = vmatprep.subr.mxu0 %v2391
    %2720 = vmatpush2.msra.mxu0 %v2390
    %2721 = vmatprep.subr.mxu0 %v2383
    %2722 = vmatpush2.msra.mxu0 %v2382
    %2723 = vmatprep.mubr.f32.mxu0 %v2514
    %2724 = vmatmul.mubr.f32.gmra.mxu0 %v2513
    %v2725 = vpop.f32.mrf.mxu0
    %v2726 = vadd.f32 %v319, %v2725
    %v2727 = vpop.f32.mrf.mxu0
    %v2728 = vadd.f32 %v323, %v2727
    %2729 = vdwg.mxu0
    %2730 = vmatprep.subr.mxu0 %v2377
    %2731 = vmatpush1.msra.mxu0 %v2376
    %2732 = vmatprep.subr.mxu0 %v2369
    %2733 = vmatpush1.msra.mxu0 %v2368
    %2734 = vmatprep.subr.mxu0 %v2361
    %2735 = vmatpush1.msra.mxu0 %v2360
    %2736 = vmatprep.subr.mxu0 %v2353
    %2737 = vmatpush1.msra.mxu0 %v2352
    %2738 = vmatprep.subr.mxu0 %v2345
    %2739 = vmatpush1.msra.mxu0 %v2344
    %2740 = vmatprep.subr.mxu0 %v2337
    %2741 = vmatpush1.msra.mxu0 %v2336
    %2742 = vmatprep.subr.mxu0 %v2329
    %2743 = vmatpush1.msra.mxu0 %v2328
    %2744 = vmatprep.subr.mxu0 %v2321
    %2745 = vmatpush1.msra.mxu0 %v2320
    %2746 = vmatprep.subr.mxu0 %v2313
    %2747 = vmatpush1.msra.mxu0 %v2312
    %2748 = vmatprep.subr.mxu0 %v2305
    %2749 = vmatpush1.msra.mxu0 %v2304
    %2750 = vmatprep.subr.mxu0 %v2297
    %2751 = vmatpush1.msra.mxu0 %v2296
    %2752 = vmatprep.subr.mxu0 %v2289
    %2753 = vmatpush1.msra.mxu0 %v2288
    %2754 = vmatprep.subr.mxu0 %v2281
    %2755 = vmatpush1.msra.mxu0 %v2280
    %2756 = vmatprep.subr.mxu0 %v2273
    %2757 = vmatpush1.msra.mxu0 %v2272
    %2758 = vmatprep.subr.mxu0 %v2265
    %2759 = vmatpush1.msra.mxu0 %v2264
    %2760 = vmatprep.subr.mxu0 %v2257
    %2761 = vmatpush1.msra.mxu0 %v2256
    %2762 = vmatprep.subr.mxu0 %v2505
    %2763 = vmatpush2.msra.mxu0 %v2504
    %2764 = vmatprep.subr.mxu0 %v2497
    %2765 = vmatpush2.msra.mxu0 %v2496
    %2766 = vmatprep.subr.mxu0 %v2489
    %2767 = vmatpush2.msra.mxu0 %v2488
    %2768 = vmatprep.subr.mxu0 %v2481
    %2769 = vmatpush2.msra.mxu0 %v2480
    %2770 = vmatprep.subr.mxu0 %v2473
    %2771 = vmatpush2.msra.mxu0 %v2472
    %2772 = vmatprep.subr.mxu0 %v2465
    %2773 = vmatpush2.msra.mxu0 %v2464
    %2774 = vmatprep.subr.mxu0 %v2457
    %2775 = vmatpush2.msra.mxu0 %v2456
    %2776 = vmatprep.subr.mxu0 %v2449
    %2777 = vmatpush2.msra.mxu0 %v2448
    %2778 = vmatprep.subr.mxu0 %v2441
    %2779 = vmatpush2.msra.mxu0 %v2440
    %2780 = vmatprep.subr.mxu0 %v2433
    %2781 = vmatpush2.msra.mxu0 %v2432
    %2782 = vmatprep.subr.mxu0 %v2425
    %2783 = vmatpush2.msra.mxu0 %v2424
    %2784 = vmatprep.subr.mxu0 %v2417
    %2785 = vmatpush2.msra.mxu0 %v2416
    %2786 = vmatprep.subr.mxu0 %v2409
    %2787 = vmatpush2.msra.mxu0 %v2408
    %2788 = vmatprep.subr.mxu0 %v2401
    %2789 = vmatpush2.msra.mxu0 %v2400
    %2790 = vmatprep.subr.mxu0 %v2393
    %2791 = vmatpush2.msra.mxu0 %v2392
    %2792 = vmatprep.subr.mxu0 %v2385
    %2793 = vmatpush2.msra.mxu0 %v2384
    %2794 = vmatprep.mubr.f32.mxu0 %v2514
    %2795 = vmatmul.mubr.f32.gmra.mxu0 %v2513
    %v2796 = vpop.f32.mrf.mxu0
    %v2797 = vadd.f32 %v327, %v2796
    %v2798 = vpop.f32.mrf.mxu0
    %v2799 = vadd.f32 %v331, %v2798
    %2800 = vdwg.mxu0
    %v2801 = vxor.u32 %v2584, 2147483648
    %v2802 = vmul.f32 %v2801, 1.442695
    %v2803 = vpow.pop %v2802
    %v2804 = vadd.f32 %v2803, 1.0
    %v2805 = vrcp.pop %v2804
    %v2806 = vmul.f32 1.0, %v2805
    %v2807 = vxor.u32 %v2586, 2147483648
    %v2808 = vmul.f32 %v2807, 1.442695
    %v2809 = vpow.pop %v2808
    %v2810 = vadd.f32 %v2809, 1.0
    %v2811 = vrcp.pop %v2810
    %v2812 = vmul.f32 1.0, %v2811
    %v2813 = vmul.f32 %v2806, %v2657
    %v2814 = vadd.f32 %v2655, %v2813
    %v2815 = vtanh.pop %v2814
    %v2816 = vsub.f32 1.0, %v2812
    %v2817 = vmul.f32 %v2816, %v2815
    %v2818 = vmul.f32 %v2812, %v2192
    %v2819 = vadd.f32 %v2817, %v2818
    %2820 = vst [vmem:[#allocation2 + $0x2] sm:$0x3] %v2819
    %v2821 = vadd.f32 %v217, %v2726
    %v2822 = vadd.f32 %v219, %v2728
    %v2823 = vadd.f32 %v294, %v2797
    %v2824 = vadd.f32 %v296, %v2799
    %v2825 = vxor.u32 %v2821, 2147483648
    %v2826 = vmul.f32 %v2825, 1.442695
    %v2827 = vpow.pop %v2826
    %v2828 = vadd.f32 %v2827, 1.0
    %v2829 = vrcp.pop %v2828
    %v2830 = vmul.f32 1.0, %v2829
    %v2831 = vxor.u32 %v2822, 2147483648
    %v2832 = vmul.f32 %v2831, 1.442695
    %v2833 = vpow.pop %v2832
    %v2834 = vadd.f32 %v2833, 1.0
    %v2835 = vrcp.pop %v2834
    %v2836 = vmul.f32 1.0, %v2835
    %v2837 = vtanh.pop %v2823
    %v2838 = vxor.u32 %v2824, 2147483648
    %v2839 = vmul.f32 %v2838, 1.442695
    %v2840 = vpow.pop %v2839
    %v2841 = vadd.f32 %v2840, 1.0
    %v2842 = vrcp.pop %v2841
    %v2843 = vmul.f32 1.0, %v2842
    %v2845 = vrot.slane %v2234, 6
    %v2847 = vmul.f32 %v2836, %v2845
    %v2848 = vmul.f32 %v2830, %v2837
    %v2849 = vadd.f32 %v2847, %v2848
    %v2850 = vtanh.pop %v2849
    %v2851 = vmul.f32 %v2843, %v2850
    %2852 = vst [vmem:[#allocation2] sm:$0x3] %v2851
    %v2853 = vld [vmem:[#allocation2] sm:$0xf]
    %v2854 = vld [vmem:[#allocation9] sm:$0xff]
    %v2855 = vld [vmem:[#allocation9 + $0x8] sm:$0xff]
    %v2856 = vld [vmem:[#allocation9 + $0x10] sm:$0xff]
    %v2857 = vld [vmem:[#allocation9 + $0x18] sm:$0xff]
    %v2858 = vld [vmem:[#allocation9 + $0x20] sm:$0xff]
    %v2859 = vld [vmem:[#allocation9 + $0x28] sm:$0xff]
    %v2860 = vld [vmem:[#allocation9 + $0x30] sm:$0xff]
    %v2861 = vld [vmem:[#allocation9 + $0x38] sm:$0xff]
    %v2862 = vld [vmem:[#allocation9 + $0x40] sm:$0xff]
    %v2863 = vld [vmem:[#allocation9 + $0x48] sm:$0xff]
    %v2864 = vld [vmem:[#allocation9 + $0x50] sm:$0xff]
    %v2865 = vld [vmem:[#allocation9 + $0x58] sm:$0xff]
    %v2866 = vld [vmem:[#allocation9 + $0x60] sm:$0xff]
    %v2867 = vld [vmem:[#allocation9 + $0x68] sm:$0xff]
    %v2868 = vld [vmem:[#allocation9 + $0x70] sm:$0xff]
    %v2869 = vld [vmem:[#allocation9 + $0x78] sm:$0xff]
    %v2870 = vld [vmem:[#allocation9 + $0x80] sm:$0xff]
    %v2871 = vld [vmem:[#allocation9 + $0x88] sm:$0xff]
    %v2872 = vld [vmem:[#allocation9 + $0x90] sm:$0xff]
    %v2873 = vld [vmem:[#allocation9 + $0x98] sm:$0xff]
    %v2874 = vld [vmem:[#allocation9 + $0xa0] sm:$0xff]
    %v2875 = vld [vmem:[#allocation9 + $0xa8] sm:$0xff]
    %v2876 = vld [vmem:[#allocation9 + $0xb0] sm:$0xff]
    %v2877 = vld [vmem:[#allocation9 + $0xb8] sm:$0xff]
    %v2878 = vld [vmem:[#allocation9 + $0xc0] sm:$0xff]
    %v2879 = vld [vmem:[#allocation9 + $0xc8] sm:$0xff]
    %v2880 = vld [vmem:[#allocation9 + $0xd0] sm:$0xff]
    %v2881 = vld [vmem:[#allocation9 + $0xd8] sm:$0xff]
    %v2882 = vld [vmem:[#allocation9 + $0xe0] sm:$0xff]
    %v2883 = vld [vmem:[#allocation9 + $0xe8] sm:$0xff]
    %v2884 = vld [vmem:[#allocation9 + $0xf0] sm:$0xff]
    %v2885 = vld [vmem:[#allocation9 + $0xf8] sm:$0xff]
    %v2886 = vld [vmem:[#allocation9 + $0x100] sm:$0xff]
    %v2887 = vld [vmem:[#allocation9 + $0x108] sm:$0xff]
    %v2888 = vld [vmem:[#allocation9 + $0x110] sm:$0xff]
    %v2889 = vld [vmem:[#allocation9 + $0x118] sm:$0xff]
    %v2890 = vld [vmem:[#allocation9 + $0x120] sm:$0xff]
    %v2891 = vld [vmem:[#allocation9 + $0x128] sm:$0xff]
    %v2892 = vld [vmem:[#allocation9 + $0x130] sm:$0xff]
    %v2893 = vld [vmem:[#allocation9 + $0x138] sm:$0xff]
    %v2894 = vld [vmem:[#allocation9 + $0x140] sm:$0xff]
    %v2895 = vld [vmem:[#allocation9 + $0x148] sm:$0xff]
    %v2896 = vld [vmem:[#allocation9 + $0x150] sm:$0xff]
    %v2897 = vld [vmem:[#allocation9 + $0x158] sm:$0xff]
    %v2898 = vld [vmem:[#allocation9 + $0x160] sm:$0xff]
    %v2899 = vld [vmem:[#allocation9 + $0x168] sm:$0xff]
    %v2900 = vld [vmem:[#allocation9 + $0x170] sm:$0xff]
    %v2901 = vld [vmem:[#allocation9 + $0x178] sm:$0xff]
    %v2902 = vld [vmem:[#allocation9 + $0x180] sm:$0xff]
    %v2903 = vld [vmem:[#allocation9 + $0x188] sm:$0xff]
    %v2904 = vld [vmem:[#allocation9 + $0x190] sm:$0xff]
    %v2905 = vld [vmem:[#allocation9 + $0x198] sm:$0xff]
    %v2906 = vld [vmem:[#allocation9 + $0x1a0] sm:$0xff]
    %v2907 = vld [vmem:[#allocation9 + $0x1a8] sm:$0xff]
    %v2908 = vld [vmem:[#allocation9 + $0x1b0] sm:$0xff]
    %v2909 = vld [vmem:[#allocation9 + $0x1b8] sm:$0xff]
    %v2910 = vld [vmem:[#allocation9 + $0x1c0] sm:$0xff]
    %v2911 = vld [vmem:[#allocation9 + $0x1c8] sm:$0xff]
    %v2912 = vld [vmem:[#allocation9 + $0x1d0] sm:$0xff]
    %v2913 = vld [vmem:[#allocation9 + $0x1d8] sm:$0xff]
    %v2914 = vld [vmem:[#allocation9 + $0x1e0] sm:$0xff]
    %v2915 = vld [vmem:[#allocation9 + $0x1e8] sm:$0xff]
    %v2916 = vld [vmem:[#allocation9 + $0x1f0] sm:$0xff]
    %v2917 = vld [vmem:[#allocation9 + $0x1f8] sm:$0xff]
    %v2918 = vld [vmem:[#allocation9 + $0x200] sm:$0xff]
    %v2919 = vld [vmem:[#allocation9 + $0x208] sm:$0xff]
    %v2920 = vld [vmem:[#allocation9 + $0x210] sm:$0xff]
    %v2921 = vld [vmem:[#allocation9 + $0x218] sm:$0xff]
    %v2922 = vld [vmem:[#allocation9 + $0x220] sm:$0xff]
    %v2923 = vld [vmem:[#allocation9 + $0x228] sm:$0xff]
    %v2924 = vld [vmem:[#allocation9 + $0x230] sm:$0xff]
    %v2925 = vld [vmem:[#allocation9 + $0x238] sm:$0xff]
    %v2926 = vld [vmem:[#allocation9 + $0x240] sm:$0xff]
    %v2927 = vld [vmem:[#allocation9 + $0x248] sm:$0xff]
    %v2928 = vld [vmem:[#allocation9 + $0x250] sm:$0xff]
    %v2929 = vld [vmem:[#allocation9 + $0x258] sm:$0xff]
    %v2930 = vld [vmem:[#allocation9 + $0x260] sm:$0xff]
    %v2931 = vld [vmem:[#allocation9 + $0x268] sm:$0xff]
    %v2932 = vld [vmem:[#allocation9 + $0x270] sm:$0xff]
    %v2933 = vld [vmem:[#allocation9 + $0x278] sm:$0xff]
    %v2934 = vld [vmem:[#allocation9 + $0x280] sm:$0xff]
    %v2935 = vld [vmem:[#allocation9 + $0x288] sm:$0xff]
    %v2936 = vld [vmem:[#allocation9 + $0x290] sm:$0xff]
    %v2937 = vld [vmem:[#allocation9 + $0x298] sm:$0xff]
    %v2938 = vld [vmem:[#allocation9 + $0x2a0] sm:$0xff]
    %v2939 = vld [vmem:[#allocation9 + $0x2a8] sm:$0xff]
    %v2940 = vld [vmem:[#allocation9 + $0x2b0] sm:$0xff]
    %v2941 = vld [vmem:[#allocation9 + $0x2b8] sm:$0xff]
    %v2942 = vld [vmem:[#allocation9 + $0x2c0] sm:$0xff]
    %v2943 = vld [vmem:[#allocation9 + $0x2c8] sm:$0xff]
    %v2944 = vld [vmem:[#allocation9 + $0x2d0] sm:$0xff]
    %v2945 = vld [vmem:[#allocation9 + $0x2d8] sm:$0xff]
    %v2946 = vld [vmem:[#allocation9 + $0x2e0] sm:$0xff]
    %v2947 = vld [vmem:[#allocation9 + $0x2e8] sm:$0xff]
    %v2948 = vld [vmem:[#allocation9 + $0x2f0] sm:$0xff]
    %v2949 = vld [vmem:[#allocation9 + $0x2f8] sm:$0xff]
    %v2950 = vld [vmem:[#allocation9 + $0x300] sm:$0xff]
    %v2951 = vld [vmem:[#allocation9 + $0x308] sm:$0xff]
    %v2952 = vld [vmem:[#allocation9 + $0x310] sm:$0xff]
    %v2953 = vld [vmem:[#allocation9 + $0x318] sm:$0xff]
    %v2954 = vld [vmem:[#allocation9 + $0x320] sm:$0xff]
    %v2955 = vld [vmem:[#allocation9 + $0x328] sm:$0xff]
    %v2956 = vld [vmem:[#allocation9 + $0x330] sm:$0xff]
    %v2957 = vld [vmem:[#allocation9 + $0x338] sm:$0xff]
    %v2958 = vld [vmem:[#allocation9 + $0x340] sm:$0xff]
    %v2959 = vld [vmem:[#allocation9 + $0x348] sm:$0xff]
    %v2960 = vld [vmem:[#allocation9 + $0x350] sm:$0xff]
    %v2961 = vld [vmem:[#allocation9 + $0x358] sm:$0xff]
    %v2962 = vld [vmem:[#allocation9 + $0x360] sm:$0xff]
    %v2963 = vld [vmem:[#allocation9 + $0x368] sm:$0xff]
    %v2964 = vld [vmem:[#allocation9 + $0x370] sm:$0xff]
    %v2965 = vld [vmem:[#allocation9 + $0x378] sm:$0xff]
    %v2966 = vld [vmem:[#allocation9 + $0x380] sm:$0xff]
    %v2967 = vld [vmem:[#allocation9 + $0x388] sm:$0xff]
    %v2968 = vld [vmem:[#allocation9 + $0x390] sm:$0xff]
    %v2969 = vld [vmem:[#allocation9 + $0x398] sm:$0xff]
    %v2970 = vld [vmem:[#allocation9 + $0x3a0] sm:$0xff]
    %v2971 = vld [vmem:[#allocation9 + $0x3a8] sm:$0xff]
    %v2972 = vld [vmem:[#allocation9 + $0x3b0] sm:$0xff]
    %v2973 = vld [vmem:[#allocation9 + $0x3b8] sm:$0xff]
    %v2974 = vld [vmem:[#allocation9 + $0x3c0] sm:$0xff]
    %v2975 = vld [vmem:[#allocation9 + $0x3c8] sm:$0xff]
    %v2976 = vld [vmem:[#allocation9 + $0x3d0] sm:$0xff]
    %v2977 = vld [vmem:[#allocation9 + $0x3d8] sm:$0xff]
    %v2978 = vld [vmem:[#allocation9 + $0x3e0] sm:$0xff]
    %v2979 = vld [vmem:[#allocation9 + $0x3e8] sm:$0xff]
    %v2980 = vld [vmem:[#allocation9 + $0x3f0] sm:$0xff]
    %v2981 = vld [vmem:[#allocation9 + $0x3f8] sm:$0xff]
    %v2982 = vld [vmem:[#allocation9 + $0x400] sm:$0xff]
    %v2983 = vld [vmem:[#allocation9 + $0x408] sm:$0xff]
    %v2984 = vld [vmem:[#allocation9 + $0x410] sm:$0xff]
    %v2985 = vld [vmem:[#allocation9 + $0x418] sm:$0xff]
    %v2986 = vld [vmem:[#allocation9 + $0x420] sm:$0xff]
    %v2987 = vld [vmem:[#allocation9 + $0x428] sm:$0xff]
    %v2988 = vld [vmem:[#allocation9 + $0x430] sm:$0xff]
    %v2989 = vld [vmem:[#allocation9 + $0x438] sm:$0xff]
    %v2990 = vld [vmem:[#allocation9 + $0x440] sm:$0xff]
    %v2991 = vld [vmem:[#allocation9 + $0x448] sm:$0xff]
    %v2992 = vld [vmem:[#allocation9 + $0x450] sm:$0xff]
    %v2993 = vld [vmem:[#allocation9 + $0x458] sm:$0xff]
    %v2994 = vld [vmem:[#allocation9 + $0x460] sm:$0xff]
    %v2995 = vld [vmem:[#allocation9 + $0x468] sm:$0xff]
    %v2996 = vld [vmem:[#allocation9 + $0x470] sm:$0xff]
    %v2997 = vld [vmem:[#allocation9 + $0x478] sm:$0xff]
    %v2998 = vld [vmem:[#allocation9 + $0x480] sm:$0xff]
    %v2999 = vld [vmem:[#allocation9 + $0x488] sm:$0xff]
    %v3000 = vld [vmem:[#allocation9 + $0x490] sm:$0xff]
    %v3001 = vld [vmem:[#allocation9 + $0x498] sm:$0xff]
    %v3002 = vld [vmem:[#allocation9 + $0x4a0] sm:$0xff]
    %v3003 = vld [vmem:[#allocation9 + $0x4a8] sm:$0xff]
    %v3004 = vld [vmem:[#allocation9 + $0x4b0] sm:$0xff]
    %v3005 = vld [vmem:[#allocation9 + $0x4b8] sm:$0xff]
    %v3006 = vld [vmem:[#allocation9 + $0x4c0] sm:$0xff]
    %v3007 = vld [vmem:[#allocation9 + $0x4c8] sm:$0xff]
    %v3008 = vld [vmem:[#allocation9 + $0x4d0] sm:$0xff]
    %v3009 = vld [vmem:[#allocation9 + $0x4d8] sm:$0xff]
    %v3010 = vld [vmem:[#allocation9 + $0x4e0] sm:$0xff]
    %v3011 = vld [vmem:[#allocation9 + $0x4e8] sm:$0xff]
    %v3012 = vld [vmem:[#allocation9 + $0x4f0] sm:$0xff]
    %v3013 = vld [vmem:[#allocation9 + $0x4f8] sm:$0xff]
    %v3014 = vld [vmem:[#allocation9 + $0x500] sm:$0xff]
    %v3015 = vld [vmem:[#allocation9 + $0x508] sm:$0xff]
    %v3016 = vld [vmem:[#allocation9 + $0x510] sm:$0xff]
    %v3017 = vld [vmem:[#allocation9 + $0x518] sm:$0xff]
    %v3018 = vld [vmem:[#allocation9 + $0x520] sm:$0xff]
    %v3019 = vld [vmem:[#allocation9 + $0x528] sm:$0xff]
    %v3020 = vld [vmem:[#allocation9 + $0x530] sm:$0xff]
    %v3021 = vld [vmem:[#allocation9 + $0x538] sm:$0xff]
    %v3022 = vld [vmem:[#allocation9 + $0x540] sm:$0xff]
    %v3023 = vld [vmem:[#allocation9 + $0x548] sm:$0xff]
    %v3024 = vld [vmem:[#allocation9 + $0x550] sm:$0xff]
    %v3025 = vld [vmem:[#allocation9 + $0x558] sm:$0xff]
    %v3026 = vld [vmem:[#allocation9 + $0x560] sm:$0xff]
    %v3027 = vld [vmem:[#allocation9 + $0x568] sm:$0xff]
    %v3028 = vld [vmem:[#allocation9 + $0x570] sm:$0xff]
    %v3029 = vld [vmem:[#allocation9 + $0x578] sm:$0xff]
    %v3030 = vld [vmem:[#allocation9 + $0x580] sm:$0xff]
    %v3031 = vld [vmem:[#allocation9 + $0x588] sm:$0xff]
    %v3032 = vld [vmem:[#allocation9 + $0x590] sm:$0xff]
    %v3033 = vld [vmem:[#allocation9 + $0x598] sm:$0xff]
    %v3034 = vld [vmem:[#allocation9 + $0x5a0] sm:$0xff]
    %v3035 = vld [vmem:[#allocation9 + $0x5a8] sm:$0xff]
    %v3036 = vld [vmem:[#allocation9 + $0x5b0] sm:$0xff]
    %v3037 = vld [vmem:[#allocation9 + $0x5b8] sm:$0xff]
    %v3038 = vld [vmem:[#allocation9 + $0x5c0] sm:$0xff]
    %v3039 = vld [vmem:[#allocation9 + $0x5c8] sm:$0xff]
    %v3040 = vld [vmem:[#allocation9 + $0x5d0] sm:$0xff]
    %v3041 = vld [vmem:[#allocation9 + $0x5d8] sm:$0xff]
    %v3042 = vld [vmem:[#allocation9 + $0x5e0] sm:$0xff]
    %v3043 = vld [vmem:[#allocation9 + $0x5e8] sm:$0xff]
    %v3044 = vld [vmem:[#allocation9 + $0x5f0] sm:$0xff]
    %v3045 = vld [vmem:[#allocation9 + $0x5f8] sm:$0xff]
    %v3046 = vld [vmem:[#allocation9 + $0x600] sm:$0xff]
    %v3047 = vld [vmem:[#allocation9 + $0x608] sm:$0xff]
    %v3048 = vld [vmem:[#allocation9 + $0x610] sm:$0xff]
    %v3049 = vld [vmem:[#allocation9 + $0x618] sm:$0xff]
    %v3050 = vld [vmem:[#allocation9 + $0x620] sm:$0xff]
    %v3051 = vld [vmem:[#allocation9 + $0x628] sm:$0xff]
    %v3052 = vld [vmem:[#allocation9 + $0x630] sm:$0xff]
    %v3053 = vld [vmem:[#allocation9 + $0x638] sm:$0xff]
    %v3054 = vld [vmem:[#allocation9 + $0x640] sm:$0xff]
    %v3055 = vld [vmem:[#allocation9 + $0x648] sm:$0xff]
    %v3056 = vld [vmem:[#allocation9 + $0x650] sm:$0xff]
    %v3057 = vld [vmem:[#allocation9 + $0x658] sm:$0xff]
    %v3058 = vld [vmem:[#allocation9 + $0x660] sm:$0xff]
    %v3059 = vld [vmem:[#allocation9 + $0x668] sm:$0xff]
    %v3060 = vld [vmem:[#allocation9 + $0x670] sm:$0xff]
    %v3061 = vld [vmem:[#allocation9 + $0x678] sm:$0xff]
    %v3062 = vld [vmem:[#allocation9 + $0x680] sm:$0xff]
    %v3063 = vld [vmem:[#allocation9 + $0x688] sm:$0xff]
    %v3064 = vld [vmem:[#allocation9 + $0x690] sm:$0xff]
    %v3065 = vld [vmem:[#allocation9 + $0x698] sm:$0xff]
    %v3066 = vld [vmem:[#allocation9 + $0x6a0] sm:$0xff]
    %v3067 = vld [vmem:[#allocation9 + $0x6a8] sm:$0xff]
    %v3068 = vld [vmem:[#allocation9 + $0x6b0] sm:$0xff]
    %v3069 = vld [vmem:[#allocation9 + $0x6b8] sm:$0xff]
    %v3070 = vld [vmem:[#allocation9 + $0x6c0] sm:$0xff]
    %v3071 = vld [vmem:[#allocation9 + $0x6c8] sm:$0xff]
    %v3072 = vld [vmem:[#allocation9 + $0x6d0] sm:$0xff]
    %v3073 = vld [vmem:[#allocation9 + $0x6d8] sm:$0xff]
    %v3074 = vld [vmem:[#allocation9 + $0x6e0] sm:$0xff]
    %v3075 = vld [vmem:[#allocation9 + $0x6e8] sm:$0xff]
    %v3076 = vld [vmem:[#allocation9 + $0x6f0] sm:$0xff]
    %v3077 = vld [vmem:[#allocation9 + $0x6f8] sm:$0xff]
    %v3078 = vld [vmem:[#allocation9 + $0x700] sm:$0xff]
    %v3079 = vld [vmem:[#allocation9 + $0x708] sm:$0xff]
    %v3080 = vld [vmem:[#allocation9 + $0x710] sm:$0xff]
    %v3081 = vld [vmem:[#allocation9 + $0x718] sm:$0xff]
    %v3082 = vld [vmem:[#allocation9 + $0x720] sm:$0xff]
    %v3083 = vld [vmem:[#allocation9 + $0x728] sm:$0xff]
    %v3084 = vld [vmem:[#allocation9 + $0x730] sm:$0xff]
    %v3085 = vld [vmem:[#allocation9 + $0x738] sm:$0xff]
    %v3086 = vld [vmem:[#allocation9 + $0x740] sm:$0xff]
    %v3087 = vld [vmem:[#allocation9 + $0x748] sm:$0xff]
    %v3088 = vld [vmem:[#allocation9 + $0x750] sm:$0xff]
    %v3089 = vld [vmem:[#allocation9 + $0x758] sm:$0xff]
    %v3090 = vld [vmem:[#allocation9 + $0x760] sm:$0xff]
    %v3091 = vld [vmem:[#allocation9 + $0x768] sm:$0xff]
    %v3092 = vld [vmem:[#allocation9 + $0x770] sm:$0xff]
    %v3093 = vld [vmem:[#allocation9 + $0x778] sm:$0xff]
    %v3094 = vld [vmem:[#allocation9 + $0x780] sm:$0xff]
    %v3095 = vld [vmem:[#allocation9 + $0x788] sm:$0xff]
    %v3096 = vld [vmem:[#allocation9 + $0x790] sm:$0xff]
    %v3097 = vld [vmem:[#allocation9 + $0x798] sm:$0xff]
    %v3098 = vld [vmem:[#allocation9 + $0x7a0] sm:$0xff]
    %v3099 = vld [vmem:[#allocation9 + $0x7a8] sm:$0xff]
    %v3100 = vld [vmem:[#allocation9 + $0x7b0] sm:$0xff]
    %v3101 = vld [vmem:[#allocation9 + $0x7b8] sm:$0xff]
    %v3102 = vld [vmem:[#allocation9 + $0x7c0] sm:$0xff]
    %v3103 = vld [vmem:[#allocation9 + $0x7c8] sm:$0xff]
    %v3104 = vld [vmem:[#allocation9 + $0x7d0] sm:$0xff]
    %v3105 = vld [vmem:[#allocation9 + $0x7d8] sm:$0xff]
    %v3106 = vld [vmem:[#allocation9 + $0x7e0] sm:$0xff]
    %v3107 = vld [vmem:[#allocation9 + $0x7e8] sm:$0xff]
    %v3108 = vld [vmem:[#allocation9 + $0x7f0] sm:$0xff]
    %v3109 = vld [vmem:[#allocation9 + $0x7f8] sm:$0xff]
    %v3112 = vunpack.c.l.s4 1983009808
    %v3113 = vunpack.c.0.s8 %v3112
    %v3114 = vlaneseq
    %v3115 = vshrl.u32 %v3114, 7
    %v3116 = vsub.s32 %v3113, %v3115
    %v3117 = vrot.slane %v2853, %v3116
    %v3118 = vcombine.high %v3117, %v3117
    %3121 = vmatprep.subr.mxu0 %v2975
    %3122 = vmatpush1.msra.mxu0 %v2974
    %3123 = vmatprep.subr.mxu0 %v2967
    %3124 = vmatpush1.msra.mxu0 %v2966
    %3125 = vmatprep.subr.mxu0 %v2959
    %3126 = vmatpush1.msra.mxu0 %v2958
    %3127 = vmatprep.subr.mxu0 %v2951
    %3128 = vmatpush1.msra.mxu0 %v2950
    %3129 = vmatprep.subr.mxu0 %v2943
    %3130 = vmatpush1.msra.mxu0 %v2942
    %3131 = vmatprep.subr.mxu0 %v2935
    %3132 = vmatpush1.msra.mxu0 %v2934
    %3133 = vmatprep.subr.mxu0 %v2927
    %3134 = vmatpush1.msra.mxu0 %v2926
    %3135 = vmatprep.subr.mxu0 %v2919
    %3136 = vmatpush1.msra.mxu0 %v2918
    %3137 = vmatprep.subr.mxu0 %v2911
    %3138 = vmatpush1.msra.mxu0 %v2910
    %3139 = vmatprep.subr.mxu0 %v2903
    %3140 = vmatpush1.msra.mxu0 %v2902
    %3141 = vmatprep.subr.mxu0 %v2895
    %3142 = vmatpush1.msra.mxu0 %v2894
    %3143 = vmatprep.subr.mxu0 %v2887
    %3144 = vmatpush1.msra.mxu0 %v2886
    %3145 = vmatprep.subr.mxu0 %v2879
    %3146 = vmatpush1.msra.mxu0 %v2878
    %3147 = vmatprep.subr.mxu0 %v2871
    %3148 = vmatpush1.msra.mxu0 %v2870
    %3149 = vmatprep.subr.mxu0 %v2863
    %3150 = vmatpush1.msra.mxu0 %v2862
    %3151 = vmatprep.subr.mxu0 %v2855
    %3152 = vmatpush1.msra.mxu0 %v2854
    %3153 = vmatprep.subr.mxu0 %v3103
    %3154 = vmatpush2.msra.mxu0 %v3102
    %3155 = vmatprep.subr.mxu0 %v3095
    %3156 = vmatpush2.msra.mxu0 %v3094
    %3157 = vmatprep.subr.mxu0 %v3087
    %3158 = vmatpush2.msra.mxu0 %v3086
    %3159 = vmatprep.subr.mxu0 %v3079
    %3160 = vmatpush2.msra.mxu0 %v3078
    %3161 = vmatprep.subr.mxu0 %v3071
    %3162 = vmatpush2.msra.mxu0 %v3070
    %3163 = vmatprep.subr.mxu0 %v3063
    %3164 = vmatpush2.msra.mxu0 %v3062
    %3165 = vmatprep.subr.mxu0 %v3055
    %3166 = vmatpush2.msra.mxu0 %v3054
    %3167 = vmatprep.subr.mxu0 %v3047
    %3168 = vmatpush2.msra.mxu0 %v3046
    %3169 = vmatprep.subr.mxu0 %v3039
    %3170 = vmatpush2.msra.mxu0 %v3038
    %3171 = vmatprep.subr.mxu0 %v3031
    %3172 = vmatpush2.msra.mxu0 %v3030
    %3173 = vmatprep.subr.mxu0 %v3023
    %3174 = vmatpush2.msra.mxu0 %v3022
    %3175 = vmatprep.subr.mxu0 %v3015
    %3176 = vmatpush2.msra.mxu0 %v3014
    %3177 = vmatprep.subr.mxu0 %v3007
    %3178 = vmatpush2.msra.mxu0 %v3006
    %3179 = vmatprep.subr.mxu0 %v2999
    %3180 = vmatpush2.msra.mxu0 %v2998
    %3181 = vmatprep.subr.mxu0 %v2991
    %3182 = vmatpush2.msra.mxu0 %v2990
    %3183 = vmatprep.subr.mxu0 %v2983
    %3184 = vmatpush2.msra.mxu0 %v2982
    %3185 = vmatprep.mubr.f32.mxu0 %v3118
    %3186 = vmatmul.mubr.f32.gmra.mxu0 %v3117
    %v3187 = vpop.f32.mrf.mxu0
    %v3188 = vadd.f32 %v303, %v3187
    %v3189 = vpop.f32.mrf.mxu0
    %v3190 = vadd.f32 %v307, %v3189
    %3191 = vdwg.mxu0
    %3192 = vmatprep.subr.mxu0 %v2977
    %3193 = vmatpush1.msra.mxu0 %v2976
    %3194 = vmatprep.subr.mxu0 %v2969
    %3195 = vmatpush1.msra.mxu0 %v2968
    %3196 = vmatprep.subr.mxu0 %v2961
    %3197 = vmatpush1.msra.mxu0 %v2960
    %3198 = vmatprep.subr.mxu0 %v2953
    %3199 = vmatpush1.msra.mxu0 %v2952
    %3200 = vmatprep.subr.mxu0 %v2945
    %3201 = vmatpush1.msra.mxu0 %v2944
    %3202 = vmatprep.subr.mxu0 %v2937
    %3203 = vmatpush1.msra.mxu0 %v2936
    %3204 = vmatprep.subr.mxu0 %v2929
    %3205 = vmatpush1.msra.mxu0 %v2928
    %3206 = vmatprep.subr.mxu0 %v2921
    %3207 = vmatpush1.msra.mxu0 %v2920
    %3208 = vmatprep.subr.mxu0 %v2913
    %3209 = vmatpush1.msra.mxu0 %v2912
    %3210 = vmatprep.subr.mxu0 %v2905
    %3211 = vmatpush1.msra.mxu0 %v2904
    %3212 = vmatprep.subr.mxu0 %v2897
    %3213 = vmatpush1.msra.mxu0 %v2896
    %3214 = vmatprep.subr.mxu0 %v2889
    %3215 = vmatpush1.msra.mxu0 %v2888
    %3216 = vmatprep.subr.mxu0 %v2881
    %3217 = vmatpush1.msra.mxu0 %v2880
    %3218 = vmatprep.subr.mxu0 %v2873
    %3219 = vmatpush1.msra.mxu0 %v2872
    %3220 = vmatprep.subr.mxu0 %v2865
    %3221 = vmatpush1.msra.mxu0 %v2864
    %3222 = vmatprep.subr.mxu0 %v2857
    %3223 = vmatpush1.msra.mxu0 %v2856
    %3224 = vmatprep.subr.mxu0 %v3105
    %3225 = vmatpush2.msra.mxu0 %v3104
    %3226 = vmatprep.subr.mxu0 %v3097
    %3227 = vmatpush2.msra.mxu0 %v3096
    %3228 = vmatprep.subr.mxu0 %v3089
    %3229 = vmatpush2.msra.mxu0 %v3088
    %3230 = vmatprep.subr.mxu0 %v3081
    %3231 = vmatpush2.msra.mxu0 %v3080
    %3232 = vmatprep.subr.mxu0 %v3073
    %3233 = vmatpush2.msra.mxu0 %v3072
    %3234 = vmatprep.subr.mxu0 %v3065
    %3235 = vmatpush2.msra.mxu0 %v3064
    %3236 = vmatprep.subr.mxu0 %v3057
    %3237 = vmatpush2.msra.mxu0 %v3056
    %3238 = vmatprep.subr.mxu0 %v3049
    %3239 = vmatpush2.msra.mxu0 %v3048
    %3240 = vmatprep.subr.mxu0 %v3041
    %3241 = vmatpush2.msra.mxu0 %v3040
    %3242 = vmatprep.subr.mxu0 %v3033
    %3243 = vmatpush2.msra.mxu0 %v3032
    %3244 = vmatprep.subr.mxu0 %v3025
    %3245 = vmatpush2.msra.mxu0 %v3024
    %3246 = vmatprep.subr.mxu0 %v3017
    %3247 = vmatpush2.msra.mxu0 %v3016
    %3248 = vmatprep.subr.mxu0 %v3009
    %3249 = vmatpush2.msra.mxu0 %v3008
    %3250 = vmatprep.subr.mxu0 %v3001
    %3251 = vmatpush2.msra.mxu0 %v3000
    %3252 = vmatprep.subr.mxu0 %v2993
    %3253 = vmatpush2.msra.mxu0 %v2992
    %3254 = vmatprep.subr.mxu0 %v2985
    %3255 = vmatpush2.msra.mxu0 %v2984
    %3256 = vmatprep.mubr.f32.mxu0 %v3118
    %3257 = vmatmul.mubr.f32.gmra.mxu0 %v3117
    %v3258 = vpop.f32.mrf.mxu0
    %v3259 = vadd.f32 %v311, %v3258
    %v3260 = vpop.f32.mrf.mxu0
    %v3261 = vadd.f32 %v315, %v3260
    %3262 = vdwg.mxu0
    %3263 = vmatprep.subr.mxu0 %v2979
    %3264 = vmatpush1.msra.mxu0 %v2978
    %3265 = vmatprep.subr.mxu0 %v2971
    %3266 = vmatpush1.msra.mxu0 %v2970
    %3267 = vmatprep.subr.mxu0 %v2963
    %3268 = vmatpush1.msra.mxu0 %v2962
    %3269 = vmatprep.subr.mxu0 %v2955
    %3270 = vmatpush1.msra.mxu0 %v2954
    %3271 = vmatprep.subr.mxu0 %v2947
    %3272 = vmatpush1.msra.mxu0 %v2946
    %3273 = vmatprep.subr.mxu0 %v2939
    %3274 = vmatpush1.msra.mxu0 %v2938
    %3275 = vmatprep.subr.mxu0 %v2931
    %3276 = vmatpush1.msra.mxu0 %v2930
    %3277 = vmatprep.subr.mxu0 %v2923
    %3278 = vmatpush1.msra.mxu0 %v2922
    %3279 = vmatprep.subr.mxu0 %v2915
    %3280 = vmatpush1.msra.mxu0 %v2914
    %3281 = vmatprep.subr.mxu0 %v2907
    %3282 = vmatpush1.msra.mxu0 %v2906
    %3283 = vmatprep.subr.mxu0 %v2899
    %3284 = vmatpush1.msra.mxu0 %v2898
    %3285 = vmatprep.subr.mxu0 %v2891
    %3286 = vmatpush1.msra.mxu0 %v2890
    %3287 = vmatprep.subr.mxu0 %v2883
    %3288 = vmatpush1.msra.mxu0 %v2882
    %3289 = vmatprep.subr.mxu0 %v2875
    %3290 = vmatpush1.msra.mxu0 %v2874
    %3291 = vmatprep.subr.mxu0 %v2867
    %3292 = vmatpush1.msra.mxu0 %v2866
    %3293 = vmatprep.subr.mxu0 %v2859
    %3294 = vmatpush1.msra.mxu0 %v2858
    %3295 = vmatprep.subr.mxu0 %v3107
    %3296 = vmatpush2.msra.mxu0 %v3106
    %3297 = vmatprep.subr.mxu0 %v3099
    %3298 = vmatpush2.msra.mxu0 %v3098
    %3299 = vmatprep.subr.mxu0 %v3091
    %3300 = vmatpush2.msra.mxu0 %v3090
    %3301 = vmatprep.subr.mxu0 %v3083
    %3302 = vmatpush2.msra.mxu0 %v3082
    %3303 = vmatprep.subr.mxu0 %v3075
    %3304 = vmatpush2.msra.mxu0 %v3074
    %3305 = vmatprep.subr.mxu0 %v3067
    %3306 = vmatpush2.msra.mxu0 %v3066
    %3307 = vmatprep.subr.mxu0 %v3059
    %3308 = vmatpush2.msra.mxu0 %v3058
    %3309 = vmatprep.subr.mxu0 %v3051
    %3310 = vmatpush2.msra.mxu0 %v3050
    %3311 = vmatprep.subr.mxu0 %v3043
    %3312 = vmatpush2.msra.mxu0 %v3042
    %3313 = vmatprep.subr.mxu0 %v3035
    %3314 = vmatpush2.msra.mxu0 %v3034
    %3315 = vmatprep.subr.mxu0 %v3027
    %3316 = vmatpush2.msra.mxu0 %v3026
    %3317 = vmatprep.subr.mxu0 %v3019
    %3318 = vmatpush2.msra.mxu0 %v3018
    %3319 = vmatprep.subr.mxu0 %v3011
    %3320 = vmatpush2.msra.mxu0 %v3010
    %3321 = vmatprep.subr.mxu0 %v3003
    %3322 = vmatpush2.msra.mxu0 %v3002
    %3323 = vmatprep.subr.mxu0 %v2995
    %3324 = vmatpush2.msra.mxu0 %v2994
    %3325 = vmatprep.subr.mxu0 %v2987
    %3326 = vmatpush2.msra.mxu0 %v2986
    %3327 = vmatprep.mubr.f32.mxu0 %v3118
    %3328 = vmatmul.mubr.f32.gmra.mxu0 %v3117
    %v3329 = vpop.f32.mrf.mxu0
    %v3330 = vadd.f32 %v319, %v3329
    %v3331 = vpop.f32.mrf.mxu0
    %v3332 = vadd.f32 %v323, %v3331
    %3333 = vdwg.mxu0
    %3334 = vmatprep.subr.mxu0 %v2981
    %3335 = vmatpush1.msra.mxu0 %v2980
    %3336 = vmatprep.subr.mxu0 %v2973
    %3337 = vmatpush1.msra.mxu0 %v2972
    %3338 = vmatprep.subr.mxu0 %v2965
    %3339 = vmatpush1.msra.mxu0 %v2964
    %3340 = vmatprep.subr.mxu0 %v2957
    %3341 = vmatpush1.msra.mxu0 %v2956
    %3342 = vmatprep.subr.mxu0 %v2949
    %3343 = vmatpush1.msra.mxu0 %v2948
    %3344 = vmatprep.subr.mxu0 %v2941
    %3345 = vmatpush1.msra.mxu0 %v2940
    %3346 = vmatprep.subr.mxu0 %v2933
    %3347 = vmatpush1.msra.mxu0 %v2932
    %3348 = vmatprep.subr.mxu0 %v2925
    %3349 = vmatpush1.msra.mxu0 %v2924
    %3350 = vmatprep.subr.mxu0 %v2917
    %3351 = vmatpush1.msra.mxu0 %v2916
    %3352 = vmatprep.subr.mxu0 %v2909
    %3353 = vmatpush1.msra.mxu0 %v2908
    %3354 = vmatprep.subr.mxu0 %v2901
    %3355 = vmatpush1.msra.mxu0 %v2900
    %3356 = vmatprep.subr.mxu0 %v2893
    %3357 = vmatpush1.msra.mxu0 %v2892
    %3358 = vmatprep.subr.mxu0 %v2885
    %3359 = vmatpush1.msra.mxu0 %v2884
    %3360 = vmatprep.subr.mxu0 %v2877
    %3361 = vmatpush1.msra.mxu0 %v2876
    %3362 = vmatprep.subr.mxu0 %v2869
    %3363 = vmatpush1.msra.mxu0 %v2868
    %3364 = vmatprep.subr.mxu0 %v2861
    %3365 = vmatpush1.msra.mxu0 %v2860
    %3366 = vmatprep.subr.mxu0 %v3109
    %3367 = vmatpush2.msra.mxu0 %v3108
    %3368 = vmatprep.subr.mxu0 %v3101
    %3369 = vmatpush2.msra.mxu0 %v3100
    %3370 = vmatprep.subr.mxu0 %v3093
    %3371 = vmatpush2.msra.mxu0 %v3092
    %3372 = vmatprep.subr.mxu0 %v3085
    %3373 = vmatpush2.msra.mxu0 %v3084
    %3374 = vmatprep.subr.mxu0 %v3077
    %3375 = vmatpush2.msra.mxu0 %v3076
    %3376 = vmatprep.subr.mxu0 %v3069
    %3377 = vmatpush2.msra.mxu0 %v3068
    %3378 = vmatprep.subr.mxu0 %v3061
    %3379 = vmatpush2.msra.mxu0 %v3060
    %3380 = vmatprep.subr.mxu0 %v3053
    %3381 = vmatpush2.msra.mxu0 %v3052
    %3382 = vmatprep.subr.mxu0 %v3045
    %3383 = vmatpush2.msra.mxu0 %v3044
    %3384 = vmatprep.subr.mxu0 %v3037
    %3385 = vmatpush2.msra.mxu0 %v3036
    %3386 = vmatprep.subr.mxu0 %v3029
    %3387 = vmatpush2.msra.mxu0 %v3028
    %3388 = vmatprep.subr.mxu0 %v3021
    %3389 = vmatpush2.msra.mxu0 %v3020
    %3390 = vmatprep.subr.mxu0 %v3013
    %3391 = vmatpush2.msra.mxu0 %v3012
    %3392 = vmatprep.subr.mxu0 %v3005
    %3393 = vmatpush2.msra.mxu0 %v3004
    %3394 = vmatprep.subr.mxu0 %v2997
    %3395 = vmatpush2.msra.mxu0 %v2996
    %3396 = vmatprep.subr.mxu0 %v2989
    %3397 = vmatpush2.msra.mxu0 %v2988
    %3398 = vmatprep.mubr.f32.mxu0 %v3118
    %3399 = vmatmul.mubr.f32.gmra.mxu0 %v3117
    %v3400 = vpop.f32.mrf.mxu0
    %v3401 = vadd.f32 %v327, %v3400
    %v3402 = vpop.f32.mrf.mxu0
    %v3403 = vadd.f32 %v331, %v3402
    %3404 = vdwg.mxu0
    %v3405 = vxor.u32 %v3188, 2147483648
    %v3406 = vmul.f32 %v3405, 1.442695
    %v3407 = vpow.pop %v3406
    %v3408 = vadd.f32 %v3407, 1.0
    %v3409 = vrcp.pop %v3408
    %v3410 = vmul.f32 1.0, %v3409
    %v3411 = vxor.u32 %v3190, 2147483648
    %v3412 = vmul.f32 %v3411, 1.442695
    %v3413 = vpow.pop %v3412
    %v3414 = vadd.f32 %v3413, 1.0
    %v3415 = vrcp.pop %v3414
    %v3416 = vmul.f32 1.0, %v3415
    %v3417 = vmul.f32 %v3410, %v3261
    %v3418 = vadd.f32 %v3259, %v3417
    %v3419 = vtanh.pop %v3418
    %v3420 = vsub.f32 1.0, %v3416
    %v3421 = vmul.f32 %v3420, %v3419
    %v3422 = vmul.f32 %v3416, %v2819
    %v3423 = vadd.f32 %v3421, %v3422
    %3424 = vst [vmem:[#allocation2 + $0x2] sm:$0x3] %v3423
    %v3429 = vrot.slane %v3330, 6
    %v3430 = vrot.slane %v3332, 6
    %v3431 = vrot.slane %v3401, 6
    %v3432 = vrot.slane %v3403, 6
    %v3437 = vadd.f32 %v217, %v3429
    %v3438 = vadd.f32 %v219, %v3430
    %v3439 = vadd.f32 %v294, %v3431
    %v3440 = vadd.f32 %v296, %v3432
    %v3441 = vxor.u32 %v3437, 2147483648
    %v3442 = vmul.f32 %v3441, 1.442695
    %v3443 = vpow.pop %v3442
    %v3444 = vadd.f32 %v3443, 1.0
    %v3445 = vrcp.pop %v3444
    %v3446 = vmul.f32 1.0, %v3445
    %v3447 = vxor.u32 %v3438, 2147483648
    %v3448 = vmul.f32 %v3447, 1.442695
    %v3449 = vpow.pop %v3448
    %v3450 = vadd.f32 %v3449, 1.0
    %v3451 = vrcp.pop %v3450
    %v3452 = vmul.f32 1.0, %v3451
    %v3453 = vtanh.pop %v3439
    %v3454 = vxor.u32 %v3440, 2147483648
    %v3455 = vmul.f32 %v3454, 1.442695
    %v3456 = vpow.pop %v3455
    %v3457 = vadd.f32 %v3456, 1.0
    %v3458 = vrcp.pop %v3457
    %v3459 = vmul.f32 1.0, %v3458
    %v3461 = vrot.slane %v2849, 6
    %v3463 = vmul.f32 %v3452, %v3461
    %v3464 = vmul.f32 %v3446, %v3453
    %v3465 = vadd.f32 %v3463, %v3464
    %v3466 = vtanh.pop %v3465
    %v3467 = vmul.f32 %v3459, %v3466
    %v3470 = vunpack.c.l.s4 1983009808
    %v3471 = vunpack.c.0.s8 %v3470
    %v3472 = vlaneseq
    %v3473 = vshrl.u32 %v3472, 7
    %v3474 = vsub.s32 %v3471, %v3473
    %v3475 = vrot.slane %v3467, %v3474
    %v3476 = vcombine.high %v3475, %v3475
    %3478 = vst [vmem:[#allocation2] sm:$0x3] %v3476
    %v3479 = vld [vmem:[#allocation2] sm:$0xf]
    %v3480 = vld [vmem:[#allocation9] sm:$0xff]
    %v3481 = vld [vmem:[#allocation9 + $0x8] sm:$0xff]
    %v3482 = vld [vmem:[#allocation9 + $0x10] sm:$0xff]
    %v3483 = vld [vmem:[#allocation9 + $0x18] sm:$0xff]
    %v3484 = vld [vmem:[#allocation9 + $0x20] sm:$0xff]
    %v3485 = vld [vmem:[#allocation9 + $0x28] sm:$0xff]
    %v3486 = vld [vmem:[#allocation9 + $0x30] sm:$0xff]
    %v3487 = vld [vmem:[#allocation9 + $0x38] sm:$0xff]
    %v3488 = vld [vmem:[#allocation9 + $0x40] sm:$0xff]
    %v3489 = vld [vmem:[#allocation9 + $0x48] sm:$0xff]
    %v3490 = vld [vmem:[#allocation9 + $0x50] sm:$0xff]
    %v3491 = vld [vmem:[#allocation9 + $0x58] sm:$0xff]
    %v3492 = vld [vmem:[#allocation9 + $0x60] sm:$0xff]
    %v3493 = vld [vmem:[#allocation9 + $0x68] sm:$0xff]
    %v3494 = vld [vmem:[#allocation9 + $0x70] sm:$0xff]
    %v3495 = vld [vmem:[#allocation9 + $0x78] sm:$0xff]
    %v3496 = vld [vmem:[#allocation9 + $0x80] sm:$0xff]
    %v3497 = vld [vmem:[#allocation9 + $0x88] sm:$0xff]
    %v3498 = vld [vmem:[#allocation9 + $0x90] sm:$0xff]
    %v3499 = vld [vmem:[#allocation9 + $0x98] sm:$0xff]
    %v3500 = vld [vmem:[#allocation9 + $0xa0] sm:$0xff]
    %v3501 = vld [vmem:[#allocation9 + $0xa8] sm:$0xff]
    %v3502 = vld [vmem:[#allocation9 + $0xb0] sm:$0xff]
    %v3503 = vld [vmem:[#allocation9 + $0xb8] sm:$0xff]
    %v3504 = vld [vmem:[#allocation9 + $0xc0] sm:$0xff]
    %v3505 = vld [vmem:[#allocation9 + $0xc8] sm:$0xff]
    %v3506 = vld [vmem:[#allocation9 + $0xd0] sm:$0xff]
    %v3507 = vld [vmem:[#allocation9 + $0xd8] sm:$0xff]
    %v3508 = vld [vmem:[#allocation9 + $0xe0] sm:$0xff]
    %v3509 = vld [vmem:[#allocation9 + $0xe8] sm:$0xff]
    %v3510 = vld [vmem:[#allocation9 + $0xf0] sm:$0xff]
    %v3511 = vld [vmem:[#allocation9 + $0xf8] sm:$0xff]
    %v3512 = vld [vmem:[#allocation9 + $0x100] sm:$0xff]
    %v3513 = vld [vmem:[#allocation9 + $0x108] sm:$0xff]
    %v3514 = vld [vmem:[#allocation9 + $0x110] sm:$0xff]
    %v3515 = vld [vmem:[#allocation9 + $0x118] sm:$0xff]
    %v3516 = vld [vmem:[#allocation9 + $0x120] sm:$0xff]
    %v3517 = vld [vmem:[#allocation9 + $0x128] sm:$0xff]
    %v3518 = vld [vmem:[#allocation9 + $0x130] sm:$0xff]
    %v3519 = vld [vmem:[#allocation9 + $0x138] sm:$0xff]
    %v3520 = vld [vmem:[#allocation9 + $0x140] sm:$0xff]
    %v3521 = vld [vmem:[#allocation9 + $0x148] sm:$0xff]
    %v3522 = vld [vmem:[#allocation9 + $0x150] sm:$0xff]
    %v3523 = vld [vmem:[#allocation9 + $0x158] sm:$0xff]
    %v3524 = vld [vmem:[#allocation9 + $0x160] sm:$0xff]
    %v3525 = vld [vmem:[#allocation9 + $0x168] sm:$0xff]
    %v3526 = vld [vmem:[#allocation9 + $0x170] sm:$0xff]
    %v3527 = vld [vmem:[#allocation9 + $0x178] sm:$0xff]
    %v3528 = vld [vmem:[#allocation9 + $0x180] sm:$0xff]
    %v3529 = vld [vmem:[#allocation9 + $0x188] sm:$0xff]
    %v3530 = vld [vmem:[#allocation9 + $0x190] sm:$0xff]
    %v3531 = vld [vmem:[#allocation9 + $0x198] sm:$0xff]
    %v3532 = vld [vmem:[#allocation9 + $0x1a0] sm:$0xff]
    %v3533 = vld [vmem:[#allocation9 + $0x1a8] sm:$0xff]
    %v3534 = vld [vmem:[#allocation9 + $0x1b0] sm:$0xff]
    %v3535 = vld [vmem:[#allocation9 + $0x1b8] sm:$0xff]
    %v3536 = vld [vmem:[#allocation9 + $0x1c0] sm:$0xff]
    %v3537 = vld [vmem:[#allocation9 + $0x1c8] sm:$0xff]
    %v3538 = vld [vmem:[#allocation9 + $0x1d0] sm:$0xff]
    %v3539 = vld [vmem:[#allocation9 + $0x1d8] sm:$0xff]
    %v3540 = vld [vmem:[#allocation9 + $0x1e0] sm:$0xff]
    %v3541 = vld [vmem:[#allocation9 + $0x1e8] sm:$0xff]
    %v3542 = vld [vmem:[#allocation9 + $0x1f0] sm:$0xff]
    %v3543 = vld [vmem:[#allocation9 + $0x1f8] sm:$0xff]
    %v3544 = vld [vmem:[#allocation9 + $0x200] sm:$0xff]
    %v3545 = vld [vmem:[#allocation9 + $0x208] sm:$0xff]
    %v3546 = vld [vmem:[#allocation9 + $0x210] sm:$0xff]
    %v3547 = vld [vmem:[#allocation9 + $0x218] sm:$0xff]
    %v3548 = vld [vmem:[#allocation9 + $0x220] sm:$0xff]
    %v3549 = vld [vmem:[#allocation9 + $0x228] sm:$0xff]
    %v3550 = vld [vmem:[#allocation9 + $0x230] sm:$0xff]
    %v3551 = vld [vmem:[#allocation9 + $0x238] sm:$0xff]
    %v3552 = vld [vmem:[#allocation9 + $0x240] sm:$0xff]
    %v3553 = vld [vmem:[#allocation9 + $0x248] sm:$0xff]
    %v3554 = vld [vmem:[#allocation9 + $0x250] sm:$0xff]
    %v3555 = vld [vmem:[#allocation9 + $0x258] sm:$0xff]
    %v3556 = vld [vmem:[#allocation9 + $0x260] sm:$0xff]
    %v3557 = vld [vmem:[#allocation9 + $0x268] sm:$0xff]
    %v3558 = vld [vmem:[#allocation9 + $0x270] sm:$0xff]
    %v3559 = vld [vmem:[#allocation9 + $0x278] sm:$0xff]
    %v3560 = vld [vmem:[#allocation9 + $0x280] sm:$0xff]
    %v3561 = vld [vmem:[#allocation9 + $0x288] sm:$0xff]
    %v3562 = vld [vmem:[#allocation9 + $0x290] sm:$0xff]
    %v3563 = vld [vmem:[#allocation9 + $0x298] sm:$0xff]
    %v3564 = vld [vmem:[#allocation9 + $0x2a0] sm:$0xff]
    %v3565 = vld [vmem:[#allocation9 + $0x2a8] sm:$0xff]
    %v3566 = vld [vmem:[#allocation9 + $0x2b0] sm:$0xff]
    %v3567 = vld [vmem:[#allocation9 + $0x2b8] sm:$0xff]
    %v3568 = vld [vmem:[#allocation9 + $0x2c0] sm:$0xff]
    %v3569 = vld [vmem:[#allocation9 + $0x2c8] sm:$0xff]
    %v3570 = vld [vmem:[#allocation9 + $0x2d0] sm:$0xff]
    %v3571 = vld [vmem:[#allocation9 + $0x2d8] sm:$0xff]
    %v3572 = vld [vmem:[#allocation9 + $0x2e0] sm:$0xff]
    %v3573 = vld [vmem:[#allocation9 + $0x2e8] sm:$0xff]
    %v3574 = vld [vmem:[#allocation9 + $0x2f0] sm:$0xff]
    %v3575 = vld [vmem:[#allocation9 + $0x2f8] sm:$0xff]
    %v3576 = vld [vmem:[#allocation9 + $0x300] sm:$0xff]
    %v3577 = vld [vmem:[#allocation9 + $0x308] sm:$0xff]
    %v3578 = vld [vmem:[#allocation9 + $0x310] sm:$0xff]
    %v3579 = vld [vmem:[#allocation9 + $0x318] sm:$0xff]
    %v3580 = vld [vmem:[#allocation9 + $0x320] sm:$0xff]
    %v3581 = vld [vmem:[#allocation9 + $0x328] sm:$0xff]
    %v3582 = vld [vmem:[#allocation9 + $0x330] sm:$0xff]
    %v3583 = vld [vmem:[#allocation9 + $0x338] sm:$0xff]
    %v3584 = vld [vmem:[#allocation9 + $0x340] sm:$0xff]
    %v3585 = vld [vmem:[#allocation9 + $0x348] sm:$0xff]
    %v3586 = vld [vmem:[#allocation9 + $0x350] sm:$0xff]
    %v3587 = vld [vmem:[#allocation9 + $0x358] sm:$0xff]
    %v3588 = vld [vmem:[#allocation9 + $0x360] sm:$0xff]
    %v3589 = vld [vmem:[#allocation9 + $0x368] sm:$0xff]
    %v3590 = vld [vmem:[#allocation9 + $0x370] sm:$0xff]
    %v3591 = vld [vmem:[#allocation9 + $0x378] sm:$0xff]
    %v3592 = vld [vmem:[#allocation9 + $0x380] sm:$0xff]
    %v3593 = vld [vmem:[#allocation9 + $0x388] sm:$0xff]
    %v3594 = vld [vmem:[#allocation9 + $0x390] sm:$0xff]
    %v3595 = vld [vmem:[#allocation9 + $0x398] sm:$0xff]
    %v3596 = vld [vmem:[#allocation9 + $0x3a0] sm:$0xff]
    %v3597 = vld [vmem:[#allocation9 + $0x3a8] sm:$0xff]
    %v3598 = vld [vmem:[#allocation9 + $0x3b0] sm:$0xff]
    %v3599 = vld [vmem:[#allocation9 + $0x3b8] sm:$0xff]
    %v3600 = vld [vmem:[#allocation9 + $0x3c0] sm:$0xff]
    %v3601 = vld [vmem:[#allocation9 + $0x3c8] sm:$0xff]
    %v3602 = vld [vmem:[#allocation9 + $0x3d0] sm:$0xff]
    %v3603 = vld [vmem:[#allocation9 + $0x3d8] sm:$0xff]
    %v3604 = vld [vmem:[#allocation9 + $0x3e0] sm:$0xff]
    %v3605 = vld [vmem:[#allocation9 + $0x3e8] sm:$0xff]
    %v3606 = vld [vmem:[#allocation9 + $0x3f0] sm:$0xff]
    %v3607 = vld [vmem:[#allocation9 + $0x3f8] sm:$0xff]
    %v3608 = vld [vmem:[#allocation9 + $0x400] sm:$0xff]
    %v3609 = vld [vmem:[#allocation9 + $0x408] sm:$0xff]
    %v3610 = vld [vmem:[#allocation9 + $0x410] sm:$0xff]
    %v3611 = vld [vmem:[#allocation9 + $0x418] sm:$0xff]
    %v3612 = vld [vmem:[#allocation9 + $0x420] sm:$0xff]
    %v3613 = vld [vmem:[#allocation9 + $0x428] sm:$0xff]
    %v3614 = vld [vmem:[#allocation9 + $0x430] sm:$0xff]
    %v3615 = vld [vmem:[#allocation9 + $0x438] sm:$0xff]
    %v3616 = vld [vmem:[#allocation9 + $0x440] sm:$0xff]
    %v3617 = vld [vmem:[#allocation9 + $0x448] sm:$0xff]
    %v3618 = vld [vmem:[#allocation9 + $0x450] sm:$0xff]
    %v3619 = vld [vmem:[#allocation9 + $0x458] sm:$0xff]
    %v3620 = vld [vmem:[#allocation9 + $0x460] sm:$0xff]
    %v3621 = vld [vmem:[#allocation9 + $0x468] sm:$0xff]
    %v3622 = vld [vmem:[#allocation9 + $0x470] sm:$0xff]
    %v3623 = vld [vmem:[#allocation9 + $0x478] sm:$0xff]
    %v3624 = vld [vmem:[#allocation9 + $0x480] sm:$0xff]
    %v3625 = vld [vmem:[#allocation9 + $0x488] sm:$0xff]
    %v3626 = vld [vmem:[#allocation9 + $0x490] sm:$0xff]
    %v3627 = vld [vmem:[#allocation9 + $0x498] sm:$0xff]
    %v3628 = vld [vmem:[#allocation9 + $0x4a0] sm:$0xff]
    %v3629 = vld [vmem:[#allocation9 + $0x4a8] sm:$0xff]
    %v3630 = vld [vmem:[#allocation9 + $0x4b0] sm:$0xff]
    %v3631 = vld [vmem:[#allocation9 + $0x4b8] sm:$0xff]
    %v3632 = vld [vmem:[#allocation9 + $0x4c0] sm:$0xff]
    %v3633 = vld [vmem:[#allocation9 + $0x4c8] sm:$0xff]
    %v3634 = vld [vmem:[#allocation9 + $0x4d0] sm:$0xff]
    %v3635 = vld [vmem:[#allocation9 + $0x4d8] sm:$0xff]
    %v3636 = vld [vmem:[#allocation9 + $0x4e0] sm:$0xff]
    %v3637 = vld [vmem:[#allocation9 + $0x4e8] sm:$0xff]
    %v3638 = vld [vmem:[#allocation9 + $0x4f0] sm:$0xff]
    %v3639 = vld [vmem:[#allocation9 + $0x4f8] sm:$0xff]
    %v3640 = vld [vmem:[#allocation9 + $0x500] sm:$0xff]
    %v3641 = vld [vmem:[#allocation9 + $0x508] sm:$0xff]
    %v3642 = vld [vmem:[#allocation9 + $0x510] sm:$0xff]
    %v3643 = vld [vmem:[#allocation9 + $0x518] sm:$0xff]
    %v3644 = vld [vmem:[#allocation9 + $0x520] sm:$0xff]
    %v3645 = vld [vmem:[#allocation9 + $0x528] sm:$0xff]
    %v3646 = vld [vmem:[#allocation9 + $0x530] sm:$0xff]
    %v3647 = vld [vmem:[#allocation9 + $0x538] sm:$0xff]
    %v3648 = vld [vmem:[#allocation9 + $0x540] sm:$0xff]
    %v3649 = vld [vmem:[#allocation9 + $0x548] sm:$0xff]
    %v3650 = vld [vmem:[#allocation9 + $0x550] sm:$0xff]
    %v3651 = vld [vmem:[#allocation9 + $0x558] sm:$0xff]
    %v3652 = vld [vmem:[#allocation9 + $0x560] sm:$0xff]
    %v3653 = vld [vmem:[#allocation9 + $0x568] sm:$0xff]
    %v3654 = vld [vmem:[#allocation9 + $0x570] sm:$0xff]
    %v3655 = vld [vmem:[#allocation9 + $0x578] sm:$0xff]
    %v3656 = vld [vmem:[#allocation9 + $0x580] sm:$0xff]
    %v3657 = vld [vmem:[#allocation9 + $0x588] sm:$0xff]
    %v3658 = vld [vmem:[#allocation9 + $0x590] sm:$0xff]
    %v3659 = vld [vmem:[#allocation9 + $0x598] sm:$0xff]
    %v3660 = vld [vmem:[#allocation9 + $0x5a0] sm:$0xff]
    %v3661 = vld [vmem:[#allocation9 + $0x5a8] sm:$0xff]
    %v3662 = vld [vmem:[#allocation9 + $0x5b0] sm:$0xff]
    %v3663 = vld [vmem:[#allocation9 + $0x5b8] sm:$0xff]
    %v3664 = vld [vmem:[#allocation9 + $0x5c0] sm:$0xff]
    %v3665 = vld [vmem:[#allocation9 + $0x5c8] sm:$0xff]
    %v3666 = vld [vmem:[#allocation9 + $0x5d0] sm:$0xff]
    %v3667 = vld [vmem:[#allocation9 + $0x5d8] sm:$0xff]
    %v3668 = vld [vmem:[#allocation9 + $0x5e0] sm:$0xff]
    %v3669 = vld [vmem:[#allocation9 + $0x5e8] sm:$0xff]
    %v3670 = vld [vmem:[#allocation9 + $0x5f0] sm:$0xff]
    %v3671 = vld [vmem:[#allocation9 + $0x5f8] sm:$0xff]
    %v3672 = vld [vmem:[#allocation9 + $0x600] sm:$0xff]
    %v3673 = vld [vmem:[#allocation9 + $0x608] sm:$0xff]
    %v3674 = vld [vmem:[#allocation9 + $0x610] sm:$0xff]
    %v3675 = vld [vmem:[#allocation9 + $0x618] sm:$0xff]
    %v3676 = vld [vmem:[#allocation9 + $0x620] sm:$0xff]
    %v3677 = vld [vmem:[#allocation9 + $0x628] sm:$0xff]
    %v3678 = vld [vmem:[#allocation9 + $0x630] sm:$0xff]
    %v3679 = vld [vmem:[#allocation9 + $0x638] sm:$0xff]
    %v3680 = vld [vmem:[#allocation9 + $0x640] sm:$0xff]
    %v3681 = vld [vmem:[#allocation9 + $0x648] sm:$0xff]
    %v3682 = vld [vmem:[#allocation9 + $0x650] sm:$0xff]
    %v3683 = vld [vmem:[#allocation9 + $0x658] sm:$0xff]
    %v3684 = vld [vmem:[#allocation9 + $0x660] sm:$0xff]
    %v3685 = vld [vmem:[#allocation9 + $0x668] sm:$0xff]
    %v3686 = vld [vmem:[#allocation9 + $0x670] sm:$0xff]
    %v3687 = vld [vmem:[#allocation9 + $0x678] sm:$0xff]
    %v3688 = vld [vmem:[#allocation9 + $0x680] sm:$0xff]
    %v3689 = vld [vmem:[#allocation9 + $0x688] sm:$0xff]
    %v3690 = vld [vmem:[#allocation9 + $0x690] sm:$0xff]
    %v3691 = vld [vmem:[#allocation9 + $0x698] sm:$0xff]
    %v3692 = vld [vmem:[#allocation9 + $0x6a0] sm:$0xff]
    %v3693 = vld [vmem:[#allocation9 + $0x6a8] sm:$0xff]
    %v3694 = vld [vmem:[#allocation9 + $0x6b0] sm:$0xff]
    %v3695 = vld [vmem:[#allocation9 + $0x6b8] sm:$0xff]
    %v3696 = vld [vmem:[#allocation9 + $0x6c0] sm:$0xff]
    %v3697 = vld [vmem:[#allocation9 + $0x6c8] sm:$0xff]
    %v3698 = vld [vmem:[#allocation9 + $0x6d0] sm:$0xff]
    %v3699 = vld [vmem:[#allocation9 + $0x6d8] sm:$0xff]
    %v3700 = vld [vmem:[#allocation9 + $0x6e0] sm:$0xff]
    %v3701 = vld [vmem:[#allocation9 + $0x6e8] sm:$0xff]
    %v3702 = vld [vmem:[#allocation9 + $0x6f0] sm:$0xff]
    %v3703 = vld [vmem:[#allocation9 + $0x6f8] sm:$0xff]
    %v3704 = vld [vmem:[#allocation9 + $0x700] sm:$0xff]
    %v3705 = vld [vmem:[#allocation9 + $0x708] sm:$0xff]
    %v3706 = vld [vmem:[#allocation9 + $0x710] sm:$0xff]
    %v3707 = vld [vmem:[#allocation9 + $0x718] sm:$0xff]
    %v3708 = vld [vmem:[#allocation9 + $0x720] sm:$0xff]
    %v3709 = vld [vmem:[#allocation9 + $0x728] sm:$0xff]
    %v3710 = vld [vmem:[#allocation9 + $0x730] sm:$0xff]
    %v3711 = vld [vmem:[#allocation9 + $0x738] sm:$0xff]
    %v3712 = vld [vmem:[#allocation9 + $0x740] sm:$0xff]
    %v3713 = vld [vmem:[#allocation9 + $0x748] sm:$0xff]
    %v3714 = vld [vmem:[#allocation9 + $0x750] sm:$0xff]
    %v3715 = vld [vmem:[#allocation9 + $0x758] sm:$0xff]
    %v3716 = vld [vmem:[#allocation9 + $0x760] sm:$0xff]
    %v3717 = vld [vmem:[#allocation9 + $0x768] sm:$0xff]
    %v3718 = vld [vmem:[#allocation9 + $0x770] sm:$0xff]
    %v3719 = vld [vmem:[#allocation9 + $0x778] sm:$0xff]
    %v3720 = vld [vmem:[#allocation9 + $0x780] sm:$0xff]
    %v3721 = vld [vmem:[#allocation9 + $0x788] sm:$0xff]
    %v3722 = vld [vmem:[#allocation9 + $0x790] sm:$0xff]
    %v3723 = vld [vmem:[#allocation9 + $0x798] sm:$0xff]
    %v3724 = vld [vmem:[#allocation9 + $0x7a0] sm:$0xff]
    %v3725 = vld [vmem:[#allocation9 + $0x7a8] sm:$0xff]
    %v3726 = vld [vmem:[#allocation9 + $0x7b0] sm:$0xff]
    %v3727 = vld [vmem:[#allocation9 + $0x7b8] sm:$0xff]
    %v3728 = vld [vmem:[#allocation9 + $0x7c0] sm:$0xff]
    %v3729 = vld [vmem:[#allocation9 + $0x7c8] sm:$0xff]
    %v3730 = vld [vmem:[#allocation9 + $0x7d0] sm:$0xff]
    %v3731 = vld [vmem:[#allocation9 + $0x7d8] sm:$0xff]
    %v3732 = vld [vmem:[#allocation9 + $0x7e0] sm:$0xff]
    %v3733 = vld [vmem:[#allocation9 + $0x7e8] sm:$0xff]
    %v3734 = vld [vmem:[#allocation9 + $0x7f0] sm:$0xff]
    %v3735 = vld [vmem:[#allocation9 + $0x7f8] sm:$0xff]
    %v3738 = vunpack.c.l.s4 1983009808
    %v3739 = vunpack.c.0.s8 %v3738
    %v3740 = vlaneseq
    %v3741 = vshrl.u32 %v3740, 7
    %v3742 = vsub.s32 %v3739, %v3741
    %v3743 = vrot.slane %v3479, %v3742
    %v3744 = vcombine.high %v3743, %v3743
    %3747 = vmatprep.subr.mxu0 %v3601
    %3748 = vmatpush1.msra.mxu0 %v3600
    %3749 = vmatprep.subr.mxu0 %v3593
    %3750 = vmatpush1.msra.mxu0 %v3592
    %3751 = vmatprep.subr.mxu0 %v3585
    %3752 = vmatpush1.msra.mxu0 %v3584
    %3753 = vmatprep.subr.mxu0 %v3577
    %3754 = vmatpush1.msra.mxu0 %v3576
    %3755 = vmatprep.subr.mxu0 %v3569
    %3756 = vmatpush1.msra.mxu0 %v3568
    %3757 = vmatprep.subr.mxu0 %v3561
    %3758 = vmatpush1.msra.mxu0 %v3560
    %3759 = vmatprep.subr.mxu0 %v3553
    %3760 = vmatpush1.msra.mxu0 %v3552
    %3761 = vmatprep.subr.mxu0 %v3545
    %3762 = vmatpush1.msra.mxu0 %v3544
    %3763 = vmatprep.subr.mxu0 %v3537
    %3764 = vmatpush1.msra.mxu0 %v3536
    %3765 = vmatprep.subr.mxu0 %v3529
    %3766 = vmatpush1.msra.mxu0 %v3528
    %3767 = vmatprep.subr.mxu0 %v3521
    %3768 = vmatpush1.msra.mxu0 %v3520
    %3769 = vmatprep.subr.mxu0 %v3513
    %3770 = vmatpush1.msra.mxu0 %v3512
    %3771 = vmatprep.subr.mxu0 %v3505
    %3772 = vmatpush1.msra.mxu0 %v3504
    %3773 = vmatprep.subr.mxu0 %v3497
    %3774 = vmatpush1.msra.mxu0 %v3496
    %3775 = vmatprep.subr.mxu0 %v3489
    %3776 = vmatpush1.msra.mxu0 %v3488
    %3777 = vmatprep.subr.mxu0 %v3481
    %3778 = vmatpush1.msra.mxu0 %v3480
    %3779 = vmatprep.subr.mxu0 %v3729
    %3780 = vmatpush2.msra.mxu0 %v3728
    %3781 = vmatprep.subr.mxu0 %v3721
    %3782 = vmatpush2.msra.mxu0 %v3720
    %3783 = vmatprep.subr.mxu0 %v3713
    %3784 = vmatpush2.msra.mxu0 %v3712
    %3785 = vmatprep.subr.mxu0 %v3705
    %3786 = vmatpush2.msra.mxu0 %v3704
    %3787 = vmatprep.subr.mxu0 %v3697
    %3788 = vmatpush2.msra.mxu0 %v3696
    %3789 = vmatprep.subr.mxu0 %v3689
    %3790 = vmatpush2.msra.mxu0 %v3688
    %3791 = vmatprep.subr.mxu0 %v3681
    %3792 = vmatpush2.msra.mxu0 %v3680
    %3793 = vmatprep.subr.mxu0 %v3673
    %3794 = vmatpush2.msra.mxu0 %v3672
    %3795 = vmatprep.subr.mxu0 %v3665
    %3796 = vmatpush2.msra.mxu0 %v3664
    %3797 = vmatprep.subr.mxu0 %v3657
    %3798 = vmatpush2.msra.mxu0 %v3656
    %3799 = vmatprep.subr.mxu0 %v3649
    %3800 = vmatpush2.msra.mxu0 %v3648
    %3801 = vmatprep.subr.mxu0 %v3641
    %3802 = vmatpush2.msra.mxu0 %v3640
    %3803 = vmatprep.subr.mxu0 %v3633
    %3804 = vmatpush2.msra.mxu0 %v3632
    %3805 = vmatprep.subr.mxu0 %v3625
    %3806 = vmatpush2.msra.mxu0 %v3624
    %3807 = vmatprep.subr.mxu0 %v3617
    %3808 = vmatpush2.msra.mxu0 %v3616
    %3809 = vmatprep.subr.mxu0 %v3609
    %3810 = vmatpush2.msra.mxu0 %v3608
    %3811 = vmatprep.mubr.f32.mxu0 %v3744
    %3812 = vmatmul.mubr.f32.gmra.mxu0 %v3743
    %v3813 = vpop.f32.mrf.mxu0
    %v3814 = vadd.f32 %v303, %v3813
    %v3815 = vpop.f32.mrf.mxu0
    %v3816 = vadd.f32 %v307, %v3815
    %3817 = vdwg.mxu0
    %3818 = vmatprep.subr.mxu0 %v3603
    %3819 = vmatpush1.msra.mxu0 %v3602
    %3820 = vmatprep.subr.mxu0 %v3595
    %3821 = vmatpush1.msra.mxu0 %v3594
    %3822 = vmatprep.subr.mxu0 %v3587
    %3823 = vmatpush1.msra.mxu0 %v3586
    %3824 = vmatprep.subr.mxu0 %v3579
    %3825 = vmatpush1.msra.mxu0 %v3578
    %3826 = vmatprep.subr.mxu0 %v3571
    %3827 = vmatpush1.msra.mxu0 %v3570
    %3828 = vmatprep.subr.mxu0 %v3563
    %3829 = vmatpush1.msra.mxu0 %v3562
    %3830 = vmatprep.subr.mxu0 %v3555
    %3831 = vmatpush1.msra.mxu0 %v3554
    %3832 = vmatprep.subr.mxu0 %v3547
    %3833 = vmatpush1.msra.mxu0 %v3546
    %3834 = vmatprep.subr.mxu0 %v3539
    %3835 = vmatpush1.msra.mxu0 %v3538
    %3836 = vmatprep.subr.mxu0 %v3531
    %3837 = vmatpush1.msra.mxu0 %v3530
    %3838 = vmatprep.subr.mxu0 %v3523
    %3839 = vmatpush1.msra.mxu0 %v3522
    %3840 = vmatprep.subr.mxu0 %v3515
    %3841 = vmatpush1.msra.mxu0 %v3514
    %3842 = vmatprep.subr.mxu0 %v3507
    %3843 = vmatpush1.msra.mxu0 %v3506
    %3844 = vmatprep.subr.mxu0 %v3499
    %3845 = vmatpush1.msra.mxu0 %v3498
    %3846 = vmatprep.subr.mxu0 %v3491
    %3847 = vmatpush1.msra.mxu0 %v3490
    %3848 = vmatprep.subr.mxu0 %v3483
    %3849 = vmatpush1.msra.mxu0 %v3482
    %3850 = vmatprep.subr.mxu0 %v3731
    %3851 = vmatpush2.msra.mxu0 %v3730
    %3852 = vmatprep.subr.mxu0 %v3723
    %3853 = vmatpush2.msra.mxu0 %v3722
    %3854 = vmatprep.subr.mxu0 %v3715
    %3855 = vmatpush2.msra.mxu0 %v3714
    %3856 = vmatprep.subr.mxu0 %v3707
    %3857 = vmatpush2.msra.mxu0 %v3706
    %3858 = vmatprep.subr.mxu0 %v3699
    %3859 = vmatpush2.msra.mxu0 %v3698
    %3860 = vmatprep.subr.mxu0 %v3691
    %3861 = vmatpush2.msra.mxu0 %v3690
    %3862 = vmatprep.subr.mxu0 %v3683
    %3863 = vmatpush2.msra.mxu0 %v3682
    %3864 = vmatprep.subr.mxu0 %v3675
    %3865 = vmatpush2.msra.mxu0 %v3674
    %3866 = vmatprep.subr.mxu0 %v3667
    %3867 = vmatpush2.msra.mxu0 %v3666
    %3868 = vmatprep.subr.mxu0 %v3659
    %3869 = vmatpush2.msra.mxu0 %v3658
    %3870 = vmatprep.subr.mxu0 %v3651
    %3871 = vmatpush2.msra.mxu0 %v3650
    %3872 = vmatprep.subr.mxu0 %v3643
    %3873 = vmatpush2.msra.mxu0 %v3642
    %3874 = vmatprep.subr.mxu0 %v3635
    %3875 = vmatpush2.msra.mxu0 %v3634
    %3876 = vmatprep.subr.mxu0 %v3627
    %3877 = vmatpush2.msra.mxu0 %v3626
    %3878 = vmatprep.subr.mxu0 %v3619
    %3879 = vmatpush2.msra.mxu0 %v3618
    %3880 = vmatprep.subr.mxu0 %v3611
    %3881 = vmatpush2.msra.mxu0 %v3610
    %3882 = vmatprep.mubr.f32.mxu0 %v3744
    %3883 = vmatmul.mubr.f32.gmra.mxu0 %v3743
    %v3884 = vpop.f32.mrf.mxu0
    %v3885 = vadd.f32 %v311, %v3884
    %v3886 = vpop.f32.mrf.mxu0
    %v3887 = vadd.f32 %v315, %v3886
    %3888 = vdwg.mxu0
    %3889 = vmatprep.subr.mxu0 %v3605
    %3890 = vmatpush1.msra.mxu0 %v3604
    %3891 = vmatprep.subr.mxu0 %v3597
    %3892 = vmatpush1.msra.mxu0 %v3596
    %3893 = vmatprep.subr.mxu0 %v3589
    %3894 = vmatpush1.msra.mxu0 %v3588
    %3895 = vmatprep.subr.mxu0 %v3581
    %3896 = vmatpush1.msra.mxu0 %v3580
    %3897 = vmatprep.subr.mxu0 %v3573
    %3898 = vmatpush1.msra.mxu0 %v3572
    %3899 = vmatprep.subr.mxu0 %v3565
    %3900 = vmatpush1.msra.mxu0 %v3564
    %3901 = vmatprep.subr.mxu0 %v3557
    %3902 = vmatpush1.msra.mxu0 %v3556
    %3903 = vmatprep.subr.mxu0 %v3549
    %3904 = vmatpush1.msra.mxu0 %v3548
    %3905 = vmatprep.subr.mxu0 %v3541
    %3906 = vmatpush1.msra.mxu0 %v3540
    %3907 = vmatprep.subr.mxu0 %v3533
    %3908 = vmatpush1.msra.mxu0 %v3532
    %3909 = vmatprep.subr.mxu0 %v3525
    %3910 = vmatpush1.msra.mxu0 %v3524
    %3911 = vmatprep.subr.mxu0 %v3517
    %3912 = vmatpush1.msra.mxu0 %v3516
    %3913 = vmatprep.subr.mxu0 %v3509
    %3914 = vmatpush1.msra.mxu0 %v3508
    %3915 = vmatprep.subr.mxu0 %v3501
    %3916 = vmatpush1.msra.mxu0 %v3500
    %3917 = vmatprep.subr.mxu0 %v3493
    %3918 = vmatpush1.msra.mxu0 %v3492
    %3919 = vmatprep.subr.mxu0 %v3485
    %3920 = vmatpush1.msra.mxu0 %v3484
    %3921 = vmatprep.subr.mxu0 %v3733
    %3922 = vmatpush2.msra.mxu0 %v3732
    %3923 = vmatprep.subr.mxu0 %v3725
    %3924 = vmatpush2.msra.mxu0 %v3724
    %3925 = vmatprep.subr.mxu0 %v3717
    %3926 = vmatpush2.msra.mxu0 %v3716
    %3927 = vmatprep.subr.mxu0 %v3709
    %3928 = vmatpush2.msra.mxu0 %v3708
    %3929 = vmatprep.subr.mxu0 %v3701
    %3930 = vmatpush2.msra.mxu0 %v3700
    %3931 = vmatprep.subr.mxu0 %v3693
    %3932 = vmatpush2.msra.mxu0 %v3692
    %3933 = vmatprep.subr.mxu0 %v3685
    %3934 = vmatpush2.msra.mxu0 %v3684
    %3935 = vmatprep.subr.mxu0 %v3677
    %3936 = vmatpush2.msra.mxu0 %v3676
    %3937 = vmatprep.subr.mxu0 %v3669
    %3938 = vmatpush2.msra.mxu0 %v3668
    %3939 = vmatprep.subr.mxu0 %v3661
    %3940 = vmatpush2.msra.mxu0 %v3660
    %3941 = vmatprep.subr.mxu0 %v3653
    %3942 = vmatpush2.msra.mxu0 %v3652
    %3943 = vmatprep.subr.mxu0 %v3645
    %3944 = vmatpush2.msra.mxu0 %v3644
    %3945 = vmatprep.subr.mxu0 %v3637
    %3946 = vmatpush2.msra.mxu0 %v3636
    %3947 = vmatprep.subr.mxu0 %v3629
    %3948 = vmatpush2.msra.mxu0 %v3628
    %3949 = vmatprep.subr.mxu0 %v3621
    %3950 = vmatpush2.msra.mxu0 %v3620
    %3951 = vmatprep.subr.mxu0 %v3613
    %3952 = vmatpush2.msra.mxu0 %v3612
    %3953 = vmatprep.mubr.f32.mxu0 %v3744
    %3954 = vmatmul.mubr.f32.gmra.mxu0 %v3743
    %v3955 = vpop.f32.mrf.mxu0
    %v3956 = vadd.f32 %v319, %v3955
    %v3957 = vpop.f32.mrf.mxu0
    %v3958 = vadd.f32 %v323, %v3957
    %3959 = vdwg.mxu0
    %3960 = vmatprep.subr.mxu0 %v3607
    %3961 = vmatpush1.msra.mxu0 %v3606
    %3962 = vmatprep.subr.mxu0 %v3599
    %3963 = vmatpush1.msra.mxu0 %v3598
    %3964 = vmatprep.subr.mxu0 %v3591
    %3965 = vmatpush1.msra.mxu0 %v3590
    %3966 = vmatprep.subr.mxu0 %v3583
    %3967 = vmatpush1.msra.mxu0 %v3582
    %3968 = vmatprep.subr.mxu0 %v3575
    %3969 = vmatpush1.msra.mxu0 %v3574
    %3970 = vmatprep.subr.mxu0 %v3567
    %3971 = vmatpush1.msra.mxu0 %v3566
    %3972 = vmatprep.subr.mxu0 %v3559
    %3973 = vmatpush1.msra.mxu0 %v3558
    %3974 = vmatprep.subr.mxu0 %v3551
    %3975 = vmatpush1.msra.mxu0 %v3550
    %3976 = vmatprep.subr.mxu0 %v3543
    %3977 = vmatpush1.msra.mxu0 %v3542
    %3978 = vmatprep.subr.mxu0 %v3535
    %3979 = vmatpush1.msra.mxu0 %v3534
    %3980 = vmatprep.subr.mxu0 %v3527
    %3981 = vmatpush1.msra.mxu0 %v3526
    %3982 = vmatprep.subr.mxu0 %v3519
    %3983 = vmatpush1.msra.mxu0 %v3518
    %3984 = vmatprep.subr.mxu0 %v3511
    %3985 = vmatpush1.msra.mxu0 %v3510
    %3986 = vmatprep.subr.mxu0 %v3503
    %3987 = vmatpush1.msra.mxu0 %v3502
    %3988 = vmatprep.subr.mxu0 %v3495
    %3989 = vmatpush1.msra.mxu0 %v3494
    %3990 = vmatprep.subr.mxu0 %v3487
    %3991 = vmatpush1.msra.mxu0 %v3486
    %3992 = vmatprep.subr.mxu0 %v3735
    %3993 = vmatpush2.msra.mxu0 %v3734
    %3994 = vmatprep.subr.mxu0 %v3727
    %3995 = vmatpush2.msra.mxu0 %v3726
    %3996 = vmatprep.subr.mxu0 %v3719
    %3997 = vmatpush2.msra.mxu0 %v3718
    %3998 = vmatprep.subr.mxu0 %v3711
    %3999 = vmatpush2.msra.mxu0 %v3710
    %4000 = vmatprep.subr.mxu0 %v3703
    %4001 = vmatpush2.msra.mxu0 %v3702
    %4002 = vmatprep.subr.mxu0 %v3695
    %4003 = vmatpush2.msra.mxu0 %v3694
    %4004 = vmatprep.subr.mxu0 %v3687
    %4005 = vmatpush2.msra.mxu0 %v3686
    %4006 = vmatprep.subr.mxu0 %v3679
    %4007 = vmatpush2.msra.mxu0 %v3678
    %4008 = vmatprep.subr.mxu0 %v3671
    %4009 = vmatpush2.msra.mxu0 %v3670
    %4010 = vmatprep.subr.mxu0 %v3663
    %4011 = vmatpush2.msra.mxu0 %v3662
    %4012 = vmatprep.subr.mxu0 %v3655
    %4013 = vmatpush2.msra.mxu0 %v3654
    %4014 = vmatprep.subr.mxu0 %v3647
    %4015 = vmatpush2.msra.mxu0 %v3646
    %4016 = vmatprep.subr.mxu0 %v3639
    %4017 = vmatpush2.msra.mxu0 %v3638
    %4018 = vmatprep.subr.mxu0 %v3631
    %4019 = vmatpush2.msra.mxu0 %v3630
    %4020 = vmatprep.subr.mxu0 %v3623
    %4021 = vmatpush2.msra.mxu0 %v3622
    %4022 = vmatprep.subr.mxu0 %v3615
    %4023 = vmatpush2.msra.mxu0 %v3614
    %4024 = vmatprep.mubr.f32.mxu0 %v3744
    %4025 = vmatmul.mubr.f32.gmra.mxu0 %v3743
    %v4026 = vpop.f32.mrf.mxu0
    %v4027 = vadd.f32 %v327, %v4026
    %v4028 = vpop.f32.mrf.mxu0
    %v4029 = vadd.f32 %v331, %v4028
    %4030 = vdwg.mxu0
    %v4031 = vxor.u32 %v3814, 2147483648
    %v4032 = vmul.f32 %v4031, 1.442695
    %v4033 = vpow.pop %v4032
    %v4034 = vadd.f32 %v4033, 1.0
    %v4035 = vrcp.pop %v4034
    %v4036 = vmul.f32 1.0, %v4035
    %v4037 = vxor.u32 %v3816, 2147483648
    %v4038 = vmul.f32 %v4037, 1.442695
    %v4039 = vpow.pop %v4038
    %v4040 = vadd.f32 %v4039, 1.0
    %v4041 = vrcp.pop %v4040
    %v4042 = vmul.f32 1.0, %v4041
    %v4043 = vmul.f32 %v4036, %v3887
    %v4044 = vadd.f32 %v3885, %v4043
    %v4045 = vtanh.pop %v4044
    %v4046 = vsub.f32 1.0, %v4042
    %v4047 = vmul.f32 %v4046, %v4045
    %v4048 = vmul.f32 %v4042, %v3423
    %v4049 = vadd.f32 %v4047, %v4048
    %4050 = vst [vmem:[#allocation2 + $0x2] sm:$0x3] %v4049
    %v4055 = vrot.slane %v3956, 4
    %v4056 = vrot.slane %v3958, 4
    %v4057 = vrot.slane %v4027, 4
    %v4058 = vrot.slane %v4029, 4
    %v4063 = vadd.f32 %v217, %v4055
    %v4064 = vadd.f32 %v219, %v4056
    %v4065 = vadd.f32 %v294, %v4057
    %v4066 = vadd.f32 %v296, %v4058
    %v4067 = vxor.u32 %v4063, 2147483648
    %v4068 = vmul.f32 %v4067, 1.442695
    %v4069 = vpow.pop %v4068
    %v4070 = vadd.f32 %v4069, 1.0
    %v4071 = vrcp.pop %v4070
    %v4072 = vmul.f32 1.0, %v4071
    %v4073 = vxor.u32 %v4064, 2147483648
    %v4074 = vmul.f32 %v4073, 1.442695
    %v4075 = vpow.pop %v4074
    %v4076 = vadd.f32 %v4075, 1.0
    %v4077 = vrcp.pop %v4076
    %v4078 = vmul.f32 1.0, %v4077
    %v4079 = vtanh.pop %v4065
    %v4080 = vxor.u32 %v4066, 2147483648
    %v4081 = vmul.f32 %v4080, 1.442695
    %v4082 = vpow.pop %v4081
    %v4083 = vadd.f32 %v4082, 1.0
    %v4084 = vrcp.pop %v4083
    %v4085 = vmul.f32 1.0, %v4084
    %v4087 = vrot.slane %v3465, 6
    %v4089 = vmul.f32 %v4078, %v4087
    %v4090 = vmul.f32 %v4072, %v4079
    %v4091 = vadd.f32 %v4089, %v4090
    %v4092 = vtanh.pop %v4091
    %v4093 = vmul.f32 %v4085, %v4092
    %v4095 = vcombine.high %v4093, %v4093
    %v4097 = vunpack.c.l.s4 1983009808
    %v4098 = vunpack.c.0.s8 %v4097
    %v4099 = vlaneseq
    %v4100 = vshrl.u32 %v4099, 7
    %v4101 = vsub.s32 %v4098, %v4100
    %v4102 = vrot.slane %v4095, %v4101
    %4104 = vst [vmem:[#allocation2] sm:$0x3] %v4102
    %v4105 = vld [vmem:[#allocation2] sm:$0xf]
    %v4106 = vld [vmem:[#allocation9] sm:$0xff]
    %v4107 = vld [vmem:[#allocation9 + $0x8] sm:$0xff]
    %v4108 = vld [vmem:[#allocation9 + $0x10] sm:$0xff]
    %v4109 = vld [vmem:[#allocation9 + $0x18] sm:$0xff]
    %v4110 = vld [vmem:[#allocation9 + $0x20] sm:$0xff]
    %v4111 = vld [vmem:[#allocation9 + $0x28] sm:$0xff]
    %v4112 = vld [vmem:[#allocation9 + $0x30] sm:$0xff]
    %v4113 = vld [vmem:[#allocation9 + $0x38] sm:$0xff]
    %v4114 = vld [vmem:[#allocation9 + $0x40] sm:$0xff]
    %v4115 = vld [vmem:[#allocation9 + $0x48] sm:$0xff]
    %v4116 = vld [vmem:[#allocation9 + $0x50] sm:$0xff]
    %v4117 = vld [vmem:[#allocation9 + $0x58] sm:$0xff]
    %v4118 = vld [vmem:[#allocation9 + $0x60] sm:$0xff]
    %v4119 = vld [vmem:[#allocation9 + $0x68] sm:$0xff]
    %v4120 = vld [vmem:[#allocation9 + $0x70] sm:$0xff]
    %v4121 = vld [vmem:[#allocation9 + $0x78] sm:$0xff]
    %v4122 = vld [vmem:[#allocation9 + $0x80] sm:$0xff]
    %v4123 = vld [vmem:[#allocation9 + $0x88] sm:$0xff]
    %v4124 = vld [vmem:[#allocation9 + $0x90] sm:$0xff]
    %v4125 = vld [vmem:[#allocation9 + $0x98] sm:$0xff]
    %v4126 = vld [vmem:[#allocation9 + $0xa0] sm:$0xff]
    %v4127 = vld [vmem:[#allocation9 + $0xa8] sm:$0xff]
    %v4128 = vld [vmem:[#allocation9 + $0xb0] sm:$0xff]
    %v4129 = vld [vmem:[#allocation9 + $0xb8] sm:$0xff]
    %v4130 = vld [vmem:[#allocation9 + $0xc0] sm:$0xff]
    %v4131 = vld [vmem:[#allocation9 + $0xc8] sm:$0xff]
    %v4132 = vld [vmem:[#allocation9 + $0xd0] sm:$0xff]
    %v4133 = vld [vmem:[#allocation9 + $0xd8] sm:$0xff]
    %v4134 = vld [vmem:[#allocation9 + $0xe0] sm:$0xff]
    %v4135 = vld [vmem:[#allocation9 + $0xe8] sm:$0xff]
    %v4136 = vld [vmem:[#allocation9 + $0xf0] sm:$0xff]
    %v4137 = vld [vmem:[#allocation9 + $0xf8] sm:$0xff]
    %v4138 = vld [vmem:[#allocation9 + $0x100] sm:$0xff]
    %v4139 = vld [vmem:[#allocation9 + $0x108] sm:$0xff]
    %v4140 = vld [vmem:[#allocation9 + $0x110] sm:$0xff]
    %v4141 = vld [vmem:[#allocation9 + $0x118] sm:$0xff]
    %v4142 = vld [vmem:[#allocation9 + $0x120] sm:$0xff]
    %v4143 = vld [vmem:[#allocation9 + $0x128] sm:$0xff]
    %v4144 = vld [vmem:[#allocation9 + $0x130] sm:$0xff]
    %v4145 = vld [vmem:[#allocation9 + $0x138] sm:$0xff]
    %v4146 = vld [vmem:[#allocation9 + $0x140] sm:$0xff]
    %v4147 = vld [vmem:[#allocation9 + $0x148] sm:$0xff]
    %v4148 = vld [vmem:[#allocation9 + $0x150] sm:$0xff]
    %v4149 = vld [vmem:[#allocation9 + $0x158] sm:$0xff]
    %v4150 = vld [vmem:[#allocation9 + $0x160] sm:$0xff]
    %v4151 = vld [vmem:[#allocation9 + $0x168] sm:$0xff]
    %v4152 = vld [vmem:[#allocation9 + $0x170] sm:$0xff]
    %v4153 = vld [vmem:[#allocation9 + $0x178] sm:$0xff]
    %v4154 = vld [vmem:[#allocation9 + $0x180] sm:$0xff]
    %v4155 = vld [vmem:[#allocation9 + $0x188] sm:$0xff]
    %v4156 = vld [vmem:[#allocation9 + $0x190] sm:$0xff]
    %v4157 = vld [vmem:[#allocation9 + $0x198] sm:$0xff]
    %v4158 = vld [vmem:[#allocation9 + $0x1a0] sm:$0xff]
    %v4159 = vld [vmem:[#allocation9 + $0x1a8] sm:$0xff]
    %v4160 = vld [vmem:[#allocation9 + $0x1b0] sm:$0xff]
    %v4161 = vld [vmem:[#allocation9 + $0x1b8] sm:$0xff]
    %v4162 = vld [vmem:[#allocation9 + $0x1c0] sm:$0xff]
    %v4163 = vld [vmem:[#allocation9 + $0x1c8] sm:$0xff]
    %v4164 = vld [vmem:[#allocation9 + $0x1d0] sm:$0xff]
    %v4165 = vld [vmem:[#allocation9 + $0x1d8] sm:$0xff]
    %v4166 = vld [vmem:[#allocation9 + $0x1e0] sm:$0xff]
    %v4167 = vld [vmem:[#allocation9 + $0x1e8] sm:$0xff]
    %v4168 = vld [vmem:[#allocation9 + $0x1f0] sm:$0xff]
    %v4169 = vld [vmem:[#allocation9 + $0x1f8] sm:$0xff]
    %v4170 = vld [vmem:[#allocation9 + $0x200] sm:$0xff]
    %v4171 = vld [vmem:[#allocation9 + $0x208] sm:$0xff]
    %v4172 = vld [vmem:[#allocation9 + $0x210] sm:$0xff]
    %v4173 = vld [vmem:[#allocation9 + $0x218] sm:$0xff]
    %v4174 = vld [vmem:[#allocation9 + $0x220] sm:$0xff]
    %v4175 = vld [vmem:[#allocation9 + $0x228] sm:$0xff]
    %v4176 = vld [vmem:[#allocation9 + $0x230] sm:$0xff]
    %v4177 = vld [vmem:[#allocation9 + $0x238] sm:$0xff]
    %v4178 = vld [vmem:[#allocation9 + $0x240] sm:$0xff]
    %v4179 = vld [vmem:[#allocation9 + $0x248] sm:$0xff]
    %v4180 = vld [vmem:[#allocation9 + $0x250] sm:$0xff]
    %v4181 = vld [vmem:[#allocation9 + $0x258] sm:$0xff]
    %v4182 = vld [vmem:[#allocation9 + $0x260] sm:$0xff]
    %v4183 = vld [vmem:[#allocation9 + $0x268] sm:$0xff]
    %v4184 = vld [vmem:[#allocation9 + $0x270] sm:$0xff]
    %v4185 = vld [vmem:[#allocation9 + $0x278] sm:$0xff]
    %v4186 = vld [vmem:[#allocation9 + $0x280] sm:$0xff]
    %v4187 = vld [vmem:[#allocation9 + $0x288] sm:$0xff]
    %v4188 = vld [vmem:[#allocation9 + $0x290] sm:$0xff]
    %v4189 = vld [vmem:[#allocation9 + $0x298] sm:$0xff]
    %v4190 = vld [vmem:[#allocation9 + $0x2a0] sm:$0xff]
    %v4191 = vld [vmem:[#allocation9 + $0x2a8] sm:$0xff]
    %v4192 = vld [vmem:[#allocation9 + $0x2b0] sm:$0xff]
    %v4193 = vld [vmem:[#allocation9 + $0x2b8] sm:$0xff]
    %v4194 = vld [vmem:[#allocation9 + $0x2c0] sm:$0xff]
    %v4195 = vld [vmem:[#allocation9 + $0x2c8] sm:$0xff]
    %v4196 = vld [vmem:[#allocation9 + $0x2d0] sm:$0xff]
    %v4197 = vld [vmem:[#allocation9 + $0x2d8] sm:$0xff]
    %v4198 = vld [vmem:[#allocation9 + $0x2e0] sm:$0xff]
    %v4199 = vld [vmem:[#allocation9 + $0x2e8] sm:$0xff]
    %v4200 = vld [vmem:[#allocation9 + $0x2f0] sm:$0xff]
    %v4201 = vld [vmem:[#allocation9 + $0x2f8] sm:$0xff]
    %v4202 = vld [vmem:[#allocation9 + $0x300] sm:$0xff]
    %v4203 = vld [vmem:[#allocation9 + $0x308] sm:$0xff]
    %v4204 = vld [vmem:[#allocation9 + $0x310] sm:$0xff]
    %v4205 = vld [vmem:[#allocation9 + $0x318] sm:$0xff]
    %v4206 = vld [vmem:[#allocation9 + $0x320] sm:$0xff]
    %v4207 = vld [vmem:[#allocation9 + $0x328] sm:$0xff]
    %v4208 = vld [vmem:[#allocation9 + $0x330] sm:$0xff]
    %v4209 = vld [vmem:[#allocation9 + $0x338] sm:$0xff]
    %v4210 = vld [vmem:[#allocation9 + $0x340] sm:$0xff]
    %v4211 = vld [vmem:[#allocation9 + $0x348] sm:$0xff]
    %v4212 = vld [vmem:[#allocation9 + $0x350] sm:$0xff]
    %v4213 = vld [vmem:[#allocation9 + $0x358] sm:$0xff]
    %v4214 = vld [vmem:[#allocation9 + $0x360] sm:$0xff]
    %v4215 = vld [vmem:[#allocation9 + $0x368] sm:$0xff]
    %v4216 = vld [vmem:[#allocation9 + $0x370] sm:$0xff]
    %v4217 = vld [vmem:[#allocation9 + $0x378] sm:$0xff]
    %v4218 = vld [vmem:[#allocation9 + $0x380] sm:$0xff]
    %v4219 = vld [vmem:[#allocation9 + $0x388] sm:$0xff]
    %v4220 = vld [vmem:[#allocation9 + $0x390] sm:$0xff]
    %v4221 = vld [vmem:[#allocation9 + $0x398] sm:$0xff]
    %v4222 = vld [vmem:[#allocation9 + $0x3a0] sm:$0xff]
    %v4223 = vld [vmem:[#allocation9 + $0x3a8] sm:$0xff]
    %v4224 = vld [vmem:[#allocation9 + $0x3b0] sm:$0xff]
    %v4225 = vld [vmem:[#allocation9 + $0x3b8] sm:$0xff]
    %v4226 = vld [vmem:[#allocation9 + $0x3c0] sm:$0xff]
    %v4227 = vld [vmem:[#allocation9 + $0x3c8] sm:$0xff]
    %v4228 = vld [vmem:[#allocation9 + $0x3d0] sm:$0xff]
    %v4229 = vld [vmem:[#allocation9 + $0x3d8] sm:$0xff]
    %v4230 = vld [vmem:[#allocation9 + $0x3e0] sm:$0xff]
    %v4231 = vld [vmem:[#allocation9 + $0x3e8] sm:$0xff]
    %v4232 = vld [vmem:[#allocation9 + $0x3f0] sm:$0xff]
    %v4233 = vld [vmem:[#allocation9 + $0x3f8] sm:$0xff]
    %v4234 = vld [vmem:[#allocation9 + $0x400] sm:$0xff]
    %v4235 = vld [vmem:[#allocation9 + $0x408] sm:$0xff]
    %v4236 = vld [vmem:[#allocation9 + $0x410] sm:$0xff]
    %v4237 = vld [vmem:[#allocation9 + $0x418] sm:$0xff]
    %v4238 = vld [vmem:[#allocation9 + $0x420] sm:$0xff]
    %v4239 = vld [vmem:[#allocation9 + $0x428] sm:$0xff]
    %v4240 = vld [vmem:[#allocation9 + $0x430] sm:$0xff]
    %v4241 = vld [vmem:[#allocation9 + $0x438] sm:$0xff]
    %v4242 = vld [vmem:[#allocation9 + $0x440] sm:$0xff]
    %v4243 = vld [vmem:[#allocation9 + $0x448] sm:$0xff]
    %v4244 = vld [vmem:[#allocation9 + $0x450] sm:$0xff]
    %v4245 = vld [vmem:[#allocation9 + $0x458] sm:$0xff]
    %v4246 = vld [vmem:[#allocation9 + $0x460] sm:$0xff]
    %v4247 = vld [vmem:[#allocation9 + $0x468] sm:$0xff]
    %v4248 = vld [vmem:[#allocation9 + $0x470] sm:$0xff]
    %v4249 = vld [vmem:[#allocation9 + $0x478] sm:$0xff]
    %v4250 = vld [vmem:[#allocation9 + $0x480] sm:$0xff]
    %v4251 = vld [vmem:[#allocation9 + $0x488] sm:$0xff]
    %v4252 = vld [vmem:[#allocation9 + $0x490] sm:$0xff]
    %v4253 = vld [vmem:[#allocation9 + $0x498] sm:$0xff]
    %v4254 = vld [vmem:[#allocation9 + $0x4a0] sm:$0xff]
    %v4255 = vld [vmem:[#allocation9 + $0x4a8] sm:$0xff]
    %v4256 = vld [vmem:[#allocation9 + $0x4b0] sm:$0xff]
    %v4257 = vld [vmem:[#allocation9 + $0x4b8] sm:$0xff]
    %v4258 = vld [vmem:[#allocation9 + $0x4c0] sm:$0xff]
    %v4259 = vld [vmem:[#allocation9 + $0x4c8] sm:$0xff]
    %v4260 = vld [vmem:[#allocation9 + $0x4d0] sm:$0xff]
    %v4261 = vld [vmem:[#allocation9 + $0x4d8] sm:$0xff]
    %v4262 = vld [vmem:[#allocation9 + $0x4e0] sm:$0xff]
    %v4263 = vld [vmem:[#allocation9 + $0x4e8] sm:$0xff]
    %v4264 = vld [vmem:[#allocation9 + $0x4f0] sm:$0xff]
    %v4265 = vld [vmem:[#allocation9 + $0x4f8] sm:$0xff]
    %v4266 = vld [vmem:[#allocation9 + $0x500] sm:$0xff]
    %v4267 = vld [vmem:[#allocation9 + $0x508] sm:$0xff]
    %v4268 = vld [vmem:[#allocation9 + $0x510] sm:$0xff]
    %v4269 = vld [vmem:[#allocation9 + $0x518] sm:$0xff]
    %v4270 = vld [vmem:[#allocation9 + $0x520] sm:$0xff]
    %v4271 = vld [vmem:[#allocation9 + $0x528] sm:$0xff]
    %v4272 = vld [vmem:[#allocation9 + $0x530] sm:$0xff]
    %v4273 = vld [vmem:[#allocation9 + $0x538] sm:$0xff]
    %v4274 = vld [vmem:[#allocation9 + $0x540] sm:$0xff]
    %v4275 = vld [vmem:[#allocation9 + $0x548] sm:$0xff]
    %v4276 = vld [vmem:[#allocation9 + $0x550] sm:$0xff]
    %v4277 = vld [vmem:[#allocation9 + $0x558] sm:$0xff]
    %v4278 = vld [vmem:[#allocation9 + $0x560] sm:$0xff]
    %v4279 = vld [vmem:[#allocation9 + $0x568] sm:$0xff]
    %v4280 = vld [vmem:[#allocation9 + $0x570] sm:$0xff]
    %v4281 = vld [vmem:[#allocation9 + $0x578] sm:$0xff]
    %v4282 = vld [vmem:[#allocation9 + $0x580] sm:$0xff]
    %v4283 = vld [vmem:[#allocation9 + $0x588] sm:$0xff]
    %v4284 = vld [vmem:[#allocation9 + $0x590] sm:$0xff]
    %v4285 = vld [vmem:[#allocation9 + $0x598] sm:$0xff]
    %v4286 = vld [vmem:[#allocation9 + $0x5a0] sm:$0xff]
    %v4287 = vld [vmem:[#allocation9 + $0x5a8] sm:$0xff]
    %v4288 = vld [vmem:[#allocation9 + $0x5b0] sm:$0xff]
    %v4289 = vld [vmem:[#allocation9 + $0x5b8] sm:$0xff]
    %v4290 = vld [vmem:[#allocation9 + $0x5c0] sm:$0xff]
    %v4291 = vld [vmem:[#allocation9 + $0x5c8] sm:$0xff]
    %v4292 = vld [vmem:[#allocation9 + $0x5d0] sm:$0xff]
    %v4293 = vld [vmem:[#allocation9 + $0x5d8] sm:$0xff]
    %v4294 = vld [vmem:[#allocation9 + $0x5e0] sm:$0xff]
    %v4295 = vld [vmem:[#allocation9 + $0x5e8] sm:$0xff]
    %v4296 = vld [vmem:[#allocation9 + $0x5f0] sm:$0xff]
    %v4297 = vld [vmem:[#allocation9 + $0x5f8] sm:$0xff]
    %v4298 = vld [vmem:[#allocation9 + $0x600] sm:$0xff]
    %v4299 = vld [vmem:[#allocation9 + $0x608] sm:$0xff]
    %v4300 = vld [vmem:[#allocation9 + $0x610] sm:$0xff]
    %v4301 = vld [vmem:[#allocation9 + $0x618] sm:$0xff]
    %v4302 = vld [vmem:[#allocation9 + $0x620] sm:$0xff]
    %v4303 = vld [vmem:[#allocation9 + $0x628] sm:$0xff]
    %v4304 = vld [vmem:[#allocation9 + $0x630] sm:$0xff]
    %v4305 = vld [vmem:[#allocation9 + $0x638] sm:$0xff]
    %v4306 = vld [vmem:[#allocation9 + $0x640] sm:$0xff]
    %v4307 = vld [vmem:[#allocation9 + $0x648] sm:$0xff]
    %v4308 = vld [vmem:[#allocation9 + $0x650] sm:$0xff]
    %v4309 = vld [vmem:[#allocation9 + $0x658] sm:$0xff]
    %v4310 = vld [vmem:[#allocation9 + $0x660] sm:$0xff]
    %v4311 = vld [vmem:[#allocation9 + $0x668] sm:$0xff]
    %v4312 = vld [vmem:[#allocation9 + $0x670] sm:$0xff]
    %v4313 = vld [vmem:[#allocation9 + $0x678] sm:$0xff]
    %v4314 = vld [vmem:[#allocation9 + $0x680] sm:$0xff]
    %v4315 = vld [vmem:[#allocation9 + $0x688] sm:$0xff]
    %v4316 = vld [vmem:[#allocation9 + $0x690] sm:$0xff]
    %v4317 = vld [vmem:[#allocation9 + $0x698] sm:$0xff]
    %v4318 = vld [vmem:[#allocation9 + $0x6a0] sm:$0xff]
    %v4319 = vld [vmem:[#allocation9 + $0x6a8] sm:$0xff]
    %v4320 = vld [vmem:[#allocation9 + $0x6b0] sm:$0xff]
    %v4321 = vld [vmem:[#allocation9 + $0x6b8] sm:$0xff]
    %v4322 = vld [vmem:[#allocation9 + $0x6c0] sm:$0xff]
    %v4323 = vld [vmem:[#allocation9 + $0x6c8] sm:$0xff]
    %v4324 = vld [vmem:[#allocation9 + $0x6d0] sm:$0xff]
    %v4325 = vld [vmem:[#allocation9 + $0x6d8] sm:$0xff]
    %v4326 = vld [vmem:[#allocation9 + $0x6e0] sm:$0xff]
    %v4327 = vld [vmem:[#allocation9 + $0x6e8] sm:$0xff]
    %v4328 = vld [vmem:[#allocation9 + $0x6f0] sm:$0xff]
    %v4329 = vld [vmem:[#allocation9 + $0x6f8] sm:$0xff]
    %v4330 = vld [vmem:[#allocation9 + $0x700] sm:$0xff]
    %v4331 = vld [vmem:[#allocation9 + $0x708] sm:$0xff]
    %v4332 = vld [vmem:[#allocation9 + $0x710] sm:$0xff]
    %v4333 = vld [vmem:[#allocation9 + $0x718] sm:$0xff]
    %v4334 = vld [vmem:[#allocation9 + $0x720] sm:$0xff]
    %v4335 = vld [vmem:[#allocation9 + $0x728] sm:$0xff]
    %v4336 = vld [vmem:[#allocation9 + $0x730] sm:$0xff]
    %v4337 = vld [vmem:[#allocation9 + $0x738] sm:$0xff]
    %v4338 = vld [vmem:[#allocation9 + $0x740] sm:$0xff]
    %v4339 = vld [vmem:[#allocation9 + $0x748] sm:$0xff]
    %v4340 = vld [vmem:[#allocation9 + $0x750] sm:$0xff]
    %v4341 = vld [vmem:[#allocation9 + $0x758] sm:$0xff]
    %v4342 = vld [vmem:[#allocation9 + $0x760] sm:$0xff]
    %v4343 = vld [vmem:[#allocation9 + $0x768] sm:$0xff]
    %v4344 = vld [vmem:[#allocation9 + $0x770] sm:$0xff]
    %v4345 = vld [vmem:[#allocation9 + $0x778] sm:$0xff]
    %v4346 = vld [vmem:[#allocation9 + $0x780] sm:$0xff]
    %v4347 = vld [vmem:[#allocation9 + $0x788] sm:$0xff]
    %v4348 = vld [vmem:[#allocation9 + $0x790] sm:$0xff]
    %v4349 = vld [vmem:[#allocation9 + $0x798] sm:$0xff]
    %v4350 = vld [vmem:[#allocation9 + $0x7a0] sm:$0xff]
    %v4351 = vld [vmem:[#allocation9 + $0x7a8] sm:$0xff]
    %v4352 = vld [vmem:[#allocation9 + $0x7b0] sm:$0xff]
    %v4353 = vld [vmem:[#allocation9 + $0x7b8] sm:$0xff]
    %v4354 = vld [vmem:[#allocation9 + $0x7c0] sm:$0xff]
    %v4355 = vld [vmem:[#allocation9 + $0x7c8] sm:$0xff]
    %v4356 = vld [vmem:[#allocation9 + $0x7d0] sm:$0xff]
    %v4357 = vld [vmem:[#allocation9 + $0x7d8] sm:$0xff]
    %v4358 = vld [vmem:[#allocation9 + $0x7e0] sm:$0xff]
    %v4359 = vld [vmem:[#allocation9 + $0x7e8] sm:$0xff]
    %v4360 = vld [vmem:[#allocation9 + $0x7f0] sm:$0xff]
    %v4361 = vld [vmem:[#allocation9 + $0x7f8] sm:$0xff]
    %v4364 = vunpack.c.l.s4 1983009808
    %v4365 = vunpack.c.0.s8 %v4364
    %v4366 = vlaneseq
    %v4367 = vshrl.u32 %v4366, 7
    %v4368 = vsub.s32 %v4365, %v4367
    %v4369 = vrot.slane %v4105, %v4368
    %v4370 = vcombine.high %v4369, %v4369
    %4373 = vmatprep.subr.mxu0 %v4227
    %4374 = vmatpush1.msra.mxu0 %v4226
    %4375 = vmatprep.subr.mxu0 %v4219
    %4376 = vmatpush1.msra.mxu0 %v4218
    %4377 = vmatprep.subr.mxu0 %v4211
    %4378 = vmatpush1.msra.mxu0 %v4210
    %4379 = vmatprep.subr.mxu0 %v4203
    %4380 = vmatpush1.msra.mxu0 %v4202
    %4381 = vmatprep.subr.mxu0 %v4195
    %4382 = vmatpush1.msra.mxu0 %v4194
    %4383 = vmatprep.subr.mxu0 %v4187
    %4384 = vmatpush1.msra.mxu0 %v4186
    %4385 = vmatprep.subr.mxu0 %v4179
    %4386 = vmatpush1.msra.mxu0 %v4178
    %4387 = vmatprep.subr.mxu0 %v4171
    %4388 = vmatpush1.msra.mxu0 %v4170
    %4389 = vmatprep.subr.mxu0 %v4163
    %4390 = vmatpush1.msra.mxu0 %v4162
    %4391 = vmatprep.subr.mxu0 %v4155
    %4392 = vmatpush1.msra.mxu0 %v4154
    %4393 = vmatprep.subr.mxu0 %v4147
    %4394 = vmatpush1.msra.mxu0 %v4146
    %4395 = vmatprep.subr.mxu0 %v4139
    %4396 = vmatpush1.msra.mxu0 %v4138
    %4397 = vmatprep.subr.mxu0 %v4131
    %4398 = vmatpush1.msra.mxu0 %v4130
    %4399 = vmatprep.subr.mxu0 %v4123
    %4400 = vmatpush1.msra.mxu0 %v4122
    %4401 = vmatprep.subr.mxu0 %v4115
    %4402 = vmatpush1.msra.mxu0 %v4114
    %4403 = vmatprep.subr.mxu0 %v4107
    %4404 = vmatpush1.msra.mxu0 %v4106
    %4405 = vmatprep.subr.mxu0 %v4355
    %4406 = vmatpush2.msra.mxu0 %v4354
    %4407 = vmatprep.subr.mxu0 %v4347
    %4408 = vmatpush2.msra.mxu0 %v4346
    %4409 = vmatprep.subr.mxu0 %v4339
    %4410 = vmatpush2.msra.mxu0 %v4338
    %4411 = vmatprep.subr.mxu0 %v4331
    %4412 = vmatpush2.msra.mxu0 %v4330
    %4413 = vmatprep.subr.mxu0 %v4323
    %4414 = vmatpush2.msra.mxu0 %v4322
    %4415 = vmatprep.subr.mxu0 %v4315
    %4416 = vmatpush2.msra.mxu0 %v4314
    %4417 = vmatprep.subr.mxu0 %v4307
    %4418 = vmatpush2.msra.mxu0 %v4306
    %4419 = vmatprep.subr.mxu0 %v4299
    %4420 = vmatpush2.msra.mxu0 %v4298
    %4421 = vmatprep.subr.mxu0 %v4291
    %4422 = vmatpush2.msra.mxu0 %v4290
    %4423 = vmatprep.subr.mxu0 %v4283
    %4424 = vmatpush2.msra.mxu0 %v4282
    %4425 = vmatprep.subr.mxu0 %v4275
    %4426 = vmatpush2.msra.mxu0 %v4274
    %4427 = vmatprep.subr.mxu0 %v4267
    %4428 = vmatpush2.msra.mxu0 %v4266
    %4429 = vmatprep.subr.mxu0 %v4259
    %4430 = vmatpush2.msra.mxu0 %v4258
    %4431 = vmatprep.subr.mxu0 %v4251
    %4432 = vmatpush2.msra.mxu0 %v4250
    %4433 = vmatprep.subr.mxu0 %v4243
    %4434 = vmatpush2.msra.mxu0 %v4242
    %4435 = vmatprep.subr.mxu0 %v4235
    %4436 = vmatpush2.msra.mxu0 %v4234
    %4437 = vmatprep.mubr.f32.mxu0 %v4370
    %4438 = vmatmul.mubr.f32.gmra.mxu0 %v4369
    %v4439 = vpop.f32.mrf.mxu0
    %v4440 = vadd.f32 %v303, %v4439
    %v4441 = vpop.f32.mrf.mxu0
    %v4442 = vadd.f32 %v307, %v4441
    %4443 = vdwg.mxu0
    %4444 = vmatprep.subr.mxu0 %v4229
    %4445 = vmatpush1.msra.mxu0 %v4228
    %4446 = vmatprep.subr.mxu0 %v4221
    %4447 = vmatpush1.msra.mxu0 %v4220
    %4448 = vmatprep.subr.mxu0 %v4213
    %4449 = vmatpush1.msra.mxu0 %v4212
    %4450 = vmatprep.subr.mxu0 %v4205
    %4451 = vmatpush1.msra.mxu0 %v4204
    %4452 = vmatprep.subr.mxu0 %v4197
    %4453 = vmatpush1.msra.mxu0 %v4196
    %4454 = vmatprep.subr.mxu0 %v4189
    %4455 = vmatpush1.msra.mxu0 %v4188
    %4456 = vmatprep.subr.mxu0 %v4181
    %4457 = vmatpush1.msra.mxu0 %v4180
    %4458 = vmatprep.subr.mxu0 %v4173
    %4459 = vmatpush1.msra.mxu0 %v4172
    %4460 = vmatprep.subr.mxu0 %v4165
    %4461 = vmatpush1.msra.mxu0 %v4164
    %4462 = vmatprep.subr.mxu0 %v4157
    %4463 = vmatpush1.msra.mxu0 %v4156
    %4464 = vmatprep.subr.mxu0 %v4149
    %4465 = vmatpush1.msra.mxu0 %v4148
    %4466 = vmatprep.subr.mxu0 %v4141
    %4467 = vmatpush1.msra.mxu0 %v4140
    %4468 = vmatprep.subr.mxu0 %v4133
    %4469 = vmatpush1.msra.mxu0 %v4132
    %4470 = vmatprep.subr.mxu0 %v4125
    %4471 = vmatpush1.msra.mxu0 %v4124
    %4472 = vmatprep.subr.mxu0 %v4117
    %4473 = vmatpush1.msra.mxu0 %v4116
    %4474 = vmatprep.subr.mxu0 %v4109
    %4475 = vmatpush1.msra.mxu0 %v4108
    %4476 = vmatprep.subr.mxu0 %v4357
    %4477 = vmatpush2.msra.mxu0 %v4356
    %4478 = vmatprep.subr.mxu0 %v4349
    %4479 = vmatpush2.msra.mxu0 %v4348
    %4480 = vmatprep.subr.mxu0 %v4341
    %4481 = vmatpush2.msra.mxu0 %v4340
    %4482 = vmatprep.subr.mxu0 %v4333
    %4483 = vmatpush2.msra.mxu0 %v4332
    %4484 = vmatprep.subr.mxu0 %v4325
    %4485 = vmatpush2.msra.mxu0 %v4324
    %4486 = vmatprep.subr.mxu0 %v4317
    %4487 = vmatpush2.msra.mxu0 %v4316
    %4488 = vmatprep.subr.mxu0 %v4309
    %4489 = vmatpush2.msra.mxu0 %v4308
    %4490 = vmatprep.subr.mxu0 %v4301
    %4491 = vmatpush2.msra.mxu0 %v4300
    %4492 = vmatprep.subr.mxu0 %v4293
    %4493 = vmatpush2.msra.mxu0 %v4292
    %4494 = vmatprep.subr.mxu0 %v4285
    %4495 = vmatpush2.msra.mxu0 %v4284
    %4496 = vmatprep.subr.mxu0 %v4277
    %4497 = vmatpush2.msra.mxu0 %v4276
    %4498 = vmatprep.subr.mxu0 %v4269
    %4499 = vmatpush2.msra.mxu0 %v4268
    %4500 = vmatprep.subr.mxu0 %v4261
    %4501 = vmatpush2.msra.mxu0 %v4260
    %4502 = vmatprep.subr.mxu0 %v4253
    %4503 = vmatpush2.msra.mxu0 %v4252
    %4504 = vmatprep.subr.mxu0 %v4245
    %4505 = vmatpush2.msra.mxu0 %v4244
    %4506 = vmatprep.subr.mxu0 %v4237
    %4507 = vmatpush2.msra.mxu0 %v4236
    %4508 = vmatprep.mubr.f32.mxu0 %v4370
    %4509 = vmatmul.mubr.f32.gmra.mxu0 %v4369
    %v4510 = vpop.f32.mrf.mxu0
    %v4511 = vadd.f32 %v311, %v4510
    %v4512 = vpop.f32.mrf.mxu0
    %v4513 = vadd.f32 %v315, %v4512
    %4514 = vdwg.mxu0
    %4515 = vmatprep.subr.mxu0 %v4231
    %4516 = vmatpush1.msra.mxu0 %v4230
    %4517 = vmatprep.subr.mxu0 %v4223
    %4518 = vmatpush1.msra.mxu0 %v4222
    %4519 = vmatprep.subr.mxu0 %v4215
    %4520 = vmatpush1.msra.mxu0 %v4214
    %4521 = vmatprep.subr.mxu0 %v4207
    %4522 = vmatpush1.msra.mxu0 %v4206
    %4523 = vmatprep.subr.mxu0 %v4199
    %4524 = vmatpush1.msra.mxu0 %v4198
    %4525 = vmatprep.subr.mxu0 %v4191
    %4526 = vmatpush1.msra.mxu0 %v4190
    %4527 = vmatprep.subr.mxu0 %v4183
    %4528 = vmatpush1.msra.mxu0 %v4182
    %4529 = vmatprep.subr.mxu0 %v4175
    %4530 = vmatpush1.msra.mxu0 %v4174
    %4531 = vmatprep.subr.mxu0 %v4167
    %4532 = vmatpush1.msra.mxu0 %v4166
    %4533 = vmatprep.subr.mxu0 %v4159
    %4534 = vmatpush1.msra.mxu0 %v4158
    %4535 = vmatprep.subr.mxu0 %v4151
    %4536 = vmatpush1.msra.mxu0 %v4150
    %4537 = vmatprep.subr.mxu0 %v4143
    %4538 = vmatpush1.msra.mxu0 %v4142
    %4539 = vmatprep.subr.mxu0 %v4135
    %4540 = vmatpush1.msra.mxu0 %v4134
    %4541 = vmatprep.subr.mxu0 %v4127
    %4542 = vmatpush1.msra.mxu0 %v4126
    %4543 = vmatprep.subr.mxu0 %v4119
    %4544 = vmatpush1.msra.mxu0 %v4118
    %4545 = vmatprep.subr.mxu0 %v4111
    %4546 = vmatpush1.msra.mxu0 %v4110
    %4547 = vmatprep.subr.mxu0 %v4359
    %4548 = vmatpush2.msra.mxu0 %v4358
    %4549 = vmatprep.subr.mxu0 %v4351
    %4550 = vmatpush2.msra.mxu0 %v4350
    %4551 = vmatprep.subr.mxu0 %v4343
    %4552 = vmatpush2.msra.mxu0 %v4342
    %4553 = vmatprep.subr.mxu0 %v4335
    %4554 = vmatpush2.msra.mxu0 %v4334
    %4555 = vmatprep.subr.mxu0 %v4327
    %4556 = vmatpush2.msra.mxu0 %v4326
    %4557 = vmatprep.subr.mxu0 %v4319
    %4558 = vmatpush2.msra.mxu0 %v4318
    %4559 = vmatprep.subr.mxu0 %v4311
    %4560 = vmatpush2.msra.mxu0 %v4310
    %4561 = vmatprep.subr.mxu0 %v4303
    %4562 = vmatpush2.msra.mxu0 %v4302
    %4563 = vmatprep.subr.mxu0 %v4295
    %4564 = vmatpush2.msra.mxu0 %v4294
    %4565 = vmatprep.subr.mxu0 %v4287
    %4566 = vmatpush2.msra.mxu0 %v4286
    %4567 = vmatprep.subr.mxu0 %v4279
    %4568 = vmatpush2.msra.mxu0 %v4278
    %4569 = vmatprep.subr.mxu0 %v4271
    %4570 = vmatpush2.msra.mxu0 %v4270
    %4571 = vmatprep.subr.mxu0 %v4263
    %4572 = vmatpush2.msra.mxu0 %v4262
    %4573 = vmatprep.subr.mxu0 %v4255
    %4574 = vmatpush2.msra.mxu0 %v4254
    %4575 = vmatprep.subr.mxu0 %v4247
    %4576 = vmatpush2.msra.mxu0 %v4246
    %4577 = vmatprep.subr.mxu0 %v4239
    %4578 = vmatpush2.msra.mxu0 %v4238
    %4579 = vmatprep.mubr.f32.mxu0 %v4370
    %4580 = vmatmul.mubr.f32.gmra.mxu0 %v4369
    %v4581 = vpop.f32.mrf.mxu0
    %v4582 = vadd.f32 %v319, %v4581
    %v4583 = vpop.f32.mrf.mxu0
    %v4584 = vadd.f32 %v323, %v4583
    %4585 = vdwg.mxu0
    %4586 = vmatprep.subr.mxu0 %v4233
    %4587 = vmatpush1.msra.mxu0 %v4232
    %4588 = vmatprep.subr.mxu0 %v4225
    %4589 = vmatpush1.msra.mxu0 %v4224
    %4590 = vmatprep.subr.mxu0 %v4217
    %4591 = vmatpush1.msra.mxu0 %v4216
    %4592 = vmatprep.subr.mxu0 %v4209
    %4593 = vmatpush1.msra.mxu0 %v4208
    %4594 = vmatprep.subr.mxu0 %v4201
    %4595 = vmatpush1.msra.mxu0 %v4200
    %4596 = vmatprep.subr.mxu0 %v4193
    %4597 = vmatpush1.msra.mxu0 %v4192
    %4598 = vmatprep.subr.mxu0 %v4185
    %4599 = vmatpush1.msra.mxu0 %v4184
    %4600 = vmatprep.subr.mxu0 %v4177
    %4601 = vmatpush1.msra.mxu0 %v4176
    %4602 = vmatprep.subr.mxu0 %v4169
    %4603 = vmatpush1.msra.mxu0 %v4168
    %4604 = vmatprep.subr.mxu0 %v4161
    %4605 = vmatpush1.msra.mxu0 %v4160
    %4606 = vmatprep.subr.mxu0 %v4153
    %4607 = vmatpush1.msra.mxu0 %v4152
    %4608 = vmatprep.subr.mxu0 %v4145
    %4609 = vmatpush1.msra.mxu0 %v4144
    %4610 = vmatprep.subr.mxu0 %v4137
    %4611 = vmatpush1.msra.mxu0 %v4136
    %4612 = vmatprep.subr.mxu0 %v4129
    %4613 = vmatpush1.msra.mxu0 %v4128
    %4614 = vmatprep.subr.mxu0 %v4121
    %4615 = vmatpush1.msra.mxu0 %v4120
    %4616 = vmatprep.subr.mxu0 %v4113
    %4617 = vmatpush1.msra.mxu0 %v4112
    %4618 = vmatprep.subr.mxu0 %v4361
    %4619 = vmatpush2.msra.mxu0 %v4360
    %4620 = vmatprep.subr.mxu0 %v4353
    %4621 = vmatpush2.msra.mxu0 %v4352
    %4622 = vmatprep.subr.mxu0 %v4345
    %4623 = vmatpush2.msra.mxu0 %v4344
    %4624 = vmatprep.subr.mxu0 %v4337
    %4625 = vmatpush2.msra.mxu0 %v4336
    %4626 = vmatprep.subr.mxu0 %v4329
    %4627 = vmatpush2.msra.mxu0 %v4328
    %4628 = vmatprep.subr.mxu0 %v4321
    %4629 = vmatpush2.msra.mxu0 %v4320
    %4630 = vmatprep.subr.mxu0 %v4313
    %4631 = vmatpush2.msra.mxu0 %v4312
    %4632 = vmatprep.subr.mxu0 %v4305
    %4633 = vmatpush2.msra.mxu0 %v4304
    %4634 = vmatprep.subr.mxu0 %v4297
    %4635 = vmatpush2.msra.mxu0 %v4296
    %4636 = vmatprep.subr.mxu0 %v4289
    %4637 = vmatpush2.msra.mxu0 %v4288
    %4638 = vmatprep.subr.mxu0 %v4281
    %4639 = vmatpush2.msra.mxu0 %v4280
    %4640 = vmatprep.subr.mxu0 %v4273
    %4641 = vmatpush2.msra.mxu0 %v4272
    %4642 = vmatprep.subr.mxu0 %v4265
    %4643 = vmatpush2.msra.mxu0 %v4264
    %4644 = vmatprep.subr.mxu0 %v4257
    %4645 = vmatpush2.msra.mxu0 %v4256
    %4646 = vmatprep.subr.mxu0 %v4249
    %4647 = vmatpush2.msra.mxu0 %v4248
    %4648 = vmatprep.subr.mxu0 %v4241
    %4649 = vmatpush2.msra.mxu0 %v4240
    %4650 = vmatprep.mubr.f32.mxu0 %v4370
    %4651 = vmatmul.mubr.f32.gmra.mxu0 %v4369
    %v4652 = vpop.f32.mrf.mxu0
    %v4653 = vadd.f32 %v327, %v4652
    %v4654 = vpop.f32.mrf.mxu0
    %v4655 = vadd.f32 %v331, %v4654
    %4656 = vdwg.mxu0
    %v4657 = vxor.u32 %v4440, 2147483648
    %v4658 = vmul.f32 %v4657, 1.442695
    %v4659 = vpow.pop %v4658
    %v4660 = vadd.f32 %v4659, 1.0
    %v4661 = vrcp.pop %v4660
    %v4662 = vmul.f32 1.0, %v4661
    %v4663 = vxor.u32 %v4442, 2147483648
    %v4664 = vmul.f32 %v4663, 1.442695
    %v4665 = vpow.pop %v4664
    %v4666 = vadd.f32 %v4665, 1.0
    %v4667 = vrcp.pop %v4666
    %v4668 = vmul.f32 1.0, %v4667
    %v4669 = vmul.f32 %v4662, %v4513
    %v4670 = vadd.f32 %v4511, %v4669
    %v4671 = vtanh.pop %v4670
    %v4672 = vsub.f32 1.0, %v4668
    %v4673 = vmul.f32 %v4672, %v4671
    %v4674 = vmul.f32 %v4668, %v4049
    %v4675 = vadd.f32 %v4673, %v4674
    %4676 = vst [vmem:[#allocation2 + $0x2] sm:$0x3] %v4675
    %v4681 = vrot.slane %v4582, 2
    %v4682 = vrot.slane %v4584, 2
    %v4683 = vrot.slane %v4653, 2
    %v4684 = vrot.slane %v4655, 2
    %v4689 = vadd.f32 %v217, %v4681
    %v4690 = vadd.f32 %v219, %v4682
    %v4691 = vadd.f32 %v294, %v4683
    %v4692 = vadd.f32 %v296, %v4684
    %v4693 = vxor.u32 %v4689, 2147483648
    %v4694 = vmul.f32 %v4693, 1.442695
    %v4695 = vpow.pop %v4694
    %v4696 = vadd.f32 %v4695, 1.0
    %v4697 = vrcp.pop %v4696
    %v4698 = vmul.f32 1.0, %v4697
    %v4699 = vxor.u32 %v4690, 2147483648
    %v4700 = vmul.f32 %v4699, 1.442695
    %v4701 = vpow.pop %v4700
    %v4702 = vadd.f32 %v4701, 1.0
    %v4703 = vrcp.pop %v4702
    %v4704 = vmul.f32 1.0, %v4703
    %v4705 = vtanh.pop %v4691
    %v4706 = vxor.u32 %v4692, 2147483648
    %v4707 = vmul.f32 %v4706, 1.442695
    %v4708 = vpow.pop %v4707
    %v4709 = vadd.f32 %v4708, 1.0
    %v4710 = vrcp.pop %v4709
    %v4711 = vmul.f32 1.0, %v4710
    %v4713 = vrot.slane %v4091, 6
    %v4715 = vmul.f32 %v4704, %v4713
    %v4716 = vmul.f32 %v4698, %v4705
    %v4717 = vadd.f32 %v4715, %v4716
    %v4718 = vtanh.pop %v4717
    %v4719 = vmul.f32 %v4711, %v4718
    %v4721 = vcombine.high %v4719, %v4719
    %v4723 = vunpack.c.l.s4 1983009808
    %v4724 = vunpack.c.0.s8 %v4723
    %v4725 = vlaneseq
    %v4726 = vshrl.u32 %v4725, 7
    %v4727 = vsub.s32 %v4724, %v4726
    %v4728 = vrot.slane %v4721, %v4727
    %v4729 = vcombine.high %v4728, %v4728
    %4731 = vst [vmem:[#allocation2] sm:$0x3] %v4729
    %v4732 = vld [vmem:[#allocation2] sm:$0xf]
    %v4733 = vld [vmem:[#allocation9] sm:$0xff]
    %v4734 = vld [vmem:[#allocation9 + $0x8] sm:$0xff]
    %v4735 = vld [vmem:[#allocation9 + $0x10] sm:$0xff]
    %v4736 = vld [vmem:[#allocation9 + $0x18] sm:$0xff]
    %v4737 = vld [vmem:[#allocation9 + $0x40] sm:$0xff]
    %v4738 = vld [vmem:[#allocation9 + $0x48] sm:$0xff]
    %v4739 = vld [vmem:[#allocation9 + $0x50] sm:$0xff]
    %v4740 = vld [vmem:[#allocation9 + $0x58] sm:$0xff]
    %v4741 = vld [vmem:[#allocation9 + $0x80] sm:$0xff]
    %v4742 = vld [vmem:[#allocation9 + $0x88] sm:$0xff]
    %v4743 = vld [vmem:[#allocation9 + $0x90] sm:$0xff]
    %v4744 = vld [vmem:[#allocation9 + $0x98] sm:$0xff]
    %v4745 = vld [vmem:[#allocation9 + $0xc0] sm:$0xff]
    %v4746 = vld [vmem:[#allocation9 + $0xc8] sm:$0xff]
    %v4747 = vld [vmem:[#allocation9 + $0xd0] sm:$0xff]
    %v4748 = vld [vmem:[#allocation9 + $0xd8] sm:$0xff]
    %v4749 = vld [vmem:[#allocation9 + $0x100] sm:$0xff]
    %v4750 = vld [vmem:[#allocation9 + $0x108] sm:$0xff]
    %v4751 = vld [vmem:[#allocation9 + $0x110] sm:$0xff]
    %v4752 = vld [vmem:[#allocation9 + $0x118] sm:$0xff]
    %v4753 = vld [vmem:[#allocation9 + $0x140] sm:$0xff]
    %v4754 = vld [vmem:[#allocation9 + $0x148] sm:$0xff]
    %v4755 = vld [vmem:[#allocation9 + $0x150] sm:$0xff]
    %v4756 = vld [vmem:[#allocation9 + $0x158] sm:$0xff]
    %v4757 = vld [vmem:[#allocation9 + $0x180] sm:$0xff]
    %v4758 = vld [vmem:[#allocation9 + $0x188] sm:$0xff]
    %v4759 = vld [vmem:[#allocation9 + $0x190] sm:$0xff]
    %v4760 = vld [vmem:[#allocation9 + $0x198] sm:$0xff]
    %v4761 = vld [vmem:[#allocation9 + $0x1c0] sm:$0xff]
    %v4762 = vld [vmem:[#allocation9 + $0x1c8] sm:$0xff]
    %v4763 = vld [vmem:[#allocation9 + $0x1d0] sm:$0xff]
    %v4764 = vld [vmem:[#allocation9 + $0x1d8] sm:$0xff]
    %v4765 = vld [vmem:[#allocation9 + $0x200] sm:$0xff]
    %v4766 = vld [vmem:[#allocation9 + $0x208] sm:$0xff]
    %v4767 = vld [vmem:[#allocation9 + $0x210] sm:$0xff]
    %v4768 = vld [vmem:[#allocation9 + $0x218] sm:$0xff]
    %v4769 = vld [vmem:[#allocation9 + $0x240] sm:$0xff]
    %v4770 = vld [vmem:[#allocation9 + $0x248] sm:$0xff]
    %v4771 = vld [vmem:[#allocation9 + $0x250] sm:$0xff]
    %v4772 = vld [vmem:[#allocation9 + $0x258] sm:$0xff]
    %v4773 = vld [vmem:[#allocation9 + $0x280] sm:$0xff]
    %v4774 = vld [vmem:[#allocation9 + $0x288] sm:$0xff]
    %v4775 = vld [vmem:[#allocation9 + $0x290] sm:$0xff]
    %v4776 = vld [vmem:[#allocation9 + $0x298] sm:$0xff]
    %v4777 = vld [vmem:[#allocation9 + $0x2c0] sm:$0xff]
    %v4778 = vld [vmem:[#allocation9 + $0x2c8] sm:$0xff]
    %v4779 = vld [vmem:[#allocation9 + $0x2d0] sm:$0xff]
    %v4780 = vld [vmem:[#allocation9 + $0x2d8] sm:$0xff]
    %v4781 = vld [vmem:[#allocation9 + $0x300] sm:$0xff]
    %v4782 = vld [vmem:[#allocation9 + $0x308] sm:$0xff]
    %v4783 = vld [vmem:[#allocation9 + $0x310] sm:$0xff]
    %v4784 = vld [vmem:[#allocation9 + $0x318] sm:$0xff]
    %v4785 = vld [vmem:[#allocation9 + $0x340] sm:$0xff]
    %v4786 = vld [vmem:[#allocation9 + $0x348] sm:$0xff]
    %v4787 = vld [vmem:[#allocation9 + $0x350] sm:$0xff]
    %v4788 = vld [vmem:[#allocation9 + $0x358] sm:$0xff]
    %v4789 = vld [vmem:[#allocation9 + $0x380] sm:$0xff]
    %v4790 = vld [vmem:[#allocation9 + $0x388] sm:$0xff]
    %v4791 = vld [vmem:[#allocation9 + $0x390] sm:$0xff]
    %v4792 = vld [vmem:[#allocation9 + $0x398] sm:$0xff]
    %v4793 = vld [vmem:[#allocation9 + $0x3c0] sm:$0xff]
    %v4794 = vld [vmem:[#allocation9 + $0x3c8] sm:$0xff]
    %v4795 = vld [vmem:[#allocation9 + $0x3d0] sm:$0xff]
    %v4796 = vld [vmem:[#allocation9 + $0x3d8] sm:$0xff]
    %v4797 = vld [vmem:[#allocation9 + $0x400] sm:$0xff]
    %v4798 = vld [vmem:[#allocation9 + $0x408] sm:$0xff]
    %v4799 = vld [vmem:[#allocation9 + $0x410] sm:$0xff]
    %v4800 = vld [vmem:[#allocation9 + $0x418] sm:$0xff]
    %v4801 = vld [vmem:[#allocation9 + $0x440] sm:$0xff]
    %v4802 = vld [vmem:[#allocation9 + $0x448] sm:$0xff]
    %v4803 = vld [vmem:[#allocation9 + $0x450] sm:$0xff]
    %v4804 = vld [vmem:[#allocation9 + $0x458] sm:$0xff]
    %v4805 = vld [vmem:[#allocation9 + $0x480] sm:$0xff]
    %v4806 = vld [vmem:[#allocation9 + $0x488] sm:$0xff]
    %v4807 = vld [vmem:[#allocation9 + $0x490] sm:$0xff]
    %v4808 = vld [vmem:[#allocation9 + $0x498] sm:$0xff]
    %v4809 = vld [vmem:[#allocation9 + $0x4c0] sm:$0xff]
    %v4810 = vld [vmem:[#allocation9 + $0x4c8] sm:$0xff]
    %v4811 = vld [vmem:[#allocation9 + $0x4d0] sm:$0xff]
    %v4812 = vld [vmem:[#allocation9 + $0x4d8] sm:$0xff]
    %v4813 = vld [vmem:[#allocation9 + $0x500] sm:$0xff]
    %v4814 = vld [vmem:[#allocation9 + $0x508] sm:$0xff]
    %v4815 = vld [vmem:[#allocation9 + $0x510] sm:$0xff]
    %v4816 = vld [vmem:[#allocation9 + $0x518] sm:$0xff]
    %v4817 = vld [vmem:[#allocation9 + $0x540] sm:$0xff]
    %v4818 = vld [vmem:[#allocation9 + $0x548] sm:$0xff]
    %v4819 = vld [vmem:[#allocation9 + $0x550] sm:$0xff]
    %v4820 = vld [vmem:[#allocation9 + $0x558] sm:$0xff]
    %v4821 = vld [vmem:[#allocation9 + $0x580] sm:$0xff]
    %v4822 = vld [vmem:[#allocation9 + $0x588] sm:$0xff]
    %v4823 = vld [vmem:[#allocation9 + $0x590] sm:$0xff]
    %v4824 = vld [vmem:[#allocation9 + $0x598] sm:$0xff]
    %v4825 = vld [vmem:[#allocation9 + $0x5c0] sm:$0xff]
    %v4826 = vld [vmem:[#allocation9 + $0x5c8] sm:$0xff]
    %v4827 = vld [vmem:[#allocation9 + $0x5d0] sm:$0xff]
    %v4828 = vld [vmem:[#allocation9 + $0x5d8] sm:$0xff]
    %v4829 = vld [vmem:[#allocation9 + $0x600] sm:$0xff]
    %v4830 = vld [vmem:[#allocation9 + $0x608] sm:$0xff]
    %v4831 = vld [vmem:[#allocation9 + $0x610] sm:$0xff]
    %v4832 = vld [vmem:[#allocation9 + $0x618] sm:$0xff]
    %v4833 = vld [vmem:[#allocation9 + $0x640] sm:$0xff]
    %v4834 = vld [vmem:[#allocation9 + $0x648] sm:$0xff]
    %v4835 = vld [vmem:[#allocation9 + $0x650] sm:$0xff]
    %v4836 = vld [vmem:[#allocation9 + $0x658] sm:$0xff]
    %v4837 = vld [vmem:[#allocation9 + $0x680] sm:$0xff]
    %v4838 = vld [vmem:[#allocation9 + $0x688] sm:$0xff]
    %v4839 = vld [vmem:[#allocation9 + $0x690] sm:$0xff]
    %v4840 = vld [vmem:[#allocation9 + $0x698] sm:$0xff]
    %v4841 = vld [vmem:[#allocation9 + $0x6c0] sm:$0xff]
    %v4842 = vld [vmem:[#allocation9 + $0x6c8] sm:$0xff]
    %v4843 = vld [vmem:[#allocation9 + $0x6d0] sm:$0xff]
    %v4844 = vld [vmem:[#allocation9 + $0x6d8] sm:$0xff]
    %v4845 = vld [vmem:[#allocation9 + $0x700] sm:$0xff]
    %v4846 = vld [vmem:[#allocation9 + $0x708] sm:$0xff]
    %v4847 = vld [vmem:[#allocation9 + $0x710] sm:$0xff]
    %v4848 = vld [vmem:[#allocation9 + $0x718] sm:$0xff]
    %v4849 = vld [vmem:[#allocation9 + $0x740] sm:$0xff]
    %v4850 = vld [vmem:[#allocation9 + $0x748] sm:$0xff]
    %v4851 = vld [vmem:[#allocation9 + $0x750] sm:$0xff]
    %v4852 = vld [vmem:[#allocation9 + $0x758] sm:$0xff]
    %v4853 = vld [vmem:[#allocation9 + $0x780] sm:$0xff]
    %v4854 = vld [vmem:[#allocation9 + $0x788] sm:$0xff]
    %v4855 = vld [vmem:[#allocation9 + $0x790] sm:$0xff]
    %v4856 = vld [vmem:[#allocation9 + $0x798] sm:$0xff]
    %v4857 = vld [vmem:[#allocation9 + $0x7c0] sm:$0xff]
    %v4858 = vld [vmem:[#allocation9 + $0x7c8] sm:$0xff]
    %v4859 = vld [vmem:[#allocation9 + $0x7d0] sm:$0xff]
    %v4860 = vld [vmem:[#allocation9 + $0x7d8] sm:$0xff]
    %v4863 = vunpack.c.l.s4 1983009808
    %v4864 = vunpack.c.0.s8 %v4863
    %v4865 = vlaneseq
    %v4866 = vshrl.u32 %v4865, 7
    %v4867 = vsub.s32 %v4864, %v4866
    %v4868 = vrot.slane %v4732, %v4867
    %v4869 = vcombine.high %v4868, %v4868
    %4872 = vmatprep.subr.mxu0 %v4794
    %4873 = vmatpush1.msra.mxu0 %v4793
    %4874 = vmatprep.subr.mxu0 %v4790
    %4875 = vmatpush1.msra.mxu0 %v4789
    %4876 = vmatprep.subr.mxu0 %v4786
    %4877 = vmatpush1.msra.mxu0 %v4785
    %4878 = vmatprep.subr.mxu0 %v4782
    %4879 = vmatpush1.msra.mxu0 %v4781
    %4880 = vmatprep.subr.mxu0 %v4778
    %4881 = vmatpush1.msra.mxu0 %v4777
    %4882 = vmatprep.subr.mxu0 %v4774
    %4883 = vmatpush1.msra.mxu0 %v4773
    %4884 = vmatprep.subr.mxu0 %v4770
    %4885 = vmatpush1.msra.mxu0 %v4769
    %4886 = vmatprep.subr.mxu0 %v4766
    %4887 = vmatpush1.msra.mxu0 %v4765
    %4888 = vmatprep.subr.mxu0 %v4762
    %4889 = vmatpush1.msra.mxu0 %v4761
    %4890 = vmatprep.subr.mxu0 %v4758
    %4891 = vmatpush1.msra.mxu0 %v4757
    %4892 = vmatprep.subr.mxu0 %v4754
    %4893 = vmatpush1.msra.mxu0 %v4753
    %4894 = vmatprep.subr.mxu0 %v4750
    %4895 = vmatpush1.msra.mxu0 %v4749
    %4896 = vmatprep.subr.mxu0 %v4746
    %4897 = vmatpush1.msra.mxu0 %v4745
    %4898 = vmatprep.subr.mxu0 %v4742
    %4899 = vmatpush1.msra.mxu0 %v4741
    %4900 = vmatprep.subr.mxu0 %v4738
    %4901 = vmatpush1.msra.mxu0 %v4737
    %4902 = vmatprep.subr.mxu0 %v4734
    %4903 = vmatpush1.msra.mxu0 %v4733
    %4904 = vmatprep.subr.mxu0 %v4858
    %4905 = vmatpush2.msra.mxu0 %v4857
    %4906 = vmatprep.subr.mxu0 %v4854
    %4907 = vmatpush2.msra.mxu0 %v4853
    %4908 = vmatprep.subr.mxu0 %v4850
    %4909 = vmatpush2.msra.mxu0 %v4849
    %4910 = vmatprep.subr.mxu0 %v4846
    %4911 = vmatpush2.msra.mxu0 %v4845
    %4912 = vmatprep.subr.mxu0 %v4842
    %4913 = vmatpush2.msra.mxu0 %v4841
    %4914 = vmatprep.subr.mxu0 %v4838
    %4915 = vmatpush2.msra.mxu0 %v4837
    %4916 = vmatprep.subr.mxu0 %v4834
    %4917 = vmatpush2.msra.mxu0 %v4833
    %4918 = vmatprep.subr.mxu0 %v4830
    %4919 = vmatpush2.msra.mxu0 %v4829
    %4920 = vmatprep.subr.mxu0 %v4826
    %4921 = vmatpush2.msra.mxu0 %v4825
    %4922 = vmatprep.subr.mxu0 %v4822
    %4923 = vmatpush2.msra.mxu0 %v4821
    %4924 = vmatprep.subr.mxu0 %v4818
    %4925 = vmatpush2.msra.mxu0 %v4817
    %4926 = vmatprep.subr.mxu0 %v4814
    %4927 = vmatpush2.msra.mxu0 %v4813
    %4928 = vmatprep.subr.mxu0 %v4810
    %4929 = vmatpush2.msra.mxu0 %v4809
    %4930 = vmatprep.subr.mxu0 %v4806
    %4931 = vmatpush2.msra.mxu0 %v4805
    %4932 = vmatprep.subr.mxu0 %v4802
    %4933 = vmatpush2.msra.mxu0 %v4801
    %4934 = vmatprep.subr.mxu0 %v4798
    %4935 = vmatpush2.msra.mxu0 %v4797
    %4936 = vmatprep.mubr.f32.mxu0 %v4869
    %4937 = vmatmul.mubr.f32.gmra.mxu0 %v4868
    %v4938 = vpop.f32.mrf.mxu0
    %v4939 = vadd.f32 %v303, %v4938
    %v4940 = vpop.f32.mrf.mxu0
    %v4941 = vadd.f32 %v307, %v4940
    %4942 = vdwg.mxu0
    %4943 = vmatprep.subr.mxu0 %v4796
    %4944 = vmatpush1.msra.mxu0 %v4795
    %4945 = vmatprep.subr.mxu0 %v4792
    %4946 = vmatpush1.msra.mxu0 %v4791
    %4947 = vmatprep.subr.mxu0 %v4788
    %4948 = vmatpush1.msra.mxu0 %v4787
    %4949 = vmatprep.subr.mxu0 %v4784
    %4950 = vmatpush1.msra.mxu0 %v4783
    %4951 = vmatprep.subr.mxu0 %v4780
    %4952 = vmatpush1.msra.mxu0 %v4779
    %4953 = vmatprep.subr.mxu0 %v4776
    %4954 = vmatpush1.msra.mxu0 %v4775
    %4955 = vmatprep.subr.mxu0 %v4772
    %4956 = vmatpush1.msra.mxu0 %v4771
    %4957 = vmatprep.subr.mxu0 %v4768
    %4958 = vmatpush1.msra.mxu0 %v4767
    %4959 = vmatprep.subr.mxu0 %v4764
    %4960 = vmatpush1.msra.mxu0 %v4763
    %4961 = vmatprep.subr.mxu0 %v4760
    %4962 = vmatpush1.msra.mxu0 %v4759
    %4963 = vmatprep.subr.mxu0 %v4756
    %4964 = vmatpush1.msra.mxu0 %v4755
    %4965 = vmatprep.subr.mxu0 %v4752
    %4966 = vmatpush1.msra.mxu0 %v4751
    %4967 = vmatprep.subr.mxu0 %v4748
    %4968 = vmatpush1.msra.mxu0 %v4747
    %4969 = vmatprep.subr.mxu0 %v4744
    %4970 = vmatpush1.msra.mxu0 %v4743
    %4971 = vmatprep.subr.mxu0 %v4740
    %4972 = vmatpush1.msra.mxu0 %v4739
    %4973 = vmatprep.subr.mxu0 %v4736
    %4974 = vmatpush1.msra.mxu0 %v4735
    %4975 = vmatprep.subr.mxu0 %v4860
    %4976 = vmatpush2.msra.mxu0 %v4859
    %4977 = vmatprep.subr.mxu0 %v4856
    %4978 = vmatpush2.msra.mxu0 %v4855
    %4979 = vmatprep.subr.mxu0 %v4852
    %4980 = vmatpush2.msra.mxu0 %v4851
    %4981 = vmatprep.subr.mxu0 %v4848
    %4982 = vmatpush2.msra.mxu0 %v4847
    %4983 = vmatprep.subr.mxu0 %v4844
    %4984 = vmatpush2.msra.mxu0 %v4843
    %4985 = vmatprep.subr.mxu0 %v4840
    %4986 = vmatpush2.msra.mxu0 %v4839
    %4987 = vmatprep.subr.mxu0 %v4836
    %4988 = vmatpush2.msra.mxu0 %v4835
    %4989 = vmatprep.subr.mxu0 %v4832
    %4990 = vmatpush2.msra.mxu0 %v4831
    %4991 = vmatprep.subr.mxu0 %v4828
    %4992 = vmatpush2.msra.mxu0 %v4827
    %4993 = vmatprep.subr.mxu0 %v4824
    %4994 = vmatpush2.msra.mxu0 %v4823
    %4995 = vmatprep.subr.mxu0 %v4820
    %4996 = vmatpush2.msra.mxu0 %v4819
    %4997 = vmatprep.subr.mxu0 %v4816
    %4998 = vmatpush2.msra.mxu0 %v4815
    %4999 = vmatprep.subr.mxu0 %v4812
    %5000 = vmatpush2.msra.mxu0 %v4811
    %5001 = vmatprep.subr.mxu0 %v4808
    %5002 = vmatpush2.msra.mxu0 %v4807
    %5003 = vmatprep.subr.mxu0 %v4804
    %5004 = vmatpush2.msra.mxu0 %v4803
    %5005 = vmatprep.subr.mxu0 %v4800
    %5006 = vmatpush2.msra.mxu0 %v4799
    %5007 = vmatprep.mubr.f32.mxu0 %v4869
    %5008 = vmatmul.mubr.f32.gmra.mxu0 %v4868
    %v5009 = vpop.f32.mrf.mxu0
    %v5010 = vadd.f32 %v311, %v5009
    %v5011 = vpop.f32.mrf.mxu0
    %v5012 = vadd.f32 %v315, %v5011
    %5013 = vdwg.mxu0
    %v5014 = vxor.u32 %v4939, 2147483648
    %v5015 = vmul.f32 %v5014, 1.442695
    %v5016 = vpow.pop %v5015
    %v5017 = vadd.f32 %v5016, 1.0
    %v5018 = vrcp.pop %v5017
    %v5019 = vmul.f32 1.0, %v5018
    %v5020 = vxor.u32 %v4941, 2147483648
    %v5021 = vmul.f32 %v5020, 1.442695
    %v5022 = vpow.pop %v5021
    %v5023 = vadd.f32 %v5022, 1.0
    %v5024 = vrcp.pop %v5023
    %v5025 = vmul.f32 1.0, %v5024
    %v5026 = vmul.f32 %v5019, %v5012
    %v5027 = vadd.f32 %v5010, %v5026
    %v5028 = vtanh.pop %v5027
    %v5029 = vsub.f32 1.0, %v5025
    %v5030 = vmul.f32 %v5029, %v5028
    %v5031 = vmul.f32 %v5025, %v4675
    %v5032 = vadd.f32 %v5030, %v5031
    %v5033 = vld [vmem:[#allocation12] sm:$0xff]
    %v5034 = vld [vmem:[#allocation12 + $0x8] sm:$0xff]
    %v5035 = vld [vmem:[#allocation12 + $0x10] sm:$0xff]
    %v5036 = vld [vmem:[#allocation12 + $0x18] sm:$0xff]
    %v5037 = vld [vmem:[#allocation12 + $0x20] sm:$0xff]
    %v5038 = vld [vmem:[#allocation12 + $0x28] sm:$0xff]
    %v5039 = vld [vmem:[#allocation12 + $0x30] sm:$0xff]
    %v5040 = vld [vmem:[#allocation12 + $0x38] sm:$0xff]
    %v5041 = vld [vmem:[#allocation12 + $0x40] sm:$0xff]
    %v5042 = vld [vmem:[#allocation12 + $0x48] sm:$0xff]
    %v5043 = vld [vmem:[#allocation12 + $0x50] sm:$0xff]
    %v5044 = vld [vmem:[#allocation12 + $0x58] sm:$0xff]
    %v5045 = vld [vmem:[#allocation12 + $0x60] sm:$0xff]
    %v5046 = vld [vmem:[#allocation12 + $0x68] sm:$0xff]
    %v5047 = vld [vmem:[#allocation12 + $0x70] sm:$0xff]
    %v5048 = vld [vmem:[#allocation12 + $0x78] sm:$0xff]
    %v5049 = vld [vmem:[%s6] sm:$0x1]
    %v5051 = vlaneseq
    %v5052 = vshrl.u32 %v5051, 7
    %v5053 = vsub.s32 0, %v5052
    %v5054 = vrot.slane %v5049, %v5053
    %5056 = vmatprep.subr.mxu0 0.0
    %5057 = vmatpush1.msra.mxu0 %v5048
    %5058 = vmatprep.subr.mxu0 0.0
    %5059 = vmatpush1.msra.mxu0 %v5047
    %5060 = vmatprep.subr.mxu0 0.0
    %5061 = vmatpush1.msra.mxu0 %v5046
    %5062 = vmatprep.subr.mxu0 0.0
    %5063 = vmatpush1.msra.mxu0 %v5045
    %5064 = vmatprep.subr.mxu0 0.0
    %5065 = vmatpush1.msra.mxu0 %v5044
    %5066 = vmatprep.subr.mxu0 0.0
    %5067 = vmatpush1.msra.mxu0 %v5043
    %5068 = vmatprep.subr.mxu0 0.0
    %5069 = vmatpush1.msra.mxu0 %v5042
    %5070 = vmatprep.subr.mxu0 0.0
    %5071 = vmatpush1.msra.mxu0 %v5041
    %5072 = vmatprep.subr.mxu0 0.0
    %5073 = vmatpush1.msra.mxu0 %v5040
    %5074 = vmatprep.subr.mxu0 0.0
    %5075 = vmatpush1.msra.mxu0 %v5039
    %5076 = vmatprep.subr.mxu0 0.0
    %5077 = vmatpush1.msra.mxu0 %v5038
    %5078 = vmatprep.subr.mxu0 0.0
    %5079 = vmatpush1.msra.mxu0 %v5037
    %5080 = vmatprep.subr.mxu0 0.0
    %5081 = vmatpush1.msra.mxu0 %v5036
    %5082 = vmatprep.subr.mxu0 0.0
    %5083 = vmatpush1.msra.mxu0 %v5035
    %5084 = vmatprep.subr.mxu0 0.0
    %5085 = vmatpush1.msra.mxu0 %v5034
    %5086 = vmatprep.subr.mxu0 0.0
    %5087 = vmatpush1.msra.mxu0 %v5033
    %5088 = vmatprep.subr.mxu0 0.0
    %5089 = vmatpush2.msra.mxu0 0.0
    %5090 = vmatprep.subr.mxu0 0.0
    %5091 = vmatpush2.msra.mxu0 0.0
    %5092 = vmatprep.subr.mxu0 0.0
    %5093 = vmatpush2.msra.mxu0 0.0
    %5094 = vmatprep.subr.mxu0 0.0
    %5095 = vmatpush2.msra.mxu0 0.0
    %5096 = vmatprep.subr.mxu0 0.0
    %5097 = vmatpush2.msra.mxu0 0.0
    %5098 = vmatprep.subr.mxu0 0.0
    %5099 = vmatpush2.msra.mxu0 0.0
    %5100 = vmatprep.subr.mxu0 0.0
    %5101 = vmatpush2.msra.mxu0 0.0
    %5102 = vmatprep.subr.mxu0 0.0
    %5103 = vmatpush2.msra.mxu0 0.0
    %5104 = vmatprep.subr.mxu0 0.0
    %5105 = vmatpush2.msra.mxu0 0.0
    %5106 = vmatprep.subr.mxu0 0.0
    %5107 = vmatpush2.msra.mxu0 0.0
    %5108 = vmatprep.subr.mxu0 0.0
    %5109 = vmatpush2.msra.mxu0 0.0
    %5110 = vmatprep.subr.mxu0 0.0
    %5111 = vmatpush2.msra.mxu0 0.0
    %5112 = vmatprep.subr.mxu0 0.0
    %5113 = vmatpush2.msra.mxu0 0.0
    %5114 = vmatprep.subr.mxu0 0.0
    %5115 = vmatpush2.msra.mxu0 0.0
    %5116 = vmatprep.subr.mxu0 0.0
    %5117 = vmatpush2.msra.mxu0 0.0
    %5118 = vmatprep.subr.mxu0 0.0
    %5119 = vmatpush2.msra.mxu0 0.0
    %5120 = vmatprep.mubr.f32.mxu0 0.0
    %5121 = vmatmul.mubr.f32.gmra.mxu0 %v5032
    %v5122 = vpop.f32.mrf.mxu0
    %v5123 = vadd.f32 %v5054, %v5122
    %v5124 = vpop.f32.mrf.mxu0
    %5125 = vdwg.mxu0
    %5126 = vst [vmem:[#allocation14] sm:$0x3] %v5123
    // Predicated region
    $region54: #{tpu_custom_call.1} parent=1 // pred_check
      _
    $region55: #{tpu_custom_call.1} parent=1 // pred_check_branch
      %5128 = sbr.rel (0) target = $region57
    $region56: #{tpu_custom_call.1} parent=1 // pred_region
      %s5130 = ssub.s32 32, 32
      %5131 = vsyncadd [#allocation5], %s5130
      %s5133 = sshll.u32 [#allocation14], 4
      %s5134 = int_to_ptr.vmem [resolvable:$true] %s5133
      %5136 = dma.vmem_to_hbm [thread:$0]  %s5134, 32, %s7, [#allocation5]
    $region57: #{tpu_custom_call.1} parent=1 // pred_fallthru
      _
    // Predicated region
    $region58: #{tpu_custom_call.1} parent=1 // pred_check
      _
    $region59: #{tpu_custom_call.1} parent=1 // pred_check_branch
      %5138 = sbr.rel (0) target = $region61
    $region60: #{tpu_custom_call.1} parent=1 // pred_region
      %5139 = dma.done [#allocation5], 32
    $region61: #{tpu_custom_call.1} parent=1 // pred_fallthru
      _
    %5140 = vsyncpa [#allocation4], 1
    %5141 = vsyncpa [#allocation7], 1
    %5142 = vsyncpa [#allocation10], 1
    %5143 = vsyncpa [#allocation13], 1
    %5144 = vsyncpa [#allocation5], 1

</llo_original>
